<compile_context>
chip_gen: v5e
topology: v5e:2x2
jax: 0.10.0
libtpu: 0.0.40
codegen_flags: <defaults>
</compile_context>

<pallas_src>
import functools

import jax
import jax.numpy as jnp
from jax.experimental import pallas as pl
from jax.experimental.pallas import tpu as pltpu

HIDDEN = (1024, 512, 1024, 512)
LANE = 128


def _round_up(x, m):
    return (x + m - 1) // m * m


def _cdiv(a, b):
    return -(-a // b)


def mlp_kernel(x_ref,
               w1_ref, b1_ref,
               w2_ref, b2_ref,
               w3_ref, b3_ref,
               w4_ref, b4_ref,
               w5_ref, b5_ref,
               out_ref):
    """Fused 5-layer MLP: bf16 activations/weights on the MXU, f32 accumulate."""
    h = x_ref[...]                                      # bf16 (TB, in_pad)
    h = jnp.dot(h, w1_ref[...], preferred_element_type=jnp.float32) + b1_ref[...]
    h = jnp.maximum(h, 0.0).astype(jnp.bfloat16)
    h = jnp.dot(h, w2_ref[...], preferred_element_type=jnp.float32) + b2_ref[...]
    h = jnp.maximum(h, 0.0).astype(jnp.bfloat16)
    h = jnp.dot(h, w3_ref[...], preferred_element_type=jnp.float32) + b3_ref[...]
    h = jnp.maximum(h, 0.0).astype(jnp.bfloat16)
    h = jnp.dot(h, w4_ref[...], preferred_element_type=jnp.float32) + b4_ref[...]
    h = jnp.maximum(h, 0.0).astype(jnp.bfloat16)
    out_ref[...] = (
        jnp.dot(h, w5_ref[...], preferred_element_type=jnp.float32) + b5_ref[...])


def init_params(key, state_size, action_size):
    """PyTorch-style uniform(+/- 1/sqrt(fan_in)) init. Torch layout:
    W is (out, in), b is (out,)."""
    dims = (state_size,) + HIDDEN + (action_size,)
    params = []
    for i in range(5):
        fan_in, fan_out = dims[i], dims[i + 1]
        key, kw, kb = jax.random.split(key, 3)
        bound = 1.0 / (fan_in ** 0.5)
        W = jax.random.uniform(kw, (fan_out, fan_in), jnp.float32, -bound, bound)
        b = jax.random.uniform(kb, (fan_out,), jnp.float32, -bound, bound)
        params.append((W, b))
    return params


def prepare_params(params):
    """One-time conversion from torch layout to kernel layout.

    * transpose W to (in, out)
    * zero-pad first layer's in-dim and last layer's out-dim to 128 lanes
    * weights -> bf16, biases -> f32 with shape (1, out)
    Returns a flat tuple (W1, b1, ..., W5, b5).
    """
    n = len(params)
    prepared = []
    for i, (W, b) in enumerate(params):
        Wt = W.T.astype(jnp.float32)            # (in, out)
        bt = b.astype(jnp.float32)[None, :]     # (1, out)
        if i == 0:
            in_pad = _round_up(Wt.shape[0], LANE)
            Wt = jnp.pad(Wt, ((0, in_pad - Wt.shape[0]), (0, 0)))
        if i == n - 1:
            out_pad = _round_up(Wt.shape[1], LANE)
            Wt = jnp.pad(Wt, ((0, 0), (0, out_pad - Wt.shape[1])))
            bt = jnp.pad(bt, ((0, 0), (0, out_pad - bt.shape[1])))
        prepared.append(Wt.astype(jnp.bfloat16))
        prepared.append(bt)
    return tuple(prepared)


def _choose_batch_tile(batch, block_batch):
    """Balanced batch tiling.

    * at least ceil(batch / block_batch) tiles (VMEM cap on the tile size),
    * at least 2 tiles once batch > 128 so both v7x TensorCores get work,
    * tile is a multiple of 8 (sublane) sized so the last tile is not mostly
      zero padding (e.g. batch=260 -> 2 tiles of 136, not 256 + 252 pad rows).
    """
    n_tiles = max(1, _cdiv(batch, block_batch))
    if batch > 128 and n_tiles < 2:
        n_tiles = 2
    tb = _round_up(_cdiv(batch, n_tiles), 8)
    padded_batch = _round_up(batch, tb)
    return tb, padded_batch


@functools.partial(
    jax.jit,
    static_argnames=("action_size", "block_batch", "single_buffer_weights"))
def _forward(state, flat_args, action_size, block_batch, single_buffer_weights):
    batch, state_size = state.shape
    in_pad = flat_args[0].shape[0]     # padded input feature dim (>= state_size)
    out_pad = flat_args[-1].shape[1]   # padded output dim (>= action_size)

    tb, padded_batch = _choose_batch_tile(batch, block_batch)

    # Pad input rows/features with zeros and cast to bf16 for the MXU.
    x = state.astype(jnp.bfloat16)
    x = jnp.pad(x, ((0, padded_batch - batch), (0, in_pad - state_size)))

    grid = (padded_batch // tb,)

    # Activations stream over the batch grid; weights/biases use a constant
    # index_map so they are DMA'd once and stay VMEM-resident.  Single-buffer
    # them (Buffered(1)) so no useless second copy (~3.4 MiB) is allocated.
    if single_buffer_weights:
        def w_spec(a):
            return pl.BlockSpec(a.shape, lambda i: (0, 0),
                                pipeline_mode=pl.Buffered(1))
    else:
        def w_spec(a):
            return pl.BlockSpec(a.shape, lambda i: (0, 0))

    in_specs = [pl.BlockSpec((tb, in_pad), lambda i: (i, 0))]
    in_specs += [w_spec(a) for a in flat_args]

    out = pl.pallas_call(
        mlp_kernel,
        out_shape=jax.ShapeDtypeStruct((padded_batch, out_pad), jnp.float32),
        grid=grid,
        in_specs=in_specs,
        out_specs=pl.BlockSpec((tb, out_pad), lambda i: (i, 0)),
        compiler_params=pltpu.CompilerParams(
            dimension_semantics=("parallel",),
            vmem_limit_bytes=48 << 20,
        ),
    )(x, *flat_args)

    return out[:batch, :action_size]


# Cached capability: does this JAX build accept pipeline_mode=pl.Buffered(1)?
_BUFFERED_OK = None


def policy_network_forward(state, flat_args, action_size, block_batch=512):
    """Runs the fused MLP Pallas kernel.

    state:     (batch, state_size) f32
    flat_args: output of prepare_params()
    """
    global _BUFFERED_OK
    if _BUFFERED_OK is not False:
        try:
            out = _forward(state, flat_args, action_size, block_batch, True)
            _BUFFERED_OK = True
            return out
        except Exception:
            if _BUFFERED_OK:
                raise          # Buffered(1) worked before -> real error, surface it.
            _BUFFERED_OK = False   # Not supported here; fall back once, remember.
    return _forward(state, flat_args, action_size, block_batch, False)


def reference_forward(state, flat_args, action_size):
    """Plain-JAX reference using the exact same (bf16) prepared weights."""
    in_pad = flat_args[0].shape[0]
    h = state.astype(jnp.bfloat16)
    h = jnp.pad(h, ((0, 0), (0, in_pad - state.shape[1])))
    n_layers = len(flat_args) // 2
    for i in range(n_layers):
        W = flat_args[2 * i]
        b = flat_args[2 * i + 1]
        h = jnp.dot(h, W, preferred_element_type=jnp.float32) + b
        if i < n_layers - 1:
            h = jnp.maximum(h, 0.0).astype(jnp.bfloat16)
    return h[:, :action_size]


if __name__ == "__main__":
    state_size = 16
    action_size = 8

    key = jax.random.PRNGKey(0)
    key_x, key_x2, key_p = jax.random.split(key, 3)

    params = init_params(key_p, state_size, action_size)
    # One-time weight preparation (transpose + pad + bf16 cast).
    flat_args = prepare_params(params)

    # Small rollout-style batch (single tile).
    batch = 2
    state = jax.random.normal(key_x, (batch, state_size), dtype=jnp.float32)
    out = jax.block_until_ready(policy_network_forward(state, flat_args, action_size))
    assert out.shape == (batch, action_size), out.shape
    assert out.dtype == jnp.float32, out.dtype
    ref = jax.block_until_ready(reference_forward(state, flat_args, action_size))
    assert jnp.allclose(out, ref, atol=2e-2, rtol=2e-2), (out, ref)

    # Medium batch: exercises the balanced multi-tile path (2 grid steps).
    batch2 = 200
    state2 = jax.random.normal(key_x2, (batch2, state_size), dtype=jnp.float32)
    out2 = jax.block_until_ready(policy_network_forward(state2, flat_args, action_size))
    assert out2.shape == (batch2, action_size), out2.shape
    ref2 = jax.block_until_ready(reference_forward(state2, flat_args, action_size))
    assert jnp.allclose(out2, ref2, atol=2e-2, rtol=2e-2)

    print("KERNEL_OK")
</pallas_src>

<mosaic_0001>
module attributes {stable_mosaic.version = 11 : i64} {
  func.func @mlp_kernel(%arg0: i32, %arg1: memref<8x128xbf16, #tpu.memory_space<vmem>>, %arg2: memref<128x1024xbf16, #tpu.memory_space<vmem>>, %arg3: memref<1x1024xf32, #tpu.memory_space<vmem>>, %arg4: memref<1024x512xbf16, #tpu.memory_space<vmem>>, %arg5: memref<1x512xf32, #tpu.memory_space<vmem>>, %arg6: memref<512x1024xbf16, #tpu.memory_space<vmem>>, %arg7: memref<1x1024xf32, #tpu.memory_space<vmem>>, %arg8: memref<1024x512xbf16, #tpu.memory_space<vmem>>, %arg9: memref<1x512xf32, #tpu.memory_space<vmem>>, %arg10: memref<512x128xbf16, #tpu.memory_space<vmem>>, %arg11: memref<1x128xf32, #tpu.memory_space<vmem>>, %arg12: memref<8x128xf32, #tpu.memory_space<vmem>>) attributes {dimension_semantics = [#tpu.dimension_semantics<parallel>], iteration_bounds = array<i64: 1>, scalar_prefetch = 0 : i64, scratch_operands = 0 : i64, tpu.core_type = #tpu.core_type<tc>, window_params = [{transform_indices = @transform_0, window_bounds = array<i64: 8, 128>}, {pipeline_mode = #tpu.pipeline_mode<synchronous>, transform_indices = @transform_1, window_bounds = array<i64: 128, 1024>}, {pipeline_mode = #tpu.pipeline_mode<synchronous>, transform_indices = @transform_2, window_bounds = array<i64: 1, 1024>}, {pipeline_mode = #tpu.pipeline_mode<synchronous>, transform_indices = @transform_3, window_bounds = array<i64: 1024, 512>}, {pipeline_mode = #tpu.pipeline_mode<synchronous>, transform_indices = @transform_4, window_bounds = array<i64: 1, 512>}, {pipeline_mode = #tpu.pipeline_mode<synchronous>, transform_indices = @transform_5, window_bounds = array<i64: 512, 1024>}, {pipeline_mode = #tpu.pipeline_mode<synchronous>, transform_indices = @transform_6, window_bounds = array<i64: 1, 1024>}, {pipeline_mode = #tpu.pipeline_mode<synchronous>, transform_indices = @transform_7, window_bounds = array<i64: 1024, 512>}, {pipeline_mode = #tpu.pipeline_mode<synchronous>, transform_indices = @transform_8, window_bounds = array<i64: 1, 512>}, {pipeline_mode = #tpu.pipeline_mode<synchronous>, transform_indices = @transform_9, window_bounds = array<i64: 512, 128>}, {pipeline_mode = #tpu.pipeline_mode<synchronous>, transform_indices = @transform_10, window_bounds = array<i64: 1, 128>}, {transform_indices = @transform_11, window_bounds = array<i64: 8, 128>}]} {
    %c0 = arith.constant 0 : index
    %c0_0 = arith.constant 0 : index
    %0 = vector.load %arg1[%c0, %c0_0] : memref<8x128xbf16, #tpu.memory_space<vmem>>, vector<8x128xbf16>
    %c0_1 = arith.constant 0 : index
    %c0_2 = arith.constant 0 : index
    %1 = vector.load %arg2[%c0_1, %c0_2] : memref<128x1024xbf16, #tpu.memory_space<vmem>>, vector<128x1024xbf16>
    %cst = arith.constant dense<0.000000e+00> : vector<8x1024xf32>
    %2 = tpu.matmul %0, %1, %cst {dimension_numbers = #tpu.dot_dimension_numbers<[1], [0], [0], [1], [0, 0, 1, 1], [], []>} : vector<8x128xbf16>, vector<128x1024xbf16>, vector<8x1024xf32> -> vector<8x1024xf32>
    %c0_3 = arith.constant 0 : index
    %c0_4 = arith.constant 0 : index
    %3 = vector.load %arg3[%c0_3, %c0_4] : memref<1x1024xf32, #tpu.memory_space<vmem>>, vector<1x1024xf32>
    %4 = vector.broadcast %3 : vector<1x1024xf32> to vector<8x1024xf32>
    %5 = arith.addf %2, %4 : vector<8x1024xf32>
    %cst_5 = arith.constant 0.000000e+00 : f32
    %6 = vector.broadcast %cst_5 : f32 to vector<8x1024xf32>
    %7 = arith.maximumf %5, %6 : vector<8x1024xf32>
    %8 = arith.truncf %7 : vector<8x1024xf32> to vector<8x1024xbf16>
    %c0_6 = arith.constant 0 : index
    %c0_7 = arith.constant 0 : index
    %9 = vector.load %arg4[%c0_6, %c0_7] : memref<1024x512xbf16, #tpu.memory_space<vmem>>, vector<1024x512xbf16>
    %cst_8 = arith.constant dense<0.000000e+00> : vector<8x512xf32>
    %10 = tpu.matmul %8, %9, %cst_8 {dimension_numbers = #tpu.dot_dimension_numbers<[1], [0], [0], [1], [0, 0, 1, 1], [], []>} : vector<8x1024xbf16>, vector<1024x512xbf16>, vector<8x512xf32> -> vector<8x512xf32>
    %c0_9 = arith.constant 0 : index
    %c0_10 = arith.constant 0 : index
    %11 = vector.load %arg5[%c0_9, %c0_10] : memref<1x512xf32, #tpu.memory_space<vmem>>, vector<1x512xf32>
    %12 = vector.broadcast %11 : vector<1x512xf32> to vector<8x512xf32>
    %13 = arith.addf %10, %12 : vector<8x512xf32>
    %cst_11 = arith.constant 0.000000e+00 : f32
    %14 = vector.broadcast %cst_11 : f32 to vector<8x512xf32>
    %15 = arith.maximumf %13, %14 : vector<8x512xf32>
    %16 = arith.truncf %15 : vector<8x512xf32> to vector<8x512xbf16>
    %c0_12 = arith.constant 0 : index
    %c0_13 = arith.constant 0 : index
    %17 = vector.load %arg6[%c0_12, %c0_13] : memref<512x1024xbf16, #tpu.memory_space<vmem>>, vector<512x1024xbf16>
    %cst_14 = arith.constant dense<0.000000e+00> : vector<8x1024xf32>
    %18 = tpu.matmul %16, %17, %cst_14 {dimension_numbers = #tpu.dot_dimension_numbers<[1], [0], [0], [1], [0, 0, 1, 1], [], []>} : vector<8x512xbf16>, vector<512x1024xbf16>, vector<8x1024xf32> -> vector<8x1024xf32>
    %c0_15 = arith.constant 0 : index
    %c0_16 = arith.constant 0 : index
    %19 = vector.load %arg7[%c0_15, %c0_16] : memref<1x1024xf32, #tpu.memory_space<vmem>>, vector<1x1024xf32>
    %20 = vector.broadcast %19 : vector<1x1024xf32> to vector<8x1024xf32>
    %21 = arith.addf %18, %20 : vector<8x1024xf32>
    %cst_17 = arith.constant 0.000000e+00 : f32
    %22 = vector.broadcast %cst_17 : f32 to vector<8x1024xf32>
    %23 = arith.maximumf %21, %22 : vector<8x1024xf32>
    %24 = arith.truncf %23 : vector<8x1024xf32> to vector<8x1024xbf16>
    %c0_18 = arith.constant 0 : index
    %c0_19 = arith.constant 0 : index
    %25 = vector.load %arg8[%c0_18, %c0_19] : memref<1024x512xbf16, #tpu.memory_space<vmem>>, vector<1024x512xbf16>
    %cst_20 = arith.constant dense<0.000000e+00> : vector<8x512xf32>
    %26 = tpu.matmul %24, %25, %cst_20 {dimension_numbers = #tpu.dot_dimension_numbers<[1], [0], [0], [1], [0, 0, 1, 1], [], []>} : vector<8x1024xbf16>, vector<1024x512xbf16>, vector<8x512xf32> -> vector<8x512xf32>
    %c0_21 = arith.constant 0 : index
    %c0_22 = arith.constant 0 : index
    %27 = vector.load %arg9[%c0_21, %c0_22] : memref<1x512xf32, #tpu.memory_space<vmem>>, vector<1x512xf32>
    %28 = vector.broadcast %27 : vector<1x512xf32> to vector<8x512xf32>
    %29 = arith.addf %26, %28 : vector<8x512xf32>
    %cst_23 = arith.constant 0.000000e+00 : f32
    %30 = vector.broadcast %cst_23 : f32 to vector<8x512xf32>
    %31 = arith.maximumf %29, %30 : vector<8x512xf32>
    %32 = arith.truncf %31 : vector<8x512xf32> to vector<8x512xbf16>
    %c0_24 = arith.constant 0 : index
    %c0_25 = arith.constant 0 : index
    %33 = vector.load %arg10[%c0_24, %c0_25] : memref<512x128xbf16, #tpu.memory_space<vmem>>, vector<512x128xbf16>
    %cst_26 = arith.constant dense<0.000000e+00> : vector<8x128xf32>
    %34 = tpu.matmul %32, %33, %cst_26 {dimension_numbers = #tpu.dot_dimension_numbers<[1], [0], [0], [1], [0, 0, 1, 1], [], []>} : vector<8x512xbf16>, vector<512x128xbf16>, vector<8x128xf32> -> vector<8x128xf32>
    %c0_27 = arith.constant 0 : index
    %c0_28 = arith.constant 0 : index
    %35 = vector.load %arg11[%c0_27, %c0_28] : memref<1x128xf32, #tpu.memory_space<vmem>>, vector<1x128xf32>
    %36 = vector.broadcast %35 : vector<1x128xf32> to vector<8x128xf32>
    %37 = arith.addf %34, %36 : vector<8x128xf32>
    %c0_29 = arith.constant 0 : index
    %c0_30 = arith.constant 0 : index
    %38 = vector.load %arg12[%c0_29, %c0_30] : memref<8x128xf32, #tpu.memory_space<vmem>>, vector<8x128xf32>
    tpu.vector_store %arg12[%c0_29, %c0_30], %37 {strides = array<i32>} : memref<8x128xf32, #tpu.memory_space<vmem>>, vector<8x128xf32>,
    return
  }
  func.func @transform_0(%arg0: i32) -> (i32, i32) {
    %c0_i32 = arith.constant 0 : i32
    %c0_i32_0 = arith.constant 0 : i32
    return %arg0, %c0_i32 : i32, i32
  }
  func.func @transform_1(%arg0: i32) -> (i32, i32) {
    %c0_i32 = arith.constant 0 : i32
    %c0_i32_0 = arith.constant 0 : i32
    %c0_i32_1 = arith.constant 0 : i32
    return %c0_i32, %c0_i32_0 : i32, i32
  }
  func.func @transform_2(%arg0: i32) -> (i32, i32) {
    %c0_i32 = arith.constant 0 : i32
    %c0_i32_0 = arith.constant 0 : i32
    %c0_i32_1 = arith.constant 0 : i32
    return %c0_i32, %c0_i32_0 : i32, i32
  }
  func.func @transform_3(%arg0: i32) -> (i32, i32) {
    %c0_i32 = arith.constant 0 : i32
    %c0_i32_0 = arith.constant 0 : i32
    %c0_i32_1 = arith.constant 0 : i32
    return %c0_i32, %c0_i32_0 : i32, i32
  }
  func.func @transform_4(%arg0: i32) -> (i32, i32) {
    %c0_i32 = arith.constant 0 : i32
    %c0_i32_0 = arith.constant 0 : i32
    %c0_i32_1 = arith.constant 0 : i32
    return %c0_i32, %c0_i32_0 : i32, i32
  }
  func.func @transform_5(%arg0: i32) -> (i32, i32) {
    %c0_i32 = arith.constant 0 : i32
    %c0_i32_0 = arith.constant 0 : i32
    %c0_i32_1 = arith.constant 0 : i32
    return %c0_i32, %c0_i32_0 : i32, i32
  }
  func.func @transform_6(%arg0: i32) -> (i32, i32) {
    %c0_i32 = arith.constant 0 : i32
    %c0_i32_0 = arith.constant 0 : i32
    %c0_i32_1 = arith.constant 0 : i32
    return %c0_i32, %c0_i32_0 : i32, i32
  }
  func.func @transform_7(%arg0: i32) -> (i32, i32) {
    %c0_i32 = arith.constant 0 : i32
    %c0_i32_0 = arith.constant 0 : i32
    %c0_i32_1 = arith.constant 0 : i32
    return %c0_i32, %c0_i32_0 : i32, i32
  }
  func.func @transform_8(%arg0: i32) -> (i32, i32) {
    %c0_i32 = arith.constant 0 : i32
    %c0_i32_0 = arith.constant 0 : i32
    %c0_i32_1 = arith.constant 0 : i32
    return %c0_i32, %c0_i32_0 : i32, i32
  }
  func.func @transform_9(%arg0: i32) -> (i32, i32) {
    %c0_i32 = arith.constant 0 : i32
    %c0_i32_0 = arith.constant 0 : i32
    %c0_i32_1 = arith.constant 0 : i32
    return %c0_i32, %c0_i32_0 : i32, i32
  }
  func.func @transform_10(%arg0: i32) -> (i32, i32) {
    %c0_i32 = arith.constant 0 : i32
    %c0_i32_0 = arith.constant 0 : i32
    %c0_i32_1 = arith.constant 0 : i32
    return %c0_i32, %c0_i32_0 : i32, i32
  }
  func.func @transform_11(%arg0: i32) -> (i32, i32) {
    %c0_i32 = arith.constant 0 : i32
    %c0_i32_0 = arith.constant 0 : i32
    return %arg0, %c0_i32 : i32, i32
  }
}

module attributes {stable_mosaic.version = 11 : i64} {
  func.func @mlp_kernel(%arg0: i32, %arg1: memref<8x128xbf16, #tpu.memory_space<vmem>>, %arg2: memref<128x1024xbf16, #tpu.memory_space<vmem>>, %arg3: memref<1x1024xf32, #tpu.memory_space<vmem>>, %arg4: memref<1024x512xbf16, #tpu.memory_space<vmem>>, %arg5: memref<1x512xf32, #tpu.memory_space<vmem>>, %arg6: memref<512x1024xbf16, #tpu.memory_space<vmem>>, %arg7: memref<1x1024xf32, #tpu.memory_space<vmem>>, %arg8: memref<1024x512xbf16, #tpu.memory_space<vmem>>, %arg9: memref<1x512xf32, #tpu.memory_space<vmem>>, %arg10: memref<512x128xbf16, #tpu.memory_space<vmem>>, %arg11: memref<1x128xf32, #tpu.memory_space<vmem>>, %arg12: memref<8x128xf32, #tpu.memory_space<vmem>>) attributes {dimension_semantics = [#tpu.dimension_semantics<parallel>], iteration_bounds = array<i64: 1>, scalar_prefetch = 0 : i64, scratch_operands = 0 : i64, tpu.core_type = #tpu.core_type<tc>, window_params = [{transform_indices = @transform_0, window_bounds = array<i64: 8, 128>}, {pipeline_mode = #tpu.pipeline_mode<synchronous>, transform_indices = @transform_1, window_bounds = array<i64: 128, 1024>}, {pipeline_mode = #tpu.pipeline_mode<synchronous>, transform_indices = @transform_2, window_bounds = array<i64: 1, 1024>}, {pipeline_mode = #tpu.pipeline_mode<synchronous>, transform_indices = @transform_3, window_bounds = array<i64: 1024, 512>}, {pipeline_mode = #tpu.pipeline_mode<synchronous>, transform_indices = @transform_4, window_bounds = array<i64: 1, 512>}, {pipeline_mode = #tpu.pipeline_mode<synchronous>, transform_indices = @transform_5, window_bounds = array<i64: 512, 1024>}, {pipeline_mode = #tpu.pipeline_mode<synchronous>, transform_indices = @transform_6, window_bounds = array<i64: 1, 1024>}, {pipeline_mode = #tpu.pipeline_mode<synchronous>, transform_indices = @transform_7, window_bounds = array<i64: 1024, 512>}, {pipeline_mode = #tpu.pipeline_mode<synchronous>, transform_indices = @transform_8, window_bounds = array<i64: 1, 512>}, {pipeline_mode = #tpu.pipeline_mode<synchronous>, transform_indices = @transform_9, window_bounds = array<i64: 512, 128>}, {pipeline_mode = #tpu.pipeline_mode<synchronous>, transform_indices = @transform_10, window_bounds = array<i64: 1, 128>}, {transform_indices = @transform_11, window_bounds = array<i64: 8, 128>}]} {
    %c0 = arith.constant 0 : index
    %c0_0 = arith.constant 0 : index
    %0 = vector.load %arg1[%c0, %c0_0] : memref<8x128xbf16, #tpu.memory_space<vmem>>, vector<8x128xbf16>
    %c0_1 = arith.constant 0 : index
    %c0_2 = arith.constant 0 : index
    %1 = vector.load %arg2[%c0_1, %c0_2] : memref<128x1024xbf16, #tpu.memory_space<vmem>>, vector<128x1024xbf16>
    %cst = arith.constant dense<0.000000e+00> : vector<8x1024xf32>
    %2 = tpu.matmul %0, %1, %cst {dimension_numbers = #tpu.dot_dimension_numbers<[1], [0], [0], [1], [0, 0, 1, 1], [], []>} : vector<8x128xbf16>, vector<128x1024xbf16>, vector<8x1024xf32> -> vector<8x1024xf32>
    %c0_3 = arith.constant 0 : index
    %c0_4 = arith.constant 0 : index
    %3 = vector.load %arg3[%c0_3, %c0_4] : memref<1x1024xf32, #tpu.memory_space<vmem>>, vector<1x1024xf32>
    %4 = vector.broadcast %3 : vector<1x1024xf32> to vector<8x1024xf32>
    %5 = arith.addf %2, %4 : vector<8x1024xf32>
    %cst_5 = arith.constant 0.000000e+00 : f32
    %6 = vector.broadcast %cst_5 : f32 to vector<8x1024xf32>
    %7 = arith.maximumf %5, %6 : vector<8x1024xf32>
    %8 = arith.truncf %7 : vector<8x1024xf32> to vector<8x1024xbf16>
    %c0_6 = arith.constant 0 : index
    %c0_7 = arith.constant 0 : index
    %9 = vector.load %arg4[%c0_6, %c0_7] : memref<1024x512xbf16, #tpu.memory_space<vmem>>, vector<1024x512xbf16>
    %cst_8 = arith.constant dense<0.000000e+00> : vector<8x512xf32>
    %10 = tpu.matmul %8, %9, %cst_8 {dimension_numbers = #tpu.dot_dimension_numbers<[1], [0], [0], [1], [0, 0, 1, 1], [], []>} : vector<8x1024xbf16>, vector<1024x512xbf16>, vector<8x512xf32> -> vector<8x512xf32>
    %c0_9 = arith.constant 0 : index
    %c0_10 = arith.constant 0 : index
    %11 = vector.load %arg5[%c0_9, %c0_10] : memref<1x512xf32, #tpu.memory_space<vmem>>, vector<1x512xf32>
    %12 = vector.broadcast %11 : vector<1x512xf32> to vector<8x512xf32>
    %13 = arith.addf %10, %12 : vector<8x512xf32>
    %cst_11 = arith.constant 0.000000e+00 : f32
    %14 = vector.broadcast %cst_11 : f32 to vector<8x512xf32>
    %15 = arith.maximumf %13, %14 : vector<8x512xf32>
    %16 = arith.truncf %15 : vector<8x512xf32> to vector<8x512xbf16>
    %c0_12 = arith.constant 0 : index
    %c0_13 = arith.constant 0 : index
    %17 = vector.load %arg6[%c0_12, %c0_13] : memref<512x1024xbf16, #tpu.memory_space<vmem>>, vector<512x1024xbf16>
    %cst_14 = arith.constant dense<0.000000e+00> : vector<8x1024xf32>
    %18 = tpu.matmul %16, %17, %cst_14 {dimension_numbers = #tpu.dot_dimension_numbers<[1], [0], [0], [1], [0, 0, 1, 1], [], []>} : vector<8x512xbf16>, vector<512x1024xbf16>, vector<8x1024xf32> -> vector<8x1024xf32>
    %c0_15 = arith.constant 0 : index
    %c0_16 = arith.constant 0 : index
    %19 = vector.load %arg7[%c0_15, %c0_16] : memref<1x1024xf32, #tpu.memory_space<vmem>>, vector<1x1024xf32>
    %20 = vector.broadcast %19 : vector<1x1024xf32> to vector<8x1024xf32>
    %21 = arith.addf %18, %20 : vector<8x1024xf32>
    %cst_17 = arith.constant 0.000000e+00 : f32
    %22 = vector.broadcast %cst_17 : f32 to vector<8x1024xf32>
    %23 = arith.maximumf %21, %22 : vector<8x1024xf32>
    %24 = arith.truncf %23 : vector<8x1024xf32> to vector<8x1024xbf16>
    %c0_18 = arith.constant 0 : index
    %c0_19 = arith.constant 0 : index
    %25 = vector.load %arg8[%c0_18, %c0_19] : memref<1024x512xbf16, #tpu.memory_space<vmem>>, vector<1024x512xbf16>
    %cst_20 = arith.constant dense<0.000000e+00> : vector<8x512xf32>
    %26 = tpu.matmul %24, %25, %cst_20 {dimension_numbers = #tpu.dot_dimension_numbers<[1], [0], [0], [1], [0, 0, 1, 1], [], []>} : vector<8x1024xbf16>, vector<1024x512xbf16>, vector<8x512xf32> -> vector<8x512xf32>
    %c0_21 = arith.constant 0 : index
    %c0_22 = arith.constant 0 : index
    %27 = vector.load %arg9[%c0_21, %c0_22] : memref<1x512xf32, #tpu.memory_space<vmem>>, vector<1x512xf32>
    %28 = vector.broadcast %27 : vector<1x512xf32> to vector<8x512xf32>
    %29 = arith.addf %26, %28 : vector<8x512xf32>
    %cst_23 = arith.constant 0.000000e+00 : f32
    %30 = vector.broadcast %cst_23 : f32 to vector<8x512xf32>
    %31 = arith.maximumf %29, %30 : vector<8x512xf32>
    %32 = arith.truncf %31 : vector<8x512xf32> to vector<8x512xbf16>
    %c0_24 = arith.constant 0 : index
    %c0_25 = arith.constant 0 : index
    %33 = vector.load %arg10[%c0_24, %c0_25] : memref<512x128xbf16, #tpu.memory_space<vmem>>, vector<512x128xbf16>
    %cst_26 = arith.constant dense<0.000000e+00> : vector<8x128xf32>
    %34 = tpu.matmul %32, %33, %cst_26 {dimension_numbers = #tpu.dot_dimension_numbers<[1], [0], [0], [1], [0, 0, 1, 1], [], []>} : vector<8x512xbf16>, vector<512x128xbf16>, vector<8x128xf32> -> vector<8x128xf32>
    %c0_27 = arith.constant 0 : index
    %c0_28 = arith.constant 0 : index
    %35 = vector.load %arg11[%c0_27, %c0_28] : memref<1x128xf32, #tpu.memory_space<vmem>>, vector<1x128xf32>
    %36 = vector.broadcast %35 : vector<1x128xf32> to vector<8x128xf32>
    %37 = arith.addf %34, %36 : vector<8x128xf32>
    %c0_29 = arith.constant 0 : index
    %c0_30 = arith.constant 0 : index
    %38 = vector.load %arg12[%c0_29, %c0_30] : memref<8x128xf32, #tpu.memory_space<vmem>>, vector<8x128xf32>
    tpu.vector_store %arg12[%c0_29, %c0_30], %37 {strides = array<i32>} : memref<8x128xf32, #tpu.memory_space<vmem>>, vector<8x128xf32>,
    return
  }
  func.func @transform_0(%arg0: i32) -> (i32, i32) {
    %c0_i32 = arith.constant 0 : i32
    %c0_i32_0 = arith.constant 0 : i32
    return %arg0, %c0_i32 : i32, i32
  }
  func.func @transform_1(%arg0: i32) -> (i32, i32) {
    %c0_i32 = arith.constant 0 : i32
    %c0_i32_0 = arith.constant 0 : i32
    %c0_i32_1 = arith.constant 0 : i32
    return %c0_i32, %c0_i32_0 : i32, i32
  }
  func.func @transform_2(%arg0: i32) -> (i32, i32) {
    %c0_i32 = arith.constant 0 : i32
    %c0_i32_0 = arith.constant 0 : i32
    %c0_i32_1 = arith.constant 0 : i32
    return %c0_i32, %c0_i32_0 : i32, i32
  }
  func.func @transform_3(%arg0: i32) -> (i32, i32) {
    %c0_i32 = arith.constant 0 : i32
    %c0_i32_0 = arith.constant 0 : i32
    %c0_i32_1 = arith.constant 0 : i32
    return %c0_i32, %c0_i32_0 : i32, i32
  }
  func.func @transform_4(%arg0: i32) -> (i32, i32) {
    %c0_i32 = arith.constant 0 : i32
    %c0_i32_0 = arith.constant 0 : i32
    %c0_i32_1 = arith.constant 0 : i32
    return %c0_i32, %c0_i32_0 : i32, i32
  }
  func.func @transform_5(%arg0: i32) -> (i32, i32) {
    %c0_i32 = arith.constant 0 : i32
    %c0_i32_0 = arith.constant 0 : i32
    %c0_i32_1 = arith.constant 0 : i32
    return %c0_i32, %c0_i32_0 : i32, i32
  }
  func.func @transform_6(%arg0: i32) -> (i32, i32) {
    %c0_i32 = arith.constant 0 : i32
    %c0_i32_0 = arith.constant 0 : i32
    %c0_i32_1 = arith.constant 0 : i32
    return %c0_i32, %c0_i32_0 : i32, i32
  }
  func.func @transform_7(%arg0: i32) -> (i32, i32) {
    %c0_i32 = arith.constant 0 : i32
    %c0_i32_0 = arith.constant 0 : i32
    %c0_i32_1 = arith.constant 0 : i32
    return %c0_i32, %c0_i32_0 : i32, i32
  }
  func.func @transform_8(%arg0: i32) -> (i32, i32) {
    %c0_i32 = arith.constant 0 : i32
    %c0_i32_0 = arith.constant 0 : i32
    %c0_i32_1 = arith.constant 0 : i32
    return %c0_i32, %c0_i32_0 : i32, i32
  }
  func.func @transform_9(%arg0: i32) -> (i32, i32) {
    %c0_i32 = arith.constant 0 : i32
    %c0_i32_0 = arith.constant 0 : i32
    %c0_i32_1 = arith.constant 0 : i32
    return %c0_i32, %c0_i32_0 : i32, i32
  }
  func.func @transform_10(%arg0: i32) -> (i32, i32) {
    %c0_i32 = arith.constant 0 : i32
    %c0_i32_0 = arith.constant 0 : i32
    %c0_i32_1 = arith.constant 0 : i32
    return %c0_i32, %c0_i32_0 : i32, i32
  }
  func.func @transform_11(%arg0: i32) -> (i32, i32) {
    %c0_i32 = arith.constant 0 : i32
    %c0_i32_0 = arith.constant 0 : i32
    return %arg0, %c0_i32 : i32, i32
  }
}

</mosaic_0001>

<llo_original>
// kernel: _forward.1
$region0: #{_forward.1}
  #allocation0 [shape = 'u32[]', space=smem, size = 0x4, offset = 0x4, fixed_abs, tag = 'smem constant byte address 0x4 - core index']
  #allocation1 [shape = 'u32[72,128]{1,0:T(1,128)}', space=vmem, size = 0x9000, scoped, tag = 'internal scratch']
  %s0 = inlined_call_operand.vmem [shape: bf16[8,128], index: 0, kind: input, shape index: {}]
  %s1 = inlined_call_operand.hbm [shape: bf16[128,1024], index: 1, kind: input, shape index: {}]
  %s2 = inlined_call_operand.vmem [shape: f32[1,1024], index: 2, kind: input, shape index: {}]
  %s3 = inlined_call_operand.hbm [shape: bf16[1024,512], index: 3, kind: input, shape index: {}]
  %s4 = inlined_call_operand.vmem [shape: f32[1,512], index: 4, kind: input, shape index: {}]
  %s5 = inlined_call_operand.hbm [shape: bf16[512,1024], index: 5, kind: input, shape index: {}]
  %s6 = inlined_call_operand.hbm [shape: f32[1,1024], index: 6, kind: input, shape index: {}]
  %s7 = inlined_call_operand.hbm [shape: bf16[1024,512], index: 7, kind: input, shape index: {}]
  %s8 = inlined_call_operand.vmem [shape: f32[1,512], index: 8, kind: input, shape index: {}]
  %s9 = inlined_call_operand.hbm [shape: bf16[512,128], index: 9, kind: input, shape index: {}]
  %s10 = inlined_call_operand.vmem [shape: f32[1,128], index: 10, kind: input, shape index: {}]
  %s11 = inlined_call_operand.vmem [shape: f32[8,128], index: 11, kind: output, shape index: {}]
  %s12 = sld [smem:[#allocation0]]
  $region78: #{_forward.1} parent=0
    _
  %s14 = ssub.s32 1, %s12
  %s15 = scalar_select 0, %s14, %s12
  $region1: #{_forward.1} parent=0
    #allocation2 [shape = 'u8[262144]{0}', space=vmem, size = 0x40000, scoped, tag = 'input window, operand 1, single buffered']
    #allocation3 [shape = 's32[1]{0}', space=sflag, size = 0x4, scoped, tag = 'scoped memory for _forward.1']
    #allocation4 [shape = 'u8[1048576]{0}', space=vmem, size = 0x100000, scoped, tag = 'input window, operand 3, single buffered']
    #allocation5 [shape = 's32[1]{0}', space=sflag, size = 0x4, scoped, tag = 'scoped memory for _forward.1']
    #allocation6 [shape = 'u8[1048576]{0}', space=vmem, size = 0x100000, scoped, tag = 'input window, operand 5, single buffered']
    #allocation7 [shape = 'u8[4096]{0}', space=vmem, size = 0x1000, scoped, tag = 'input window, operand 6, single buffered']
    #allocation8 [shape = 's32[1]{0}', space=sflag, size = 0x4, scoped, tag = 'scoped memory for _forward.1']
    #allocation9 [shape = 'u8[1048576]{0}', space=vmem, size = 0x100000, scoped, tag = 'input window, operand 7, single buffered']
    #allocation10 [shape = 'u8[131072]{0}', space=vmem, size = 0x20000, scoped, tag = 'input window, operand 9, single buffered']
    #allocation11 [shape = 's32[1]{0}', space=sflag, size = 0x4, scoped, tag = 'scoped memory for _forward.1']
    %16 = vsyncpa [#allocation3], 0
    %17 = vsyncpa [#allocation5], 0
    %18 = vsyncpa [#allocation8], 0
    %19 = vsyncpa [#allocation11], 0
    // Predicated region
    $region2: #{_forward.1} parent=1 // pred_check
      _
    $region3: #{_forward.1} parent=1 // pred_check_branch
      %21 = sbr.rel (0) target = $region5
    $region4: #{_forward.1} parent=1 // pred_region
      _
    $region5: #{_forward.1} parent=1 // pred_fallthru
      _
    // Predicated region
    $region6: #{_forward.1} parent=1 // pred_check
      _
    $region7: #{_forward.1} parent=1 // pred_check_branch
      %23 = sbr.rel (0) target = $region9
    $region8: #{_forward.1} parent=1 // pred_region
      %25 = vsyncadd [#allocation3], 0
      %s26 = sshll.u32 %s1, 4
      %s27 = int_to_ptr.hbm [resolvable:$true] %s26
      %s28 = sshll.u32 [#allocation2], 4
      %s29 = int_to_ptr.vmem [resolvable:$true] %s28
      %34 = dma.hbm_to_vmem [thread:$0]  %s27, 8192, %s29, [#allocation3], 512, 512, 32
    $region9: #{_forward.1} parent=1 // pred_fallthru
      _
    // Predicated region
    $region10: #{_forward.1} parent=1 // pred_check
      _
    $region11: #{_forward.1} parent=1 // pred_check_branch
      %36 = sbr.rel (0) target = $region13
    $region12: #{_forward.1} parent=1 // pred_region
      _
    $region13: #{_forward.1} parent=1 // pred_fallthru
      _
    // Predicated region
    $region14: #{_forward.1} parent=1 // pred_check
      _
    $region15: #{_forward.1} parent=1 // pred_check_branch
      %38 = sbr.rel (0) target = $region17
    $region16: #{_forward.1} parent=1 // pred_region
      %40 = vsyncadd [#allocation5], 0
      %s41 = sshll.u32 %s3, 4
      %s42 = int_to_ptr.hbm [resolvable:$true] %s41
      %s43 = sshll.u32 [#allocation4], 4
      %s44 = int_to_ptr.vmem [resolvable:$true] %s43
      %49 = dma.hbm_to_vmem [thread:$0]  %s42, 32768, %s44, [#allocation5], 256, 256, 16
    $region17: #{_forward.1} parent=1 // pred_fallthru
      _
    // Predicated region
    $region18: #{_forward.1} parent=1 // pred_check
      _
    $region19: #{_forward.1} parent=1 // pred_check_branch
      %51 = sbr.rel (0) target = $region21
    $region20: #{_forward.1} parent=1 // pred_region
      _
    $region21: #{_forward.1} parent=1 // pred_fallthru
      _
    // Predicated region
    $region22: #{_forward.1} parent=1 // pred_check
      _
    $region23: #{_forward.1} parent=1 // pred_check_branch
      %53 = sbr.rel (0) target = $region25
    $region24: #{_forward.1} parent=1 // pred_region
      %55 = vsyncadd [#allocation5], 0
      %s56 = sshll.u32 %s5, 4
      %s57 = int_to_ptr.hbm [resolvable:$true] %s56
      %s58 = sshll.u32 [#allocation6], 4
      %s59 = int_to_ptr.vmem [resolvable:$true] %s58
      %64 = dma.hbm_to_vmem [thread:$0]  %s57, 32768, %s59, [#allocation5], 512, 512, 32
    $region25: #{_forward.1} parent=1 // pred_fallthru
      _
    // Predicated region
    $region26: #{_forward.1} parent=1 // pred_check
      _
    $region27: #{_forward.1} parent=1 // pred_check_branch
      %66 = sbr.rel (0) target = $region29
    $region28: #{_forward.1} parent=1 // pred_region
      %68 = vsyncadd [#allocation8], 0
      %s70 = sshll.u32 %s6, 4
      %s71 = int_to_ptr.hbm [resolvable:$true] %s70
      %s72 = sshll.u32 [#allocation7], 4
      %s73 = int_to_ptr.vmem [resolvable:$true] %s72
      %75 = dma.hbm_to_vmem [thread:$0]  %s71, 128, %s73, [#allocation8]
    $region29: #{_forward.1} parent=1 // pred_fallthru
      _
    // Predicated region
    $region30: #{_forward.1} parent=1 // pred_check
      _
    $region31: #{_forward.1} parent=1 // pred_check_branch
      %77 = sbr.rel (0) target = $region33
    $region32: #{_forward.1} parent=1 // pred_region
      %79 = vsyncadd [#allocation8], 0
      %s80 = sshll.u32 %s7, 4
      %s81 = int_to_ptr.hbm [resolvable:$true] %s80
      %s82 = sshll.u32 [#allocation9], 4
      %s83 = int_to_ptr.vmem [resolvable:$true] %s82
      %88 = dma.hbm_to_vmem [thread:$0]  %s81, 32768, %s83, [#allocation8], 256, 256, 16
    $region33: #{_forward.1} parent=1 // pred_fallthru
      _
    // Predicated region
    $region34: #{_forward.1} parent=1 // pred_check
      _
    $region35: #{_forward.1} parent=1 // pred_check_branch
      %90 = sbr.rel (0) target = $region37
    $region36: #{_forward.1} parent=1 // pred_region
      _
    $region37: #{_forward.1} parent=1 // pred_fallthru
      _
    // Predicated region
    $region38: #{_forward.1} parent=1 // pred_check
      _
    $region39: #{_forward.1} parent=1 // pred_check_branch
      %92 = sbr.rel (0) target = $region41
    $region40: #{_forward.1} parent=1 // pred_region
      %94 = vsyncadd [#allocation11], 0
      %s95 = sshll.u32 %s9, 4
      %s96 = int_to_ptr.hbm [resolvable:$true] %s95
      %s97 = sshll.u32 [#allocation10], 4
      %s98 = int_to_ptr.vmem [resolvable:$true] %s97
      %103 = dma.hbm_to_vmem [thread:$0]  %s96, 4096, %s98, [#allocation11], 64, 64, 4
    $region41: #{_forward.1} parent=1 // pred_fallthru
      _
    // Predicated region
    $region42: #{_forward.1} parent=1 // pred_check
      _
    $region43: #{_forward.1} parent=1 // pred_check_branch
      %105 = sbr.rel (0) target = $region45
    $region44: #{_forward.1} parent=1 // pred_region
      _
    $region45: #{_forward.1} parent=1 // pred_fallthru
      _
    // Predicated region
    $region46: #{_forward.1} parent=1 // pred_check
      _
    $region47: #{_forward.1} parent=1 // pred_check_branch
      %107 = sbr.rel (0) target = $region49
    $region48: #{_forward.1} parent=1 // pred_region
      %109 = dma.done [#allocation3], 8192
    $region49: #{_forward.1} parent=1 // pred_fallthru
      _
    // Predicated region
    $region50: #{_forward.1} parent=1 // pred_check
      _
    $region51: #{_forward.1} parent=1 // pred_check_branch
      %111 = sbr.rel (0) target = $region53
    $region52: #{_forward.1} parent=1 // pred_region
      %113 = dma.done [#allocation5], 32768
    $region53: #{_forward.1} parent=1 // pred_fallthru
      _
    // Predicated region
    $region54: #{_forward.1} parent=1 // pred_check
      _
    $region55: #{_forward.1} parent=1 // pred_check_branch
      %115 = sbr.rel (0) target = $region57
    $region56: #{_forward.1} parent=1 // pred_region
      %117 = dma.done [#allocation5], 32768
    $region57: #{_forward.1} parent=1 // pred_fallthru
      _
    // Predicated region
    $region58: #{_forward.1} parent=1 // pred_check
      _
    $region59: #{_forward.1} parent=1 // pred_check_branch
      %119 = sbr.rel (0) target = $region61
    $region60: #{_forward.1} parent=1 // pred_region
      %121 = dma.done [#allocation8], 128
    $region61: #{_forward.1} parent=1 // pred_fallthru
      _
    // Predicated region
    $region62: #{_forward.1} parent=1 // pred_check
      _
    $region63: #{_forward.1} parent=1 // pred_check_branch
      %123 = sbr.rel (0) target = $region65
    $region64: #{_forward.1} parent=1 // pred_region
      %125 = dma.done [#allocation8], 32768
    $region65: #{_forward.1} parent=1 // pred_fallthru
      _
    // Predicated region
    $region66: #{_forward.1} parent=1 // pred_check
      _
    $region67: #{_forward.1} parent=1 // pred_check_branch
      %127 = sbr.rel (0) target = $region69
    $region68: #{_forward.1} parent=1 // pred_region
      %129 = dma.done [#allocation11], 4096
    $region69: #{_forward.1} parent=1 // pred_fallthru
      _
    %v130 = vld [vmem:[%s0] sm:$0xf]
    %v131 = vld [vmem:[#allocation2] sm:$0xff]
    %v132 = vld [vmem:[#allocation2 + $0x8] sm:$0xff]
    %v133 = vld [vmem:[#allocation2 + $0x10] sm:$0xff]
    %v134 = vld [vmem:[#allocation2 + $0x18] sm:$0xff]
    %v135 = vld [vmem:[#allocation2 + $0x20] sm:$0xff]
    %v136 = vld [vmem:[#allocation2 + $0x28] sm:$0xff]
    %v137 = vld [vmem:[#allocation2 + $0x30] sm:$0xff]
    %v138 = vld [vmem:[#allocation2 + $0x38] sm:$0xff]
    %v139 = vld [vmem:[#allocation2 + $0x40] sm:$0xff]
    %v140 = vld [vmem:[#allocation2 + $0x48] sm:$0xff]
    %v141 = vld [vmem:[#allocation2 + $0x50] sm:$0xff]
    %v142 = vld [vmem:[#allocation2 + $0x58] sm:$0xff]
    %v143 = vld [vmem:[#allocation2 + $0x60] sm:$0xff]
    %v144 = vld [vmem:[#allocation2 + $0x68] sm:$0xff]
    %v145 = vld [vmem:[#allocation2 + $0x70] sm:$0xff]
    %v146 = vld [vmem:[#allocation2 + $0x78] sm:$0xff]
    %v147 = vld [vmem:[#allocation2 + $0x80] sm:$0xff]
    %v148 = vld [vmem:[#allocation2 + $0x88] sm:$0xff]
    %v149 = vld [vmem:[#allocation2 + $0x90] sm:$0xff]
    %v150 = vld [vmem:[#allocation2 + $0x98] sm:$0xff]
    %v151 = vld [vmem:[#allocation2 + $0xa0] sm:$0xff]
    %v152 = vld [vmem:[#allocation2 + $0xa8] sm:$0xff]
    %v153 = vld [vmem:[#allocation2 + $0xb0] sm:$0xff]
    %v154 = vld [vmem:[#allocation2 + $0xb8] sm:$0xff]
    %v155 = vld [vmem:[#allocation2 + $0xc0] sm:$0xff]
    %v156 = vld [vmem:[#allocation2 + $0xc8] sm:$0xff]
    %v157 = vld [vmem:[#allocation2 + $0xd0] sm:$0xff]
    %v158 = vld [vmem:[#allocation2 + $0xd8] sm:$0xff]
    %v159 = vld [vmem:[#allocation2 + $0xe0] sm:$0xff]
    %v160 = vld [vmem:[#allocation2 + $0xe8] sm:$0xff]
    %v161 = vld [vmem:[#allocation2 + $0xf0] sm:$0xff]
    %v162 = vld [vmem:[#allocation2 + $0xf8] sm:$0xff]
    %v163 = vld [vmem:[#allocation2 + $0x100] sm:$0xff]
    %v164 = vld [vmem:[#allocation2 + $0x108] sm:$0xff]
    %v165 = vld [vmem:[#allocation2 + $0x110] sm:$0xff]
    %v166 = vld [vmem:[#allocation2 + $0x118] sm:$0xff]
    %v167 = vld [vmem:[#allocation2 + $0x120] sm:$0xff]
    %v168 = vld [vmem:[#allocation2 + $0x128] sm:$0xff]
    %v169 = vld [vmem:[#allocation2 + $0x130] sm:$0xff]
    %v170 = vld [vmem:[#allocation2 + $0x138] sm:$0xff]
    %v171 = vld [vmem:[#allocation2 + $0x140] sm:$0xff]
    %v172 = vld [vmem:[#allocation2 + $0x148] sm:$0xff]
    %v173 = vld [vmem:[#allocation2 + $0x150] sm:$0xff]
    %v174 = vld [vmem:[#allocation2 + $0x158] sm:$0xff]
    %v175 = vld [vmem:[#allocation2 + $0x160] sm:$0xff]
    %v176 = vld [vmem:[#allocation2 + $0x168] sm:$0xff]
    %v177 = vld [vmem:[#allocation2 + $0x170] sm:$0xff]
    %v178 = vld [vmem:[#allocation2 + $0x178] sm:$0xff]
    %v179 = vld [vmem:[#allocation2 + $0x180] sm:$0xff]
    %v180 = vld [vmem:[#allocation2 + $0x188] sm:$0xff]
    %v181 = vld [vmem:[#allocation2 + $0x190] sm:$0xff]
    %v182 = vld [vmem:[#allocation2 + $0x198] sm:$0xff]
    %v183 = vld [vmem:[#allocation2 + $0x1a0] sm:$0xff]
    %v184 = vld [vmem:[#allocation2 + $0x1a8] sm:$0xff]
    %v185 = vld [vmem:[#allocation2 + $0x1b0] sm:$0xff]
    %v186 = vld [vmem:[#allocation2 + $0x1b8] sm:$0xff]
    %v187 = vld [vmem:[#allocation2 + $0x1c0] sm:$0xff]
    %v188 = vld [vmem:[#allocation2 + $0x1c8] sm:$0xff]
    %v189 = vld [vmem:[#allocation2 + $0x1d0] sm:$0xff]
    %v190 = vld [vmem:[#allocation2 + $0x1d8] sm:$0xff]
    %v191 = vld [vmem:[#allocation2 + $0x1e0] sm:$0xff]
    %v192 = vld [vmem:[#allocation2 + $0x1e8] sm:$0xff]
    %v193 = vld [vmem:[#allocation2 + $0x1f0] sm:$0xff]
    %v194 = vld [vmem:[#allocation2 + $0x1f8] sm:$0xff]
    %v195 = vld [vmem:[%s2] sm:$0xff]
    %v197 = vperm.slane %v195, 0
    %v198 = vperm.slane %v195, 1
    %v199 = vperm.slane %v195, 2
    %v200 = vperm.slane %v195, 3
    %v201 = vperm.slane %v195, 4
    %v202 = vperm.slane %v195, 5
    %v203 = vperm.slane %v195, 6
    %v204 = vperm.slane %v195, 7
    %v277 = vunpack.c.l.b16 %v131
    %v278 = vunpack.c.h.b16 %v131
    %v279 = vunpack.c.l.b16 %v132
    %v280 = vunpack.c.h.b16 %v132
    %v281 = vunpack.c.l.b16 %v133
    %v282 = vunpack.c.h.b16 %v133
    %v283 = vunpack.c.l.b16 %v134
    %v284 = vunpack.c.h.b16 %v134
    %v285 = vunpack.c.l.b16 %v135
    %v286 = vunpack.c.h.b16 %v135
    %v287 = vunpack.c.l.b16 %v136
    %v288 = vunpack.c.h.b16 %v136
    %v289 = vunpack.c.l.b16 %v137
    %v290 = vunpack.c.h.b16 %v137
    %v291 = vunpack.c.l.b16 %v138
    %v292 = vunpack.c.h.b16 %v138
    %v293 = vunpack.c.l.b16 %v139
    %v294 = vunpack.c.h.b16 %v139
    %v295 = vunpack.c.l.b16 %v140
    %v296 = vunpack.c.h.b16 %v140
    %v297 = vunpack.c.l.b16 %v141
    %v298 = vunpack.c.h.b16 %v141
    %v299 = vunpack.c.l.b16 %v142
    %v300 = vunpack.c.h.b16 %v142
    %v301 = vunpack.c.l.b16 %v143
    %v302 = vunpack.c.h.b16 %v143
    %v303 = vunpack.c.l.b16 %v144
    %v304 = vunpack.c.h.b16 %v144
    %v305 = vunpack.c.l.b16 %v145
    %v306 = vunpack.c.h.b16 %v145
    %v307 = vunpack.c.l.b16 %v146
    %v308 = vunpack.c.h.b16 %v146
    %v309 = vunpack.c.l.b16 %v147
    %v310 = vunpack.c.h.b16 %v147
    %v311 = vunpack.c.l.b16 %v148
    %v312 = vunpack.c.h.b16 %v148
    %v313 = vunpack.c.l.b16 %v149
    %v314 = vunpack.c.h.b16 %v149
    %v315 = vunpack.c.l.b16 %v150
    %v316 = vunpack.c.h.b16 %v150
    %v317 = vunpack.c.l.b16 %v151
    %v318 = vunpack.c.h.b16 %v151
    %v319 = vunpack.c.l.b16 %v152
    %v320 = vunpack.c.h.b16 %v152
    %v321 = vunpack.c.l.b16 %v153
    %v322 = vunpack.c.h.b16 %v153
    %v323 = vunpack.c.l.b16 %v154
    %v324 = vunpack.c.h.b16 %v154
    %v325 = vunpack.c.l.b16 %v155
    %v326 = vunpack.c.h.b16 %v155
    %v327 = vunpack.c.l.b16 %v156
    %v328 = vunpack.c.h.b16 %v156
    %v329 = vunpack.c.l.b16 %v157
    %v330 = vunpack.c.h.b16 %v157
    %v331 = vunpack.c.l.b16 %v158
    %v332 = vunpack.c.h.b16 %v158
    %v333 = vunpack.c.l.b16 %v159
    %v334 = vunpack.c.h.b16 %v159
    %v335 = vunpack.c.l.b16 %v160
    %v336 = vunpack.c.h.b16 %v160
    %v337 = vunpack.c.l.b16 %v161
    %v338 = vunpack.c.h.b16 %v161
    %v339 = vunpack.c.l.b16 %v162
    %v340 = vunpack.c.h.b16 %v162
    %v341 = vunpack.c.l.b16 %v163
    %v342 = vunpack.c.h.b16 %v163
    %v343 = vunpack.c.l.b16 %v164
    %v344 = vunpack.c.h.b16 %v164
    %v345 = vunpack.c.l.b16 %v165
    %v346 = vunpack.c.h.b16 %v165
    %v347 = vunpack.c.l.b16 %v166
    %v348 = vunpack.c.h.b16 %v166
    %v349 = vunpack.c.l.b16 %v167
    %v350 = vunpack.c.h.b16 %v167
    %v351 = vunpack.c.l.b16 %v168
    %v352 = vunpack.c.h.b16 %v168
    %v353 = vunpack.c.l.b16 %v169
    %v354 = vunpack.c.h.b16 %v169
    %v355 = vunpack.c.l.b16 %v170
    %v356 = vunpack.c.h.b16 %v170
    %v357 = vunpack.c.l.b16 %v171
    %v358 = vunpack.c.h.b16 %v171
    %v359 = vunpack.c.l.b16 %v172
    %v360 = vunpack.c.h.b16 %v172
    %v361 = vunpack.c.l.b16 %v173
    %v362 = vunpack.c.h.b16 %v173
    %v363 = vunpack.c.l.b16 %v174
    %v364 = vunpack.c.h.b16 %v174
    %v365 = vunpack.c.l.b16 %v175
    %v366 = vunpack.c.h.b16 %v175
    %v367 = vunpack.c.l.b16 %v176
    %v368 = vunpack.c.h.b16 %v176
    %v369 = vunpack.c.l.b16 %v177
    %v370 = vunpack.c.h.b16 %v177
    %v371 = vunpack.c.l.b16 %v178
    %v372 = vunpack.c.h.b16 %v178
    %v373 = vunpack.c.l.b16 %v179
    %v374 = vunpack.c.h.b16 %v179
    %v375 = vunpack.c.l.b16 %v180
    %v376 = vunpack.c.h.b16 %v180
    %v377 = vunpack.c.l.b16 %v181
    %v378 = vunpack.c.h.b16 %v181
    %v379 = vunpack.c.l.b16 %v182
    %v380 = vunpack.c.h.b16 %v182
    %v381 = vunpack.c.l.b16 %v183
    %v382 = vunpack.c.h.b16 %v183
    %v383 = vunpack.c.l.b16 %v184
    %v384 = vunpack.c.h.b16 %v184
    %v385 = vunpack.c.l.b16 %v185
    %v386 = vunpack.c.h.b16 %v185
    %v387 = vunpack.c.l.b16 %v186
    %v388 = vunpack.c.h.b16 %v186
    %v389 = vunpack.c.l.b16 %v187
    %v390 = vunpack.c.h.b16 %v187
    %v391 = vunpack.c.l.b16 %v188
    %v392 = vunpack.c.h.b16 %v188
    %v393 = vunpack.c.l.b16 %v189
    %v394 = vunpack.c.h.b16 %v189
    %v395 = vunpack.c.l.b16 %v190
    %v396 = vunpack.c.h.b16 %v190
    %v397 = vunpack.c.l.b16 %v191
    %v398 = vunpack.c.h.b16 %v191
    %v399 = vunpack.c.l.b16 %v192
    %v400 = vunpack.c.h.b16 %v192
    %v401 = vunpack.c.l.b16 %v193
    %v402 = vunpack.c.h.b16 %v193
    %v403 = vunpack.c.l.b16 %v194
    %v404 = vunpack.c.h.b16 %v194
    %v405 = vpack.c.b16 %v285, %v277
    %v406 = vpack.c.b16 %v286, %v278
    %v407 = vpack.c.b16 %v287, %v279
    %v408 = vpack.c.b16 %v288, %v280
    %v409 = vpack.c.b16 %v289, %v281
    %v410 = vpack.c.b16 %v290, %v282
    %v411 = vpack.c.b16 %v291, %v283
    %v412 = vpack.c.b16 %v292, %v284
    %v413 = vpack.c.b16 %v301, %v293
    %v414 = vpack.c.b16 %v302, %v294
    %v415 = vpack.c.b16 %v303, %v295
    %v416 = vpack.c.b16 %v304, %v296
    %v417 = vpack.c.b16 %v305, %v297
    %v418 = vpack.c.b16 %v306, %v298
    %v419 = vpack.c.b16 %v307, %v299
    %v420 = vpack.c.b16 %v308, %v300
    %v421 = vpack.c.b16 %v317, %v309
    %v422 = vpack.c.b16 %v318, %v310
    %v423 = vpack.c.b16 %v319, %v311
    %v424 = vpack.c.b16 %v320, %v312
    %v425 = vpack.c.b16 %v321, %v313
    %v426 = vpack.c.b16 %v322, %v314
    %v427 = vpack.c.b16 %v323, %v315
    %v428 = vpack.c.b16 %v324, %v316
    %v429 = vpack.c.b16 %v333, %v325
    %v430 = vpack.c.b16 %v334, %v326
    %v431 = vpack.c.b16 %v335, %v327
    %v432 = vpack.c.b16 %v336, %v328
    %v433 = vpack.c.b16 %v337, %v329
    %v434 = vpack.c.b16 %v338, %v330
    %v435 = vpack.c.b16 %v339, %v331
    %v436 = vpack.c.b16 %v340, %v332
    %v437 = vpack.c.b16 %v349, %v341
    %v438 = vpack.c.b16 %v350, %v342
    %v439 = vpack.c.b16 %v351, %v343
    %v440 = vpack.c.b16 %v352, %v344
    %v441 = vpack.c.b16 %v353, %v345
    %v442 = vpack.c.b16 %v354, %v346
    %v443 = vpack.c.b16 %v355, %v347
    %v444 = vpack.c.b16 %v356, %v348
    %v445 = vpack.c.b16 %v365, %v357
    %v446 = vpack.c.b16 %v366, %v358
    %v447 = vpack.c.b16 %v367, %v359
    %v448 = vpack.c.b16 %v368, %v360
    %v449 = vpack.c.b16 %v369, %v361
    %v450 = vpack.c.b16 %v370, %v362
    %v451 = vpack.c.b16 %v371, %v363
    %v452 = vpack.c.b16 %v372, %v364
    %v453 = vpack.c.b16 %v381, %v373
    %v454 = vpack.c.b16 %v382, %v374
    %v455 = vpack.c.b16 %v383, %v375
    %v456 = vpack.c.b16 %v384, %v376
    %v457 = vpack.c.b16 %v385, %v377
    %v458 = vpack.c.b16 %v386, %v378
    %v459 = vpack.c.b16 %v387, %v379
    %v460 = vpack.c.b16 %v388, %v380
    %v461 = vpack.c.b16 %v397, %v389
    %v462 = vpack.c.b16 %v398, %v390
    %v463 = vpack.c.b16 %v399, %v391
    %v464 = vpack.c.b16 %v400, %v392
    %v465 = vpack.c.b16 %v401, %v393
    %v466 = vpack.c.b16 %v402, %v394
    %v467 = vpack.c.b16 %v403, %v395
    %v468 = vpack.c.b16 %v404, %v396
    %533 = vmatpush.bf16.msra.mxu0 %v461
    %534 = vmatpush.bf16.msra.mxu0 %v453
    %535 = vmatpush.bf16.msra.mxu0 %v445
    %536 = vmatpush.bf16.msra.mxu0 %v437
    %537 = vmatpush.bf16.msra.mxu0 %v429
    %538 = vmatpush.bf16.msra.mxu0 %v421
    %539 = vmatpush.bf16.msra.mxu0 %v413
    %540 = vmatpush.bf16.msra.mxu0 %v405
    %541 = vmatmul.bf16.gmra.mxu0 %v130
    %v542 = vpop.f32.mrf.mxu0
    %v543 = vadd.f32 %v197, %v542
    %v544 = vpop.f32.mrf.mxu0
    %545 = vdwg.mxu0
    %546 = vmatpush.bf16.msra.mxu0 %v462
    %547 = vmatpush.bf16.msra.mxu0 %v454
    %548 = vmatpush.bf16.msra.mxu0 %v446
    %549 = vmatpush.bf16.msra.mxu0 %v438
    %550 = vmatpush.bf16.msra.mxu0 %v430
    %551 = vmatpush.bf16.msra.mxu0 %v422
    %552 = vmatpush.bf16.msra.mxu0 %v414
    %553 = vmatpush.bf16.msra.mxu0 %v406
    %554 = vmatmul.bf16.gmra.mxu0 %v130
    %v555 = vpop.f32.mrf.mxu0
    %v556 = vadd.f32 %v198, %v555
    %v557 = vpop.f32.mrf.mxu0
    %558 = vdwg.mxu0
    %559 = vmatpush.bf16.msra.mxu0 %v463
    %560 = vmatpush.bf16.msra.mxu0 %v455
    %561 = vmatpush.bf16.msra.mxu0 %v447
    %562 = vmatpush.bf16.msra.mxu0 %v439
    %563 = vmatpush.bf16.msra.mxu0 %v431
    %564 = vmatpush.bf16.msra.mxu0 %v423
    %565 = vmatpush.bf16.msra.mxu0 %v415
    %566 = vmatpush.bf16.msra.mxu0 %v407
    %567 = vmatmul.bf16.gmra.mxu0 %v130
    %v568 = vpop.f32.mrf.mxu0
    %v569 = vadd.f32 %v199, %v568
    %v570 = vpop.f32.mrf.mxu0
    %571 = vdwg.mxu0
    %572 = vmatpush.bf16.msra.mxu0 %v464
    %573 = vmatpush.bf16.msra.mxu0 %v456
    %574 = vmatpush.bf16.msra.mxu0 %v448
    %575 = vmatpush.bf16.msra.mxu0 %v440
    %576 = vmatpush.bf16.msra.mxu0 %v432
    %577 = vmatpush.bf16.msra.mxu0 %v424
    %578 = vmatpush.bf16.msra.mxu0 %v416
    %579 = vmatpush.bf16.msra.mxu0 %v408
    %580 = vmatmul.bf16.gmra.mxu0 %v130
    %v581 = vpop.f32.mrf.mxu0
    %v582 = vadd.f32 %v200, %v581
    %v583 = vpop.f32.mrf.mxu0
    %584 = vdwg.mxu0
    %585 = vmatpush.bf16.msra.mxu0 %v465
    %586 = vmatpush.bf16.msra.mxu0 %v457
    %587 = vmatpush.bf16.msra.mxu0 %v449
    %588 = vmatpush.bf16.msra.mxu0 %v441
    %589 = vmatpush.bf16.msra.mxu0 %v433
    %590 = vmatpush.bf16.msra.mxu0 %v425
    %591 = vmatpush.bf16.msra.mxu0 %v417
    %592 = vmatpush.bf16.msra.mxu0 %v409
    %593 = vmatmul.bf16.gmra.mxu0 %v130
    %v594 = vpop.f32.mrf.mxu0
    %v595 = vadd.f32 %v201, %v594
    %v596 = vpop.f32.mrf.mxu0
    %597 = vdwg.mxu0
    %598 = vmatpush.bf16.msra.mxu0 %v466
    %599 = vmatpush.bf16.msra.mxu0 %v458
    %600 = vmatpush.bf16.msra.mxu0 %v450
    %601 = vmatpush.bf16.msra.mxu0 %v442
    %602 = vmatpush.bf16.msra.mxu0 %v434
    %603 = vmatpush.bf16.msra.mxu0 %v426
    %604 = vmatpush.bf16.msra.mxu0 %v418
    %605 = vmatpush.bf16.msra.mxu0 %v410
    %606 = vmatmul.bf16.gmra.mxu0 %v130
    %v607 = vpop.f32.mrf.mxu0
    %v608 = vadd.f32 %v202, %v607
    %v609 = vpop.f32.mrf.mxu0
    %610 = vdwg.mxu0
    %611 = vmatpush.bf16.msra.mxu0 %v467
    %612 = vmatpush.bf16.msra.mxu0 %v459
    %613 = vmatpush.bf16.msra.mxu0 %v451
    %614 = vmatpush.bf16.msra.mxu0 %v443
    %615 = vmatpush.bf16.msra.mxu0 %v435
    %616 = vmatpush.bf16.msra.mxu0 %v427
    %617 = vmatpush.bf16.msra.mxu0 %v419
    %618 = vmatpush.bf16.msra.mxu0 %v411
    %619 = vmatmul.bf16.gmra.mxu0 %v130
    %v620 = vpop.f32.mrf.mxu0
    %v621 = vadd.f32 %v203, %v620
    %v622 = vpop.f32.mrf.mxu0
    %623 = vdwg.mxu0
    %624 = vmatpush.bf16.msra.mxu0 %v468
    %625 = vmatpush.bf16.msra.mxu0 %v460
    %626 = vmatpush.bf16.msra.mxu0 %v452
    %627 = vmatpush.bf16.msra.mxu0 %v444
    %628 = vmatpush.bf16.msra.mxu0 %v436
    %629 = vmatpush.bf16.msra.mxu0 %v428
    %630 = vmatpush.bf16.msra.mxu0 %v420
    %631 = vmatpush.bf16.msra.mxu0 %v412
    %632 = vmatmul.bf16.gmra.mxu0 %v130
    %v633 = vpop.f32.mrf.mxu0
    %v634 = vadd.f32 %v204, %v633
    %v635 = vpop.f32.mrf.mxu0
    %636 = vdwg.mxu0
    %v637 = vmax.f32 %v543, 0.0
    %v638 = vmax.f32 %v556, 0.0
    %v639 = vmax.f32 %v569, 0.0
    %v640 = vmax.f32 %v582, 0.0
    %v641 = vmax.f32 %v595, 0.0
    %v642 = vmax.f32 %v608, 0.0
    %v643 = vmax.f32 %v621, 0.0
    %v644 = vmax.f32 %v634, 0.0
    %v645 = vpack.c.bf16 %v637, %v637
    %v646 = vpack.c.bf16 %v638, %v638
    %v647 = vpack.c.bf16 %v639, %v639
    %v648 = vpack.c.bf16 %v640, %v640
    %v649 = vpack.c.bf16 %v641, %v641
    %v650 = vpack.c.bf16 %v642, %v642
    %v651 = vpack.c.bf16 %v643, %v643
    %v652 = vpack.c.bf16 %v644, %v644
    %v653 = vld [vmem:[#allocation4] sm:$0xff]
    %v654 = vld [vmem:[#allocation4 + $0x8] sm:$0xff]
    %v655 = vld [vmem:[#allocation4 + $0x10] sm:$0xff]
    %v656 = vld [vmem:[#allocation4 + $0x18] sm:$0xff]
    %v657 = vld [vmem:[#allocation4 + $0x20] sm:$0xff]
    %v658 = vld [vmem:[#allocation4 + $0x28] sm:$0xff]
    %v659 = vld [vmem:[#allocation4 + $0x30] sm:$0xff]
    %v660 = vld [vmem:[#allocation4 + $0x38] sm:$0xff]
    %v661 = vld [vmem:[#allocation4 + $0x40] sm:$0xff]
    %v662 = vld [vmem:[#allocation4 + $0x48] sm:$0xff]
    %v663 = vld [vmem:[#allocation4 + $0x50] sm:$0xff]
    %v664 = vld [vmem:[#allocation4 + $0x58] sm:$0xff]
    %v665 = vld [vmem:[#allocation4 + $0x60] sm:$0xff]
    %v666 = vld [vmem:[#allocation4 + $0x68] sm:$0xff]
    %v667 = vld [vmem:[#allocation4 + $0x70] sm:$0xff]
    %v668 = vld [vmem:[#allocation4 + $0x78] sm:$0xff]
    %v669 = vld [vmem:[#allocation4 + $0x80] sm:$0xff]
    %v670 = vld [vmem:[#allocation4 + $0x88] sm:$0xff]
    %v671 = vld [vmem:[#allocation4 + $0x90] sm:$0xff]
    %v672 = vld [vmem:[#allocation4 + $0x98] sm:$0xff]
    %v673 = vld [vmem:[#allocation4 + $0xa0] sm:$0xff]
    %v674 = vld [vmem:[#allocation4 + $0xa8] sm:$0xff]
    %v675 = vld [vmem:[#allocation4 + $0xb0] sm:$0xff]
    %v676 = vld [vmem:[#allocation4 + $0xb8] sm:$0xff]
    %v677 = vld [vmem:[#allocation4 + $0xc0] sm:$0xff]
    %v678 = vld [vmem:[#allocation4 + $0xc8] sm:$0xff]
    %v679 = vld [vmem:[#allocation4 + $0xd0] sm:$0xff]
    %v680 = vld [vmem:[#allocation4 + $0xd8] sm:$0xff]
    %v681 = vld [vmem:[#allocation4 + $0xe0] sm:$0xff]
    %v682 = vld [vmem:[#allocation4 + $0xe8] sm:$0xff]
    %v683 = vld [vmem:[#allocation4 + $0xf0] sm:$0xff]
    %v684 = vld [vmem:[#allocation4 + $0xf8] sm:$0xff]
    %v685 = vld [vmem:[#allocation4 + $0x100] sm:$0xff]
    %v686 = vld [vmem:[#allocation4 + $0x108] sm:$0xff]
    %v687 = vld [vmem:[#allocation4 + $0x110] sm:$0xff]
    %v688 = vld [vmem:[#allocation4 + $0x118] sm:$0xff]
    %v689 = vld [vmem:[#allocation4 + $0x120] sm:$0xff]
    %v690 = vld [vmem:[#allocation4 + $0x128] sm:$0xff]
    %v691 = vld [vmem:[#allocation4 + $0x130] sm:$0xff]
    %v692 = vld [vmem:[#allocation4 + $0x138] sm:$0xff]
    %v693 = vld [vmem:[#allocation4 + $0x140] sm:$0xff]
    %v694 = vld [vmem:[#allocation4 + $0x148] sm:$0xff]
    %v695 = vld [vmem:[#allocation4 + $0x150] sm:$0xff]
    %v696 = vld [vmem:[#allocation4 + $0x158] sm:$0xff]
    %v697 = vld [vmem:[#allocation4 + $0x160] sm:$0xff]
    %v698 = vld [vmem:[#allocation4 + $0x168] sm:$0xff]
    %v699 = vld [vmem:[#allocation4 + $0x170] sm:$0xff]
    %v700 = vld [vmem:[#allocation4 + $0x178] sm:$0xff]
    %v701 = vld [vmem:[#allocation4 + $0x180] sm:$0xff]
    %v702 = vld [vmem:[#allocation4 + $0x188] sm:$0xff]
    %v703 = vld [vmem:[#allocation4 + $0x190] sm:$0xff]
    %v704 = vld [vmem:[#allocation4 + $0x198] sm:$0xff]
    %v705 = vld [vmem:[#allocation4 + $0x1a0] sm:$0xff]
    %v706 = vld [vmem:[#allocation4 + $0x1a8] sm:$0xff]
    %v707 = vld [vmem:[#allocation4 + $0x1b0] sm:$0xff]
    %v708 = vld [vmem:[#allocation4 + $0x1b8] sm:$0xff]
    %v709 = vld [vmem:[#allocation4 + $0x1c0] sm:$0xff]
    %v710 = vld [vmem:[#allocation4 + $0x1c8] sm:$0xff]
    %v711 = vld [vmem:[#allocation4 + $0x1d0] sm:$0xff]
    %v712 = vld [vmem:[#allocation4 + $0x1d8] sm:$0xff]
    %v713 = vld [vmem:[#allocation4 + $0x1e0] sm:$0xff]
    %v714 = vld [vmem:[#allocation4 + $0x1e8] sm:$0xff]
    %v715 = vld [vmem:[#allocation4 + $0x1f0] sm:$0xff]
    %v716 = vld [vmem:[#allocation4 + $0x1f8] sm:$0xff]
    %v717 = vld [vmem:[#allocation4 + $0x200] sm:$0xff]
    %v718 = vld [vmem:[#allocation4 + $0x208] sm:$0xff]
    %v719 = vld [vmem:[#allocation4 + $0x210] sm:$0xff]
    %v720 = vld [vmem:[#allocation4 + $0x218] sm:$0xff]
    %v721 = vld [vmem:[#allocation4 + $0x220] sm:$0xff]
    %v722 = vld [vmem:[#allocation4 + $0x228] sm:$0xff]
    %v723 = vld [vmem:[#allocation4 + $0x230] sm:$0xff]
    %v724 = vld [vmem:[#allocation4 + $0x238] sm:$0xff]
    %v725 = vld [vmem:[#allocation4 + $0x240] sm:$0xff]
    %v726 = vld [vmem:[#allocation4 + $0x248] sm:$0xff]
    %v727 = vld [vmem:[#allocation4 + $0x250] sm:$0xff]
    %v728 = vld [vmem:[#allocation4 + $0x258] sm:$0xff]
    %v729 = vld [vmem:[#allocation4 + $0x260] sm:$0xff]
    %v730 = vld [vmem:[#allocation4 + $0x268] sm:$0xff]
    %v731 = vld [vmem:[#allocation4 + $0x270] sm:$0xff]
    %v732 = vld [vmem:[#allocation4 + $0x278] sm:$0xff]
    %v733 = vld [vmem:[#allocation4 + $0x280] sm:$0xff]
    %v734 = vld [vmem:[#allocation4 + $0x288] sm:$0xff]
    %v735 = vld [vmem:[#allocation4 + $0x290] sm:$0xff]
    %v736 = vld [vmem:[#allocation4 + $0x298] sm:$0xff]
    %v737 = vld [vmem:[#allocation4 + $0x2a0] sm:$0xff]
    %v738 = vld [vmem:[#allocation4 + $0x2a8] sm:$0xff]
    %v739 = vld [vmem:[#allocation4 + $0x2b0] sm:$0xff]
    %v740 = vld [vmem:[#allocation4 + $0x2b8] sm:$0xff]
    %v741 = vld [vmem:[#allocation4 + $0x2c0] sm:$0xff]
    %v742 = vld [vmem:[#allocation4 + $0x2c8] sm:$0xff]
    %v743 = vld [vmem:[#allocation4 + $0x2d0] sm:$0xff]
    %v744 = vld [vmem:[#allocation4 + $0x2d8] sm:$0xff]
    %v745 = vld [vmem:[#allocation4 + $0x2e0] sm:$0xff]
    %v746 = vld [vmem:[#allocation4 + $0x2e8] sm:$0xff]
    %v747 = vld [vmem:[#allocation4 + $0x2f0] sm:$0xff]
    %v748 = vld [vmem:[#allocation4 + $0x2f8] sm:$0xff]
    %v749 = vld [vmem:[#allocation4 + $0x300] sm:$0xff]
    %v750 = vld [vmem:[#allocation4 + $0x308] sm:$0xff]
    %v751 = vld [vmem:[#allocation4 + $0x310] sm:$0xff]
    %v752 = vld [vmem:[#allocation4 + $0x318] sm:$0xff]
    %v753 = vld [vmem:[#allocation4 + $0x320] sm:$0xff]
    %v754 = vld [vmem:[#allocation4 + $0x328] sm:$0xff]
    %v755 = vld [vmem:[#allocation4 + $0x330] sm:$0xff]
    %v756 = vld [vmem:[#allocation4 + $0x338] sm:$0xff]
    %v757 = vld [vmem:[#allocation4 + $0x340] sm:$0xff]
    %v758 = vld [vmem:[#allocation4 + $0x348] sm:$0xff]
    %v759 = vld [vmem:[#allocation4 + $0x350] sm:$0xff]
    %v760 = vld [vmem:[#allocation4 + $0x358] sm:$0xff]
    %v761 = vld [vmem:[#allocation4 + $0x360] sm:$0xff]
    %v762 = vld [vmem:[#allocation4 + $0x368] sm:$0xff]
    %v763 = vld [vmem:[#allocation4 + $0x370] sm:$0xff]
    %v764 = vld [vmem:[#allocation4 + $0x378] sm:$0xff]
    %v765 = vld [vmem:[#allocation4 + $0x380] sm:$0xff]
    %v766 = vld [vmem:[#allocation4 + $0x388] sm:$0xff]
    %v767 = vld [vmem:[#allocation4 + $0x390] sm:$0xff]
    %v768 = vld [vmem:[#allocation4 + $0x398] sm:$0xff]
    %v769 = vld [vmem:[#allocation4 + $0x3a0] sm:$0xff]
    %v770 = vld [vmem:[#allocation4 + $0x3a8] sm:$0xff]
    %v771 = vld [vmem:[#allocation4 + $0x3b0] sm:$0xff]
    %v772 = vld [vmem:[#allocation4 + $0x3b8] sm:$0xff]
    %v773 = vld [vmem:[#allocation4 + $0x3c0] sm:$0xff]
    %v774 = vld [vmem:[#allocation4 + $0x3c8] sm:$0xff]
    %v775 = vld [vmem:[#allocation4 + $0x3d0] sm:$0xff]
    %v776 = vld [vmem:[#allocation4 + $0x3d8] sm:$0xff]
    %v777 = vld [vmem:[#allocation4 + $0x3e0] sm:$0xff]
    %v778 = vld [vmem:[#allocation4 + $0x3e8] sm:$0xff]
    %v779 = vld [vmem:[#allocation4 + $0x3f0] sm:$0xff]
    %v780 = vld [vmem:[#allocation4 + $0x3f8] sm:$0xff]
    %v781 = vld [vmem:[#allocation4 + $0x400] sm:$0xff]
    %v782 = vld [vmem:[#allocation4 + $0x408] sm:$0xff]
    %v783 = vld [vmem:[#allocation4 + $0x410] sm:$0xff]
    %v784 = vld [vmem:[#allocation4 + $0x418] sm:$0xff]
    %v785 = vld [vmem:[#allocation4 + $0x420] sm:$0xff]
    %v786 = vld [vmem:[#allocation4 + $0x428] sm:$0xff]
    %v787 = vld [vmem:[#allocation4 + $0x430] sm:$0xff]
    %v788 = vld [vmem:[#allocation4 + $0x438] sm:$0xff]
    %v789 = vld [vmem:[#allocation4 + $0x440] sm:$0xff]
    %v790 = vld [vmem:[#allocation4 + $0x448] sm:$0xff]
    %v791 = vld [vmem:[#allocation4 + $0x450] sm:$0xff]
    %v792 = vld [vmem:[#allocation4 + $0x458] sm:$0xff]
    %v793 = vld [vmem:[#allocation4 + $0x460] sm:$0xff]
    %v794 = vld [vmem:[#allocation4 + $0x468] sm:$0xff]
    %v795 = vld [vmem:[#allocation4 + $0x470] sm:$0xff]
    %v796 = vld [vmem:[#allocation4 + $0x478] sm:$0xff]
    %v797 = vld [vmem:[#allocation4 + $0x480] sm:$0xff]
    %v798 = vld [vmem:[#allocation4 + $0x488] sm:$0xff]
    %v799 = vld [vmem:[#allocation4 + $0x490] sm:$0xff]
    %v800 = vld [vmem:[#allocation4 + $0x498] sm:$0xff]
    %v801 = vld [vmem:[#allocation4 + $0x4a0] sm:$0xff]
    %v802 = vld [vmem:[#allocation4 + $0x4a8] sm:$0xff]
    %v803 = vld [vmem:[#allocation4 + $0x4b0] sm:$0xff]
    %v804 = vld [vmem:[#allocation4 + $0x4b8] sm:$0xff]
    %v805 = vld [vmem:[#allocation4 + $0x4c0] sm:$0xff]
    %v806 = vld [vmem:[#allocation4 + $0x4c8] sm:$0xff]
    %v807 = vld [vmem:[#allocation4 + $0x4d0] sm:$0xff]
    %v808 = vld [vmem:[#allocation4 + $0x4d8] sm:$0xff]
    %v809 = vld [vmem:[#allocation4 + $0x4e0] sm:$0xff]
    %v810 = vld [vmem:[#allocation4 + $0x4e8] sm:$0xff]
    %v811 = vld [vmem:[#allocation4 + $0x4f0] sm:$0xff]
    %v812 = vld [vmem:[#allocation4 + $0x4f8] sm:$0xff]
    %v813 = vld [vmem:[#allocation4 + $0x500] sm:$0xff]
    %v814 = vld [vmem:[#allocation4 + $0x508] sm:$0xff]
    %v815 = vld [vmem:[#allocation4 + $0x510] sm:$0xff]
    %v816 = vld [vmem:[#allocation4 + $0x518] sm:$0xff]
    %v817 = vld [vmem:[#allocation4 + $0x520] sm:$0xff]
    %v818 = vld [vmem:[#allocation4 + $0x528] sm:$0xff]
    %v819 = vld [vmem:[#allocation4 + $0x530] sm:$0xff]
    %v820 = vld [vmem:[#allocation4 + $0x538] sm:$0xff]
    %v821 = vld [vmem:[#allocation4 + $0x540] sm:$0xff]
    %v822 = vld [vmem:[#allocation4 + $0x548] sm:$0xff]
    %v823 = vld [vmem:[#allocation4 + $0x550] sm:$0xff]
    %v824 = vld [vmem:[#allocation4 + $0x558] sm:$0xff]
    %v825 = vld [vmem:[#allocation4 + $0x560] sm:$0xff]
    %v826 = vld [vmem:[#allocation4 + $0x568] sm:$0xff]
    %v827 = vld [vmem:[#allocation4 + $0x570] sm:$0xff]
    %v828 = vld [vmem:[#allocation4 + $0x578] sm:$0xff]
    %v829 = vld [vmem:[#allocation4 + $0x580] sm:$0xff]
    %v830 = vld [vmem:[#allocation4 + $0x588] sm:$0xff]
    %v831 = vld [vmem:[#allocation4 + $0x590] sm:$0xff]
    %v832 = vld [vmem:[#allocation4 + $0x598] sm:$0xff]
    %v833 = vld [vmem:[#allocation4 + $0x5a0] sm:$0xff]
    %v834 = vld [vmem:[#allocation4 + $0x5a8] sm:$0xff]
    %v835 = vld [vmem:[#allocation4 + $0x5b0] sm:$0xff]
    %v836 = vld [vmem:[#allocation4 + $0x5b8] sm:$0xff]
    %v837 = vld [vmem:[#allocation4 + $0x5c0] sm:$0xff]
    %v838 = vld [vmem:[#allocation4 + $0x5c8] sm:$0xff]
    %v839 = vld [vmem:[#allocation4 + $0x5d0] sm:$0xff]
    %v840 = vld [vmem:[#allocation4 + $0x5d8] sm:$0xff]
    %v841 = vld [vmem:[#allocation4 + $0x5e0] sm:$0xff]
    %v842 = vld [vmem:[#allocation4 + $0x5e8] sm:$0xff]
    %v843 = vld [vmem:[#allocation4 + $0x5f0] sm:$0xff]
    %v844 = vld [vmem:[#allocation4 + $0x5f8] sm:$0xff]
    %v845 = vld [vmem:[#allocation4 + $0x600] sm:$0xff]
    %v846 = vld [vmem:[#allocation4 + $0x608] sm:$0xff]
    %v847 = vld [vmem:[#allocation4 + $0x610] sm:$0xff]
    %v848 = vld [vmem:[#allocation4 + $0x618] sm:$0xff]
    %v849 = vld [vmem:[#allocation4 + $0x620] sm:$0xff]
    %v850 = vld [vmem:[#allocation4 + $0x628] sm:$0xff]
    %v851 = vld [vmem:[#allocation4 + $0x630] sm:$0xff]
    %v852 = vld [vmem:[#allocation4 + $0x638] sm:$0xff]
    %v853 = vld [vmem:[#allocation4 + $0x640] sm:$0xff]
    %v854 = vld [vmem:[#allocation4 + $0x648] sm:$0xff]
    %v855 = vld [vmem:[#allocation4 + $0x650] sm:$0xff]
    %v856 = vld [vmem:[#allocation4 + $0x658] sm:$0xff]
    %v857 = vld [vmem:[#allocation4 + $0x660] sm:$0xff]
    %v858 = vld [vmem:[#allocation4 + $0x668] sm:$0xff]
    %v859 = vld [vmem:[#allocation4 + $0x670] sm:$0xff]
    %v860 = vld [vmem:[#allocation4 + $0x678] sm:$0xff]
    %v861 = vld [vmem:[#allocation4 + $0x680] sm:$0xff]
    %v862 = vld [vmem:[#allocation4 + $0x688] sm:$0xff]
    %v863 = vld [vmem:[#allocation4 + $0x690] sm:$0xff]
    %v864 = vld [vmem:[#allocation4 + $0x698] sm:$0xff]
    %v865 = vld [vmem:[#allocation4 + $0x6a0] sm:$0xff]
    %v866 = vld [vmem:[#allocation4 + $0x6a8] sm:$0xff]
    %v867 = vld [vmem:[#allocation4 + $0x6b0] sm:$0xff]
    %v868 = vld [vmem:[#allocation4 + $0x6b8] sm:$0xff]
    %v869 = vld [vmem:[#allocation4 + $0x6c0] sm:$0xff]
    %v870 = vld [vmem:[#allocation4 + $0x6c8] sm:$0xff]
    %v871 = vld [vmem:[#allocation4 + $0x6d0] sm:$0xff]
    %v872 = vld [vmem:[#allocation4 + $0x6d8] sm:$0xff]
    %v873 = vld [vmem:[#allocation4 + $0x6e0] sm:$0xff]
    %v874 = vld [vmem:[#allocation4 + $0x6e8] sm:$0xff]
    %v875 = vld [vmem:[#allocation4 + $0x6f0] sm:$0xff]
    %v876 = vld [vmem:[#allocation4 + $0x6f8] sm:$0xff]
    %v877 = vld [vmem:[#allocation4 + $0x700] sm:$0xff]
    %v878 = vld [vmem:[#allocation4 + $0x708] sm:$0xff]
    %v879 = vld [vmem:[#allocation4 + $0x710] sm:$0xff]
    %v880 = vld [vmem:[#allocation4 + $0x718] sm:$0xff]
    %v881 = vld [vmem:[#allocation4 + $0x720] sm:$0xff]
    %v882 = vld [vmem:[#allocation4 + $0x728] sm:$0xff]
    %v883 = vld [vmem:[#allocation4 + $0x730] sm:$0xff]
    %v884 = vld [vmem:[#allocation4 + $0x738] sm:$0xff]
    %v885 = vld [vmem:[#allocation4 + $0x740] sm:$0xff]
    %v886 = vld [vmem:[#allocation4 + $0x748] sm:$0xff]
    %v887 = vld [vmem:[#allocation4 + $0x750] sm:$0xff]
    %v888 = vld [vmem:[#allocation4 + $0x758] sm:$0xff]
    %v889 = vld [vmem:[#allocation4 + $0x760] sm:$0xff]
    %v890 = vld [vmem:[#allocation4 + $0x768] sm:$0xff]
    %v891 = vld [vmem:[#allocation4 + $0x770] sm:$0xff]
    %v892 = vld [vmem:[#allocation4 + $0x778] sm:$0xff]
    %v893 = vld [vmem:[#allocation4 + $0x780] sm:$0xff]
    %v894 = vld [vmem:[#allocation4 + $0x788] sm:$0xff]
    %v895 = vld [vmem:[#allocation4 + $0x790] sm:$0xff]
    %v896 = vld [vmem:[#allocation4 + $0x798] sm:$0xff]
    %v897 = vld [vmem:[#allocation4 + $0x7a0] sm:$0xff]
    %v898 = vld [vmem:[#allocation4 + $0x7a8] sm:$0xff]
    %v899 = vld [vmem:[#allocation4 + $0x7b0] sm:$0xff]
    %v900 = vld [vmem:[#allocation4 + $0x7b8] sm:$0xff]
    %v901 = vld [vmem:[#allocation4 + $0x7c0] sm:$0xff]
    %v902 = vld [vmem:[#allocation4 + $0x7c8] sm:$0xff]
    %v903 = vld [vmem:[#allocation4 + $0x7d0] sm:$0xff]
    %v904 = vld [vmem:[#allocation4 + $0x7d8] sm:$0xff]
    %v905 = vld [vmem:[#allocation4 + $0x7e0] sm:$0xff]
    %v906 = vld [vmem:[#allocation4 + $0x7e8] sm:$0xff]
    %v907 = vld [vmem:[#allocation4 + $0x7f0] sm:$0xff]
    %v908 = vld [vmem:[#allocation4 + $0x7f8] sm:$0xff]
    %v909 = vld [vmem:[%s4] sm:$0xf]
    %v911 = vperm.slane %v909, 0
    %v912 = vperm.slane %v909, 1
    %v913 = vperm.slane %v909, 2
    %v914 = vperm.slane %v909, 3
    %v1175 = vunpack.c.l.b16 %v653
    %v1176 = vunpack.c.h.b16 %v653
    %v1177 = vunpack.c.l.b16 %v654
    %v1178 = vunpack.c.h.b16 %v654
    %v1179 = vunpack.c.l.b16 %v655
    %v1180 = vunpack.c.h.b16 %v655
    %v1181 = vunpack.c.l.b16 %v656
    %v1182 = vunpack.c.h.b16 %v656
    %v1183 = vunpack.c.l.b16 %v657
    %v1184 = vunpack.c.h.b16 %v657
    %v1185 = vunpack.c.l.b16 %v658
    %v1186 = vunpack.c.h.b16 %v658
    %v1187 = vunpack.c.l.b16 %v659
    %v1188 = vunpack.c.h.b16 %v659
    %v1189 = vunpack.c.l.b16 %v660
    %v1190 = vunpack.c.h.b16 %v660
    %v1191 = vunpack.c.l.b16 %v661
    %v1192 = vunpack.c.h.b16 %v661
    %v1193 = vunpack.c.l.b16 %v662
    %v1194 = vunpack.c.h.b16 %v662
    %v1195 = vunpack.c.l.b16 %v663
    %v1196 = vunpack.c.h.b16 %v663
    %v1197 = vunpack.c.l.b16 %v664
    %v1198 = vunpack.c.h.b16 %v664
    %v1199 = vunpack.c.l.b16 %v665
    %v1200 = vunpack.c.h.b16 %v665
    %v1201 = vunpack.c.l.b16 %v666
    %v1202 = vunpack.c.h.b16 %v666
    %v1203 = vunpack.c.l.b16 %v667
    %v1204 = vunpack.c.h.b16 %v667
    %v1205 = vunpack.c.l.b16 %v668
    %v1206 = vunpack.c.h.b16 %v668
    %v1207 = vunpack.c.l.b16 %v669
    %v1208 = vunpack.c.h.b16 %v669
    %v1209 = vunpack.c.l.b16 %v670
    %v1210 = vunpack.c.h.b16 %v670
    %v1211 = vunpack.c.l.b16 %v671
    %v1212 = vunpack.c.h.b16 %v671
    %v1213 = vunpack.c.l.b16 %v672
    %v1214 = vunpack.c.h.b16 %v672
    %v1215 = vunpack.c.l.b16 %v673
    %v1216 = vunpack.c.h.b16 %v673
    %v1217 = vunpack.c.l.b16 %v674
    %v1218 = vunpack.c.h.b16 %v674
    %v1219 = vunpack.c.l.b16 %v675
    %v1220 = vunpack.c.h.b16 %v675
    %v1221 = vunpack.c.l.b16 %v676
    %v1222 = vunpack.c.h.b16 %v676
    %v1223 = vunpack.c.l.b16 %v677
    %v1224 = vunpack.c.h.b16 %v677
    %v1225 = vunpack.c.l.b16 %v678
    %v1226 = vunpack.c.h.b16 %v678
    %v1227 = vunpack.c.l.b16 %v679
    %v1228 = vunpack.c.h.b16 %v679
    %v1229 = vunpack.c.l.b16 %v680
    %v1230 = vunpack.c.h.b16 %v680
    %v1231 = vunpack.c.l.b16 %v681
    %v1232 = vunpack.c.h.b16 %v681
    %v1233 = vunpack.c.l.b16 %v682
    %v1234 = vunpack.c.h.b16 %v682
    %v1235 = vunpack.c.l.b16 %v683
    %v1236 = vunpack.c.h.b16 %v683
    %v1237 = vunpack.c.l.b16 %v684
    %v1238 = vunpack.c.h.b16 %v684
    %v1239 = vunpack.c.l.b16 %v685
    %v1240 = vunpack.c.h.b16 %v685
    %v1241 = vunpack.c.l.b16 %v686
    %v1242 = vunpack.c.h.b16 %v686
    %v1243 = vunpack.c.l.b16 %v687
    %v1244 = vunpack.c.h.b16 %v687
    %v1245 = vunpack.c.l.b16 %v688
    %v1246 = vunpack.c.h.b16 %v688
    %v1247 = vunpack.c.l.b16 %v689
    %v1248 = vunpack.c.h.b16 %v689
    %v1249 = vunpack.c.l.b16 %v690
    %v1250 = vunpack.c.h.b16 %v690
    %v1251 = vunpack.c.l.b16 %v691
    %v1252 = vunpack.c.h.b16 %v691
    %v1253 = vunpack.c.l.b16 %v692
    %v1254 = vunpack.c.h.b16 %v692
    %v1255 = vunpack.c.l.b16 %v693
    %v1256 = vunpack.c.h.b16 %v693
    %v1257 = vunpack.c.l.b16 %v694
    %v1258 = vunpack.c.h.b16 %v694
    %v1259 = vunpack.c.l.b16 %v695
    %v1260 = vunpack.c.h.b16 %v695
    %v1261 = vunpack.c.l.b16 %v696
    %v1262 = vunpack.c.h.b16 %v696
    %v1263 = vunpack.c.l.b16 %v697
    %v1264 = vunpack.c.h.b16 %v697
    %v1265 = vunpack.c.l.b16 %v698
    %v1266 = vunpack.c.h.b16 %v698
    %v1267 = vunpack.c.l.b16 %v699
    %v1268 = vunpack.c.h.b16 %v699
    %v1269 = vunpack.c.l.b16 %v700
    %v1270 = vunpack.c.h.b16 %v700
    %v1271 = vunpack.c.l.b16 %v701
    %v1272 = vunpack.c.h.b16 %v701
    %v1273 = vunpack.c.l.b16 %v702
    %v1274 = vunpack.c.h.b16 %v702
    %v1275 = vunpack.c.l.b16 %v703
    %v1276 = vunpack.c.h.b16 %v703
    %v1277 = vunpack.c.l.b16 %v704
    %v1278 = vunpack.c.h.b16 %v704
    %v1279 = vunpack.c.l.b16 %v705
    %v1280 = vunpack.c.h.b16 %v705
    %v1281 = vunpack.c.l.b16 %v706
    %v1282 = vunpack.c.h.b16 %v706
    %v1283 = vunpack.c.l.b16 %v707
    %v1284 = vunpack.c.h.b16 %v707
    %v1285 = vunpack.c.l.b16 %v708
    %v1286 = vunpack.c.h.b16 %v708
    %v1287 = vunpack.c.l.b16 %v709
    %v1288 = vunpack.c.h.b16 %v709
    %v1289 = vunpack.c.l.b16 %v710
    %v1290 = vunpack.c.h.b16 %v710
    %v1291 = vunpack.c.l.b16 %v711
    %v1292 = vunpack.c.h.b16 %v711
    %v1293 = vunpack.c.l.b16 %v712
    %v1294 = vunpack.c.h.b16 %v712
    %v1295 = vunpack.c.l.b16 %v713
    %v1296 = vunpack.c.h.b16 %v713
    %v1297 = vunpack.c.l.b16 %v714
    %v1298 = vunpack.c.h.b16 %v714
    %v1299 = vunpack.c.l.b16 %v715
    %v1300 = vunpack.c.h.b16 %v715
    %v1301 = vunpack.c.l.b16 %v716
    %v1302 = vunpack.c.h.b16 %v716
    %v1303 = vunpack.c.l.b16 %v717
    %v1304 = vunpack.c.h.b16 %v717
    %v1305 = vunpack.c.l.b16 %v718
    %v1306 = vunpack.c.h.b16 %v718
    %v1307 = vunpack.c.l.b16 %v719
    %v1308 = vunpack.c.h.b16 %v719
    %v1309 = vunpack.c.l.b16 %v720
    %v1310 = vunpack.c.h.b16 %v720
    %v1311 = vunpack.c.l.b16 %v721
    %v1312 = vunpack.c.h.b16 %v721
    %v1313 = vunpack.c.l.b16 %v722
    %v1314 = vunpack.c.h.b16 %v722
    %v1315 = vunpack.c.l.b16 %v723
    %v1316 = vunpack.c.h.b16 %v723
    %v1317 = vunpack.c.l.b16 %v724
    %v1318 = vunpack.c.h.b16 %v724
    %v1319 = vunpack.c.l.b16 %v725
    %v1320 = vunpack.c.h.b16 %v725
    %v1321 = vunpack.c.l.b16 %v726
    %v1322 = vunpack.c.h.b16 %v726
    %v1323 = vunpack.c.l.b16 %v727
    %v1324 = vunpack.c.h.b16 %v727
    %v1325 = vunpack.c.l.b16 %v728
    %v1326 = vunpack.c.h.b16 %v728
    %v1327 = vunpack.c.l.b16 %v729
    %v1328 = vunpack.c.h.b16 %v729
    %v1329 = vunpack.c.l.b16 %v730
    %v1330 = vunpack.c.h.b16 %v730
    %v1331 = vunpack.c.l.b16 %v731
    %v1332 = vunpack.c.h.b16 %v731
    %v1333 = vunpack.c.l.b16 %v732
    %v1334 = vunpack.c.h.b16 %v732
    %v1335 = vunpack.c.l.b16 %v733
    %v1336 = vunpack.c.h.b16 %v733
    %v1337 = vunpack.c.l.b16 %v734
    %v1338 = vunpack.c.h.b16 %v734
    %v1339 = vunpack.c.l.b16 %v735
    %v1340 = vunpack.c.h.b16 %v735
    %v1341 = vunpack.c.l.b16 %v736
    %v1342 = vunpack.c.h.b16 %v736
    %v1343 = vunpack.c.l.b16 %v737
    %v1344 = vunpack.c.h.b16 %v737
    %v1345 = vunpack.c.l.b16 %v738
    %v1346 = vunpack.c.h.b16 %v738
    %v1347 = vunpack.c.l.b16 %v739
    %v1348 = vunpack.c.h.b16 %v739
    %v1349 = vunpack.c.l.b16 %v740
    %v1350 = vunpack.c.h.b16 %v740
    %v1351 = vunpack.c.l.b16 %v741
    %v1352 = vunpack.c.h.b16 %v741
    %v1353 = vunpack.c.l.b16 %v742
    %v1354 = vunpack.c.h.b16 %v742
    %v1355 = vunpack.c.l.b16 %v743
    %v1356 = vunpack.c.h.b16 %v743
    %v1357 = vunpack.c.l.b16 %v744
    %v1358 = vunpack.c.h.b16 %v744
    %v1359 = vunpack.c.l.b16 %v745
    %v1360 = vunpack.c.h.b16 %v745
    %v1361 = vunpack.c.l.b16 %v746
    %v1362 = vunpack.c.h.b16 %v746
    %v1363 = vunpack.c.l.b16 %v747
    %v1364 = vunpack.c.h.b16 %v747
    %v1365 = vunpack.c.l.b16 %v748
    %v1366 = vunpack.c.h.b16 %v748
    %v1367 = vunpack.c.l.b16 %v749
    %v1368 = vunpack.c.h.b16 %v749
    %v1369 = vunpack.c.l.b16 %v750
    %v1370 = vunpack.c.h.b16 %v750
    %v1371 = vunpack.c.l.b16 %v751
    %v1372 = vunpack.c.h.b16 %v751
    %v1373 = vunpack.c.l.b16 %v752
    %v1374 = vunpack.c.h.b16 %v752
    %v1375 = vunpack.c.l.b16 %v753
    %v1376 = vunpack.c.h.b16 %v753
    %v1377 = vunpack.c.l.b16 %v754
    %v1378 = vunpack.c.h.b16 %v754
    %v1379 = vunpack.c.l.b16 %v755
    %v1380 = vunpack.c.h.b16 %v755
    %v1381 = vunpack.c.l.b16 %v756
    %v1382 = vunpack.c.h.b16 %v756
    %v1383 = vunpack.c.l.b16 %v757
    %v1384 = vunpack.c.h.b16 %v757
    %v1385 = vunpack.c.l.b16 %v758
    %v1386 = vunpack.c.h.b16 %v758
    %v1387 = vunpack.c.l.b16 %v759
    %v1388 = vunpack.c.h.b16 %v759
    %v1389 = vunpack.c.l.b16 %v760
    %v1390 = vunpack.c.h.b16 %v760
    %v1391 = vunpack.c.l.b16 %v761
    %v1392 = vunpack.c.h.b16 %v761
    %v1393 = vunpack.c.l.b16 %v762
    %v1394 = vunpack.c.h.b16 %v762
    %v1395 = vunpack.c.l.b16 %v763
    %v1396 = vunpack.c.h.b16 %v763
    %v1397 = vunpack.c.l.b16 %v764
    %v1398 = vunpack.c.h.b16 %v764
    %v1399 = vunpack.c.l.b16 %v765
    %v1400 = vunpack.c.h.b16 %v765
    %v1401 = vunpack.c.l.b16 %v766
    %v1402 = vunpack.c.h.b16 %v766
    %v1403 = vunpack.c.l.b16 %v767
    %v1404 = vunpack.c.h.b16 %v767
    %v1405 = vunpack.c.l.b16 %v768
    %v1406 = vunpack.c.h.b16 %v768
    %v1407 = vunpack.c.l.b16 %v769
    %v1408 = vunpack.c.h.b16 %v769
    %v1409 = vunpack.c.l.b16 %v770
    %v1410 = vunpack.c.h.b16 %v770
    %v1411 = vunpack.c.l.b16 %v771
    %v1412 = vunpack.c.h.b16 %v771
    %v1413 = vunpack.c.l.b16 %v772
    %v1414 = vunpack.c.h.b16 %v772
    %v1415 = vunpack.c.l.b16 %v773
    %v1416 = vunpack.c.h.b16 %v773
    %v1417 = vunpack.c.l.b16 %v774
    %v1418 = vunpack.c.h.b16 %v774
    %v1419 = vunpack.c.l.b16 %v775
    %v1420 = vunpack.c.h.b16 %v775
    %v1421 = vunpack.c.l.b16 %v776
    %v1422 = vunpack.c.h.b16 %v776
    %v1423 = vunpack.c.l.b16 %v777
    %v1424 = vunpack.c.h.b16 %v777
    %v1425 = vunpack.c.l.b16 %v778
    %v1426 = vunpack.c.h.b16 %v778
    %v1427 = vunpack.c.l.b16 %v779
    %v1428 = vunpack.c.h.b16 %v779
    %v1429 = vunpack.c.l.b16 %v780
    %v1430 = vunpack.c.h.b16 %v780
    %v1431 = vunpack.c.l.b16 %v781
    %v1432 = vunpack.c.h.b16 %v781
    %v1433 = vunpack.c.l.b16 %v782
    %v1434 = vunpack.c.h.b16 %v782
    %v1435 = vunpack.c.l.b16 %v783
    %v1436 = vunpack.c.h.b16 %v783
    %v1437 = vunpack.c.l.b16 %v784
    %v1438 = vunpack.c.h.b16 %v784
    %v1439 = vunpack.c.l.b16 %v785
    %v1440 = vunpack.c.h.b16 %v785
    %v1441 = vunpack.c.l.b16 %v786
    %v1442 = vunpack.c.h.b16 %v786
    %v1443 = vunpack.c.l.b16 %v787
    %v1444 = vunpack.c.h.b16 %v787
    %v1445 = vunpack.c.l.b16 %v788
    %v1446 = vunpack.c.h.b16 %v788
    %v1447 = vunpack.c.l.b16 %v789
    %v1448 = vunpack.c.h.b16 %v789
    %v1449 = vunpack.c.l.b16 %v790
    %v1450 = vunpack.c.h.b16 %v790
    %v1451 = vunpack.c.l.b16 %v791
    %v1452 = vunpack.c.h.b16 %v791
    %v1453 = vunpack.c.l.b16 %v792
    %v1454 = vunpack.c.h.b16 %v792
    %v1455 = vunpack.c.l.b16 %v793
    %v1456 = vunpack.c.h.b16 %v793
    %v1457 = vunpack.c.l.b16 %v794
    %v1458 = vunpack.c.h.b16 %v794
    %v1459 = vunpack.c.l.b16 %v795
    %v1460 = vunpack.c.h.b16 %v795
    %v1461 = vunpack.c.l.b16 %v796
    %v1462 = vunpack.c.h.b16 %v796
    %v1463 = vunpack.c.l.b16 %v797
    %v1464 = vunpack.c.h.b16 %v797
    %v1465 = vunpack.c.l.b16 %v798
    %v1466 = vunpack.c.h.b16 %v798
    %v1467 = vunpack.c.l.b16 %v799
    %v1468 = vunpack.c.h.b16 %v799
    %v1469 = vunpack.c.l.b16 %v800
    %v1470 = vunpack.c.h.b16 %v800
    %v1471 = vunpack.c.l.b16 %v801
    %v1472 = vunpack.c.h.b16 %v801
    %v1473 = vunpack.c.l.b16 %v802
    %v1474 = vunpack.c.h.b16 %v802
    %v1475 = vunpack.c.l.b16 %v803
    %v1476 = vunpack.c.h.b16 %v803
    %v1477 = vunpack.c.l.b16 %v804
    %v1478 = vunpack.c.h.b16 %v804
    %v1479 = vunpack.c.l.b16 %v805
    %v1480 = vunpack.c.h.b16 %v805
    %v1481 = vunpack.c.l.b16 %v806
    %v1482 = vunpack.c.h.b16 %v806
    %v1483 = vunpack.c.l.b16 %v807
    %v1484 = vunpack.c.h.b16 %v807
    %v1485 = vunpack.c.l.b16 %v808
    %v1486 = vunpack.c.h.b16 %v808
    %v1487 = vunpack.c.l.b16 %v809
    %v1488 = vunpack.c.h.b16 %v809
    %v1489 = vunpack.c.l.b16 %v810
    %v1490 = vunpack.c.h.b16 %v810
    %v1491 = vunpack.c.l.b16 %v811
    %v1492 = vunpack.c.h.b16 %v811
    %v1493 = vunpack.c.l.b16 %v812
    %v1494 = vunpack.c.h.b16 %v812
    %v1495 = vunpack.c.l.b16 %v813
    %v1496 = vunpack.c.h.b16 %v813
    %v1497 = vunpack.c.l.b16 %v814
    %v1498 = vunpack.c.h.b16 %v814
    %v1499 = vunpack.c.l.b16 %v815
    %v1500 = vunpack.c.h.b16 %v815
    %v1501 = vunpack.c.l.b16 %v816
    %v1502 = vunpack.c.h.b16 %v816
    %v1503 = vunpack.c.l.b16 %v817
    %v1504 = vunpack.c.h.b16 %v817
    %v1505 = vunpack.c.l.b16 %v818
    %v1506 = vunpack.c.h.b16 %v818
    %v1507 = vunpack.c.l.b16 %v819
    %v1508 = vunpack.c.h.b16 %v819
    %v1509 = vunpack.c.l.b16 %v820
    %v1510 = vunpack.c.h.b16 %v820
    %v1511 = vunpack.c.l.b16 %v821
    %v1512 = vunpack.c.h.b16 %v821
    %v1513 = vunpack.c.l.b16 %v822
    %v1514 = vunpack.c.h.b16 %v822
    %v1515 = vunpack.c.l.b16 %v823
    %v1516 = vunpack.c.h.b16 %v823
    %v1517 = vunpack.c.l.b16 %v824
    %v1518 = vunpack.c.h.b16 %v824
    %v1519 = vunpack.c.l.b16 %v825
    %v1520 = vunpack.c.h.b16 %v825
    %v1521 = vunpack.c.l.b16 %v826
    %v1522 = vunpack.c.h.b16 %v826
    %v1523 = vunpack.c.l.b16 %v827
    %v1524 = vunpack.c.h.b16 %v827
    %v1525 = vunpack.c.l.b16 %v828
    %v1526 = vunpack.c.h.b16 %v828
    %v1527 = vunpack.c.l.b16 %v829
    %v1528 = vunpack.c.h.b16 %v829
    %v1529 = vunpack.c.l.b16 %v830
    %v1530 = vunpack.c.h.b16 %v830
    %v1531 = vunpack.c.l.b16 %v831
    %v1532 = vunpack.c.h.b16 %v831
    %v1533 = vunpack.c.l.b16 %v832
    %v1534 = vunpack.c.h.b16 %v832
    %v1535 = vunpack.c.l.b16 %v833
    %v1536 = vunpack.c.h.b16 %v833
    %v1537 = vunpack.c.l.b16 %v834
    %v1538 = vunpack.c.h.b16 %v834
    %v1539 = vunpack.c.l.b16 %v835
    %v1540 = vunpack.c.h.b16 %v835
    %v1541 = vunpack.c.l.b16 %v836
    %v1542 = vunpack.c.h.b16 %v836
    %v1543 = vunpack.c.l.b16 %v837
    %v1544 = vunpack.c.h.b16 %v837
    %v1545 = vunpack.c.l.b16 %v838
    %v1546 = vunpack.c.h.b16 %v838
    %v1547 = vunpack.c.l.b16 %v839
    %v1548 = vunpack.c.h.b16 %v839
    %v1549 = vunpack.c.l.b16 %v840
    %v1550 = vunpack.c.h.b16 %v840
    %v1551 = vunpack.c.l.b16 %v841
    %v1552 = vunpack.c.h.b16 %v841
    %v1553 = vunpack.c.l.b16 %v842
    %v1554 = vunpack.c.h.b16 %v842
    %v1555 = vunpack.c.l.b16 %v843
    %v1556 = vunpack.c.h.b16 %v843
    %v1557 = vunpack.c.l.b16 %v844
    %v1558 = vunpack.c.h.b16 %v844
    %v1559 = vunpack.c.l.b16 %v845
    %v1560 = vunpack.c.h.b16 %v845
    %v1561 = vunpack.c.l.b16 %v846
    %v1562 = vunpack.c.h.b16 %v846
    %v1563 = vunpack.c.l.b16 %v847
    %v1564 = vunpack.c.h.b16 %v847
    %v1565 = vunpack.c.l.b16 %v848
    %v1566 = vunpack.c.h.b16 %v848
    %v1567 = vunpack.c.l.b16 %v849
    %v1568 = vunpack.c.h.b16 %v849
    %v1569 = vunpack.c.l.b16 %v850
    %v1570 = vunpack.c.h.b16 %v850
    %v1571 = vunpack.c.l.b16 %v851
    %v1572 = vunpack.c.h.b16 %v851
    %v1573 = vunpack.c.l.b16 %v852
    %v1574 = vunpack.c.h.b16 %v852
    %v1575 = vunpack.c.l.b16 %v853
    %v1576 = vunpack.c.h.b16 %v853
    %v1577 = vunpack.c.l.b16 %v854
    %v1578 = vunpack.c.h.b16 %v854
    %v1579 = vunpack.c.l.b16 %v855
    %v1580 = vunpack.c.h.b16 %v855
    %v1581 = vunpack.c.l.b16 %v856
    %v1582 = vunpack.c.h.b16 %v856
    %v1583 = vunpack.c.l.b16 %v857
    %v1584 = vunpack.c.h.b16 %v857
    %v1585 = vunpack.c.l.b16 %v858
    %v1586 = vunpack.c.h.b16 %v858
    %v1587 = vunpack.c.l.b16 %v859
    %v1588 = vunpack.c.h.b16 %v859
    %v1589 = vunpack.c.l.b16 %v860
    %v1590 = vunpack.c.h.b16 %v860
    %v1591 = vunpack.c.l.b16 %v861
    %v1592 = vunpack.c.h.b16 %v861
    %v1593 = vunpack.c.l.b16 %v862
    %v1594 = vunpack.c.h.b16 %v862
    %v1595 = vunpack.c.l.b16 %v863
    %v1596 = vunpack.c.h.b16 %v863
    %v1597 = vunpack.c.l.b16 %v864
    %v1598 = vunpack.c.h.b16 %v864
    %v1599 = vunpack.c.l.b16 %v865
    %v1600 = vunpack.c.h.b16 %v865
    %v1601 = vunpack.c.l.b16 %v866
    %v1602 = vunpack.c.h.b16 %v866
    %v1603 = vunpack.c.l.b16 %v867
    %v1604 = vunpack.c.h.b16 %v867
    %v1605 = vunpack.c.l.b16 %v868
    %v1606 = vunpack.c.h.b16 %v868
    %v1607 = vunpack.c.l.b16 %v869
    %v1608 = vunpack.c.h.b16 %v869
    %v1609 = vunpack.c.l.b16 %v870
    %v1610 = vunpack.c.h.b16 %v870
    %v1611 = vunpack.c.l.b16 %v871
    %v1612 = vunpack.c.h.b16 %v871
    %v1613 = vunpack.c.l.b16 %v872
    %v1614 = vunpack.c.h.b16 %v872
    %v1615 = vunpack.c.l.b16 %v873
    %v1616 = vunpack.c.h.b16 %v873
    %v1617 = vunpack.c.l.b16 %v874
    %v1618 = vunpack.c.h.b16 %v874
    %v1619 = vunpack.c.l.b16 %v875
    %v1620 = vunpack.c.h.b16 %v875
    %v1621 = vunpack.c.l.b16 %v876
    %v1622 = vunpack.c.h.b16 %v876
    %v1623 = vunpack.c.l.b16 %v877
    %v1624 = vunpack.c.h.b16 %v877
    %v1625 = vunpack.c.l.b16 %v878
    %v1626 = vunpack.c.h.b16 %v878
    %v1627 = vunpack.c.l.b16 %v879
    %v1628 = vunpack.c.h.b16 %v879
    %v1629 = vunpack.c.l.b16 %v880
    %v1630 = vunpack.c.h.b16 %v880
    %v1631 = vunpack.c.l.b16 %v881
    %v1632 = vunpack.c.h.b16 %v881
    %v1633 = vunpack.c.l.b16 %v882
    %v1634 = vunpack.c.h.b16 %v882
    %v1635 = vunpack.c.l.b16 %v883
    %v1636 = vunpack.c.h.b16 %v883
    %v1637 = vunpack.c.l.b16 %v884
    %v1638 = vunpack.c.h.b16 %v884
    %v1639 = vunpack.c.l.b16 %v885
    %v1640 = vunpack.c.h.b16 %v885
    %v1641 = vunpack.c.l.b16 %v886
    %v1642 = vunpack.c.h.b16 %v886
    %v1643 = vunpack.c.l.b16 %v887
    %v1644 = vunpack.c.h.b16 %v887
    %v1645 = vunpack.c.l.b16 %v888
    %v1646 = vunpack.c.h.b16 %v888
    %v1647 = vunpack.c.l.b16 %v889
    %v1648 = vunpack.c.h.b16 %v889
    %v1649 = vunpack.c.l.b16 %v890
    %v1650 = vunpack.c.h.b16 %v890
    %v1651 = vunpack.c.l.b16 %v891
    %v1652 = vunpack.c.h.b16 %v891
    %v1653 = vunpack.c.l.b16 %v892
    %v1654 = vunpack.c.h.b16 %v892
    %v1655 = vunpack.c.l.b16 %v893
    %v1656 = vunpack.c.h.b16 %v893
    %v1657 = vunpack.c.l.b16 %v894
    %v1658 = vunpack.c.h.b16 %v894
    %v1659 = vunpack.c.l.b16 %v895
    %v1660 = vunpack.c.h.b16 %v895
    %v1661 = vunpack.c.l.b16 %v896
    %v1662 = vunpack.c.h.b16 %v896
    %v1663 = vunpack.c.l.b16 %v897
    %v1664 = vunpack.c.h.b16 %v897
    %v1665 = vunpack.c.l.b16 %v898
    %v1666 = vunpack.c.h.b16 %v898
    %v1667 = vunpack.c.l.b16 %v899
    %v1668 = vunpack.c.h.b16 %v899
    %v1669 = vunpack.c.l.b16 %v900
    %v1670 = vunpack.c.h.b16 %v900
    %v1671 = vunpack.c.l.b16 %v901
    %v1672 = vunpack.c.h.b16 %v901
    %v1673 = vunpack.c.l.b16 %v902
    %v1674 = vunpack.c.h.b16 %v902
    %v1675 = vunpack.c.l.b16 %v903
    %v1676 = vunpack.c.h.b16 %v903
    %v1677 = vunpack.c.l.b16 %v904
    %v1678 = vunpack.c.h.b16 %v904
    %v1679 = vunpack.c.l.b16 %v905
    %v1680 = vunpack.c.h.b16 %v905
    %v1681 = vunpack.c.l.b16 %v906
    %v1682 = vunpack.c.h.b16 %v906
    %v1683 = vunpack.c.l.b16 %v907
    %v1684 = vunpack.c.h.b16 %v907
    %v1685 = vunpack.c.l.b16 %v908
    %v1686 = vunpack.c.h.b16 %v908
    %v1687 = vpack.c.b16 %v1179, %v1175
    %v1688 = vpack.c.b16 %v1180, %v1176
    %v1689 = vpack.c.b16 %v1181, %v1177
    %v1690 = vpack.c.b16 %v1182, %v1178
    %v1691 = vpack.c.b16 %v1187, %v1183
    %v1692 = vpack.c.b16 %v1188, %v1184
    %v1693 = vpack.c.b16 %v1189, %v1185
    %v1694 = vpack.c.b16 %v1190, %v1186
    %v1695 = vpack.c.b16 %v1195, %v1191
    %v1696 = vpack.c.b16 %v1196, %v1192
    %v1697 = vpack.c.b16 %v1197, %v1193
    %v1698 = vpack.c.b16 %v1198, %v1194
    %v1699 = vpack.c.b16 %v1203, %v1199
    %v1700 = vpack.c.b16 %v1204, %v1200
    %v1701 = vpack.c.b16 %v1205, %v1201
    %v1702 = vpack.c.b16 %v1206, %v1202
    %v1703 = vpack.c.b16 %v1211, %v1207
    %v1704 = vpack.c.b16 %v1212, %v1208
    %v1705 = vpack.c.b16 %v1213, %v1209
    %v1706 = vpack.c.b16 %v1214, %v1210
    %v1707 = vpack.c.b16 %v1219, %v1215
    %v1708 = vpack.c.b16 %v1220, %v1216
    %v1709 = vpack.c.b16 %v1221, %v1217
    %v1710 = vpack.c.b16 %v1222, %v1218
    %v1711 = vpack.c.b16 %v1227, %v1223
    %v1712 = vpack.c.b16 %v1228, %v1224
    %v1713 = vpack.c.b16 %v1229, %v1225
    %v1714 = vpack.c.b16 %v1230, %v1226
    %v1715 = vpack.c.b16 %v1235, %v1231
    %v1716 = vpack.c.b16 %v1236, %v1232
    %v1717 = vpack.c.b16 %v1237, %v1233
    %v1718 = vpack.c.b16 %v1238, %v1234
    %v1719 = vpack.c.b16 %v1243, %v1239
    %v1720 = vpack.c.b16 %v1244, %v1240
    %v1721 = vpack.c.b16 %v1245, %v1241
    %v1722 = vpack.c.b16 %v1246, %v1242
    %v1723 = vpack.c.b16 %v1251, %v1247
    %v1724 = vpack.c.b16 %v1252, %v1248
    %v1725 = vpack.c.b16 %v1253, %v1249
    %v1726 = vpack.c.b16 %v1254, %v1250
    %v1727 = vpack.c.b16 %v1259, %v1255
    %v1728 = vpack.c.b16 %v1260, %v1256
    %v1729 = vpack.c.b16 %v1261, %v1257
    %v1730 = vpack.c.b16 %v1262, %v1258
    %v1731 = vpack.c.b16 %v1267, %v1263
    %v1732 = vpack.c.b16 %v1268, %v1264
    %v1733 = vpack.c.b16 %v1269, %v1265
    %v1734 = vpack.c.b16 %v1270, %v1266
    %v1735 = vpack.c.b16 %v1275, %v1271
    %v1736 = vpack.c.b16 %v1276, %v1272
    %v1737 = vpack.c.b16 %v1277, %v1273
    %v1738 = vpack.c.b16 %v1278, %v1274
    %v1739 = vpack.c.b16 %v1283, %v1279
    %v1740 = vpack.c.b16 %v1284, %v1280
    %v1741 = vpack.c.b16 %v1285, %v1281
    %v1742 = vpack.c.b16 %v1286, %v1282
    %v1743 = vpack.c.b16 %v1291, %v1287
    %v1744 = vpack.c.b16 %v1292, %v1288
    %v1745 = vpack.c.b16 %v1293, %v1289
    %v1746 = vpack.c.b16 %v1294, %v1290
    %v1747 = vpack.c.b16 %v1299, %v1295
    %v1748 = vpack.c.b16 %v1300, %v1296
    %v1749 = vpack.c.b16 %v1301, %v1297
    %v1750 = vpack.c.b16 %v1302, %v1298
    %v1751 = vpack.c.b16 %v1307, %v1303
    %v1752 = vpack.c.b16 %v1308, %v1304
    %v1753 = vpack.c.b16 %v1309, %v1305
    %v1754 = vpack.c.b16 %v1310, %v1306
    %v1755 = vpack.c.b16 %v1315, %v1311
    %v1756 = vpack.c.b16 %v1316, %v1312
    %v1757 = vpack.c.b16 %v1317, %v1313
    %v1758 = vpack.c.b16 %v1318, %v1314
    %v1759 = vpack.c.b16 %v1323, %v1319
    %v1760 = vpack.c.b16 %v1324, %v1320
    %v1761 = vpack.c.b16 %v1325, %v1321
    %v1762 = vpack.c.b16 %v1326, %v1322
    %v1763 = vpack.c.b16 %v1331, %v1327
    %v1764 = vpack.c.b16 %v1332, %v1328
    %v1765 = vpack.c.b16 %v1333, %v1329
    %v1766 = vpack.c.b16 %v1334, %v1330
    %v1767 = vpack.c.b16 %v1339, %v1335
    %v1768 = vpack.c.b16 %v1340, %v1336
    %v1769 = vpack.c.b16 %v1341, %v1337
    %v1770 = vpack.c.b16 %v1342, %v1338
    %v1771 = vpack.c.b16 %v1347, %v1343
    %v1772 = vpack.c.b16 %v1348, %v1344
    %v1773 = vpack.c.b16 %v1349, %v1345
    %v1774 = vpack.c.b16 %v1350, %v1346
    %v1775 = vpack.c.b16 %v1355, %v1351
    %v1776 = vpack.c.b16 %v1356, %v1352
    %v1777 = vpack.c.b16 %v1357, %v1353
    %v1778 = vpack.c.b16 %v1358, %v1354
    %v1779 = vpack.c.b16 %v1363, %v1359
    %v1780 = vpack.c.b16 %v1364, %v1360
    %v1781 = vpack.c.b16 %v1365, %v1361
    %v1782 = vpack.c.b16 %v1366, %v1362
    %v1783 = vpack.c.b16 %v1371, %v1367
    %v1784 = vpack.c.b16 %v1372, %v1368
    %v1785 = vpack.c.b16 %v1373, %v1369
    %v1786 = vpack.c.b16 %v1374, %v1370
    %v1787 = vpack.c.b16 %v1379, %v1375
    %v1788 = vpack.c.b16 %v1380, %v1376
    %v1789 = vpack.c.b16 %v1381, %v1377
    %v1790 = vpack.c.b16 %v1382, %v1378
    %v1791 = vpack.c.b16 %v1387, %v1383
    %v1792 = vpack.c.b16 %v1388, %v1384
    %v1793 = vpack.c.b16 %v1389, %v1385
    %v1794 = vpack.c.b16 %v1390, %v1386
    %v1795 = vpack.c.b16 %v1395, %v1391
    %v1796 = vpack.c.b16 %v1396, %v1392
    %v1797 = vpack.c.b16 %v1397, %v1393
    %v1798 = vpack.c.b16 %v1398, %v1394
    %v1799 = vpack.c.b16 %v1403, %v1399
    %v1800 = vpack.c.b16 %v1404, %v1400
    %v1801 = vpack.c.b16 %v1405, %v1401
    %v1802 = vpack.c.b16 %v1406, %v1402
    %v1803 = vpack.c.b16 %v1411, %v1407
    %v1804 = vpack.c.b16 %v1412, %v1408
    %v1805 = vpack.c.b16 %v1413, %v1409
    %v1806 = vpack.c.b16 %v1414, %v1410
    %v1807 = vpack.c.b16 %v1419, %v1415
    %v1808 = vpack.c.b16 %v1420, %v1416
    %v1809 = vpack.c.b16 %v1421, %v1417
    %v1810 = vpack.c.b16 %v1422, %v1418
    %v1811 = vpack.c.b16 %v1427, %v1423
    %v1812 = vpack.c.b16 %v1428, %v1424
    %v1813 = vpack.c.b16 %v1429, %v1425
    %v1814 = vpack.c.b16 %v1430, %v1426
    %v1815 = vpack.c.b16 %v1435, %v1431
    %v1816 = vpack.c.b16 %v1436, %v1432
    %v1817 = vpack.c.b16 %v1437, %v1433
    %v1818 = vpack.c.b16 %v1438, %v1434
    %v1819 = vpack.c.b16 %v1443, %v1439
    %v1820 = vpack.c.b16 %v1444, %v1440
    %v1821 = vpack.c.b16 %v1445, %v1441
    %v1822 = vpack.c.b16 %v1446, %v1442
    %v1823 = vpack.c.b16 %v1451, %v1447
    %v1824 = vpack.c.b16 %v1452, %v1448
    %v1825 = vpack.c.b16 %v1453, %v1449
    %v1826 = vpack.c.b16 %v1454, %v1450
    %v1827 = vpack.c.b16 %v1459, %v1455
    %v1828 = vpack.c.b16 %v1460, %v1456
    %v1829 = vpack.c.b16 %v1461, %v1457
    %v1830 = vpack.c.b16 %v1462, %v1458
    %v1831 = vpack.c.b16 %v1467, %v1463
    %v1832 = vpack.c.b16 %v1468, %v1464
    %v1833 = vpack.c.b16 %v1469, %v1465
    %v1834 = vpack.c.b16 %v1470, %v1466
    %v1835 = vpack.c.b16 %v1475, %v1471
    %v1836 = vpack.c.b16 %v1476, %v1472
    %v1837 = vpack.c.b16 %v1477, %v1473
    %v1838 = vpack.c.b16 %v1478, %v1474
    %v1839 = vpack.c.b16 %v1483, %v1479
    %v1840 = vpack.c.b16 %v1484, %v1480
    %v1841 = vpack.c.b16 %v1485, %v1481
    %v1842 = vpack.c.b16 %v1486, %v1482
    %v1843 = vpack.c.b16 %v1491, %v1487
    %v1844 = vpack.c.b16 %v1492, %v1488
    %v1845 = vpack.c.b16 %v1493, %v1489
    %v1846 = vpack.c.b16 %v1494, %v1490
    %v1847 = vpack.c.b16 %v1499, %v1495
    %v1848 = vpack.c.b16 %v1500, %v1496
    %v1849 = vpack.c.b16 %v1501, %v1497
    %v1850 = vpack.c.b16 %v1502, %v1498
    %v1851 = vpack.c.b16 %v1507, %v1503
    %v1852 = vpack.c.b16 %v1508, %v1504
    %v1853 = vpack.c.b16 %v1509, %v1505
    %v1854 = vpack.c.b16 %v1510, %v1506
    %v1855 = vpack.c.b16 %v1515, %v1511
    %v1856 = vpack.c.b16 %v1516, %v1512
    %v1857 = vpack.c.b16 %v1517, %v1513
    %v1858 = vpack.c.b16 %v1518, %v1514
    %v1859 = vpack.c.b16 %v1523, %v1519
    %v1860 = vpack.c.b16 %v1524, %v1520
    %v1861 = vpack.c.b16 %v1525, %v1521
    %v1862 = vpack.c.b16 %v1526, %v1522
    %v1863 = vpack.c.b16 %v1531, %v1527
    %v1864 = vpack.c.b16 %v1532, %v1528
    %v1865 = vpack.c.b16 %v1533, %v1529
    %v1866 = vpack.c.b16 %v1534, %v1530
    %v1867 = vpack.c.b16 %v1539, %v1535
    %v1868 = vpack.c.b16 %v1540, %v1536
    %v1869 = vpack.c.b16 %v1541, %v1537
    %v1870 = vpack.c.b16 %v1542, %v1538
    %v1871 = vpack.c.b16 %v1547, %v1543
    %v1872 = vpack.c.b16 %v1548, %v1544
    %v1873 = vpack.c.b16 %v1549, %v1545
    %v1874 = vpack.c.b16 %v1550, %v1546
    %v1875 = vpack.c.b16 %v1555, %v1551
    %v1876 = vpack.c.b16 %v1556, %v1552
    %v1877 = vpack.c.b16 %v1557, %v1553
    %v1878 = vpack.c.b16 %v1558, %v1554
    %v1879 = vpack.c.b16 %v1563, %v1559
    %v1880 = vpack.c.b16 %v1564, %v1560
    %v1881 = vpack.c.b16 %v1565, %v1561
    %v1882 = vpack.c.b16 %v1566, %v1562
    %v1883 = vpack.c.b16 %v1571, %v1567
    %v1884 = vpack.c.b16 %v1572, %v1568
    %v1885 = vpack.c.b16 %v1573, %v1569
    %v1886 = vpack.c.b16 %v1574, %v1570
    %v1887 = vpack.c.b16 %v1579, %v1575
    %v1888 = vpack.c.b16 %v1580, %v1576
    %v1889 = vpack.c.b16 %v1581, %v1577
    %v1890 = vpack.c.b16 %v1582, %v1578
    %v1891 = vpack.c.b16 %v1587, %v1583
    %v1892 = vpack.c.b16 %v1588, %v1584
    %v1893 = vpack.c.b16 %v1589, %v1585
    %v1894 = vpack.c.b16 %v1590, %v1586
    %v1895 = vpack.c.b16 %v1595, %v1591
    %v1896 = vpack.c.b16 %v1596, %v1592
    %v1897 = vpack.c.b16 %v1597, %v1593
    %v1898 = vpack.c.b16 %v1598, %v1594
    %v1899 = vpack.c.b16 %v1603, %v1599
    %v1900 = vpack.c.b16 %v1604, %v1600
    %v1901 = vpack.c.b16 %v1605, %v1601
    %v1902 = vpack.c.b16 %v1606, %v1602
    %v1903 = vpack.c.b16 %v1611, %v1607
    %v1904 = vpack.c.b16 %v1612, %v1608
    %v1905 = vpack.c.b16 %v1613, %v1609
    %v1906 = vpack.c.b16 %v1614, %v1610
    %v1907 = vpack.c.b16 %v1619, %v1615
    %v1908 = vpack.c.b16 %v1620, %v1616
    %v1909 = vpack.c.b16 %v1621, %v1617
    %v1910 = vpack.c.b16 %v1622, %v1618
    %v1911 = vpack.c.b16 %v1627, %v1623
    %v1912 = vpack.c.b16 %v1628, %v1624
    %v1913 = vpack.c.b16 %v1629, %v1625
    %v1914 = vpack.c.b16 %v1630, %v1626
    %v1915 = vpack.c.b16 %v1635, %v1631
    %v1916 = vpack.c.b16 %v1636, %v1632
    %v1917 = vpack.c.b16 %v1637, %v1633
    %v1918 = vpack.c.b16 %v1638, %v1634
    %v1919 = vpack.c.b16 %v1643, %v1639
    %v1920 = vpack.c.b16 %v1644, %v1640
    %v1921 = vpack.c.b16 %v1645, %v1641
    %v1922 = vpack.c.b16 %v1646, %v1642
    %v1923 = vpack.c.b16 %v1651, %v1647
    %v1924 = vpack.c.b16 %v1652, %v1648
    %v1925 = vpack.c.b16 %v1653, %v1649
    %v1926 = vpack.c.b16 %v1654, %v1650
    %v1927 = vpack.c.b16 %v1659, %v1655
    %v1928 = vpack.c.b16 %v1660, %v1656
    %v1929 = vpack.c.b16 %v1661, %v1657
    %v1930 = vpack.c.b16 %v1662, %v1658
    %v1931 = vpack.c.b16 %v1667, %v1663
    %v1932 = vpack.c.b16 %v1668, %v1664
    %v1933 = vpack.c.b16 %v1669, %v1665
    %v1934 = vpack.c.b16 %v1670, %v1666
    %v1935 = vpack.c.b16 %v1675, %v1671
    %v1936 = vpack.c.b16 %v1676, %v1672
    %v1937 = vpack.c.b16 %v1677, %v1673
    %v1938 = vpack.c.b16 %v1678, %v1674
    %v1939 = vpack.c.b16 %v1683, %v1679
    %v1940 = vpack.c.b16 %v1684, %v1680
    %v1941 = vpack.c.b16 %v1685, %v1681
    %v1942 = vpack.c.b16 %v1686, %v1682
    %2199 = vmatpush.bf16.msra.mxu0 %v1715
    %2200 = vmatpush.bf16.msra.mxu0 %v1711
    %2201 = vmatpush.bf16.msra.mxu0 %v1707
    %2202 = vmatpush.bf16.msra.mxu0 %v1703
    %2203 = vmatpush.bf16.msra.mxu0 %v1699
    %2204 = vmatpush.bf16.msra.mxu0 %v1695
    %2205 = vmatpush.bf16.msra.mxu0 %v1691
    %2206 = vmatpush.bf16.msra.mxu0 %v1687
    %2207 = vmatmul.bf16.gmra.mxu0 %v645
    %v2208 = vpop.f32.mrf.mxu0
    %v2209 = vadd.f32 %v911, %v2208
    %v2210 = vpop.f32.mrf.mxu0
    %2211 = vdwg.mxu0
    %2212 = vmatpush.bf16.msra.mxu0 %v1747
    %2213 = vmatpush.bf16.msra.mxu0 %v1743
    %2214 = vmatpush.bf16.msra.mxu0 %v1739
    %2215 = vmatpush.bf16.msra.mxu0 %v1735
    %2216 = vmatpush.bf16.msra.mxu0 %v1731
    %2217 = vmatpush.bf16.msra.mxu0 %v1727
    %2218 = vmatpush.bf16.msra.mxu0 %v1723
    %2219 = vmatpush.bf16.msra.mxu0 %v1719
    %2220 = vmatmul.bf16.gmra.mxu0 %v646
    %v2221 = vpop.f32.mrf.mxu0
    %v2222 = vadd.f32 %v2209, %v2221
    %v2223 = vpop.f32.mrf.mxu0
    %2224 = vdwg.mxu0
    %2225 = vmatpush.bf16.msra.mxu0 %v1779
    %2226 = vmatpush.bf16.msra.mxu0 %v1775
    %2227 = vmatpush.bf16.msra.mxu0 %v1771
    %2228 = vmatpush.bf16.msra.mxu0 %v1767
    %2229 = vmatpush.bf16.msra.mxu0 %v1763
    %2230 = vmatpush.bf16.msra.mxu0 %v1759
    %2231 = vmatpush.bf16.msra.mxu0 %v1755
    %2232 = vmatpush.bf16.msra.mxu0 %v1751
    %2233 = vmatmul.bf16.gmra.mxu0 %v647
    %v2234 = vpop.f32.mrf.mxu0
    %v2235 = vadd.f32 %v2222, %v2234
    %v2236 = vpop.f32.mrf.mxu0
    %2237 = vdwg.mxu0
    %2238 = vmatpush.bf16.msra.mxu0 %v1811
    %2239 = vmatpush.bf16.msra.mxu0 %v1807
    %2240 = vmatpush.bf16.msra.mxu0 %v1803
    %2241 = vmatpush.bf16.msra.mxu0 %v1799
    %2242 = vmatpush.bf16.msra.mxu0 %v1795
    %2243 = vmatpush.bf16.msra.mxu0 %v1791
    %2244 = vmatpush.bf16.msra.mxu0 %v1787
    %2245 = vmatpush.bf16.msra.mxu0 %v1783
    %2246 = vmatmul.bf16.gmra.mxu0 %v648
    %v2247 = vpop.f32.mrf.mxu0
    %v2248 = vadd.f32 %v2235, %v2247
    %v2249 = vpop.f32.mrf.mxu0
    %2250 = vdwg.mxu0
    %2251 = vmatpush.bf16.msra.mxu0 %v1843
    %2252 = vmatpush.bf16.msra.mxu0 %v1839
    %2253 = vmatpush.bf16.msra.mxu0 %v1835
    %2254 = vmatpush.bf16.msra.mxu0 %v1831
    %2255 = vmatpush.bf16.msra.mxu0 %v1827
    %2256 = vmatpush.bf16.msra.mxu0 %v1823
    %2257 = vmatpush.bf16.msra.mxu0 %v1819
    %2258 = vmatpush.bf16.msra.mxu0 %v1815
    %2259 = vmatmul.bf16.gmra.mxu0 %v649
    %v2260 = vpop.f32.mrf.mxu0
    %v2261 = vadd.f32 %v2248, %v2260
    %v2262 = vpop.f32.mrf.mxu0
    %2263 = vdwg.mxu0
    %2264 = vmatpush.bf16.msra.mxu0 %v1875
    %2265 = vmatpush.bf16.msra.mxu0 %v1871
    %2266 = vmatpush.bf16.msra.mxu0 %v1867
    %2267 = vmatpush.bf16.msra.mxu0 %v1863
    %2268 = vmatpush.bf16.msra.mxu0 %v1859
    %2269 = vmatpush.bf16.msra.mxu0 %v1855
    %2270 = vmatpush.bf16.msra.mxu0 %v1851
    %2271 = vmatpush.bf16.msra.mxu0 %v1847
    %2272 = vmatmul.bf16.gmra.mxu0 %v650
    %v2273 = vpop.f32.mrf.mxu0
    %v2274 = vadd.f32 %v2261, %v2273
    %v2275 = vpop.f32.mrf.mxu0
    %2276 = vdwg.mxu0
    %2277 = vmatpush.bf16.msra.mxu0 %v1907
    %2278 = vmatpush.bf16.msra.mxu0 %v1903
    %2279 = vmatpush.bf16.msra.mxu0 %v1899
    %2280 = vmatpush.bf16.msra.mxu0 %v1895
    %2281 = vmatpush.bf16.msra.mxu0 %v1891
    %2282 = vmatpush.bf16.msra.mxu0 %v1887
    %2283 = vmatpush.bf16.msra.mxu0 %v1883
    %2284 = vmatpush.bf16.msra.mxu0 %v1879
    %2285 = vmatmul.bf16.gmra.mxu0 %v651
    %v2286 = vpop.f32.mrf.mxu0
    %v2287 = vadd.f32 %v2274, %v2286
    %v2288 = vpop.f32.mrf.mxu0
    %2289 = vdwg.mxu0
    %2290 = vmatpush.bf16.msra.mxu0 %v1939
    %2291 = vmatpush.bf16.msra.mxu0 %v1935
    %2292 = vmatpush.bf16.msra.mxu0 %v1931
    %2293 = vmatpush.bf16.msra.mxu0 %v1927
    %2294 = vmatpush.bf16.msra.mxu0 %v1923
    %2295 = vmatpush.bf16.msra.mxu0 %v1919
    %2296 = vmatpush.bf16.msra.mxu0 %v1915
    %2297 = vmatpush.bf16.msra.mxu0 %v1911
    %2298 = vmatmul.bf16.gmra.mxu0 %v652
    %v2299 = vpop.f32.mrf.mxu0
    %v2300 = vadd.f32 %v2287, %v2299
    %v2301 = vpop.f32.mrf.mxu0
    %2302 = vdwg.mxu0
    %2303 = vmatpush.bf16.msra.mxu0 %v1716
    %2304 = vmatpush.bf16.msra.mxu0 %v1712
    %2305 = vmatpush.bf16.msra.mxu0 %v1708
    %2306 = vmatpush.bf16.msra.mxu0 %v1704
    %2307 = vmatpush.bf16.msra.mxu0 %v1700
    %2308 = vmatpush.bf16.msra.mxu0 %v1696
    %2309 = vmatpush.bf16.msra.mxu0 %v1692
    %2310 = vmatpush.bf16.msra.mxu0 %v1688
    %2311 = vmatmul.bf16.gmra.mxu0 %v645
    %v2312 = vpop.f32.mrf.mxu0
    %v2313 = vadd.f32 %v912, %v2312
    %v2314 = vpop.f32.mrf.mxu0
    %2315 = vdwg.mxu0
    %2316 = vmatpush.bf16.msra.mxu0 %v1748
    %2317 = vmatpush.bf16.msra.mxu0 %v1744
    %2318 = vmatpush.bf16.msra.mxu0 %v1740
    %2319 = vmatpush.bf16.msra.mxu0 %v1736
    %2320 = vmatpush.bf16.msra.mxu0 %v1732
    %2321 = vmatpush.bf16.msra.mxu0 %v1728
    %2322 = vmatpush.bf16.msra.mxu0 %v1724
    %2323 = vmatpush.bf16.msra.mxu0 %v1720
    %2324 = vmatmul.bf16.gmra.mxu0 %v646
    %v2325 = vpop.f32.mrf.mxu0
    %v2326 = vadd.f32 %v2313, %v2325
    %v2327 = vpop.f32.mrf.mxu0
    %2328 = vdwg.mxu0
    %2329 = vmatpush.bf16.msra.mxu0 %v1780
    %2330 = vmatpush.bf16.msra.mxu0 %v1776
    %2331 = vmatpush.bf16.msra.mxu0 %v1772
    %2332 = vmatpush.bf16.msra.mxu0 %v1768
    %2333 = vmatpush.bf16.msra.mxu0 %v1764
    %2334 = vmatpush.bf16.msra.mxu0 %v1760
    %2335 = vmatpush.bf16.msra.mxu0 %v1756
    %2336 = vmatpush.bf16.msra.mxu0 %v1752
    %2337 = vmatmul.bf16.gmra.mxu0 %v647
    %v2338 = vpop.f32.mrf.mxu0
    %v2339 = vadd.f32 %v2326, %v2338
    %v2340 = vpop.f32.mrf.mxu0
    %2341 = vdwg.mxu0
    %2342 = vmatpush.bf16.msra.mxu0 %v1812
    %2343 = vmatpush.bf16.msra.mxu0 %v1808
    %2344 = vmatpush.bf16.msra.mxu0 %v1804
    %2345 = vmatpush.bf16.msra.mxu0 %v1800
    %2346 = vmatpush.bf16.msra.mxu0 %v1796
    %2347 = vmatpush.bf16.msra.mxu0 %v1792
    %2348 = vmatpush.bf16.msra.mxu0 %v1788
    %2349 = vmatpush.bf16.msra.mxu0 %v1784
    %2350 = vmatmul.bf16.gmra.mxu0 %v648
    %v2351 = vpop.f32.mrf.mxu0
    %v2352 = vadd.f32 %v2339, %v2351
    %v2353 = vpop.f32.mrf.mxu0
    %2354 = vdwg.mxu0
    %2355 = vmatpush.bf16.msra.mxu0 %v1844
    %2356 = vmatpush.bf16.msra.mxu0 %v1840
    %2357 = vmatpush.bf16.msra.mxu0 %v1836
    %2358 = vmatpush.bf16.msra.mxu0 %v1832
    %2359 = vmatpush.bf16.msra.mxu0 %v1828
    %2360 = vmatpush.bf16.msra.mxu0 %v1824
    %2361 = vmatpush.bf16.msra.mxu0 %v1820
    %2362 = vmatpush.bf16.msra.mxu0 %v1816
    %2363 = vmatmul.bf16.gmra.mxu0 %v649
    %v2364 = vpop.f32.mrf.mxu0
    %v2365 = vadd.f32 %v2352, %v2364
    %v2366 = vpop.f32.mrf.mxu0
    %2367 = vdwg.mxu0
    %2368 = vmatpush.bf16.msra.mxu0 %v1876
    %2369 = vmatpush.bf16.msra.mxu0 %v1872
    %2370 = vmatpush.bf16.msra.mxu0 %v1868
    %2371 = vmatpush.bf16.msra.mxu0 %v1864
    %2372 = vmatpush.bf16.msra.mxu0 %v1860
    %2373 = vmatpush.bf16.msra.mxu0 %v1856
    %2374 = vmatpush.bf16.msra.mxu0 %v1852
    %2375 = vmatpush.bf16.msra.mxu0 %v1848
    %2376 = vmatmul.bf16.gmra.mxu0 %v650
    %v2377 = vpop.f32.mrf.mxu0
    %v2378 = vadd.f32 %v2365, %v2377
    %v2379 = vpop.f32.mrf.mxu0
    %2380 = vdwg.mxu0
    %2381 = vmatpush.bf16.msra.mxu0 %v1908
    %2382 = vmatpush.bf16.msra.mxu0 %v1904
    %2383 = vmatpush.bf16.msra.mxu0 %v1900
    %2384 = vmatpush.bf16.msra.mxu0 %v1896
    %2385 = vmatpush.bf16.msra.mxu0 %v1892
    %2386 = vmatpush.bf16.msra.mxu0 %v1888
    %2387 = vmatpush.bf16.msra.mxu0 %v1884
    %2388 = vmatpush.bf16.msra.mxu0 %v1880
    %2389 = vmatmul.bf16.gmra.mxu0 %v651
    %v2390 = vpop.f32.mrf.mxu0
    %v2391 = vadd.f32 %v2378, %v2390
    %v2392 = vpop.f32.mrf.mxu0
    %2393 = vdwg.mxu0
    %2394 = vmatpush.bf16.msra.mxu0 %v1940
    %2395 = vmatpush.bf16.msra.mxu0 %v1936
    %2396 = vmatpush.bf16.msra.mxu0 %v1932
    %2397 = vmatpush.bf16.msra.mxu0 %v1928
    %2398 = vmatpush.bf16.msra.mxu0 %v1924
    %2399 = vmatpush.bf16.msra.mxu0 %v1920
    %2400 = vmatpush.bf16.msra.mxu0 %v1916
    %2401 = vmatpush.bf16.msra.mxu0 %v1912
    %2402 = vmatmul.bf16.gmra.mxu0 %v652
    %v2403 = vpop.f32.mrf.mxu0
    %v2404 = vadd.f32 %v2391, %v2403
    %v2405 = vpop.f32.mrf.mxu0
    %2406 = vdwg.mxu0
    %2407 = vmatpush.bf16.msra.mxu0 %v1717
    %2408 = vmatpush.bf16.msra.mxu0 %v1713
    %2409 = vmatpush.bf16.msra.mxu0 %v1709
    %2410 = vmatpush.bf16.msra.mxu0 %v1705
    %2411 = vmatpush.bf16.msra.mxu0 %v1701
    %2412 = vmatpush.bf16.msra.mxu0 %v1697
    %2413 = vmatpush.bf16.msra.mxu0 %v1693
    %2414 = vmatpush.bf16.msra.mxu0 %v1689
    %2415 = vmatmul.bf16.gmra.mxu0 %v645
    %v2416 = vpop.f32.mrf.mxu0
    %v2417 = vadd.f32 %v913, %v2416
    %v2418 = vpop.f32.mrf.mxu0
    %2419 = vdwg.mxu0
    %2420 = vmatpush.bf16.msra.mxu0 %v1749
    %2421 = vmatpush.bf16.msra.mxu0 %v1745
    %2422 = vmatpush.bf16.msra.mxu0 %v1741
    %2423 = vmatpush.bf16.msra.mxu0 %v1737
    %2424 = vmatpush.bf16.msra.mxu0 %v1733
    %2425 = vmatpush.bf16.msra.mxu0 %v1729
    %2426 = vmatpush.bf16.msra.mxu0 %v1725
    %2427 = vmatpush.bf16.msra.mxu0 %v1721
    %2428 = vmatmul.bf16.gmra.mxu0 %v646
    %v2429 = vpop.f32.mrf.mxu0
    %v2430 = vadd.f32 %v2417, %v2429
    %v2431 = vpop.f32.mrf.mxu0
    %2432 = vdwg.mxu0
    %2433 = vmatpush.bf16.msra.mxu0 %v1781
    %2434 = vmatpush.bf16.msra.mxu0 %v1777
    %2435 = vmatpush.bf16.msra.mxu0 %v1773
    %2436 = vmatpush.bf16.msra.mxu0 %v1769
    %2437 = vmatpush.bf16.msra.mxu0 %v1765
    %2438 = vmatpush.bf16.msra.mxu0 %v1761
    %2439 = vmatpush.bf16.msra.mxu0 %v1757
    %2440 = vmatpush.bf16.msra.mxu0 %v1753
    %2441 = vmatmul.bf16.gmra.mxu0 %v647
    %v2442 = vpop.f32.mrf.mxu0
    %v2443 = vadd.f32 %v2430, %v2442
    %v2444 = vpop.f32.mrf.mxu0
    %2445 = vdwg.mxu0
    %2446 = vmatpush.bf16.msra.mxu0 %v1813
    %2447 = vmatpush.bf16.msra.mxu0 %v1809
    %2448 = vmatpush.bf16.msra.mxu0 %v1805
    %2449 = vmatpush.bf16.msra.mxu0 %v1801
    %2450 = vmatpush.bf16.msra.mxu0 %v1797
    %2451 = vmatpush.bf16.msra.mxu0 %v1793
    %2452 = vmatpush.bf16.msra.mxu0 %v1789
    %2453 = vmatpush.bf16.msra.mxu0 %v1785
    %2454 = vmatmul.bf16.gmra.mxu0 %v648
    %v2455 = vpop.f32.mrf.mxu0
    %v2456 = vadd.f32 %v2443, %v2455
    %v2457 = vpop.f32.mrf.mxu0
    %2458 = vdwg.mxu0
    %2459 = vmatpush.bf16.msra.mxu0 %v1845
    %2460 = vmatpush.bf16.msra.mxu0 %v1841
    %2461 = vmatpush.bf16.msra.mxu0 %v1837
    %2462 = vmatpush.bf16.msra.mxu0 %v1833
    %2463 = vmatpush.bf16.msra.mxu0 %v1829
    %2464 = vmatpush.bf16.msra.mxu0 %v1825
    %2465 = vmatpush.bf16.msra.mxu0 %v1821
    %2466 = vmatpush.bf16.msra.mxu0 %v1817
    %2467 = vmatmul.bf16.gmra.mxu0 %v649
    %v2468 = vpop.f32.mrf.mxu0
    %v2469 = vadd.f32 %v2456, %v2468
    %v2470 = vpop.f32.mrf.mxu0
    %2471 = vdwg.mxu0
    %2472 = vmatpush.bf16.msra.mxu0 %v1877
    %2473 = vmatpush.bf16.msra.mxu0 %v1873
    %2474 = vmatpush.bf16.msra.mxu0 %v1869
    %2475 = vmatpush.bf16.msra.mxu0 %v1865
    %2476 = vmatpush.bf16.msra.mxu0 %v1861
    %2477 = vmatpush.bf16.msra.mxu0 %v1857
    %2478 = vmatpush.bf16.msra.mxu0 %v1853
    %2479 = vmatpush.bf16.msra.mxu0 %v1849
    %2480 = vmatmul.bf16.gmra.mxu0 %v650
    %v2481 = vpop.f32.mrf.mxu0
    %v2482 = vadd.f32 %v2469, %v2481
    %v2483 = vpop.f32.mrf.mxu0
    %2484 = vdwg.mxu0
    %2485 = vmatpush.bf16.msra.mxu0 %v1909
    %2486 = vmatpush.bf16.msra.mxu0 %v1905
    %2487 = vmatpush.bf16.msra.mxu0 %v1901
    %2488 = vmatpush.bf16.msra.mxu0 %v1897
    %2489 = vmatpush.bf16.msra.mxu0 %v1893
    %2490 = vmatpush.bf16.msra.mxu0 %v1889
    %2491 = vmatpush.bf16.msra.mxu0 %v1885
    %2492 = vmatpush.bf16.msra.mxu0 %v1881
    %2493 = vmatmul.bf16.gmra.mxu0 %v651
    %v2494 = vpop.f32.mrf.mxu0
    %v2495 = vadd.f32 %v2482, %v2494
    %v2496 = vpop.f32.mrf.mxu0
    %2497 = vdwg.mxu0
    %2498 = vmatpush.bf16.msra.mxu0 %v1941
    %2499 = vmatpush.bf16.msra.mxu0 %v1937
    %2500 = vmatpush.bf16.msra.mxu0 %v1933
    %2501 = vmatpush.bf16.msra.mxu0 %v1929
    %2502 = vmatpush.bf16.msra.mxu0 %v1925
    %2503 = vmatpush.bf16.msra.mxu0 %v1921
    %2504 = vmatpush.bf16.msra.mxu0 %v1917
    %2505 = vmatpush.bf16.msra.mxu0 %v1913
    %2506 = vmatmul.bf16.gmra.mxu0 %v652
    %v2507 = vpop.f32.mrf.mxu0
    %v2508 = vadd.f32 %v2495, %v2507
    %v2509 = vpop.f32.mrf.mxu0
    %2510 = vdwg.mxu0
    %2511 = vmatpush.bf16.msra.mxu0 %v1718
    %2512 = vmatpush.bf16.msra.mxu0 %v1714
    %2513 = vmatpush.bf16.msra.mxu0 %v1710
    %2514 = vmatpush.bf16.msra.mxu0 %v1706
    %2515 = vmatpush.bf16.msra.mxu0 %v1702
    %2516 = vmatpush.bf16.msra.mxu0 %v1698
    %2517 = vmatpush.bf16.msra.mxu0 %v1694
    %2518 = vmatpush.bf16.msra.mxu0 %v1690
    %2519 = vmatmul.bf16.gmra.mxu0 %v645
    %v2520 = vpop.f32.mrf.mxu0
    %v2521 = vadd.f32 %v914, %v2520
    %v2522 = vpop.f32.mrf.mxu0
    %2523 = vdwg.mxu0
    %2524 = vmatpush.bf16.msra.mxu0 %v1750
    %2525 = vmatpush.bf16.msra.mxu0 %v1746
    %2526 = vmatpush.bf16.msra.mxu0 %v1742
    %2527 = vmatpush.bf16.msra.mxu0 %v1738
    %2528 = vmatpush.bf16.msra.mxu0 %v1734
    %2529 = vmatpush.bf16.msra.mxu0 %v1730
    %2530 = vmatpush.bf16.msra.mxu0 %v1726
    %2531 = vmatpush.bf16.msra.mxu0 %v1722
    %2532 = vmatmul.bf16.gmra.mxu0 %v646
    %v2533 = vpop.f32.mrf.mxu0
    %v2534 = vadd.f32 %v2521, %v2533
    %v2535 = vpop.f32.mrf.mxu0
    %2536 = vdwg.mxu0
    %2537 = vmatpush.bf16.msra.mxu0 %v1782
    %2538 = vmatpush.bf16.msra.mxu0 %v1778
    %2539 = vmatpush.bf16.msra.mxu0 %v1774
    %2540 = vmatpush.bf16.msra.mxu0 %v1770
    %2541 = vmatpush.bf16.msra.mxu0 %v1766
    %2542 = vmatpush.bf16.msra.mxu0 %v1762
    %2543 = vmatpush.bf16.msra.mxu0 %v1758
    %2544 = vmatpush.bf16.msra.mxu0 %v1754
    %2545 = vmatmul.bf16.gmra.mxu0 %v647
    %v2546 = vpop.f32.mrf.mxu0
    %v2547 = vadd.f32 %v2534, %v2546
    %v2548 = vpop.f32.mrf.mxu0
    %2549 = vdwg.mxu0
    %2550 = vmatpush.bf16.msra.mxu0 %v1814
    %2551 = vmatpush.bf16.msra.mxu0 %v1810
    %2552 = vmatpush.bf16.msra.mxu0 %v1806
    %2553 = vmatpush.bf16.msra.mxu0 %v1802
    %2554 = vmatpush.bf16.msra.mxu0 %v1798
    %2555 = vmatpush.bf16.msra.mxu0 %v1794
    %2556 = vmatpush.bf16.msra.mxu0 %v1790
    %2557 = vmatpush.bf16.msra.mxu0 %v1786
    %2558 = vmatmul.bf16.gmra.mxu0 %v648
    %v2559 = vpop.f32.mrf.mxu0
    %v2560 = vadd.f32 %v2547, %v2559
    %v2561 = vpop.f32.mrf.mxu0
    %2562 = vdwg.mxu0
    %2563 = vmatpush.bf16.msra.mxu0 %v1846
    %2564 = vmatpush.bf16.msra.mxu0 %v1842
    %2565 = vmatpush.bf16.msra.mxu0 %v1838
    %2566 = vmatpush.bf16.msra.mxu0 %v1834
    %2567 = vmatpush.bf16.msra.mxu0 %v1830
    %2568 = vmatpush.bf16.msra.mxu0 %v1826
    %2569 = vmatpush.bf16.msra.mxu0 %v1822
    %2570 = vmatpush.bf16.msra.mxu0 %v1818
    %2571 = vmatmul.bf16.gmra.mxu0 %v649
    %v2572 = vpop.f32.mrf.mxu0
    %v2573 = vadd.f32 %v2560, %v2572
    %v2574 = vpop.f32.mrf.mxu0
    %2575 = vdwg.mxu0
    %2576 = vmatpush.bf16.msra.mxu0 %v1878
    %2577 = vmatpush.bf16.msra.mxu0 %v1874
    %2578 = vmatpush.bf16.msra.mxu0 %v1870
    %2579 = vmatpush.bf16.msra.mxu0 %v1866
    %2580 = vmatpush.bf16.msra.mxu0 %v1862
    %2581 = vmatpush.bf16.msra.mxu0 %v1858
    %2582 = vmatpush.bf16.msra.mxu0 %v1854
    %2583 = vmatpush.bf16.msra.mxu0 %v1850
    %2584 = vmatmul.bf16.gmra.mxu0 %v650
    %v2585 = vpop.f32.mrf.mxu0
    %v2586 = vadd.f32 %v2573, %v2585
    %v2587 = vpop.f32.mrf.mxu0
    %2588 = vdwg.mxu0
    %2589 = vmatpush.bf16.msra.mxu0 %v1910
    %2590 = vmatpush.bf16.msra.mxu0 %v1906
    %2591 = vmatpush.bf16.msra.mxu0 %v1902
    %2592 = vmatpush.bf16.msra.mxu0 %v1898
    %2593 = vmatpush.bf16.msra.mxu0 %v1894
    %2594 = vmatpush.bf16.msra.mxu0 %v1890
    %2595 = vmatpush.bf16.msra.mxu0 %v1886
    %2596 = vmatpush.bf16.msra.mxu0 %v1882
    %2597 = vmatmul.bf16.gmra.mxu0 %v651
    %v2598 = vpop.f32.mrf.mxu0
    %v2599 = vadd.f32 %v2586, %v2598
    %v2600 = vpop.f32.mrf.mxu0
    %2601 = vdwg.mxu0
    %2602 = vmatpush.bf16.msra.mxu0 %v1942
    %2603 = vmatpush.bf16.msra.mxu0 %v1938
    %2604 = vmatpush.bf16.msra.mxu0 %v1934
    %2605 = vmatpush.bf16.msra.mxu0 %v1930
    %2606 = vmatpush.bf16.msra.mxu0 %v1926
    %2607 = vmatpush.bf16.msra.mxu0 %v1922
    %2608 = vmatpush.bf16.msra.mxu0 %v1918
    %2609 = vmatpush.bf16.msra.mxu0 %v1914
    %2610 = vmatmul.bf16.gmra.mxu0 %v652
    %v2611 = vpop.f32.mrf.mxu0
    %v2612 = vadd.f32 %v2599, %v2611
    %v2613 = vpop.f32.mrf.mxu0
    %2614 = vdwg.mxu0
    %v2615 = vmax.f32 %v2300, 0.0
    %v2616 = vmax.f32 %v2404, 0.0
    %v2617 = vmax.f32 %v2508, 0.0
    %v2618 = vmax.f32 %v2612, 0.0
    %v2619 = vpack.c.bf16 %v2615, %v2615
    %v2620 = vpack.c.bf16 %v2616, %v2616
    %v2621 = vpack.c.bf16 %v2617, %v2617
    %v2622 = vpack.c.bf16 %v2618, %v2618
    %v2623 = vld [vmem:[#allocation6] sm:$0xff]
    %v2624 = vld [vmem:[#allocation6 + $0x8] sm:$0xff]
    %v2625 = vld [vmem:[#allocation6 + $0x10] sm:$0xff]
    %v2626 = vld [vmem:[#allocation6 + $0x18] sm:$0xff]
    %v2627 = vld [vmem:[#allocation6 + $0x20] sm:$0xff]
    %v2628 = vld [vmem:[#allocation6 + $0x28] sm:$0xff]
    %v2629 = vld [vmem:[#allocation6 + $0x30] sm:$0xff]
    %v2630 = vld [vmem:[#allocation6 + $0x38] sm:$0xff]
    %v2631 = vld [vmem:[#allocation6 + $0x40] sm:$0xff]
    %v2632 = vld [vmem:[#allocation6 + $0x48] sm:$0xff]
    %v2633 = vld [vmem:[#allocation6 + $0x50] sm:$0xff]
    %v2634 = vld [vmem:[#allocation6 + $0x58] sm:$0xff]
    %v2635 = vld [vmem:[#allocation6 + $0x60] sm:$0xff]
    %v2636 = vld [vmem:[#allocation6 + $0x68] sm:$0xff]
    %v2637 = vld [vmem:[#allocation6 + $0x70] sm:$0xff]
    %v2638 = vld [vmem:[#allocation6 + $0x78] sm:$0xff]
    %v2639 = vld [vmem:[#allocation6 + $0x80] sm:$0xff]
    %v2640 = vld [vmem:[#allocation6 + $0x88] sm:$0xff]
    %v2641 = vld [vmem:[#allocation6 + $0x90] sm:$0xff]
    %v2642 = vld [vmem:[#allocation6 + $0x98] sm:$0xff]
    %v2643 = vld [vmem:[#allocation6 + $0xa0] sm:$0xff]
    %v2644 = vld [vmem:[#allocation6 + $0xa8] sm:$0xff]
    %v2645 = vld [vmem:[#allocation6 + $0xb0] sm:$0xff]
    %v2646 = vld [vmem:[#allocation6 + $0xb8] sm:$0xff]
    %v2647 = vld [vmem:[#allocation6 + $0xc0] sm:$0xff]
    %v2648 = vld [vmem:[#allocation6 + $0xc8] sm:$0xff]
    %v2649 = vld [vmem:[#allocation6 + $0xd0] sm:$0xff]
    %v2650 = vld [vmem:[#allocation6 + $0xd8] sm:$0xff]
    %v2651 = vld [vmem:[#allocation6 + $0xe0] sm:$0xff]
    %v2652 = vld [vmem:[#allocation6 + $0xe8] sm:$0xff]
    %v2653 = vld [vmem:[#allocation6 + $0xf0] sm:$0xff]
    %v2654 = vld [vmem:[#allocation6 + $0xf8] sm:$0xff]
    %v2655 = vld [vmem:[#allocation6 + $0x100] sm:$0xff]
    %v2656 = vld [vmem:[#allocation6 + $0x108] sm:$0xff]
    %v2657 = vld [vmem:[#allocation6 + $0x110] sm:$0xff]
    %v2658 = vld [vmem:[#allocation6 + $0x118] sm:$0xff]
    %v2659 = vld [vmem:[#allocation6 + $0x120] sm:$0xff]
    %v2660 = vld [vmem:[#allocation6 + $0x128] sm:$0xff]
    %v2661 = vld [vmem:[#allocation6 + $0x130] sm:$0xff]
    %v2662 = vld [vmem:[#allocation6 + $0x138] sm:$0xff]
    %v2663 = vld [vmem:[#allocation6 + $0x140] sm:$0xff]
    %v2664 = vld [vmem:[#allocation6 + $0x148] sm:$0xff]
    %v2665 = vld [vmem:[#allocation6 + $0x150] sm:$0xff]
    %v2666 = vld [vmem:[#allocation6 + $0x158] sm:$0xff]
    %v2667 = vld [vmem:[#allocation6 + $0x160] sm:$0xff]
    %v2668 = vld [vmem:[#allocation6 + $0x168] sm:$0xff]
    %v2669 = vld [vmem:[#allocation6 + $0x170] sm:$0xff]
    %v2670 = vld [vmem:[#allocation6 + $0x178] sm:$0xff]
    %v2671 = vld [vmem:[#allocation6 + $0x180] sm:$0xff]
    %v2672 = vld [vmem:[#allocation6 + $0x188] sm:$0xff]
    %v2673 = vld [vmem:[#allocation6 + $0x190] sm:$0xff]
    %v2674 = vld [vmem:[#allocation6 + $0x198] sm:$0xff]
    %v2675 = vld [vmem:[#allocation6 + $0x1a0] sm:$0xff]
    %v2676 = vld [vmem:[#allocation6 + $0x1a8] sm:$0xff]
    %v2677 = vld [vmem:[#allocation6 + $0x1b0] sm:$0xff]
    %v2678 = vld [vmem:[#allocation6 + $0x1b8] sm:$0xff]
    %v2679 = vld [vmem:[#allocation6 + $0x1c0] sm:$0xff]
    %v2680 = vld [vmem:[#allocation6 + $0x1c8] sm:$0xff]
    %v2681 = vld [vmem:[#allocation6 + $0x1d0] sm:$0xff]
    %v2682 = vld [vmem:[#allocation6 + $0x1d8] sm:$0xff]
    %v2683 = vld [vmem:[#allocation6 + $0x1e0] sm:$0xff]
    %v2684 = vld [vmem:[#allocation6 + $0x1e8] sm:$0xff]
    %v2685 = vld [vmem:[#allocation6 + $0x1f0] sm:$0xff]
    %v2686 = vld [vmem:[#allocation6 + $0x1f8] sm:$0xff]
    %v2687 = vld [vmem:[#allocation6 + $0x200] sm:$0xff]
    %v2688 = vld [vmem:[#allocation6 + $0x208] sm:$0xff]
    %v2689 = vld [vmem:[#allocation6 + $0x210] sm:$0xff]
    %v2690 = vld [vmem:[#allocation6 + $0x218] sm:$0xff]
    %v2691 = vld [vmem:[#allocation6 + $0x220] sm:$0xff]
    %v2692 = vld [vmem:[#allocation6 + $0x228] sm:$0xff]
    %v2693 = vld [vmem:[#allocation6 + $0x230] sm:$0xff]
    %v2694 = vld [vmem:[#allocation6 + $0x238] sm:$0xff]
    %v2695 = vld [vmem:[#allocation6 + $0x240] sm:$0xff]
    %v2696 = vld [vmem:[#allocation6 + $0x248] sm:$0xff]
    %v2697 = vld [vmem:[#allocation6 + $0x250] sm:$0xff]
    %v2698 = vld [vmem:[#allocation6 + $0x258] sm:$0xff]
    %v2699 = vld [vmem:[#allocation6 + $0x260] sm:$0xff]
    %v2700 = vld [vmem:[#allocation6 + $0x268] sm:$0xff]
    %v2701 = vld [vmem:[#allocation6 + $0x270] sm:$0xff]
    %v2702 = vld [vmem:[#allocation6 + $0x278] sm:$0xff]
    %v2703 = vld [vmem:[#allocation6 + $0x280] sm:$0xff]
    %v2704 = vld [vmem:[#allocation6 + $0x288] sm:$0xff]
    %v2705 = vld [vmem:[#allocation6 + $0x290] sm:$0xff]
    %v2706 = vld [vmem:[#allocation6 + $0x298] sm:$0xff]
    %v2707 = vld [vmem:[#allocation6 + $0x2a0] sm:$0xff]
    %v2708 = vld [vmem:[#allocation6 + $0x2a8] sm:$0xff]
    %v2709 = vld [vmem:[#allocation6 + $0x2b0] sm:$0xff]
    %v2710 = vld [vmem:[#allocation6 + $0x2b8] sm:$0xff]
    %v2711 = vld [vmem:[#allocation6 + $0x2c0] sm:$0xff]
    %v2712 = vld [vmem:[#allocation6 + $0x2c8] sm:$0xff]
    %v2713 = vld [vmem:[#allocation6 + $0x2d0] sm:$0xff]
    %v2714 = vld [vmem:[#allocation6 + $0x2d8] sm:$0xff]
    %v2715 = vld [vmem:[#allocation6 + $0x2e0] sm:$0xff]
    %v2716 = vld [vmem:[#allocation6 + $0x2e8] sm:$0xff]
    %v2717 = vld [vmem:[#allocation6 + $0x2f0] sm:$0xff]
    %v2718 = vld [vmem:[#allocation6 + $0x2f8] sm:$0xff]
    %v2719 = vld [vmem:[#allocation6 + $0x300] sm:$0xff]
    %v2720 = vld [vmem:[#allocation6 + $0x308] sm:$0xff]
    %v2721 = vld [vmem:[#allocation6 + $0x310] sm:$0xff]
    %v2722 = vld [vmem:[#allocation6 + $0x318] sm:$0xff]
    %v2723 = vld [vmem:[#allocation6 + $0x320] sm:$0xff]
    %v2724 = vld [vmem:[#allocation6 + $0x328] sm:$0xff]
    %v2725 = vld [vmem:[#allocation6 + $0x330] sm:$0xff]
    %v2726 = vld [vmem:[#allocation6 + $0x338] sm:$0xff]
    %v2727 = vld [vmem:[#allocation6 + $0x340] sm:$0xff]
    %v2728 = vld [vmem:[#allocation6 + $0x348] sm:$0xff]
    %v2729 = vld [vmem:[#allocation6 + $0x350] sm:$0xff]
    %v2730 = vld [vmem:[#allocation6 + $0x358] sm:$0xff]
    %v2731 = vld [vmem:[#allocation6 + $0x360] sm:$0xff]
    %v2732 = vld [vmem:[#allocation6 + $0x368] sm:$0xff]
    %v2733 = vld [vmem:[#allocation6 + $0x370] sm:$0xff]
    %v2734 = vld [vmem:[#allocation6 + $0x378] sm:$0xff]
    %v2735 = vld [vmem:[#allocation6 + $0x380] sm:$0xff]
    %v2736 = vld [vmem:[#allocation6 + $0x388] sm:$0xff]
    %v2737 = vld [vmem:[#allocation6 + $0x390] sm:$0xff]
    %v2738 = vld [vmem:[#allocation6 + $0x398] sm:$0xff]
    %v2739 = vld [vmem:[#allocation6 + $0x3a0] sm:$0xff]
    %v2740 = vld [vmem:[#allocation6 + $0x3a8] sm:$0xff]
    %v2741 = vld [vmem:[#allocation6 + $0x3b0] sm:$0xff]
    %v2742 = vld [vmem:[#allocation6 + $0x3b8] sm:$0xff]
    %v2743 = vld [vmem:[#allocation6 + $0x3c0] sm:$0xff]
    %v2744 = vld [vmem:[#allocation6 + $0x3c8] sm:$0xff]
    %v2745 = vld [vmem:[#allocation6 + $0x3d0] sm:$0xff]
    %v2746 = vld [vmem:[#allocation6 + $0x3d8] sm:$0xff]
    %v2747 = vld [vmem:[#allocation6 + $0x3e0] sm:$0xff]
    %v2748 = vld [vmem:[#allocation6 + $0x3e8] sm:$0xff]
    %v2749 = vld [vmem:[#allocation6 + $0x3f0] sm:$0xff]
    %v2750 = vld [vmem:[#allocation6 + $0x3f8] sm:$0xff]
    %v2751 = vld [vmem:[#allocation6 + $0x400] sm:$0xff]
    %v2752 = vld [vmem:[#allocation6 + $0x408] sm:$0xff]
    %v2753 = vld [vmem:[#allocation6 + $0x410] sm:$0xff]
    %v2754 = vld [vmem:[#allocation6 + $0x418] sm:$0xff]
    %v2755 = vld [vmem:[#allocation6 + $0x420] sm:$0xff]
    %v2756 = vld [vmem:[#allocation6 + $0x428] sm:$0xff]
    %v2757 = vld [vmem:[#allocation6 + $0x430] sm:$0xff]
    %v2758 = vld [vmem:[#allocation6 + $0x438] sm:$0xff]
    %v2759 = vld [vmem:[#allocation6 + $0x440] sm:$0xff]
    %v2760 = vld [vmem:[#allocation6 + $0x448] sm:$0xff]
    %v2761 = vld [vmem:[#allocation6 + $0x450] sm:$0xff]
    %v2762 = vld [vmem:[#allocation6 + $0x458] sm:$0xff]
    %v2763 = vld [vmem:[#allocation6 + $0x460] sm:$0xff]
    %v2764 = vld [vmem:[#allocation6 + $0x468] sm:$0xff]
    %v2765 = vld [vmem:[#allocation6 + $0x470] sm:$0xff]
    %v2766 = vld [vmem:[#allocation6 + $0x478] sm:$0xff]
    %v2767 = vld [vmem:[#allocation6 + $0x480] sm:$0xff]
    %v2768 = vld [vmem:[#allocation6 + $0x488] sm:$0xff]
    %v2769 = vld [vmem:[#allocation6 + $0x490] sm:$0xff]
    %v2770 = vld [vmem:[#allocation6 + $0x498] sm:$0xff]
    %v2771 = vld [vmem:[#allocation6 + $0x4a0] sm:$0xff]
    %v2772 = vld [vmem:[#allocation6 + $0x4a8] sm:$0xff]
    %v2773 = vld [vmem:[#allocation6 + $0x4b0] sm:$0xff]
    %v2774 = vld [vmem:[#allocation6 + $0x4b8] sm:$0xff]
    %v2775 = vld [vmem:[#allocation6 + $0x4c0] sm:$0xff]
    %v2776 = vld [vmem:[#allocation6 + $0x4c8] sm:$0xff]
    %v2777 = vld [vmem:[#allocation6 + $0x4d0] sm:$0xff]
    %v2778 = vld [vmem:[#allocation6 + $0x4d8] sm:$0xff]
    %v2779 = vld [vmem:[#allocation6 + $0x4e0] sm:$0xff]
    %v2780 = vld [vmem:[#allocation6 + $0x4e8] sm:$0xff]
    %v2781 = vld [vmem:[#allocation6 + $0x4f0] sm:$0xff]
    %v2782 = vld [vmem:[#allocation6 + $0x4f8] sm:$0xff]
    %v2783 = vld [vmem:[#allocation6 + $0x500] sm:$0xff]
    %v2784 = vld [vmem:[#allocation6 + $0x508] sm:$0xff]
    %v2785 = vld [vmem:[#allocation6 + $0x510] sm:$0xff]
    %v2786 = vld [vmem:[#allocation6 + $0x518] sm:$0xff]
    %v2787 = vld [vmem:[#allocation6 + $0x520] sm:$0xff]
    %v2788 = vld [vmem:[#allocation6 + $0x528] sm:$0xff]
    %v2789 = vld [vmem:[#allocation6 + $0x530] sm:$0xff]
    %v2790 = vld [vmem:[#allocation6 + $0x538] sm:$0xff]
    %v2791 = vld [vmem:[#allocation6 + $0x540] sm:$0xff]
    %v2792 = vld [vmem:[#allocation6 + $0x548] sm:$0xff]
    %v2793 = vld [vmem:[#allocation6 + $0x550] sm:$0xff]
    %v2794 = vld [vmem:[#allocation6 + $0x558] sm:$0xff]
    %v2795 = vld [vmem:[#allocation6 + $0x560] sm:$0xff]
    %v2796 = vld [vmem:[#allocation6 + $0x568] sm:$0xff]
    %v2797 = vld [vmem:[#allocation6 + $0x570] sm:$0xff]
    %v2798 = vld [vmem:[#allocation6 + $0x578] sm:$0xff]
    %v2799 = vld [vmem:[#allocation6 + $0x580] sm:$0xff]
    %v2800 = vld [vmem:[#allocation6 + $0x588] sm:$0xff]
    %v2801 = vld [vmem:[#allocation6 + $0x590] sm:$0xff]
    %v2802 = vld [vmem:[#allocation6 + $0x598] sm:$0xff]
    %v2803 = vld [vmem:[#allocation6 + $0x5a0] sm:$0xff]
    %v2804 = vld [vmem:[#allocation6 + $0x5a8] sm:$0xff]
    %v2805 = vld [vmem:[#allocation6 + $0x5b0] sm:$0xff]
    %v2806 = vld [vmem:[#allocation6 + $0x5b8] sm:$0xff]
    %v2807 = vld [vmem:[#allocation6 + $0x5c0] sm:$0xff]
    %v2808 = vld [vmem:[#allocation6 + $0x5c8] sm:$0xff]
    %v2809 = vld [vmem:[#allocation6 + $0x5d0] sm:$0xff]
    %v2810 = vld [vmem:[#allocation6 + $0x5d8] sm:$0xff]
    %v2811 = vld [vmem:[#allocation6 + $0x5e0] sm:$0xff]
    %v2812 = vld [vmem:[#allocation6 + $0x5e8] sm:$0xff]
    %v2813 = vld [vmem:[#allocation6 + $0x5f0] sm:$0xff]
    %v2814 = vld [vmem:[#allocation6 + $0x5f8] sm:$0xff]
    %v2815 = vld [vmem:[#allocation6 + $0x600] sm:$0xff]
    %v2816 = vld [vmem:[#allocation6 + $0x608] sm:$0xff]
    %v2817 = vld [vmem:[#allocation6 + $0x610] sm:$0xff]
    %v2818 = vld [vmem:[#allocation6 + $0x618] sm:$0xff]
    %v2819 = vld [vmem:[#allocation6 + $0x620] sm:$0xff]
    %v2820 = vld [vmem:[#allocation6 + $0x628] sm:$0xff]
    %v2821 = vld [vmem:[#allocation6 + $0x630] sm:$0xff]
    %v2822 = vld [vmem:[#allocation6 + $0x638] sm:$0xff]
    %v2823 = vld [vmem:[#allocation6 + $0x640] sm:$0xff]
    %v2824 = vld [vmem:[#allocation6 + $0x648] sm:$0xff]
    %v2825 = vld [vmem:[#allocation6 + $0x650] sm:$0xff]
    %v2826 = vld [vmem:[#allocation6 + $0x658] sm:$0xff]
    %v2827 = vld [vmem:[#allocation6 + $0x660] sm:$0xff]
    %v2828 = vld [vmem:[#allocation6 + $0x668] sm:$0xff]
    %v2829 = vld [vmem:[#allocation6 + $0x670] sm:$0xff]
    %v2830 = vld [vmem:[#allocation6 + $0x678] sm:$0xff]
    %v2831 = vld [vmem:[#allocation6 + $0x680] sm:$0xff]
    %v2832 = vld [vmem:[#allocation6 + $0x688] sm:$0xff]
    %v2833 = vld [vmem:[#allocation6 + $0x690] sm:$0xff]
    %v2834 = vld [vmem:[#allocation6 + $0x698] sm:$0xff]
    %v2835 = vld [vmem:[#allocation6 + $0x6a0] sm:$0xff]
    %v2836 = vld [vmem:[#allocation6 + $0x6a8] sm:$0xff]
    %v2837 = vld [vmem:[#allocation6 + $0x6b0] sm:$0xff]
    %v2838 = vld [vmem:[#allocation6 + $0x6b8] sm:$0xff]
    %v2839 = vld [vmem:[#allocation6 + $0x6c0] sm:$0xff]
    %v2840 = vld [vmem:[#allocation6 + $0x6c8] sm:$0xff]
    %v2841 = vld [vmem:[#allocation6 + $0x6d0] sm:$0xff]
    %v2842 = vld [vmem:[#allocation6 + $0x6d8] sm:$0xff]
    %v2843 = vld [vmem:[#allocation6 + $0x6e0] sm:$0xff]
    %v2844 = vld [vmem:[#allocation6 + $0x6e8] sm:$0xff]
    %v2845 = vld [vmem:[#allocation6 + $0x6f0] sm:$0xff]
    %v2846 = vld [vmem:[#allocation6 + $0x6f8] sm:$0xff]
    %v2847 = vld [vmem:[#allocation6 + $0x700] sm:$0xff]
    %v2848 = vld [vmem:[#allocation6 + $0x708] sm:$0xff]
    %v2849 = vld [vmem:[#allocation6 + $0x710] sm:$0xff]
    %v2850 = vld [vmem:[#allocation6 + $0x718] sm:$0xff]
    %v2851 = vld [vmem:[#allocation6 + $0x720] sm:$0xff]
    %v2852 = vld [vmem:[#allocation6 + $0x728] sm:$0xff]
    %v2853 = vld [vmem:[#allocation6 + $0x730] sm:$0xff]
    %v2854 = vld [vmem:[#allocation6 + $0x738] sm:$0xff]
    %v2855 = vld [vmem:[#allocation6 + $0x740] sm:$0xff]
    %v2856 = vld [vmem:[#allocation6 + $0x748] sm:$0xff]
    %v2857 = vld [vmem:[#allocation6 + $0x750] sm:$0xff]
    %v2858 = vld [vmem:[#allocation6 + $0x758] sm:$0xff]
    %v2859 = vld [vmem:[#allocation6 + $0x760] sm:$0xff]
    %v2860 = vld [vmem:[#allocation6 + $0x768] sm:$0xff]
    %v2861 = vld [vmem:[#allocation6 + $0x770] sm:$0xff]
    %v2862 = vld [vmem:[#allocation6 + $0x778] sm:$0xff]
    %v2863 = vld [vmem:[#allocation6 + $0x780] sm:$0xff]
    %v2864 = vld [vmem:[#allocation6 + $0x788] sm:$0xff]
    %v2865 = vld [vmem:[#allocation6 + $0x790] sm:$0xff]
    %v2866 = vld [vmem:[#allocation6 + $0x798] sm:$0xff]
    %v2867 = vld [vmem:[#allocation6 + $0x7a0] sm:$0xff]
    %v2868 = vld [vmem:[#allocation6 + $0x7a8] sm:$0xff]
    %v2869 = vld [vmem:[#allocation6 + $0x7b0] sm:$0xff]
    %v2870 = vld [vmem:[#allocation6 + $0x7b8] sm:$0xff]
    %v2871 = vld [vmem:[#allocation6 + $0x7c0] sm:$0xff]
    %v2872 = vld [vmem:[#allocation6 + $0x7c8] sm:$0xff]
    %v2873 = vld [vmem:[#allocation6 + $0x7d0] sm:$0xff]
    %v2874 = vld [vmem:[#allocation6 + $0x7d8] sm:$0xff]
    %v2875 = vld [vmem:[#allocation6 + $0x7e0] sm:$0xff]
    %v2876 = vld [vmem:[#allocation6 + $0x7e8] sm:$0xff]
    %v2877 = vld [vmem:[#allocation6 + $0x7f0] sm:$0xff]
    %v2878 = vld [vmem:[#allocation6 + $0x7f8] sm:$0xff]
    %v2879 = vld [vmem:[#allocation7] sm:$0xff]
    %v2881 = vperm.slane %v2879, 0
    %v2882 = vperm.slane %v2879, 1
    %v2883 = vperm.slane %v2879, 2
    %v2884 = vperm.slane %v2879, 3
    %v2885 = vperm.slane %v2879, 4
    %v2886 = vperm.slane %v2879, 5
    %v2887 = vperm.slane %v2879, 6
    %v2888 = vperm.slane %v2879, 7
    %v3153 = vunpack.c.l.b16 %v2623
    %v3154 = vunpack.c.h.b16 %v2623
    %v3155 = vunpack.c.l.b16 %v2624
    %v3156 = vunpack.c.h.b16 %v2624
    %v3157 = vunpack.c.l.b16 %v2625
    %v3158 = vunpack.c.h.b16 %v2625
    %v3159 = vunpack.c.l.b16 %v2626
    %v3160 = vunpack.c.h.b16 %v2626
    %v3161 = vunpack.c.l.b16 %v2627
    %v3162 = vunpack.c.h.b16 %v2627
    %v3163 = vunpack.c.l.b16 %v2628
    %v3164 = vunpack.c.h.b16 %v2628
    %v3165 = vunpack.c.l.b16 %v2629
    %v3166 = vunpack.c.h.b16 %v2629
    %v3167 = vunpack.c.l.b16 %v2630
    %v3168 = vunpack.c.h.b16 %v2630
    %v3169 = vunpack.c.l.b16 %v2631
    %v3170 = vunpack.c.h.b16 %v2631
    %v3171 = vunpack.c.l.b16 %v2632
    %v3172 = vunpack.c.h.b16 %v2632
    %v3173 = vunpack.c.l.b16 %v2633
    %v3174 = vunpack.c.h.b16 %v2633
    %v3175 = vunpack.c.l.b16 %v2634
    %v3176 = vunpack.c.h.b16 %v2634
    %v3177 = vunpack.c.l.b16 %v2635
    %v3178 = vunpack.c.h.b16 %v2635
    %v3179 = vunpack.c.l.b16 %v2636
    %v3180 = vunpack.c.h.b16 %v2636
    %v3181 = vunpack.c.l.b16 %v2637
    %v3182 = vunpack.c.h.b16 %v2637
    %v3183 = vunpack.c.l.b16 %v2638
    %v3184 = vunpack.c.h.b16 %v2638
    %v3185 = vunpack.c.l.b16 %v2639
    %v3186 = vunpack.c.h.b16 %v2639
    %v3187 = vunpack.c.l.b16 %v2640
    %v3188 = vunpack.c.h.b16 %v2640
    %v3189 = vunpack.c.l.b16 %v2641
    %v3190 = vunpack.c.h.b16 %v2641
    %v3191 = vunpack.c.l.b16 %v2642
    %v3192 = vunpack.c.h.b16 %v2642
    %v3193 = vunpack.c.l.b16 %v2643
    %v3194 = vunpack.c.h.b16 %v2643
    %v3195 = vunpack.c.l.b16 %v2644
    %v3196 = vunpack.c.h.b16 %v2644
    %v3197 = vunpack.c.l.b16 %v2645
    %v3198 = vunpack.c.h.b16 %v2645
    %v3199 = vunpack.c.l.b16 %v2646
    %v3200 = vunpack.c.h.b16 %v2646
    %v3201 = vunpack.c.l.b16 %v2647
    %v3202 = vunpack.c.h.b16 %v2647
    %v3203 = vunpack.c.l.b16 %v2648
    %v3204 = vunpack.c.h.b16 %v2648
    %v3205 = vunpack.c.l.b16 %v2649
    %v3206 = vunpack.c.h.b16 %v2649
    %v3207 = vunpack.c.l.b16 %v2650
    %v3208 = vunpack.c.h.b16 %v2650
    %v3209 = vunpack.c.l.b16 %v2651
    %v3210 = vunpack.c.h.b16 %v2651
    %v3211 = vunpack.c.l.b16 %v2652
    %v3212 = vunpack.c.h.b16 %v2652
    %v3213 = vunpack.c.l.b16 %v2653
    %v3214 = vunpack.c.h.b16 %v2653
    %v3215 = vunpack.c.l.b16 %v2654
    %v3216 = vunpack.c.h.b16 %v2654
    %v3217 = vunpack.c.l.b16 %v2655
    %v3218 = vunpack.c.h.b16 %v2655
    %v3219 = vunpack.c.l.b16 %v2656
    %v3220 = vunpack.c.h.b16 %v2656
    %v3221 = vunpack.c.l.b16 %v2657
    %v3222 = vunpack.c.h.b16 %v2657
    %v3223 = vunpack.c.l.b16 %v2658
    %v3224 = vunpack.c.h.b16 %v2658
    %v3225 = vunpack.c.l.b16 %v2659
    %v3226 = vunpack.c.h.b16 %v2659
    %v3227 = vunpack.c.l.b16 %v2660
    %v3228 = vunpack.c.h.b16 %v2660
    %v3229 = vunpack.c.l.b16 %v2661
    %v3230 = vunpack.c.h.b16 %v2661
    %v3231 = vunpack.c.l.b16 %v2662
    %v3232 = vunpack.c.h.b16 %v2662
    %v3233 = vunpack.c.l.b16 %v2663
    %v3234 = vunpack.c.h.b16 %v2663
    %v3235 = vunpack.c.l.b16 %v2664
    %v3236 = vunpack.c.h.b16 %v2664
    %v3237 = vunpack.c.l.b16 %v2665
    %v3238 = vunpack.c.h.b16 %v2665
    %v3239 = vunpack.c.l.b16 %v2666
    %v3240 = vunpack.c.h.b16 %v2666
    %v3241 = vunpack.c.l.b16 %v2667
    %v3242 = vunpack.c.h.b16 %v2667
    %v3243 = vunpack.c.l.b16 %v2668
    %v3244 = vunpack.c.h.b16 %v2668
    %v3245 = vunpack.c.l.b16 %v2669
    %v3246 = vunpack.c.h.b16 %v2669
    %v3247 = vunpack.c.l.b16 %v2670
    %v3248 = vunpack.c.h.b16 %v2670
    %v3249 = vunpack.c.l.b16 %v2671
    %v3250 = vunpack.c.h.b16 %v2671
    %v3251 = vunpack.c.l.b16 %v2672
    %v3252 = vunpack.c.h.b16 %v2672
    %v3253 = vunpack.c.l.b16 %v2673
    %v3254 = vunpack.c.h.b16 %v2673
    %v3255 = vunpack.c.l.b16 %v2674
    %v3256 = vunpack.c.h.b16 %v2674
    %v3257 = vunpack.c.l.b16 %v2675
    %v3258 = vunpack.c.h.b16 %v2675
    %v3259 = vunpack.c.l.b16 %v2676
    %v3260 = vunpack.c.h.b16 %v2676
    %v3261 = vunpack.c.l.b16 %v2677
    %v3262 = vunpack.c.h.b16 %v2677
    %v3263 = vunpack.c.l.b16 %v2678
    %v3264 = vunpack.c.h.b16 %v2678
    %v3265 = vunpack.c.l.b16 %v2679
    %v3266 = vunpack.c.h.b16 %v2679
    %v3267 = vunpack.c.l.b16 %v2680
    %v3268 = vunpack.c.h.b16 %v2680
    %v3269 = vunpack.c.l.b16 %v2681
    %v3270 = vunpack.c.h.b16 %v2681
    %v3271 = vunpack.c.l.b16 %v2682
    %v3272 = vunpack.c.h.b16 %v2682
    %v3273 = vunpack.c.l.b16 %v2683
    %v3274 = vunpack.c.h.b16 %v2683
    %v3275 = vunpack.c.l.b16 %v2684
    %v3276 = vunpack.c.h.b16 %v2684
    %v3277 = vunpack.c.l.b16 %v2685
    %v3278 = vunpack.c.h.b16 %v2685
    %v3279 = vunpack.c.l.b16 %v2686
    %v3280 = vunpack.c.h.b16 %v2686
    %v3281 = vunpack.c.l.b16 %v2687
    %v3282 = vunpack.c.h.b16 %v2687
    %v3283 = vunpack.c.l.b16 %v2688
    %v3284 = vunpack.c.h.b16 %v2688
    %v3285 = vunpack.c.l.b16 %v2689
    %v3286 = vunpack.c.h.b16 %v2689
    %v3287 = vunpack.c.l.b16 %v2690
    %v3288 = vunpack.c.h.b16 %v2690
    %v3289 = vunpack.c.l.b16 %v2691
    %v3290 = vunpack.c.h.b16 %v2691
    %v3291 = vunpack.c.l.b16 %v2692
    %v3292 = vunpack.c.h.b16 %v2692
    %v3293 = vunpack.c.l.b16 %v2693
    %v3294 = vunpack.c.h.b16 %v2693
    %v3295 = vunpack.c.l.b16 %v2694
    %v3296 = vunpack.c.h.b16 %v2694
    %v3297 = vunpack.c.l.b16 %v2695
    %v3298 = vunpack.c.h.b16 %v2695
    %v3299 = vunpack.c.l.b16 %v2696
    %v3300 = vunpack.c.h.b16 %v2696
    %v3301 = vunpack.c.l.b16 %v2697
    %v3302 = vunpack.c.h.b16 %v2697
    %v3303 = vunpack.c.l.b16 %v2698
    %v3304 = vunpack.c.h.b16 %v2698
    %v3305 = vunpack.c.l.b16 %v2699
    %v3306 = vunpack.c.h.b16 %v2699
    %v3307 = vunpack.c.l.b16 %v2700
    %v3308 = vunpack.c.h.b16 %v2700
    %v3309 = vunpack.c.l.b16 %v2701
    %v3310 = vunpack.c.h.b16 %v2701
    %v3311 = vunpack.c.l.b16 %v2702
    %v3312 = vunpack.c.h.b16 %v2702
    %v3313 = vunpack.c.l.b16 %v2703
    %v3314 = vunpack.c.h.b16 %v2703
    %v3315 = vunpack.c.l.b16 %v2704
    %v3316 = vunpack.c.h.b16 %v2704
    %v3317 = vunpack.c.l.b16 %v2705
    %v3318 = vunpack.c.h.b16 %v2705
    %v3319 = vunpack.c.l.b16 %v2706
    %v3320 = vunpack.c.h.b16 %v2706
    %v3321 = vunpack.c.l.b16 %v2707
    %v3322 = vunpack.c.h.b16 %v2707
    %v3323 = vunpack.c.l.b16 %v2708
    %v3324 = vunpack.c.h.b16 %v2708
    %v3325 = vunpack.c.l.b16 %v2709
    %v3326 = vunpack.c.h.b16 %v2709
    %v3327 = vunpack.c.l.b16 %v2710
    %v3328 = vunpack.c.h.b16 %v2710
    %v3329 = vunpack.c.l.b16 %v2711
    %v3330 = vunpack.c.h.b16 %v2711
    %v3331 = vunpack.c.l.b16 %v2712
    %v3332 = vunpack.c.h.b16 %v2712
    %v3333 = vunpack.c.l.b16 %v2713
    %v3334 = vunpack.c.h.b16 %v2713
    %v3335 = vunpack.c.l.b16 %v2714
    %v3336 = vunpack.c.h.b16 %v2714
    %v3337 = vunpack.c.l.b16 %v2715
    %v3338 = vunpack.c.h.b16 %v2715
    %v3339 = vunpack.c.l.b16 %v2716
    %v3340 = vunpack.c.h.b16 %v2716
    %v3341 = vunpack.c.l.b16 %v2717
    %v3342 = vunpack.c.h.b16 %v2717
    %v3343 = vunpack.c.l.b16 %v2718
    %v3344 = vunpack.c.h.b16 %v2718
    %v3345 = vunpack.c.l.b16 %v2719
    %v3346 = vunpack.c.h.b16 %v2719
    %v3347 = vunpack.c.l.b16 %v2720
    %v3348 = vunpack.c.h.b16 %v2720
    %v3349 = vunpack.c.l.b16 %v2721
    %v3350 = vunpack.c.h.b16 %v2721
    %v3351 = vunpack.c.l.b16 %v2722
    %v3352 = vunpack.c.h.b16 %v2722
    %v3353 = vunpack.c.l.b16 %v2723
    %v3354 = vunpack.c.h.b16 %v2723
    %v3355 = vunpack.c.l.b16 %v2724
    %v3356 = vunpack.c.h.b16 %v2724
    %v3357 = vunpack.c.l.b16 %v2725
    %v3358 = vunpack.c.h.b16 %v2725
    %v3359 = vunpack.c.l.b16 %v2726
    %v3360 = vunpack.c.h.b16 %v2726
    %v3361 = vunpack.c.l.b16 %v2727
    %v3362 = vunpack.c.h.b16 %v2727
    %v3363 = vunpack.c.l.b16 %v2728
    %v3364 = vunpack.c.h.b16 %v2728
    %v3365 = vunpack.c.l.b16 %v2729
    %v3366 = vunpack.c.h.b16 %v2729
    %v3367 = vunpack.c.l.b16 %v2730
    %v3368 = vunpack.c.h.b16 %v2730
    %v3369 = vunpack.c.l.b16 %v2731
    %v3370 = vunpack.c.h.b16 %v2731
    %v3371 = vunpack.c.l.b16 %v2732
    %v3372 = vunpack.c.h.b16 %v2732
    %v3373 = vunpack.c.l.b16 %v2733
    %v3374 = vunpack.c.h.b16 %v2733
    %v3375 = vunpack.c.l.b16 %v2734
    %v3376 = vunpack.c.h.b16 %v2734
    %v3377 = vunpack.c.l.b16 %v2735
    %v3378 = vunpack.c.h.b16 %v2735
    %v3379 = vunpack.c.l.b16 %v2736
    %v3380 = vunpack.c.h.b16 %v2736
    %v3381 = vunpack.c.l.b16 %v2737
    %v3382 = vunpack.c.h.b16 %v2737
    %v3383 = vunpack.c.l.b16 %v2738
    %v3384 = vunpack.c.h.b16 %v2738
    %v3385 = vunpack.c.l.b16 %v2739
    %v3386 = vunpack.c.h.b16 %v2739
    %v3387 = vunpack.c.l.b16 %v2740
    %v3388 = vunpack.c.h.b16 %v2740
    %v3389 = vunpack.c.l.b16 %v2741
    %v3390 = vunpack.c.h.b16 %v2741
    %v3391 = vunpack.c.l.b16 %v2742
    %v3392 = vunpack.c.h.b16 %v2742
    %v3393 = vunpack.c.l.b16 %v2743
    %v3394 = vunpack.c.h.b16 %v2743
    %v3395 = vunpack.c.l.b16 %v2744
    %v3396 = vunpack.c.h.b16 %v2744
    %v3397 = vunpack.c.l.b16 %v2745
    %v3398 = vunpack.c.h.b16 %v2745
    %v3399 = vunpack.c.l.b16 %v2746
    %v3400 = vunpack.c.h.b16 %v2746
    %v3401 = vunpack.c.l.b16 %v2747
    %v3402 = vunpack.c.h.b16 %v2747
    %v3403 = vunpack.c.l.b16 %v2748
    %v3404 = vunpack.c.h.b16 %v2748
    %v3405 = vunpack.c.l.b16 %v2749
    %v3406 = vunpack.c.h.b16 %v2749
    %v3407 = vunpack.c.l.b16 %v2750
    %v3408 = vunpack.c.h.b16 %v2750
    %v3409 = vunpack.c.l.b16 %v2751
    %v3410 = vunpack.c.h.b16 %v2751
    %v3411 = vunpack.c.l.b16 %v2752
    %v3412 = vunpack.c.h.b16 %v2752
    %v3413 = vunpack.c.l.b16 %v2753
    %v3414 = vunpack.c.h.b16 %v2753
    %v3415 = vunpack.c.l.b16 %v2754
    %v3416 = vunpack.c.h.b16 %v2754
    %v3417 = vunpack.c.l.b16 %v2755
    %v3418 = vunpack.c.h.b16 %v2755
    %v3419 = vunpack.c.l.b16 %v2756
    %v3420 = vunpack.c.h.b16 %v2756
    %v3421 = vunpack.c.l.b16 %v2757
    %v3422 = vunpack.c.h.b16 %v2757
    %v3423 = vunpack.c.l.b16 %v2758
    %v3424 = vunpack.c.h.b16 %v2758
    %v3425 = vunpack.c.l.b16 %v2759
    %v3426 = vunpack.c.h.b16 %v2759
    %v3427 = vunpack.c.l.b16 %v2760
    %v3428 = vunpack.c.h.b16 %v2760
    %v3429 = vunpack.c.l.b16 %v2761
    %v3430 = vunpack.c.h.b16 %v2761
    %v3431 = vunpack.c.l.b16 %v2762
    %v3432 = vunpack.c.h.b16 %v2762
    %v3433 = vunpack.c.l.b16 %v2763
    %v3434 = vunpack.c.h.b16 %v2763
    %v3435 = vunpack.c.l.b16 %v2764
    %v3436 = vunpack.c.h.b16 %v2764
    %v3437 = vunpack.c.l.b16 %v2765
    %v3438 = vunpack.c.h.b16 %v2765
    %v3439 = vunpack.c.l.b16 %v2766
    %v3440 = vunpack.c.h.b16 %v2766
    %v3441 = vunpack.c.l.b16 %v2767
    %v3442 = vunpack.c.h.b16 %v2767
    %v3443 = vunpack.c.l.b16 %v2768
    %v3444 = vunpack.c.h.b16 %v2768
    %v3445 = vunpack.c.l.b16 %v2769
    %v3446 = vunpack.c.h.b16 %v2769
    %v3447 = vunpack.c.l.b16 %v2770
    %v3448 = vunpack.c.h.b16 %v2770
    %v3449 = vunpack.c.l.b16 %v2771
    %v3450 = vunpack.c.h.b16 %v2771
    %v3451 = vunpack.c.l.b16 %v2772
    %v3452 = vunpack.c.h.b16 %v2772
    %v3453 = vunpack.c.l.b16 %v2773
    %v3454 = vunpack.c.h.b16 %v2773
    %v3455 = vunpack.c.l.b16 %v2774
    %v3456 = vunpack.c.h.b16 %v2774
    %v3457 = vunpack.c.l.b16 %v2775
    %v3458 = vunpack.c.h.b16 %v2775
    %v3459 = vunpack.c.l.b16 %v2776
    %v3460 = vunpack.c.h.b16 %v2776
    %v3461 = vunpack.c.l.b16 %v2777
    %v3462 = vunpack.c.h.b16 %v2777
    %v3463 = vunpack.c.l.b16 %v2778
    %v3464 = vunpack.c.h.b16 %v2778
    %v3465 = vunpack.c.l.b16 %v2779
    %v3466 = vunpack.c.h.b16 %v2779
    %v3467 = vunpack.c.l.b16 %v2780
    %v3468 = vunpack.c.h.b16 %v2780
    %v3469 = vunpack.c.l.b16 %v2781
    %v3470 = vunpack.c.h.b16 %v2781
    %v3471 = vunpack.c.l.b16 %v2782
    %v3472 = vunpack.c.h.b16 %v2782
    %v3473 = vunpack.c.l.b16 %v2783
    %v3474 = vunpack.c.h.b16 %v2783
    %v3475 = vunpack.c.l.b16 %v2784
    %v3476 = vunpack.c.h.b16 %v2784
    %v3477 = vunpack.c.l.b16 %v2785
    %v3478 = vunpack.c.h.b16 %v2785
    %v3479 = vunpack.c.l.b16 %v2786
    %v3480 = vunpack.c.h.b16 %v2786
    %v3481 = vunpack.c.l.b16 %v2787
    %v3482 = vunpack.c.h.b16 %v2787
    %v3483 = vunpack.c.l.b16 %v2788
    %v3484 = vunpack.c.h.b16 %v2788
    %v3485 = vunpack.c.l.b16 %v2789
    %v3486 = vunpack.c.h.b16 %v2789
    %v3487 = vunpack.c.l.b16 %v2790
    %v3488 = vunpack.c.h.b16 %v2790
    %v3489 = vunpack.c.l.b16 %v2791
    %v3490 = vunpack.c.h.b16 %v2791
    %v3491 = vunpack.c.l.b16 %v2792
    %v3492 = vunpack.c.h.b16 %v2792
    %v3493 = vunpack.c.l.b16 %v2793
    %v3494 = vunpack.c.h.b16 %v2793
    %v3495 = vunpack.c.l.b16 %v2794
    %v3496 = vunpack.c.h.b16 %v2794
    %v3497 = vunpack.c.l.b16 %v2795
    %v3498 = vunpack.c.h.b16 %v2795
    %v3499 = vunpack.c.l.b16 %v2796
    %v3500 = vunpack.c.h.b16 %v2796
    %v3501 = vunpack.c.l.b16 %v2797
    %v3502 = vunpack.c.h.b16 %v2797
    %v3503 = vunpack.c.l.b16 %v2798
    %v3504 = vunpack.c.h.b16 %v2798
    %v3505 = vunpack.c.l.b16 %v2799
    %v3506 = vunpack.c.h.b16 %v2799
    %v3507 = vunpack.c.l.b16 %v2800
    %v3508 = vunpack.c.h.b16 %v2800
    %v3509 = vunpack.c.l.b16 %v2801
    %v3510 = vunpack.c.h.b16 %v2801
    %v3511 = vunpack.c.l.b16 %v2802
    %v3512 = vunpack.c.h.b16 %v2802
    %v3513 = vunpack.c.l.b16 %v2803
    %v3514 = vunpack.c.h.b16 %v2803
    %v3515 = vunpack.c.l.b16 %v2804
    %v3516 = vunpack.c.h.b16 %v2804
    %v3517 = vunpack.c.l.b16 %v2805
    %v3518 = vunpack.c.h.b16 %v2805
    %v3519 = vunpack.c.l.b16 %v2806
    %v3520 = vunpack.c.h.b16 %v2806
    %v3521 = vunpack.c.l.b16 %v2807
    %v3522 = vunpack.c.h.b16 %v2807
    %v3523 = vunpack.c.l.b16 %v2808
    %v3524 = vunpack.c.h.b16 %v2808
    %v3525 = vunpack.c.l.b16 %v2809
    %v3526 = vunpack.c.h.b16 %v2809
    %v3527 = vunpack.c.l.b16 %v2810
    %v3528 = vunpack.c.h.b16 %v2810
    %v3529 = vunpack.c.l.b16 %v2811
    %v3530 = vunpack.c.h.b16 %v2811
    %v3531 = vunpack.c.l.b16 %v2812
    %v3532 = vunpack.c.h.b16 %v2812
    %v3533 = vunpack.c.l.b16 %v2813
    %v3534 = vunpack.c.h.b16 %v2813
    %v3535 = vunpack.c.l.b16 %v2814
    %v3536 = vunpack.c.h.b16 %v2814
    %v3537 = vunpack.c.l.b16 %v2815
    %v3538 = vunpack.c.h.b16 %v2815
    %v3539 = vunpack.c.l.b16 %v2816
    %v3540 = vunpack.c.h.b16 %v2816
    %v3541 = vunpack.c.l.b16 %v2817
    %v3542 = vunpack.c.h.b16 %v2817
    %v3543 = vunpack.c.l.b16 %v2818
    %v3544 = vunpack.c.h.b16 %v2818
    %v3545 = vunpack.c.l.b16 %v2819
    %v3546 = vunpack.c.h.b16 %v2819
    %v3547 = vunpack.c.l.b16 %v2820
    %v3548 = vunpack.c.h.b16 %v2820
    %v3549 = vunpack.c.l.b16 %v2821
    %v3550 = vunpack.c.h.b16 %v2821
    %v3551 = vunpack.c.l.b16 %v2822
    %v3552 = vunpack.c.h.b16 %v2822
    %v3553 = vunpack.c.l.b16 %v2823
    %v3554 = vunpack.c.h.b16 %v2823
    %v3555 = vunpack.c.l.b16 %v2824
    %v3556 = vunpack.c.h.b16 %v2824
    %v3557 = vunpack.c.l.b16 %v2825
    %v3558 = vunpack.c.h.b16 %v2825
    %v3559 = vunpack.c.l.b16 %v2826
    %v3560 = vunpack.c.h.b16 %v2826
    %v3561 = vunpack.c.l.b16 %v2827
    %v3562 = vunpack.c.h.b16 %v2827
    %v3563 = vunpack.c.l.b16 %v2828
    %v3564 = vunpack.c.h.b16 %v2828
    %v3565 = vunpack.c.l.b16 %v2829
    %v3566 = vunpack.c.h.b16 %v2829
    %v3567 = vunpack.c.l.b16 %v2830
    %v3568 = vunpack.c.h.b16 %v2830
    %v3569 = vunpack.c.l.b16 %v2831
    %v3570 = vunpack.c.h.b16 %v2831
    %v3571 = vunpack.c.l.b16 %v2832
    %v3572 = vunpack.c.h.b16 %v2832
    %v3573 = vunpack.c.l.b16 %v2833
    %v3574 = vunpack.c.h.b16 %v2833
    %v3575 = vunpack.c.l.b16 %v2834
    %v3576 = vunpack.c.h.b16 %v2834
    %v3577 = vunpack.c.l.b16 %v2835
    %v3578 = vunpack.c.h.b16 %v2835
    %v3579 = vunpack.c.l.b16 %v2836
    %v3580 = vunpack.c.h.b16 %v2836
    %v3581 = vunpack.c.l.b16 %v2837
    %v3582 = vunpack.c.h.b16 %v2837
    %v3583 = vunpack.c.l.b16 %v2838
    %v3584 = vunpack.c.h.b16 %v2838
    %v3585 = vunpack.c.l.b16 %v2839
    %v3586 = vunpack.c.h.b16 %v2839
    %v3587 = vunpack.c.l.b16 %v2840
    %v3588 = vunpack.c.h.b16 %v2840
    %v3589 = vunpack.c.l.b16 %v2841
    %v3590 = vunpack.c.h.b16 %v2841
    %v3591 = vunpack.c.l.b16 %v2842
    %v3592 = vunpack.c.h.b16 %v2842
    %v3593 = vunpack.c.l.b16 %v2843
    %v3594 = vunpack.c.h.b16 %v2843
    %v3595 = vunpack.c.l.b16 %v2844
    %v3596 = vunpack.c.h.b16 %v2844
    %v3597 = vunpack.c.l.b16 %v2845
    %v3598 = vunpack.c.h.b16 %v2845
    %v3599 = vunpack.c.l.b16 %v2846
    %v3600 = vunpack.c.h.b16 %v2846
    %v3601 = vunpack.c.l.b16 %v2847
    %v3602 = vunpack.c.h.b16 %v2847
    %v3603 = vunpack.c.l.b16 %v2848
    %v3604 = vunpack.c.h.b16 %v2848
    %v3605 = vunpack.c.l.b16 %v2849
    %v3606 = vunpack.c.h.b16 %v2849
    %v3607 = vunpack.c.l.b16 %v2850
    %v3608 = vunpack.c.h.b16 %v2850
    %v3609 = vunpack.c.l.b16 %v2851
    %v3610 = vunpack.c.h.b16 %v2851
    %v3611 = vunpack.c.l.b16 %v2852
    %v3612 = vunpack.c.h.b16 %v2852
    %v3613 = vunpack.c.l.b16 %v2853
    %v3614 = vunpack.c.h.b16 %v2853
    %v3615 = vunpack.c.l.b16 %v2854
    %v3616 = vunpack.c.h.b16 %v2854
    %v3617 = vunpack.c.l.b16 %v2855
    %v3618 = vunpack.c.h.b16 %v2855
    %v3619 = vunpack.c.l.b16 %v2856
    %v3620 = vunpack.c.h.b16 %v2856
    %v3621 = vunpack.c.l.b16 %v2857
    %v3622 = vunpack.c.h.b16 %v2857
    %v3623 = vunpack.c.l.b16 %v2858
    %v3624 = vunpack.c.h.b16 %v2858
    %v3625 = vunpack.c.l.b16 %v2859
    %v3626 = vunpack.c.h.b16 %v2859
    %v3627 = vunpack.c.l.b16 %v2860
    %v3628 = vunpack.c.h.b16 %v2860
    %v3629 = vunpack.c.l.b16 %v2861
    %v3630 = vunpack.c.h.b16 %v2861
    %v3631 = vunpack.c.l.b16 %v2862
    %v3632 = vunpack.c.h.b16 %v2862
    %v3633 = vunpack.c.l.b16 %v2863
    %v3634 = vunpack.c.h.b16 %v2863
    %v3635 = vunpack.c.l.b16 %v2864
    %v3636 = vunpack.c.h.b16 %v2864
    %v3637 = vunpack.c.l.b16 %v2865
    %v3638 = vunpack.c.h.b16 %v2865
    %v3639 = vunpack.c.l.b16 %v2866
    %v3640 = vunpack.c.h.b16 %v2866
    %v3641 = vunpack.c.l.b16 %v2867
    %v3642 = vunpack.c.h.b16 %v2867
    %v3643 = vunpack.c.l.b16 %v2868
    %v3644 = vunpack.c.h.b16 %v2868
    %v3645 = vunpack.c.l.b16 %v2869
    %v3646 = vunpack.c.h.b16 %v2869
    %v3647 = vunpack.c.l.b16 %v2870
    %v3648 = vunpack.c.h.b16 %v2870
    %v3649 = vunpack.c.l.b16 %v2871
    %v3650 = vunpack.c.h.b16 %v2871
    %v3651 = vunpack.c.l.b16 %v2872
    %v3652 = vunpack.c.h.b16 %v2872
    %v3653 = vunpack.c.l.b16 %v2873
    %v3654 = vunpack.c.h.b16 %v2873
    %v3655 = vunpack.c.l.b16 %v2874
    %v3656 = vunpack.c.h.b16 %v2874
    %v3657 = vunpack.c.l.b16 %v2875
    %v3658 = vunpack.c.h.b16 %v2875
    %v3659 = vunpack.c.l.b16 %v2876
    %v3660 = vunpack.c.h.b16 %v2876
    %v3661 = vunpack.c.l.b16 %v2877
    %v3662 = vunpack.c.h.b16 %v2877
    %v3663 = vunpack.c.l.b16 %v2878
    %v3664 = vunpack.c.h.b16 %v2878
    %v3665 = vpack.c.b16 %v3161, %v3153
    %v3666 = vpack.c.b16 %v3162, %v3154
    %v3667 = vpack.c.b16 %v3163, %v3155
    %v3668 = vpack.c.b16 %v3164, %v3156
    %v3669 = vpack.c.b16 %v3165, %v3157
    %v3670 = vpack.c.b16 %v3166, %v3158
    %v3671 = vpack.c.b16 %v3167, %v3159
    %v3672 = vpack.c.b16 %v3168, %v3160
    %v3673 = vpack.c.b16 %v3177, %v3169
    %v3674 = vpack.c.b16 %v3178, %v3170
    %v3675 = vpack.c.b16 %v3179, %v3171
    %v3676 = vpack.c.b16 %v3180, %v3172
    %v3677 = vpack.c.b16 %v3181, %v3173
    %v3678 = vpack.c.b16 %v3182, %v3174
    %v3679 = vpack.c.b16 %v3183, %v3175
    %v3680 = vpack.c.b16 %v3184, %v3176
    %v3681 = vpack.c.b16 %v3193, %v3185
    %v3682 = vpack.c.b16 %v3194, %v3186
    %v3683 = vpack.c.b16 %v3195, %v3187
    %v3684 = vpack.c.b16 %v3196, %v3188
    %v3685 = vpack.c.b16 %v3197, %v3189
    %v3686 = vpack.c.b16 %v3198, %v3190
    %v3687 = vpack.c.b16 %v3199, %v3191
    %v3688 = vpack.c.b16 %v3200, %v3192
    %v3689 = vpack.c.b16 %v3209, %v3201
    %v3690 = vpack.c.b16 %v3210, %v3202
    %v3691 = vpack.c.b16 %v3211, %v3203
    %v3692 = vpack.c.b16 %v3212, %v3204
    %v3693 = vpack.c.b16 %v3213, %v3205
    %v3694 = vpack.c.b16 %v3214, %v3206
    %v3695 = vpack.c.b16 %v3215, %v3207
    %v3696 = vpack.c.b16 %v3216, %v3208
    %v3697 = vpack.c.b16 %v3225, %v3217
    %v3698 = vpack.c.b16 %v3226, %v3218
    %v3699 = vpack.c.b16 %v3227, %v3219
    %v3700 = vpack.c.b16 %v3228, %v3220
    %v3701 = vpack.c.b16 %v3229, %v3221
    %v3702 = vpack.c.b16 %v3230, %v3222
    %v3703 = vpack.c.b16 %v3231, %v3223
    %v3704 = vpack.c.b16 %v3232, %v3224
    %v3705 = vpack.c.b16 %v3241, %v3233
    %v3706 = vpack.c.b16 %v3242, %v3234
    %v3707 = vpack.c.b16 %v3243, %v3235
    %v3708 = vpack.c.b16 %v3244, %v3236
    %v3709 = vpack.c.b16 %v3245, %v3237
    %v3710 = vpack.c.b16 %v3246, %v3238
    %v3711 = vpack.c.b16 %v3247, %v3239
    %v3712 = vpack.c.b16 %v3248, %v3240
    %v3713 = vpack.c.b16 %v3257, %v3249
    %v3714 = vpack.c.b16 %v3258, %v3250
    %v3715 = vpack.c.b16 %v3259, %v3251
    %v3716 = vpack.c.b16 %v3260, %v3252
    %v3717 = vpack.c.b16 %v3261, %v3253
    %v3718 = vpack.c.b16 %v3262, %v3254
    %v3719 = vpack.c.b16 %v3263, %v3255
    %v3720 = vpack.c.b16 %v3264, %v3256
    %v3721 = vpack.c.b16 %v3273, %v3265
    %v3722 = vpack.c.b16 %v3274, %v3266
    %v3723 = vpack.c.b16 %v3275, %v3267
    %v3724 = vpack.c.b16 %v3276, %v3268
    %v3725 = vpack.c.b16 %v3277, %v3269
    %v3726 = vpack.c.b16 %v3278, %v3270
    %v3727 = vpack.c.b16 %v3279, %v3271
    %v3728 = vpack.c.b16 %v3280, %v3272
    %v3729 = vpack.c.b16 %v3289, %v3281
    %v3730 = vpack.c.b16 %v3290, %v3282
    %v3731 = vpack.c.b16 %v3291, %v3283
    %v3732 = vpack.c.b16 %v3292, %v3284
    %v3733 = vpack.c.b16 %v3293, %v3285
    %v3734 = vpack.c.b16 %v3294, %v3286
    %v3735 = vpack.c.b16 %v3295, %v3287
    %v3736 = vpack.c.b16 %v3296, %v3288
    %v3737 = vpack.c.b16 %v3305, %v3297
    %v3738 = vpack.c.b16 %v3306, %v3298
    %v3739 = vpack.c.b16 %v3307, %v3299
    %v3740 = vpack.c.b16 %v3308, %v3300
    %v3741 = vpack.c.b16 %v3309, %v3301
    %v3742 = vpack.c.b16 %v3310, %v3302
    %v3743 = vpack.c.b16 %v3311, %v3303
    %v3744 = vpack.c.b16 %v3312, %v3304
    %v3745 = vpack.c.b16 %v3321, %v3313
    %v3746 = vpack.c.b16 %v3322, %v3314
    %v3747 = vpack.c.b16 %v3323, %v3315
    %v3748 = vpack.c.b16 %v3324, %v3316
    %v3749 = vpack.c.b16 %v3325, %v3317
    %v3750 = vpack.c.b16 %v3326, %v3318
    %v3751 = vpack.c.b16 %v3327, %v3319
    %v3752 = vpack.c.b16 %v3328, %v3320
    %v3753 = vpack.c.b16 %v3337, %v3329
    %v3754 = vpack.c.b16 %v3338, %v3330
    %v3755 = vpack.c.b16 %v3339, %v3331
    %v3756 = vpack.c.b16 %v3340, %v3332
    %v3757 = vpack.c.b16 %v3341, %v3333
    %v3758 = vpack.c.b16 %v3342, %v3334
    %v3759 = vpack.c.b16 %v3343, %v3335
    %v3760 = vpack.c.b16 %v3344, %v3336
    %v3761 = vpack.c.b16 %v3353, %v3345
    %v3762 = vpack.c.b16 %v3354, %v3346
    %v3763 = vpack.c.b16 %v3355, %v3347
    %v3764 = vpack.c.b16 %v3356, %v3348
    %v3765 = vpack.c.b16 %v3357, %v3349
    %v3766 = vpack.c.b16 %v3358, %v3350
    %v3767 = vpack.c.b16 %v3359, %v3351
    %v3768 = vpack.c.b16 %v3360, %v3352
    %v3769 = vpack.c.b16 %v3369, %v3361
    %v3770 = vpack.c.b16 %v3370, %v3362
    %v3771 = vpack.c.b16 %v3371, %v3363
    %v3772 = vpack.c.b16 %v3372, %v3364
    %v3773 = vpack.c.b16 %v3373, %v3365
    %v3774 = vpack.c.b16 %v3374, %v3366
    %v3775 = vpack.c.b16 %v3375, %v3367
    %v3776 = vpack.c.b16 %v3376, %v3368
    %v3777 = vpack.c.b16 %v3385, %v3377
    %v3778 = vpack.c.b16 %v3386, %v3378
    %v3779 = vpack.c.b16 %v3387, %v3379
    %v3780 = vpack.c.b16 %v3388, %v3380
    %v3781 = vpack.c.b16 %v3389, %v3381
    %v3782 = vpack.c.b16 %v3390, %v3382
    %v3783 = vpack.c.b16 %v3391, %v3383
    %v3784 = vpack.c.b16 %v3392, %v3384
    %v3785 = vpack.c.b16 %v3401, %v3393
    %v3786 = vpack.c.b16 %v3402, %v3394
    %v3787 = vpack.c.b16 %v3403, %v3395
    %v3788 = vpack.c.b16 %v3404, %v3396
    %v3789 = vpack.c.b16 %v3405, %v3397
    %v3790 = vpack.c.b16 %v3406, %v3398
    %v3791 = vpack.c.b16 %v3407, %v3399
    %v3792 = vpack.c.b16 %v3408, %v3400
    %v3793 = vpack.c.b16 %v3417, %v3409
    %v3794 = vpack.c.b16 %v3418, %v3410
    %v3795 = vpack.c.b16 %v3419, %v3411
    %v3796 = vpack.c.b16 %v3420, %v3412
    %v3797 = vpack.c.b16 %v3421, %v3413
    %v3798 = vpack.c.b16 %v3422, %v3414
    %v3799 = vpack.c.b16 %v3423, %v3415
    %v3800 = vpack.c.b16 %v3424, %v3416
    %v3801 = vpack.c.b16 %v3433, %v3425
    %v3802 = vpack.c.b16 %v3434, %v3426
    %v3803 = vpack.c.b16 %v3435, %v3427
    %v3804 = vpack.c.b16 %v3436, %v3428
    %v3805 = vpack.c.b16 %v3437, %v3429
    %v3806 = vpack.c.b16 %v3438, %v3430
    %v3807 = vpack.c.b16 %v3439, %v3431
    %v3808 = vpack.c.b16 %v3440, %v3432
    %v3809 = vpack.c.b16 %v3449, %v3441
    %v3810 = vpack.c.b16 %v3450, %v3442
    %v3811 = vpack.c.b16 %v3451, %v3443
    %v3812 = vpack.c.b16 %v3452, %v3444
    %v3813 = vpack.c.b16 %v3453, %v3445
    %v3814 = vpack.c.b16 %v3454, %v3446
    %v3815 = vpack.c.b16 %v3455, %v3447
    %v3816 = vpack.c.b16 %v3456, %v3448
    %v3817 = vpack.c.b16 %v3465, %v3457
    %v3818 = vpack.c.b16 %v3466, %v3458
    %v3819 = vpack.c.b16 %v3467, %v3459
    %v3820 = vpack.c.b16 %v3468, %v3460
    %v3821 = vpack.c.b16 %v3469, %v3461
    %v3822 = vpack.c.b16 %v3470, %v3462
    %v3823 = vpack.c.b16 %v3471, %v3463
    %v3824 = vpack.c.b16 %v3472, %v3464
    %v3825 = vpack.c.b16 %v3481, %v3473
    %v3826 = vpack.c.b16 %v3482, %v3474
    %v3827 = vpack.c.b16 %v3483, %v3475
    %v3828 = vpack.c.b16 %v3484, %v3476
    %v3829 = vpack.c.b16 %v3485, %v3477
    %v3830 = vpack.c.b16 %v3486, %v3478
    %v3831 = vpack.c.b16 %v3487, %v3479
    %v3832 = vpack.c.b16 %v3488, %v3480
    %v3833 = vpack.c.b16 %v3497, %v3489
    %v3834 = vpack.c.b16 %v3498, %v3490
    %v3835 = vpack.c.b16 %v3499, %v3491
    %v3836 = vpack.c.b16 %v3500, %v3492
    %v3837 = vpack.c.b16 %v3501, %v3493
    %v3838 = vpack.c.b16 %v3502, %v3494
    %v3839 = vpack.c.b16 %v3503, %v3495
    %v3840 = vpack.c.b16 %v3504, %v3496
    %v3841 = vpack.c.b16 %v3513, %v3505
    %v3842 = vpack.c.b16 %v3514, %v3506
    %v3843 = vpack.c.b16 %v3515, %v3507
    %v3844 = vpack.c.b16 %v3516, %v3508
    %v3845 = vpack.c.b16 %v3517, %v3509
    %v3846 = vpack.c.b16 %v3518, %v3510
    %v3847 = vpack.c.b16 %v3519, %v3511
    %v3848 = vpack.c.b16 %v3520, %v3512
    %v3849 = vpack.c.b16 %v3529, %v3521
    %v3850 = vpack.c.b16 %v3530, %v3522
    %v3851 = vpack.c.b16 %v3531, %v3523
    %v3852 = vpack.c.b16 %v3532, %v3524
    %v3853 = vpack.c.b16 %v3533, %v3525
    %v3854 = vpack.c.b16 %v3534, %v3526
    %v3855 = vpack.c.b16 %v3535, %v3527
    %v3856 = vpack.c.b16 %v3536, %v3528
    %v3857 = vpack.c.b16 %v3545, %v3537
    %v3858 = vpack.c.b16 %v3546, %v3538
    %v3859 = vpack.c.b16 %v3547, %v3539
    %v3860 = vpack.c.b16 %v3548, %v3540
    %v3861 = vpack.c.b16 %v3549, %v3541
    %v3862 = vpack.c.b16 %v3550, %v3542
    %v3863 = vpack.c.b16 %v3551, %v3543
    %v3864 = vpack.c.b16 %v3552, %v3544
    %v3865 = vpack.c.b16 %v3561, %v3553
    %v3866 = vpack.c.b16 %v3562, %v3554
    %v3867 = vpack.c.b16 %v3563, %v3555
    %v3868 = vpack.c.b16 %v3564, %v3556
    %v3869 = vpack.c.b16 %v3565, %v3557
    %v3870 = vpack.c.b16 %v3566, %v3558
    %v3871 = vpack.c.b16 %v3567, %v3559
    %v3872 = vpack.c.b16 %v3568, %v3560
    %v3873 = vpack.c.b16 %v3577, %v3569
    %v3874 = vpack.c.b16 %v3578, %v3570
    %v3875 = vpack.c.b16 %v3579, %v3571
    %v3876 = vpack.c.b16 %v3580, %v3572
    %v3877 = vpack.c.b16 %v3581, %v3573
    %v3878 = vpack.c.b16 %v3582, %v3574
    %v3879 = vpack.c.b16 %v3583, %v3575
    %v3880 = vpack.c.b16 %v3584, %v3576
    %v3881 = vpack.c.b16 %v3593, %v3585
    %v3882 = vpack.c.b16 %v3594, %v3586
    %v3883 = vpack.c.b16 %v3595, %v3587
    %v3884 = vpack.c.b16 %v3596, %v3588
    %v3885 = vpack.c.b16 %v3597, %v3589
    %v3886 = vpack.c.b16 %v3598, %v3590
    %v3887 = vpack.c.b16 %v3599, %v3591
    %v3888 = vpack.c.b16 %v3600, %v3592
    %v3889 = vpack.c.b16 %v3609, %v3601
    %v3890 = vpack.c.b16 %v3610, %v3602
    %v3891 = vpack.c.b16 %v3611, %v3603
    %v3892 = vpack.c.b16 %v3612, %v3604
    %v3893 = vpack.c.b16 %v3613, %v3605
    %v3894 = vpack.c.b16 %v3614, %v3606
    %v3895 = vpack.c.b16 %v3615, %v3607
    %v3896 = vpack.c.b16 %v3616, %v3608
    %v3897 = vpack.c.b16 %v3625, %v3617
    %v3898 = vpack.c.b16 %v3626, %v3618
    %v3899 = vpack.c.b16 %v3627, %v3619
    %v3900 = vpack.c.b16 %v3628, %v3620
    %v3901 = vpack.c.b16 %v3629, %v3621
    %v3902 = vpack.c.b16 %v3630, %v3622
    %v3903 = vpack.c.b16 %v3631, %v3623
    %v3904 = vpack.c.b16 %v3632, %v3624
    %v3905 = vpack.c.b16 %v3641, %v3633
    %v3906 = vpack.c.b16 %v3642, %v3634
    %v3907 = vpack.c.b16 %v3643, %v3635
    %v3908 = vpack.c.b16 %v3644, %v3636
    %v3909 = vpack.c.b16 %v3645, %v3637
    %v3910 = vpack.c.b16 %v3646, %v3638
    %v3911 = vpack.c.b16 %v3647, %v3639
    %v3912 = vpack.c.b16 %v3648, %v3640
    %v3913 = vpack.c.b16 %v3657, %v3649
    %v3914 = vpack.c.b16 %v3658, %v3650
    %v3915 = vpack.c.b16 %v3659, %v3651
    %v3916 = vpack.c.b16 %v3660, %v3652
    %v3917 = vpack.c.b16 %v3661, %v3653
    %v3918 = vpack.c.b16 %v3662, %v3654
    %v3919 = vpack.c.b16 %v3663, %v3655
    %v3920 = vpack.c.b16 %v3664, %v3656
    %4177 = vmatpush.bf16.msra.mxu0 %v3721
    %4178 = vmatpush.bf16.msra.mxu0 %v3713
    %4179 = vmatpush.bf16.msra.mxu0 %v3705
    %4180 = vmatpush.bf16.msra.mxu0 %v3697
    %4181 = vmatpush.bf16.msra.mxu0 %v3689
    %4182 = vmatpush.bf16.msra.mxu0 %v3681
    %4183 = vmatpush.bf16.msra.mxu0 %v3673
    %4184 = vmatpush.bf16.msra.mxu0 %v3665
    %4185 = vmatmul.bf16.gmra.mxu0 %v2619
    %v4186 = vpop.f32.mrf.mxu0
    %v4187 = vadd.f32 %v2881, %v4186
    %v4188 = vpop.f32.mrf.mxu0
    %4189 = vdwg.mxu0
    %4190 = vmatpush.bf16.msra.mxu0 %v3785
    %4191 = vmatpush.bf16.msra.mxu0 %v3777
    %4192 = vmatpush.bf16.msra.mxu0 %v3769
    %4193 = vmatpush.bf16.msra.mxu0 %v3761
    %4194 = vmatpush.bf16.msra.mxu0 %v3753
    %4195 = vmatpush.bf16.msra.mxu0 %v3745
    %4196 = vmatpush.bf16.msra.mxu0 %v3737
    %4197 = vmatpush.bf16.msra.mxu0 %v3729
    %4198 = vmatmul.bf16.gmra.mxu0 %v2620
    %v4199 = vpop.f32.mrf.mxu0
    %v4200 = vadd.f32 %v4187, %v4199
    %v4201 = vpop.f32.mrf.mxu0
    %4202 = vdwg.mxu0
    %4203 = vmatpush.bf16.msra.mxu0 %v3849
    %4204 = vmatpush.bf16.msra.mxu0 %v3841
    %4205 = vmatpush.bf16.msra.mxu0 %v3833
    %4206 = vmatpush.bf16.msra.mxu0 %v3825
    %4207 = vmatpush.bf16.msra.mxu0 %v3817
    %4208 = vmatpush.bf16.msra.mxu0 %v3809
    %4209 = vmatpush.bf16.msra.mxu0 %v3801
    %4210 = vmatpush.bf16.msra.mxu0 %v3793
    %4211 = vmatmul.bf16.gmra.mxu0 %v2621
    %v4212 = vpop.f32.mrf.mxu0
    %v4213 = vadd.f32 %v4200, %v4212
    %v4214 = vpop.f32.mrf.mxu0
    %4215 = vdwg.mxu0
    %4216 = vmatpush.bf16.msra.mxu0 %v3913
    %4217 = vmatpush.bf16.msra.mxu0 %v3905
    %4218 = vmatpush.bf16.msra.mxu0 %v3897
    %4219 = vmatpush.bf16.msra.mxu0 %v3889
    %4220 = vmatpush.bf16.msra.mxu0 %v3881
    %4221 = vmatpush.bf16.msra.mxu0 %v3873
    %4222 = vmatpush.bf16.msra.mxu0 %v3865
    %4223 = vmatpush.bf16.msra.mxu0 %v3857
    %4224 = vmatmul.bf16.gmra.mxu0 %v2622
    %v4225 = vpop.f32.mrf.mxu0
    %v4226 = vadd.f32 %v4213, %v4225
    %v4227 = vpop.f32.mrf.mxu0
    %4228 = vdwg.mxu0
    %4229 = vmatpush.bf16.msra.mxu0 %v3722
    %4230 = vmatpush.bf16.msra.mxu0 %v3714
    %4231 = vmatpush.bf16.msra.mxu0 %v3706
    %4232 = vmatpush.bf16.msra.mxu0 %v3698
    %4233 = vmatpush.bf16.msra.mxu0 %v3690
    %4234 = vmatpush.bf16.msra.mxu0 %v3682
    %4235 = vmatpush.bf16.msra.mxu0 %v3674
    %4236 = vmatpush.bf16.msra.mxu0 %v3666
    %4237 = vmatmul.bf16.gmra.mxu0 %v2619
    %v4238 = vpop.f32.mrf.mxu0
    %v4239 = vadd.f32 %v2882, %v4238
    %v4240 = vpop.f32.mrf.mxu0
    %4241 = vdwg.mxu0
    %4242 = vmatpush.bf16.msra.mxu0 %v3786
    %4243 = vmatpush.bf16.msra.mxu0 %v3778
    %4244 = vmatpush.bf16.msra.mxu0 %v3770
    %4245 = vmatpush.bf16.msra.mxu0 %v3762
    %4246 = vmatpush.bf16.msra.mxu0 %v3754
    %4247 = vmatpush.bf16.msra.mxu0 %v3746
    %4248 = vmatpush.bf16.msra.mxu0 %v3738
    %4249 = vmatpush.bf16.msra.mxu0 %v3730
    %4250 = vmatmul.bf16.gmra.mxu0 %v2620
    %v4251 = vpop.f32.mrf.mxu0
    %v4252 = vadd.f32 %v4239, %v4251
    %v4253 = vpop.f32.mrf.mxu0
    %4254 = vdwg.mxu0
    %4255 = vmatpush.bf16.msra.mxu0 %v3850
    %4256 = vmatpush.bf16.msra.mxu0 %v3842
    %4257 = vmatpush.bf16.msra.mxu0 %v3834
    %4258 = vmatpush.bf16.msra.mxu0 %v3826
    %4259 = vmatpush.bf16.msra.mxu0 %v3818
    %4260 = vmatpush.bf16.msra.mxu0 %v3810
    %4261 = vmatpush.bf16.msra.mxu0 %v3802
    %4262 = vmatpush.bf16.msra.mxu0 %v3794
    %4263 = vmatmul.bf16.gmra.mxu0 %v2621
    %v4264 = vpop.f32.mrf.mxu0
    %v4265 = vadd.f32 %v4252, %v4264
    %v4266 = vpop.f32.mrf.mxu0
    %4267 = vdwg.mxu0
    %4268 = vmatpush.bf16.msra.mxu0 %v3914
    %4269 = vmatpush.bf16.msra.mxu0 %v3906
    %4270 = vmatpush.bf16.msra.mxu0 %v3898
    %4271 = vmatpush.bf16.msra.mxu0 %v3890
    %4272 = vmatpush.bf16.msra.mxu0 %v3882
    %4273 = vmatpush.bf16.msra.mxu0 %v3874
    %4274 = vmatpush.bf16.msra.mxu0 %v3866
    %4275 = vmatpush.bf16.msra.mxu0 %v3858
    %4276 = vmatmul.bf16.gmra.mxu0 %v2622
    %v4277 = vpop.f32.mrf.mxu0
    %v4278 = vadd.f32 %v4265, %v4277
    %v4279 = vpop.f32.mrf.mxu0
    %4280 = vdwg.mxu0
    %4281 = vmatpush.bf16.msra.mxu0 %v3723
    %4282 = vmatpush.bf16.msra.mxu0 %v3715
    %4283 = vmatpush.bf16.msra.mxu0 %v3707
    %4284 = vmatpush.bf16.msra.mxu0 %v3699
    %4285 = vmatpush.bf16.msra.mxu0 %v3691
    %4286 = vmatpush.bf16.msra.mxu0 %v3683
    %4287 = vmatpush.bf16.msra.mxu0 %v3675
    %4288 = vmatpush.bf16.msra.mxu0 %v3667
    %4289 = vmatmul.bf16.gmra.mxu0 %v2619
    %v4290 = vpop.f32.mrf.mxu0
    %v4291 = vadd.f32 %v2883, %v4290
    %v4292 = vpop.f32.mrf.mxu0
    %4293 = vdwg.mxu0
    %4294 = vmatpush.bf16.msra.mxu0 %v3787
    %4295 = vmatpush.bf16.msra.mxu0 %v3779
    %4296 = vmatpush.bf16.msra.mxu0 %v3771
    %4297 = vmatpush.bf16.msra.mxu0 %v3763
    %4298 = vmatpush.bf16.msra.mxu0 %v3755
    %4299 = vmatpush.bf16.msra.mxu0 %v3747
    %4300 = vmatpush.bf16.msra.mxu0 %v3739
    %4301 = vmatpush.bf16.msra.mxu0 %v3731
    %4302 = vmatmul.bf16.gmra.mxu0 %v2620
    %v4303 = vpop.f32.mrf.mxu0
    %v4304 = vadd.f32 %v4291, %v4303
    %v4305 = vpop.f32.mrf.mxu0
    %4306 = vdwg.mxu0
    %4307 = vmatpush.bf16.msra.mxu0 %v3851
    %4308 = vmatpush.bf16.msra.mxu0 %v3843
    %4309 = vmatpush.bf16.msra.mxu0 %v3835
    %4310 = vmatpush.bf16.msra.mxu0 %v3827
    %4311 = vmatpush.bf16.msra.mxu0 %v3819
    %4312 = vmatpush.bf16.msra.mxu0 %v3811
    %4313 = vmatpush.bf16.msra.mxu0 %v3803
    %4314 = vmatpush.bf16.msra.mxu0 %v3795
    %4315 = vmatmul.bf16.gmra.mxu0 %v2621
    %v4316 = vpop.f32.mrf.mxu0
    %v4317 = vadd.f32 %v4304, %v4316
    %v4318 = vpop.f32.mrf.mxu0
    %4319 = vdwg.mxu0
    %4320 = vmatpush.bf16.msra.mxu0 %v3915
    %4321 = vmatpush.bf16.msra.mxu0 %v3907
    %4322 = vmatpush.bf16.msra.mxu0 %v3899
    %4323 = vmatpush.bf16.msra.mxu0 %v3891
    %4324 = vmatpush.bf16.msra.mxu0 %v3883
    %4325 = vmatpush.bf16.msra.mxu0 %v3875
    %4326 = vmatpush.bf16.msra.mxu0 %v3867
    %4327 = vmatpush.bf16.msra.mxu0 %v3859
    %4328 = vmatmul.bf16.gmra.mxu0 %v2622
    %v4329 = vpop.f32.mrf.mxu0
    %v4330 = vadd.f32 %v4317, %v4329
    %v4331 = vpop.f32.mrf.mxu0
    %4332 = vdwg.mxu0
    %4333 = vmatpush.bf16.msra.mxu0 %v3724
    %4334 = vmatpush.bf16.msra.mxu0 %v3716
    %4335 = vmatpush.bf16.msra.mxu0 %v3708
    %4336 = vmatpush.bf16.msra.mxu0 %v3700
    %4337 = vmatpush.bf16.msra.mxu0 %v3692
    %4338 = vmatpush.bf16.msra.mxu0 %v3684
    %4339 = vmatpush.bf16.msra.mxu0 %v3676
    %4340 = vmatpush.bf16.msra.mxu0 %v3668
    %4341 = vmatmul.bf16.gmra.mxu0 %v2619
    %v4342 = vpop.f32.mrf.mxu0
    %v4343 = vadd.f32 %v2884, %v4342
    %v4344 = vpop.f32.mrf.mxu0
    %4345 = vdwg.mxu0
    %4346 = vmatpush.bf16.msra.mxu0 %v3788
    %4347 = vmatpush.bf16.msra.mxu0 %v3780
    %4348 = vmatpush.bf16.msra.mxu0 %v3772
    %4349 = vmatpush.bf16.msra.mxu0 %v3764
    %4350 = vmatpush.bf16.msra.mxu0 %v3756
    %4351 = vmatpush.bf16.msra.mxu0 %v3748
    %4352 = vmatpush.bf16.msra.mxu0 %v3740
    %4353 = vmatpush.bf16.msra.mxu0 %v3732
    %4354 = vmatmul.bf16.gmra.mxu0 %v2620
    %v4355 = vpop.f32.mrf.mxu0
    %v4356 = vadd.f32 %v4343, %v4355
    %v4357 = vpop.f32.mrf.mxu0
    %4358 = vdwg.mxu0
    %4359 = vmatpush.bf16.msra.mxu0 %v3852
    %4360 = vmatpush.bf16.msra.mxu0 %v3844
    %4361 = vmatpush.bf16.msra.mxu0 %v3836
    %4362 = vmatpush.bf16.msra.mxu0 %v3828
    %4363 = vmatpush.bf16.msra.mxu0 %v3820
    %4364 = vmatpush.bf16.msra.mxu0 %v3812
    %4365 = vmatpush.bf16.msra.mxu0 %v3804
    %4366 = vmatpush.bf16.msra.mxu0 %v3796
    %4367 = vmatmul.bf16.gmra.mxu0 %v2621
    %v4368 = vpop.f32.mrf.mxu0
    %v4369 = vadd.f32 %v4356, %v4368
    %v4370 = vpop.f32.mrf.mxu0
    %4371 = vdwg.mxu0
    %4372 = vmatpush.bf16.msra.mxu0 %v3916
    %4373 = vmatpush.bf16.msra.mxu0 %v3908
    %4374 = vmatpush.bf16.msra.mxu0 %v3900
    %4375 = vmatpush.bf16.msra.mxu0 %v3892
    %4376 = vmatpush.bf16.msra.mxu0 %v3884
    %4377 = vmatpush.bf16.msra.mxu0 %v3876
    %4378 = vmatpush.bf16.msra.mxu0 %v3868
    %4379 = vmatpush.bf16.msra.mxu0 %v3860
    %4380 = vmatmul.bf16.gmra.mxu0 %v2622
    %v4381 = vpop.f32.mrf.mxu0
    %v4382 = vadd.f32 %v4369, %v4381
    %v4383 = vpop.f32.mrf.mxu0
    %4384 = vdwg.mxu0
    %4385 = vmatpush.bf16.msra.mxu0 %v3725
    %4386 = vmatpush.bf16.msra.mxu0 %v3717
    %4387 = vmatpush.bf16.msra.mxu0 %v3709
    %4388 = vmatpush.bf16.msra.mxu0 %v3701
    %4389 = vmatpush.bf16.msra.mxu0 %v3693
    %4390 = vmatpush.bf16.msra.mxu0 %v3685
    %4391 = vmatpush.bf16.msra.mxu0 %v3677
    %4392 = vmatpush.bf16.msra.mxu0 %v3669
    %4393 = vmatmul.bf16.gmra.mxu0 %v2619
    %v4394 = vpop.f32.mrf.mxu0
    %v4395 = vadd.f32 %v2885, %v4394
    %v4396 = vpop.f32.mrf.mxu0
    %4397 = vdwg.mxu0
    %4398 = vmatpush.bf16.msra.mxu0 %v3789
    %4399 = vmatpush.bf16.msra.mxu0 %v3781
    %4400 = vmatpush.bf16.msra.mxu0 %v3773
    %4401 = vmatpush.bf16.msra.mxu0 %v3765
    %4402 = vmatpush.bf16.msra.mxu0 %v3757
    %4403 = vmatpush.bf16.msra.mxu0 %v3749
    %4404 = vmatpush.bf16.msra.mxu0 %v3741
    %4405 = vmatpush.bf16.msra.mxu0 %v3733
    %4406 = vmatmul.bf16.gmra.mxu0 %v2620
    %v4407 = vpop.f32.mrf.mxu0
    %v4408 = vadd.f32 %v4395, %v4407
    %v4409 = vpop.f32.mrf.mxu0
    %4410 = vdwg.mxu0
    %4411 = vmatpush.bf16.msra.mxu0 %v3853
    %4412 = vmatpush.bf16.msra.mxu0 %v3845
    %4413 = vmatpush.bf16.msra.mxu0 %v3837
    %4414 = vmatpush.bf16.msra.mxu0 %v3829
    %4415 = vmatpush.bf16.msra.mxu0 %v3821
    %4416 = vmatpush.bf16.msra.mxu0 %v3813
    %4417 = vmatpush.bf16.msra.mxu0 %v3805
    %4418 = vmatpush.bf16.msra.mxu0 %v3797
    %4419 = vmatmul.bf16.gmra.mxu0 %v2621
    %v4420 = vpop.f32.mrf.mxu0
    %v4421 = vadd.f32 %v4408, %v4420
    %v4422 = vpop.f32.mrf.mxu0
    %4423 = vdwg.mxu0
    %4424 = vmatpush.bf16.msra.mxu0 %v3917
    %4425 = vmatpush.bf16.msra.mxu0 %v3909
    %4426 = vmatpush.bf16.msra.mxu0 %v3901
    %4427 = vmatpush.bf16.msra.mxu0 %v3893
    %4428 = vmatpush.bf16.msra.mxu0 %v3885
    %4429 = vmatpush.bf16.msra.mxu0 %v3877
    %4430 = vmatpush.bf16.msra.mxu0 %v3869
    %4431 = vmatpush.bf16.msra.mxu0 %v3861
    %4432 = vmatmul.bf16.gmra.mxu0 %v2622
    %v4433 = vpop.f32.mrf.mxu0
    %v4434 = vadd.f32 %v4421, %v4433
    %v4435 = vpop.f32.mrf.mxu0
    %4436 = vdwg.mxu0
    %4437 = vmatpush.bf16.msra.mxu0 %v3726
    %4438 = vmatpush.bf16.msra.mxu0 %v3718
    %4439 = vmatpush.bf16.msra.mxu0 %v3710
    %4440 = vmatpush.bf16.msra.mxu0 %v3702
    %4441 = vmatpush.bf16.msra.mxu0 %v3694
    %4442 = vmatpush.bf16.msra.mxu0 %v3686
    %4443 = vmatpush.bf16.msra.mxu0 %v3678
    %4444 = vmatpush.bf16.msra.mxu0 %v3670
    %4445 = vmatmul.bf16.gmra.mxu0 %v2619
    %v4446 = vpop.f32.mrf.mxu0
    %v4447 = vadd.f32 %v2886, %v4446
    %v4448 = vpop.f32.mrf.mxu0
    %4449 = vdwg.mxu0
    %4450 = vmatpush.bf16.msra.mxu0 %v3790
    %4451 = vmatpush.bf16.msra.mxu0 %v3782
    %4452 = vmatpush.bf16.msra.mxu0 %v3774
    %4453 = vmatpush.bf16.msra.mxu0 %v3766
    %4454 = vmatpush.bf16.msra.mxu0 %v3758
    %4455 = vmatpush.bf16.msra.mxu0 %v3750
    %4456 = vmatpush.bf16.msra.mxu0 %v3742
    %4457 = vmatpush.bf16.msra.mxu0 %v3734
    %4458 = vmatmul.bf16.gmra.mxu0 %v2620
    %v4459 = vpop.f32.mrf.mxu0
    %v4460 = vadd.f32 %v4447, %v4459
    %v4461 = vpop.f32.mrf.mxu0
    %4462 = vdwg.mxu0
    %4463 = vmatpush.bf16.msra.mxu0 %v3854
    %4464 = vmatpush.bf16.msra.mxu0 %v3846
    %4465 = vmatpush.bf16.msra.mxu0 %v3838
    %4466 = vmatpush.bf16.msra.mxu0 %v3830
    %4467 = vmatpush.bf16.msra.mxu0 %v3822
    %4468 = vmatpush.bf16.msra.mxu0 %v3814
    %4469 = vmatpush.bf16.msra.mxu0 %v3806
    %4470 = vmatpush.bf16.msra.mxu0 %v3798
    %4471 = vmatmul.bf16.gmra.mxu0 %v2621
    %v4472 = vpop.f32.mrf.mxu0
    %v4473 = vadd.f32 %v4460, %v4472
    %v4474 = vpop.f32.mrf.mxu0
    %4475 = vdwg.mxu0
    %4476 = vmatpush.bf16.msra.mxu0 %v3918
    %4477 = vmatpush.bf16.msra.mxu0 %v3910
    %4478 = vmatpush.bf16.msra.mxu0 %v3902
    %4479 = vmatpush.bf16.msra.mxu0 %v3894
    %4480 = vmatpush.bf16.msra.mxu0 %v3886
    %4481 = vmatpush.bf16.msra.mxu0 %v3878
    %4482 = vmatpush.bf16.msra.mxu0 %v3870
    %4483 = vmatpush.bf16.msra.mxu0 %v3862
    %4484 = vmatmul.bf16.gmra.mxu0 %v2622
    %v4485 = vpop.f32.mrf.mxu0
    %v4486 = vadd.f32 %v4473, %v4485
    %v4487 = vpop.f32.mrf.mxu0
    %4488 = vdwg.mxu0
    %4489 = vmatpush.bf16.msra.mxu0 %v3727
    %4490 = vmatpush.bf16.msra.mxu0 %v3719
    %4491 = vmatpush.bf16.msra.mxu0 %v3711
    %4492 = vmatpush.bf16.msra.mxu0 %v3703
    %4493 = vmatpush.bf16.msra.mxu0 %v3695
    %4494 = vmatpush.bf16.msra.mxu0 %v3687
    %4495 = vmatpush.bf16.msra.mxu0 %v3679
    %4496 = vmatpush.bf16.msra.mxu0 %v3671
    %4497 = vmatmul.bf16.gmra.mxu0 %v2619
    %v4498 = vpop.f32.mrf.mxu0
    %v4499 = vadd.f32 %v2887, %v4498
    %v4500 = vpop.f32.mrf.mxu0
    %4501 = vdwg.mxu0
    %4502 = vmatpush.bf16.msra.mxu0 %v3791
    %4503 = vmatpush.bf16.msra.mxu0 %v3783
    %4504 = vmatpush.bf16.msra.mxu0 %v3775
    %4505 = vmatpush.bf16.msra.mxu0 %v3767
    %4506 = vmatpush.bf16.msra.mxu0 %v3759
    %4507 = vmatpush.bf16.msra.mxu0 %v3751
    %4508 = vmatpush.bf16.msra.mxu0 %v3743
    %4509 = vmatpush.bf16.msra.mxu0 %v3735
    %4510 = vmatmul.bf16.gmra.mxu0 %v2620
    %v4511 = vpop.f32.mrf.mxu0
    %v4512 = vadd.f32 %v4499, %v4511
    %v4513 = vpop.f32.mrf.mxu0
    %4514 = vdwg.mxu0
    %4515 = vmatpush.bf16.msra.mxu0 %v3855
    %4516 = vmatpush.bf16.msra.mxu0 %v3847
    %4517 = vmatpush.bf16.msra.mxu0 %v3839
    %4518 = vmatpush.bf16.msra.mxu0 %v3831
    %4519 = vmatpush.bf16.msra.mxu0 %v3823
    %4520 = vmatpush.bf16.msra.mxu0 %v3815
    %4521 = vmatpush.bf16.msra.mxu0 %v3807
    %4522 = vmatpush.bf16.msra.mxu0 %v3799
    %4523 = vmatmul.bf16.gmra.mxu0 %v2621
    %v4524 = vpop.f32.mrf.mxu0
    %v4525 = vadd.f32 %v4512, %v4524
    %v4526 = vpop.f32.mrf.mxu0
    %4527 = vdwg.mxu0
    %4528 = vmatpush.bf16.msra.mxu0 %v3919
    %4529 = vmatpush.bf16.msra.mxu0 %v3911
    %4530 = vmatpush.bf16.msra.mxu0 %v3903
    %4531 = vmatpush.bf16.msra.mxu0 %v3895
    %4532 = vmatpush.bf16.msra.mxu0 %v3887
    %4533 = vmatpush.bf16.msra.mxu0 %v3879
    %4534 = vmatpush.bf16.msra.mxu0 %v3871
    %4535 = vmatpush.bf16.msra.mxu0 %v3863
    %4536 = vmatmul.bf16.gmra.mxu0 %v2622
    %v4537 = vpop.f32.mrf.mxu0
    %v4538 = vadd.f32 %v4525, %v4537
    %v4539 = vpop.f32.mrf.mxu0
    %4540 = vdwg.mxu0
    %4541 = vmatpush.bf16.msra.mxu0 %v3728
    %4542 = vmatpush.bf16.msra.mxu0 %v3720
    %4543 = vmatpush.bf16.msra.mxu0 %v3712
    %4544 = vmatpush.bf16.msra.mxu0 %v3704
    %4545 = vmatpush.bf16.msra.mxu0 %v3696
    %4546 = vmatpush.bf16.msra.mxu0 %v3688
    %4547 = vmatpush.bf16.msra.mxu0 %v3680
    %4548 = vmatpush.bf16.msra.mxu0 %v3672
    %4549 = vmatmul.bf16.gmra.mxu0 %v2619
    %v4550 = vpop.f32.mrf.mxu0
    %v4551 = vadd.f32 %v2888, %v4550
    %v4552 = vpop.f32.mrf.mxu0
    %4553 = vdwg.mxu0
    %4554 = vmatpush.bf16.msra.mxu0 %v3792
    %4555 = vmatpush.bf16.msra.mxu0 %v3784
    %4556 = vmatpush.bf16.msra.mxu0 %v3776
    %4557 = vmatpush.bf16.msra.mxu0 %v3768
    %4558 = vmatpush.bf16.msra.mxu0 %v3760
    %4559 = vmatpush.bf16.msra.mxu0 %v3752
    %4560 = vmatpush.bf16.msra.mxu0 %v3744
    %4561 = vmatpush.bf16.msra.mxu0 %v3736
    %4562 = vmatmul.bf16.gmra.mxu0 %v2620
    %v4563 = vpop.f32.mrf.mxu0
    %v4564 = vadd.f32 %v4551, %v4563
    %v4565 = vpop.f32.mrf.mxu0
    %4566 = vdwg.mxu0
    %4567 = vmatpush.bf16.msra.mxu0 %v3856
    %4568 = vmatpush.bf16.msra.mxu0 %v3848
    %4569 = vmatpush.bf16.msra.mxu0 %v3840
    %4570 = vmatpush.bf16.msra.mxu0 %v3832
    %4571 = vmatpush.bf16.msra.mxu0 %v3824
    %4572 = vmatpush.bf16.msra.mxu0 %v3816
    %4573 = vmatpush.bf16.msra.mxu0 %v3808
    %4574 = vmatpush.bf16.msra.mxu0 %v3800
    %4575 = vmatmul.bf16.gmra.mxu0 %v2621
    %v4576 = vpop.f32.mrf.mxu0
    %v4577 = vadd.f32 %v4564, %v4576
    %v4578 = vpop.f32.mrf.mxu0
    %4579 = vdwg.mxu0
    %4580 = vmatpush.bf16.msra.mxu0 %v3920
    %4581 = vmatpush.bf16.msra.mxu0 %v3912
    %4582 = vmatpush.bf16.msra.mxu0 %v3904
    %4583 = vmatpush.bf16.msra.mxu0 %v3896
    %4584 = vmatpush.bf16.msra.mxu0 %v3888
    %4585 = vmatpush.bf16.msra.mxu0 %v3880
    %4586 = vmatpush.bf16.msra.mxu0 %v3872
    %4587 = vmatpush.bf16.msra.mxu0 %v3864
    %4588 = vmatmul.bf16.gmra.mxu0 %v2622
    %v4589 = vpop.f32.mrf.mxu0
    %v4590 = vadd.f32 %v4577, %v4589
    %v4591 = vpop.f32.mrf.mxu0
    %4592 = vdwg.mxu0
    %v4593 = vmax.f32 %v4226, 0.0
    %v4594 = vmax.f32 %v4278, 0.0
    %v4595 = vmax.f32 %v4330, 0.0
    %v4596 = vmax.f32 %v4382, 0.0
    %v4597 = vmax.f32 %v4434, 0.0
    %v4598 = vmax.f32 %v4486, 0.0
    %v4599 = vmax.f32 %v4538, 0.0
    %v4600 = vmax.f32 %v4590, 0.0
    %v4601 = vpack.c.bf16 %v4593, %v4593
    %v4602 = vpack.c.bf16 %v4594, %v4594
    %v4603 = vpack.c.bf16 %v4595, %v4595
    %v4604 = vpack.c.bf16 %v4596, %v4596
    %v4605 = vpack.c.bf16 %v4597, %v4597
    %v4606 = vpack.c.bf16 %v4598, %v4598
    %v4607 = vpack.c.bf16 %v4599, %v4599
    %v4608 = vpack.c.bf16 %v4600, %v4600
    %v4609 = vld [vmem:[#allocation9] sm:$0xff]
    %v4610 = vld [vmem:[#allocation9 + $0x8] sm:$0xff]
    %v4611 = vld [vmem:[#allocation9 + $0x10] sm:$0xff]
    %v4612 = vld [vmem:[#allocation9 + $0x18] sm:$0xff]
    %v4613 = vld [vmem:[#allocation9 + $0x20] sm:$0xff]
    %v4614 = vld [vmem:[#allocation9 + $0x28] sm:$0xff]
    %v4615 = vld [vmem:[#allocation9 + $0x30] sm:$0xff]
    %v4616 = vld [vmem:[#allocation9 + $0x38] sm:$0xff]
    %v4617 = vld [vmem:[#allocation9 + $0x40] sm:$0xff]
    %v4618 = vld [vmem:[#allocation9 + $0x48] sm:$0xff]
    %v4619 = vld [vmem:[#allocation9 + $0x50] sm:$0xff]
    %v4620 = vld [vmem:[#allocation9 + $0x58] sm:$0xff]
    %v4621 = vld [vmem:[#allocation9 + $0x60] sm:$0xff]
    %v4622 = vld [vmem:[#allocation9 + $0x68] sm:$0xff]
    %v4623 = vld [vmem:[#allocation9 + $0x70] sm:$0xff]
    %v4624 = vld [vmem:[#allocation9 + $0x78] sm:$0xff]
    %v4625 = vld [vmem:[#allocation9 + $0x80] sm:$0xff]
    %v4626 = vld [vmem:[#allocation9 + $0x88] sm:$0xff]
    %v4627 = vld [vmem:[#allocation9 + $0x90] sm:$0xff]
    %v4628 = vld [vmem:[#allocation9 + $0x98] sm:$0xff]
    %v4629 = vld [vmem:[#allocation9 + $0xa0] sm:$0xff]
    %v4630 = vld [vmem:[#allocation9 + $0xa8] sm:$0xff]
    %v4631 = vld [vmem:[#allocation9 + $0xb0] sm:$0xff]
    %v4632 = vld [vmem:[#allocation9 + $0xb8] sm:$0xff]
    %v4633 = vld [vmem:[#allocation9 + $0xc0] sm:$0xff]
    %v4634 = vld [vmem:[#allocation9 + $0xc8] sm:$0xff]
    %v4635 = vld [vmem:[#allocation9 + $0xd0] sm:$0xff]
    %v4636 = vld [vmem:[#allocation9 + $0xd8] sm:$0xff]
    %v4637 = vld [vmem:[#allocation9 + $0xe0] sm:$0xff]
    %v4638 = vld [vmem:[#allocation9 + $0xe8] sm:$0xff]
    %v4639 = vld [vmem:[#allocation9 + $0xf0] sm:$0xff]
    %v4640 = vld [vmem:[#allocation9 + $0xf8] sm:$0xff]
    %v4641 = vld [vmem:[#allocation9 + $0x100] sm:$0xff]
    %v4642 = vld [vmem:[#allocation9 + $0x108] sm:$0xff]
    %v4643 = vld [vmem:[#allocation9 + $0x110] sm:$0xff]
    %v4644 = vld [vmem:[#allocation9 + $0x118] sm:$0xff]
    %v4645 = vld [vmem:[#allocation9 + $0x120] sm:$0xff]
    %v4646 = vld [vmem:[#allocation9 + $0x128] sm:$0xff]
    %v4647 = vld [vmem:[#allocation9 + $0x130] sm:$0xff]
    %v4648 = vld [vmem:[#allocation9 + $0x138] sm:$0xff]
    %v4649 = vld [vmem:[#allocation9 + $0x140] sm:$0xff]
    %v4650 = vld [vmem:[#allocation9 + $0x148] sm:$0xff]
    %v4651 = vld [vmem:[#allocation9 + $0x150] sm:$0xff]
    %v4652 = vld [vmem:[#allocation9 + $0x158] sm:$0xff]
    %v4653 = vld [vmem:[#allocation9 + $0x160] sm:$0xff]
    %v4654 = vld [vmem:[#allocation9 + $0x168] sm:$0xff]
    %v4655 = vld [vmem:[#allocation9 + $0x170] sm:$0xff]
    %v4656 = vld [vmem:[#allocation9 + $0x178] sm:$0xff]
    %v4657 = vld [vmem:[#allocation9 + $0x180] sm:$0xff]
    %v4658 = vld [vmem:[#allocation9 + $0x188] sm:$0xff]
    %v4659 = vld [vmem:[#allocation9 + $0x190] sm:$0xff]
    %v4660 = vld [vmem:[#allocation9 + $0x198] sm:$0xff]
    %v4661 = vld [vmem:[#allocation9 + $0x1a0] sm:$0xff]
    %v4662 = vld [vmem:[#allocation9 + $0x1a8] sm:$0xff]
    %v4663 = vld [vmem:[#allocation9 + $0x1b0] sm:$0xff]
    %v4664 = vld [vmem:[#allocation9 + $0x1b8] sm:$0xff]
    %v4665 = vld [vmem:[#allocation9 + $0x1c0] sm:$0xff]
    %v4666 = vld [vmem:[#allocation9 + $0x1c8] sm:$0xff]
    %v4667 = vld [vmem:[#allocation9 + $0x1d0] sm:$0xff]
    %v4668 = vld [vmem:[#allocation9 + $0x1d8] sm:$0xff]
    %v4669 = vld [vmem:[#allocation9 + $0x1e0] sm:$0xff]
    %v4670 = vld [vmem:[#allocation9 + $0x1e8] sm:$0xff]
    %v4671 = vld [vmem:[#allocation9 + $0x1f0] sm:$0xff]
    %v4672 = vld [vmem:[#allocation9 + $0x1f8] sm:$0xff]
    %v4673 = vld [vmem:[#allocation9 + $0x200] sm:$0xff]
    %v4674 = vld [vmem:[#allocation9 + $0x208] sm:$0xff]
    %v4675 = vld [vmem:[#allocation9 + $0x210] sm:$0xff]
    %v4676 = vld [vmem:[#allocation9 + $0x218] sm:$0xff]
    %v4677 = vld [vmem:[#allocation9 + $0x220] sm:$0xff]
    %v4678 = vld [vmem:[#allocation9 + $0x228] sm:$0xff]
    %v4679 = vld [vmem:[#allocation9 + $0x230] sm:$0xff]
    %v4680 = vld [vmem:[#allocation9 + $0x238] sm:$0xff]
    %v4681 = vld [vmem:[#allocation9 + $0x240] sm:$0xff]
    %v4682 = vld [vmem:[#allocation9 + $0x248] sm:$0xff]
    %v4683 = vld [vmem:[#allocation9 + $0x250] sm:$0xff]
    %v4684 = vld [vmem:[#allocation9 + $0x258] sm:$0xff]
    %v4685 = vld [vmem:[#allocation9 + $0x260] sm:$0xff]
    %v4686 = vld [vmem:[#allocation9 + $0x268] sm:$0xff]
    %v4687 = vld [vmem:[#allocation9 + $0x270] sm:$0xff]
    %v4688 = vld [vmem:[#allocation9 + $0x278] sm:$0xff]
    %v4689 = vld [vmem:[#allocation9 + $0x280] sm:$0xff]
    %v4690 = vld [vmem:[#allocation9 + $0x288] sm:$0xff]
    %v4691 = vld [vmem:[#allocation9 + $0x290] sm:$0xff]
    %v4692 = vld [vmem:[#allocation9 + $0x298] sm:$0xff]
    %v4693 = vld [vmem:[#allocation9 + $0x2a0] sm:$0xff]
    %v4694 = vld [vmem:[#allocation9 + $0x2a8] sm:$0xff]
    %v4695 = vld [vmem:[#allocation9 + $0x2b0] sm:$0xff]
    %v4696 = vld [vmem:[#allocation9 + $0x2b8] sm:$0xff]
    %v4697 = vld [vmem:[#allocation9 + $0x2c0] sm:$0xff]
    %v4698 = vld [vmem:[#allocation9 + $0x2c8] sm:$0xff]
    %v4699 = vld [vmem:[#allocation9 + $0x2d0] sm:$0xff]
    %v4700 = vld [vmem:[#allocation9 + $0x2d8] sm:$0xff]
    %v4701 = vld [vmem:[#allocation9 + $0x2e0] sm:$0xff]
    %v4702 = vld [vmem:[#allocation9 + $0x2e8] sm:$0xff]
    %v4703 = vld [vmem:[#allocation9 + $0x2f0] sm:$0xff]
    %v4704 = vld [vmem:[#allocation9 + $0x2f8] sm:$0xff]
    %v4705 = vld [vmem:[#allocation9 + $0x300] sm:$0xff]
    %v4706 = vld [vmem:[#allocation9 + $0x308] sm:$0xff]
    %v4707 = vld [vmem:[#allocation9 + $0x310] sm:$0xff]
    %v4708 = vld [vmem:[#allocation9 + $0x318] sm:$0xff]
    %v4709 = vld [vmem:[#allocation9 + $0x320] sm:$0xff]
    %v4710 = vld [vmem:[#allocation9 + $0x328] sm:$0xff]
    %v4711 = vld [vmem:[#allocation9 + $0x330] sm:$0xff]
    %v4712 = vld [vmem:[#allocation9 + $0x338] sm:$0xff]
    %v4713 = vld [vmem:[#allocation9 + $0x340] sm:$0xff]
    %v4714 = vld [vmem:[#allocation9 + $0x348] sm:$0xff]
    %v4715 = vld [vmem:[#allocation9 + $0x350] sm:$0xff]
    %v4716 = vld [vmem:[#allocation9 + $0x358] sm:$0xff]
    %v4717 = vld [vmem:[#allocation9 + $0x360] sm:$0xff]
    %v4718 = vld [vmem:[#allocation9 + $0x368] sm:$0xff]
    %v4719 = vld [vmem:[#allocation9 + $0x370] sm:$0xff]
    %v4720 = vld [vmem:[#allocation9 + $0x378] sm:$0xff]
    %v4721 = vld [vmem:[#allocation9 + $0x380] sm:$0xff]
    %v4722 = vld [vmem:[#allocation9 + $0x388] sm:$0xff]
    %v4723 = vld [vmem:[#allocation9 + $0x390] sm:$0xff]
    %v4724 = vld [vmem:[#allocation9 + $0x398] sm:$0xff]
    %v4725 = vld [vmem:[#allocation9 + $0x3a0] sm:$0xff]
    %v4726 = vld [vmem:[#allocation9 + $0x3a8] sm:$0xff]
    %v4727 = vld [vmem:[#allocation9 + $0x3b0] sm:$0xff]
    %v4728 = vld [vmem:[#allocation9 + $0x3b8] sm:$0xff]
    %v4729 = vld [vmem:[#allocation9 + $0x3c0] sm:$0xff]
    %v4730 = vld [vmem:[#allocation9 + $0x3c8] sm:$0xff]
    %v4731 = vld [vmem:[#allocation9 + $0x3d0] sm:$0xff]
    %v4732 = vld [vmem:[#allocation9 + $0x3d8] sm:$0xff]
    %v4733 = vld [vmem:[#allocation9 + $0x3e0] sm:$0xff]
    %v4734 = vld [vmem:[#allocation9 + $0x3e8] sm:$0xff]
    %v4735 = vld [vmem:[#allocation9 + $0x3f0] sm:$0xff]
    %v4736 = vld [vmem:[#allocation9 + $0x3f8] sm:$0xff]
    %v4737 = vld [vmem:[#allocation9 + $0x400] sm:$0xff]
    %v4738 = vld [vmem:[#allocation9 + $0x408] sm:$0xff]
    %v4739 = vld [vmem:[#allocation9 + $0x410] sm:$0xff]
    %v4740 = vld [vmem:[#allocation9 + $0x418] sm:$0xff]
    %v4741 = vld [vmem:[#allocation9 + $0x420] sm:$0xff]
    %v4742 = vld [vmem:[#allocation9 + $0x428] sm:$0xff]
    %v4743 = vld [vmem:[#allocation9 + $0x430] sm:$0xff]
    %v4744 = vld [vmem:[#allocation9 + $0x438] sm:$0xff]
    %v4745 = vld [vmem:[#allocation9 + $0x440] sm:$0xff]
    %v4746 = vld [vmem:[#allocation9 + $0x448] sm:$0xff]
    %v4747 = vld [vmem:[#allocation9 + $0x450] sm:$0xff]
    %v4748 = vld [vmem:[#allocation9 + $0x458] sm:$0xff]
    %v4749 = vld [vmem:[#allocation9 + $0x460] sm:$0xff]
    %v4750 = vld [vmem:[#allocation9 + $0x468] sm:$0xff]
    %v4751 = vld [vmem:[#allocation9 + $0x470] sm:$0xff]
    %v4752 = vld [vmem:[#allocation9 + $0x478] sm:$0xff]
    %v4753 = vld [vmem:[#allocation9 + $0x480] sm:$0xff]
    %v4754 = vld [vmem:[#allocation9 + $0x488] sm:$0xff]
    %v4755 = vld [vmem:[#allocation9 + $0x490] sm:$0xff]
    %v4756 = vld [vmem:[#allocation9 + $0x498] sm:$0xff]
    %v4757 = vld [vmem:[#allocation9 + $0x4a0] sm:$0xff]
    %v4758 = vld [vmem:[#allocation9 + $0x4a8] sm:$0xff]
    %v4759 = vld [vmem:[#allocation9 + $0x4b0] sm:$0xff]
    %v4760 = vld [vmem:[#allocation9 + $0x4b8] sm:$0xff]
    %v4761 = vld [vmem:[#allocation9 + $0x4c0] sm:$0xff]
    %v4762 = vld [vmem:[#allocation9 + $0x4c8] sm:$0xff]
    %v4763 = vld [vmem:[#allocation9 + $0x4d0] sm:$0xff]
    %v4764 = vld [vmem:[#allocation9 + $0x4d8] sm:$0xff]
    %v4765 = vld [vmem:[#allocation9 + $0x4e0] sm:$0xff]
    %v4766 = vld [vmem:[#allocation9 + $0x4e8] sm:$0xff]
    %v4767 = vld [vmem:[#allocation9 + $0x4f0] sm:$0xff]
    %v4768 = vld [vmem:[#allocation9 + $0x4f8] sm:$0xff]
    %v4769 = vld [vmem:[#allocation9 + $0x500] sm:$0xff]
    %v4770 = vld [vmem:[#allocation9 + $0x508] sm:$0xff]
    %v4771 = vld [vmem:[#allocation9 + $0x510] sm:$0xff]
    %v4772 = vld [vmem:[#allocation9 + $0x518] sm:$0xff]
    %v4773 = vld [vmem:[#allocation9 + $0x520] sm:$0xff]
    %v4774 = vld [vmem:[#allocation9 + $0x528] sm:$0xff]
    %v4775 = vld [vmem:[#allocation9 + $0x530] sm:$0xff]
    %v4776 = vld [vmem:[#allocation9 + $0x538] sm:$0xff]
    %v4777 = vld [vmem:[#allocation9 + $0x540] sm:$0xff]
    %v4778 = vld [vmem:[#allocation9 + $0x548] sm:$0xff]
    %v4779 = vld [vmem:[#allocation9 + $0x550] sm:$0xff]
    %v4780 = vld [vmem:[#allocation9 + $0x558] sm:$0xff]
    %v4781 = vld [vmem:[#allocation9 + $0x560] sm:$0xff]
    %v4782 = vld [vmem:[#allocation9 + $0x568] sm:$0xff]
    %v4783 = vld [vmem:[#allocation9 + $0x570] sm:$0xff]
    %v4784 = vld [vmem:[#allocation9 + $0x578] sm:$0xff]
    %v4785 = vld [vmem:[#allocation9 + $0x580] sm:$0xff]
    %v4786 = vld [vmem:[#allocation9 + $0x588] sm:$0xff]
    %v4787 = vld [vmem:[#allocation9 + $0x590] sm:$0xff]
    %v4788 = vld [vmem:[#allocation9 + $0x598] sm:$0xff]
    %v4789 = vld [vmem:[#allocation9 + $0x5a0] sm:$0xff]
    %v4790 = vld [vmem:[#allocation9 + $0x5a8] sm:$0xff]
    %v4791 = vld [vmem:[#allocation9 + $0x5b0] sm:$0xff]
    %v4792 = vld [vmem:[#allocation9 + $0x5b8] sm:$0xff]
    %v4793 = vld [vmem:[#allocation9 + $0x5c0] sm:$0xff]
    %v4794 = vld [vmem:[#allocation9 + $0x5c8] sm:$0xff]
    %v4795 = vld [vmem:[#allocation9 + $0x5d0] sm:$0xff]
    %v4796 = vld [vmem:[#allocation9 + $0x5d8] sm:$0xff]
    %v4797 = vld [vmem:[#allocation9 + $0x5e0] sm:$0xff]
    %v4798 = vld [vmem:[#allocation9 + $0x5e8] sm:$0xff]
    %v4799 = vld [vmem:[#allocation9 + $0x5f0] sm:$0xff]
    %v4800 = vld [vmem:[#allocation9 + $0x5f8] sm:$0xff]
    %v4801 = vld [vmem:[#allocation9 + $0x600] sm:$0xff]
    %v4802 = vld [vmem:[#allocation9 + $0x608] sm:$0xff]
    %v4803 = vld [vmem:[#allocation9 + $0x610] sm:$0xff]
    %v4804 = vld [vmem:[#allocation9 + $0x618] sm:$0xff]
    %v4805 = vld [vmem:[#allocation9 + $0x620] sm:$0xff]
    %v4806 = vld [vmem:[#allocation9 + $0x628] sm:$0xff]
    %v4807 = vld [vmem:[#allocation9 + $0x630] sm:$0xff]
    %v4808 = vld [vmem:[#allocation9 + $0x638] sm:$0xff]
    %v4809 = vld [vmem:[#allocation9 + $0x640] sm:$0xff]
    %v4810 = vld [vmem:[#allocation9 + $0x648] sm:$0xff]
    %v4811 = vld [vmem:[#allocation9 + $0x650] sm:$0xff]
    %v4812 = vld [vmem:[#allocation9 + $0x658] sm:$0xff]
    %v4813 = vld [vmem:[#allocation9 + $0x660] sm:$0xff]
    %v4814 = vld [vmem:[#allocation9 + $0x668] sm:$0xff]
    %v4815 = vld [vmem:[#allocation9 + $0x670] sm:$0xff]
    %v4816 = vld [vmem:[#allocation9 + $0x678] sm:$0xff]
    %v4817 = vld [vmem:[#allocation9 + $0x680] sm:$0xff]
    %v4818 = vld [vmem:[#allocation9 + $0x688] sm:$0xff]
    %v4819 = vld [vmem:[#allocation9 + $0x690] sm:$0xff]
    %v4820 = vld [vmem:[#allocation9 + $0x698] sm:$0xff]
    %v4821 = vld [vmem:[#allocation9 + $0x6a0] sm:$0xff]
    %v4822 = vld [vmem:[#allocation9 + $0x6a8] sm:$0xff]
    %v4823 = vld [vmem:[#allocation9 + $0x6b0] sm:$0xff]
    %v4824 = vld [vmem:[#allocation9 + $0x6b8] sm:$0xff]
    %v4825 = vld [vmem:[#allocation9 + $0x6c0] sm:$0xff]
    %v4826 = vld [vmem:[#allocation9 + $0x6c8] sm:$0xff]
    %v4827 = vld [vmem:[#allocation9 + $0x6d0] sm:$0xff]
    %v4828 = vld [vmem:[#allocation9 + $0x6d8] sm:$0xff]
    %v4829 = vld [vmem:[#allocation9 + $0x6e0] sm:$0xff]
    %v4830 = vld [vmem:[#allocation9 + $0x6e8] sm:$0xff]
    %v4831 = vld [vmem:[#allocation9 + $0x6f0] sm:$0xff]
    %v4832 = vld [vmem:[#allocation9 + $0x6f8] sm:$0xff]
    %v4833 = vld [vmem:[#allocation9 + $0x700] sm:$0xff]
    %v4834 = vld [vmem:[#allocation9 + $0x708] sm:$0xff]
    %v4835 = vld [vmem:[#allocation9 + $0x710] sm:$0xff]
    %v4836 = vld [vmem:[#allocation9 + $0x718] sm:$0xff]
    %v4837 = vld [vmem:[#allocation9 + $0x720] sm:$0xff]
    %v4838 = vld [vmem:[#allocation9 + $0x728] sm:$0xff]
    %v4839 = vld [vmem:[#allocation9 + $0x730] sm:$0xff]
    %v4840 = vld [vmem:[#allocation9 + $0x738] sm:$0xff]
    %v4841 = vld [vmem:[#allocation9 + $0x740] sm:$0xff]
    %v4842 = vld [vmem:[#allocation9 + $0x748] sm:$0xff]
    %v4843 = vld [vmem:[#allocation9 + $0x750] sm:$0xff]
    %v4844 = vld [vmem:[#allocation9 + $0x758] sm:$0xff]
    %v4845 = vld [vmem:[#allocation9 + $0x760] sm:$0xff]
    %v4846 = vld [vmem:[#allocation9 + $0x768] sm:$0xff]
    %v4847 = vld [vmem:[#allocation9 + $0x770] sm:$0xff]
    %v4848 = vld [vmem:[#allocation9 + $0x778] sm:$0xff]
    %v4849 = vld [vmem:[#allocation9 + $0x780] sm:$0xff]
    %v4850 = vld [vmem:[#allocation9 + $0x788] sm:$0xff]
    %v4851 = vld [vmem:[#allocation9 + $0x790] sm:$0xff]
    %v4852 = vld [vmem:[#allocation9 + $0x798] sm:$0xff]
    %v4853 = vld [vmem:[#allocation9 + $0x7a0] sm:$0xff]
    %v4854 = vld [vmem:[#allocation9 + $0x7a8] sm:$0xff]
    %v4855 = vld [vmem:[#allocation9 + $0x7b0] sm:$0xff]
    %v4856 = vld [vmem:[#allocation9 + $0x7b8] sm:$0xff]
    %v4857 = vld [vmem:[#allocation9 + $0x7c0] sm:$0xff]
    %v4858 = vld [vmem:[#allocation9 + $0x7c8] sm:$0xff]
    %v4859 = vld [vmem:[#allocation9 + $0x7d0] sm:$0xff]
    %v4860 = vld [vmem:[#allocation9 + $0x7d8] sm:$0xff]
    %v4861 = vld [vmem:[#allocation9 + $0x7e0] sm:$0xff]
    %v4862 = vld [vmem:[#allocation9 + $0x7e8] sm:$0xff]
    %v4863 = vld [vmem:[#allocation9 + $0x7f0] sm:$0xff]
    %v4864 = vld [vmem:[#allocation9 + $0x7f8] sm:$0xff]
    %v4865 = vld [vmem:[%s8] sm:$0xf]
    %v4867 = vperm.slane %v4865, 0
    %v4868 = vperm.slane %v4865, 1
    %v4869 = vperm.slane %v4865, 2
    %v4870 = vperm.slane %v4865, 3
    %v5131 = vunpack.c.l.b16 %v4609
    %v5132 = vunpack.c.h.b16 %v4609
    %v5133 = vunpack.c.l.b16 %v4610
    %v5134 = vunpack.c.h.b16 %v4610
    %v5135 = vunpack.c.l.b16 %v4611
    %v5136 = vunpack.c.h.b16 %v4611
    %v5137 = vunpack.c.l.b16 %v4612
    %v5138 = vunpack.c.h.b16 %v4612
    %v5139 = vunpack.c.l.b16 %v4613
    %v5140 = vunpack.c.h.b16 %v4613
    %v5141 = vunpack.c.l.b16 %v4614
    %v5142 = vunpack.c.h.b16 %v4614
    %v5143 = vunpack.c.l.b16 %v4615
    %v5144 = vunpack.c.h.b16 %v4615
    %v5145 = vunpack.c.l.b16 %v4616
    %v5146 = vunpack.c.h.b16 %v4616
    %v5147 = vunpack.c.l.b16 %v4617
    %v5148 = vunpack.c.h.b16 %v4617
    %v5149 = vunpack.c.l.b16 %v4618
    %v5150 = vunpack.c.h.b16 %v4618
    %v5151 = vunpack.c.l.b16 %v4619
    %v5152 = vunpack.c.h.b16 %v4619
    %v5153 = vunpack.c.l.b16 %v4620
    %v5154 = vunpack.c.h.b16 %v4620
    %v5155 = vunpack.c.l.b16 %v4621
    %v5156 = vunpack.c.h.b16 %v4621
    %v5157 = vunpack.c.l.b16 %v4622
    %v5158 = vunpack.c.h.b16 %v4622
    %v5159 = vunpack.c.l.b16 %v4623
    %v5160 = vunpack.c.h.b16 %v4623
    %v5161 = vunpack.c.l.b16 %v4624
    %v5162 = vunpack.c.h.b16 %v4624
    %v5163 = vunpack.c.l.b16 %v4625
    %v5164 = vunpack.c.h.b16 %v4625
    %v5165 = vunpack.c.l.b16 %v4626
    %v5166 = vunpack.c.h.b16 %v4626
    %v5167 = vunpack.c.l.b16 %v4627
    %v5168 = vunpack.c.h.b16 %v4627
    %v5169 = vunpack.c.l.b16 %v4628
    %v5170 = vunpack.c.h.b16 %v4628
    %v5171 = vunpack.c.l.b16 %v4629
    %v5172 = vunpack.c.h.b16 %v4629
    %v5173 = vunpack.c.l.b16 %v4630
    %v5174 = vunpack.c.h.b16 %v4630
    %v5175 = vunpack.c.l.b16 %v4631
    %v5176 = vunpack.c.h.b16 %v4631
    %v5177 = vunpack.c.l.b16 %v4632
    %v5178 = vunpack.c.h.b16 %v4632
    %v5179 = vunpack.c.l.b16 %v4633
    %v5180 = vunpack.c.h.b16 %v4633
    %v5181 = vunpack.c.l.b16 %v4634
    %v5182 = vunpack.c.h.b16 %v4634
    %v5183 = vunpack.c.l.b16 %v4635
    %v5184 = vunpack.c.h.b16 %v4635
    %v5185 = vunpack.c.l.b16 %v4636
    %v5186 = vunpack.c.h.b16 %v4636
    %v5187 = vunpack.c.l.b16 %v4637
    %v5188 = vunpack.c.h.b16 %v4637
    %v5189 = vunpack.c.l.b16 %v4638
    %v5190 = vunpack.c.h.b16 %v4638
    %v5191 = vunpack.c.l.b16 %v4639
    %v5192 = vunpack.c.h.b16 %v4639
    %v5193 = vunpack.c.l.b16 %v4640
    %v5194 = vunpack.c.h.b16 %v4640
    %v5195 = vunpack.c.l.b16 %v4641
    %v5196 = vunpack.c.h.b16 %v4641
    %v5197 = vunpack.c.l.b16 %v4642
    %v5198 = vunpack.c.h.b16 %v4642
    %v5199 = vunpack.c.l.b16 %v4643
    %v5200 = vunpack.c.h.b16 %v4643
    %v5201 = vunpack.c.l.b16 %v4644
    %v5202 = vunpack.c.h.b16 %v4644
    %v5203 = vunpack.c.l.b16 %v4645
    %v5204 = vunpack.c.h.b16 %v4645
    %v5205 = vunpack.c.l.b16 %v4646
    %v5206 = vunpack.c.h.b16 %v4646
    %v5207 = vunpack.c.l.b16 %v4647
    %v5208 = vunpack.c.h.b16 %v4647
    %v5209 = vunpack.c.l.b16 %v4648
    %v5210 = vunpack.c.h.b16 %v4648
    %v5211 = vunpack.c.l.b16 %v4649
    %v5212 = vunpack.c.h.b16 %v4649
    %v5213 = vunpack.c.l.b16 %v4650
    %v5214 = vunpack.c.h.b16 %v4650
    %v5215 = vunpack.c.l.b16 %v4651
    %v5216 = vunpack.c.h.b16 %v4651
    %v5217 = vunpack.c.l.b16 %v4652
    %v5218 = vunpack.c.h.b16 %v4652
    %v5219 = vunpack.c.l.b16 %v4653
    %v5220 = vunpack.c.h.b16 %v4653
    %v5221 = vunpack.c.l.b16 %v4654
    %v5222 = vunpack.c.h.b16 %v4654
    %v5223 = vunpack.c.l.b16 %v4655
    %v5224 = vunpack.c.h.b16 %v4655
    %v5225 = vunpack.c.l.b16 %v4656
    %v5226 = vunpack.c.h.b16 %v4656
    %v5227 = vunpack.c.l.b16 %v4657
    %v5228 = vunpack.c.h.b16 %v4657
    %v5229 = vunpack.c.l.b16 %v4658
    %v5230 = vunpack.c.h.b16 %v4658
    %v5231 = vunpack.c.l.b16 %v4659
    %v5232 = vunpack.c.h.b16 %v4659
    %v5233 = vunpack.c.l.b16 %v4660
    %v5234 = vunpack.c.h.b16 %v4660
    %v5235 = vunpack.c.l.b16 %v4661
    %v5236 = vunpack.c.h.b16 %v4661
    %v5237 = vunpack.c.l.b16 %v4662
    %v5238 = vunpack.c.h.b16 %v4662
    %v5239 = vunpack.c.l.b16 %v4663
    %v5240 = vunpack.c.h.b16 %v4663
    %v5241 = vunpack.c.l.b16 %v4664
    %v5242 = vunpack.c.h.b16 %v4664
    %v5243 = vunpack.c.l.b16 %v4665
    %v5244 = vunpack.c.h.b16 %v4665
    %v5245 = vunpack.c.l.b16 %v4666
    %v5246 = vunpack.c.h.b16 %v4666
    %v5247 = vunpack.c.l.b16 %v4667
    %v5248 = vunpack.c.h.b16 %v4667
    %v5249 = vunpack.c.l.b16 %v4668
    %v5250 = vunpack.c.h.b16 %v4668
    %v5251 = vunpack.c.l.b16 %v4669
    %v5252 = vunpack.c.h.b16 %v4669
    %v5253 = vunpack.c.l.b16 %v4670
    %v5254 = vunpack.c.h.b16 %v4670
    %v5255 = vunpack.c.l.b16 %v4671
    %v5256 = vunpack.c.h.b16 %v4671
    %v5257 = vunpack.c.l.b16 %v4672
    %v5258 = vunpack.c.h.b16 %v4672
    %v5259 = vunpack.c.l.b16 %v4673
    %v5260 = vunpack.c.h.b16 %v4673
    %v5261 = vunpack.c.l.b16 %v4674
    %v5262 = vunpack.c.h.b16 %v4674
    %v5263 = vunpack.c.l.b16 %v4675
    %v5264 = vunpack.c.h.b16 %v4675
    %v5265 = vunpack.c.l.b16 %v4676
    %v5266 = vunpack.c.h.b16 %v4676
    %v5267 = vunpack.c.l.b16 %v4677
    %v5268 = vunpack.c.h.b16 %v4677
    %v5269 = vunpack.c.l.b16 %v4678
    %v5270 = vunpack.c.h.b16 %v4678
    %v5271 = vunpack.c.l.b16 %v4679
    %v5272 = vunpack.c.h.b16 %v4679
    %v5273 = vunpack.c.l.b16 %v4680
    %v5274 = vunpack.c.h.b16 %v4680
    %v5275 = vunpack.c.l.b16 %v4681
    %v5276 = vunpack.c.h.b16 %v4681
    %v5277 = vunpack.c.l.b16 %v4682
    %v5278 = vunpack.c.h.b16 %v4682
    %v5279 = vunpack.c.l.b16 %v4683
    %v5280 = vunpack.c.h.b16 %v4683
    %v5281 = vunpack.c.l.b16 %v4684
    %v5282 = vunpack.c.h.b16 %v4684
    %v5283 = vunpack.c.l.b16 %v4685
    %v5284 = vunpack.c.h.b16 %v4685
    %v5285 = vunpack.c.l.b16 %v4686
    %v5286 = vunpack.c.h.b16 %v4686
    %v5287 = vunpack.c.l.b16 %v4687
    %v5288 = vunpack.c.h.b16 %v4687
    %v5289 = vunpack.c.l.b16 %v4688
    %v5290 = vunpack.c.h.b16 %v4688
    %v5291 = vunpack.c.l.b16 %v4689
    %v5292 = vunpack.c.h.b16 %v4689
    %v5293 = vunpack.c.l.b16 %v4690
    %v5294 = vunpack.c.h.b16 %v4690
    %v5295 = vunpack.c.l.b16 %v4691
    %v5296 = vunpack.c.h.b16 %v4691
    %v5297 = vunpack.c.l.b16 %v4692
    %v5298 = vunpack.c.h.b16 %v4692
    %v5299 = vunpack.c.l.b16 %v4693
    %v5300 = vunpack.c.h.b16 %v4693
    %v5301 = vunpack.c.l.b16 %v4694
    %v5302 = vunpack.c.h.b16 %v4694
    %v5303 = vunpack.c.l.b16 %v4695
    %v5304 = vunpack.c.h.b16 %v4695
    %v5305 = vunpack.c.l.b16 %v4696
    %v5306 = vunpack.c.h.b16 %v4696
    %v5307 = vunpack.c.l.b16 %v4697
    %v5308 = vunpack.c.h.b16 %v4697
    %v5309 = vunpack.c.l.b16 %v4698
    %v5310 = vunpack.c.h.b16 %v4698
    %v5311 = vunpack.c.l.b16 %v4699
    %v5312 = vunpack.c.h.b16 %v4699
    %v5313 = vunpack.c.l.b16 %v4700
    %v5314 = vunpack.c.h.b16 %v4700
    %v5315 = vunpack.c.l.b16 %v4701
    %v5316 = vunpack.c.h.b16 %v4701
    %v5317 = vunpack.c.l.b16 %v4702
    %v5318 = vunpack.c.h.b16 %v4702
    %v5319 = vunpack.c.l.b16 %v4703
    %v5320 = vunpack.c.h.b16 %v4703
    %v5321 = vunpack.c.l.b16 %v4704
    %v5322 = vunpack.c.h.b16 %v4704
    %v5323 = vunpack.c.l.b16 %v4705
    %v5324 = vunpack.c.h.b16 %v4705
    %v5325 = vunpack.c.l.b16 %v4706
    %v5326 = vunpack.c.h.b16 %v4706
    %v5327 = vunpack.c.l.b16 %v4707
    %v5328 = vunpack.c.h.b16 %v4707
    %v5329 = vunpack.c.l.b16 %v4708
    %v5330 = vunpack.c.h.b16 %v4708
    %v5331 = vunpack.c.l.b16 %v4709
    %v5332 = vunpack.c.h.b16 %v4709
    %v5333 = vunpack.c.l.b16 %v4710
    %v5334 = vunpack.c.h.b16 %v4710
    %v5335 = vunpack.c.l.b16 %v4711
    %v5336 = vunpack.c.h.b16 %v4711
    %v5337 = vunpack.c.l.b16 %v4712
    %v5338 = vunpack.c.h.b16 %v4712
    %v5339 = vunpack.c.l.b16 %v4713
    %v5340 = vunpack.c.h.b16 %v4713
    %v5341 = vunpack.c.l.b16 %v4714
    %v5342 = vunpack.c.h.b16 %v4714
    %v5343 = vunpack.c.l.b16 %v4715
    %v5344 = vunpack.c.h.b16 %v4715
    %v5345 = vunpack.c.l.b16 %v4716
    %v5346 = vunpack.c.h.b16 %v4716
    %v5347 = vunpack.c.l.b16 %v4717
    %v5348 = vunpack.c.h.b16 %v4717
    %v5349 = vunpack.c.l.b16 %v4718
    %v5350 = vunpack.c.h.b16 %v4718
    %v5351 = vunpack.c.l.b16 %v4719
    %v5352 = vunpack.c.h.b16 %v4719
    %v5353 = vunpack.c.l.b16 %v4720
    %v5354 = vunpack.c.h.b16 %v4720
    %v5355 = vunpack.c.l.b16 %v4721
    %v5356 = vunpack.c.h.b16 %v4721
    %v5357 = vunpack.c.l.b16 %v4722
    %v5358 = vunpack.c.h.b16 %v4722
    %v5359 = vunpack.c.l.b16 %v4723
    %v5360 = vunpack.c.h.b16 %v4723
    %v5361 = vunpack.c.l.b16 %v4724
    %v5362 = vunpack.c.h.b16 %v4724
    %v5363 = vunpack.c.l.b16 %v4725
    %v5364 = vunpack.c.h.b16 %v4725
    %v5365 = vunpack.c.l.b16 %v4726
    %v5366 = vunpack.c.h.b16 %v4726
    %v5367 = vunpack.c.l.b16 %v4727
    %v5368 = vunpack.c.h.b16 %v4727
    %v5369 = vunpack.c.l.b16 %v4728
    %v5370 = vunpack.c.h.b16 %v4728
    %v5371 = vunpack.c.l.b16 %v4729
    %v5372 = vunpack.c.h.b16 %v4729
    %v5373 = vunpack.c.l.b16 %v4730
    %v5374 = vunpack.c.h.b16 %v4730
    %v5375 = vunpack.c.l.b16 %v4731
    %v5376 = vunpack.c.h.b16 %v4731
    %v5377 = vunpack.c.l.b16 %v4732
    %v5378 = vunpack.c.h.b16 %v4732
    %v5379 = vunpack.c.l.b16 %v4733
    %v5380 = vunpack.c.h.b16 %v4733
    %v5381 = vunpack.c.l.b16 %v4734
    %v5382 = vunpack.c.h.b16 %v4734
    %v5383 = vunpack.c.l.b16 %v4735
    %v5384 = vunpack.c.h.b16 %v4735
    %v5385 = vunpack.c.l.b16 %v4736
    %v5386 = vunpack.c.h.b16 %v4736
    %v5387 = vunpack.c.l.b16 %v4737
    %v5388 = vunpack.c.h.b16 %v4737
    %v5389 = vunpack.c.l.b16 %v4738
    %v5390 = vunpack.c.h.b16 %v4738
    %v5391 = vunpack.c.l.b16 %v4739
    %v5392 = vunpack.c.h.b16 %v4739
    %v5393 = vunpack.c.l.b16 %v4740
    %v5394 = vunpack.c.h.b16 %v4740
    %v5395 = vunpack.c.l.b16 %v4741
    %v5396 = vunpack.c.h.b16 %v4741
    %v5397 = vunpack.c.l.b16 %v4742
    %v5398 = vunpack.c.h.b16 %v4742
    %v5399 = vunpack.c.l.b16 %v4743
    %v5400 = vunpack.c.h.b16 %v4743
    %v5401 = vunpack.c.l.b16 %v4744
    %v5402 = vunpack.c.h.b16 %v4744
    %v5403 = vunpack.c.l.b16 %v4745
    %v5404 = vunpack.c.h.b16 %v4745
    %v5405 = vunpack.c.l.b16 %v4746
    %v5406 = vunpack.c.h.b16 %v4746
    %v5407 = vunpack.c.l.b16 %v4747
    %v5408 = vunpack.c.h.b16 %v4747
    %v5409 = vunpack.c.l.b16 %v4748
    %v5410 = vunpack.c.h.b16 %v4748
    %v5411 = vunpack.c.l.b16 %v4749
    %v5412 = vunpack.c.h.b16 %v4749
    %v5413 = vunpack.c.l.b16 %v4750
    %v5414 = vunpack.c.h.b16 %v4750
    %v5415 = vunpack.c.l.b16 %v4751
    %v5416 = vunpack.c.h.b16 %v4751
    %v5417 = vunpack.c.l.b16 %v4752
    %v5418 = vunpack.c.h.b16 %v4752
    %v5419 = vunpack.c.l.b16 %v4753
    %v5420 = vunpack.c.h.b16 %v4753
    %v5421 = vunpack.c.l.b16 %v4754
    %v5422 = vunpack.c.h.b16 %v4754
    %v5423 = vunpack.c.l.b16 %v4755
    %v5424 = vunpack.c.h.b16 %v4755
    %v5425 = vunpack.c.l.b16 %v4756
    %v5426 = vunpack.c.h.b16 %v4756
    %v5427 = vunpack.c.l.b16 %v4757
    %v5428 = vunpack.c.h.b16 %v4757
    %v5429 = vunpack.c.l.b16 %v4758
    %v5430 = vunpack.c.h.b16 %v4758
    %v5431 = vunpack.c.l.b16 %v4759
    %v5432 = vunpack.c.h.b16 %v4759
    %v5433 = vunpack.c.l.b16 %v4760
    %v5434 = vunpack.c.h.b16 %v4760
    %v5435 = vunpack.c.l.b16 %v4761
    %v5436 = vunpack.c.h.b16 %v4761
    %v5437 = vunpack.c.l.b16 %v4762
    %v5438 = vunpack.c.h.b16 %v4762
    %v5439 = vunpack.c.l.b16 %v4763
    %v5440 = vunpack.c.h.b16 %v4763
    %v5441 = vunpack.c.l.b16 %v4764
    %v5442 = vunpack.c.h.b16 %v4764
    %v5443 = vunpack.c.l.b16 %v4765
    %v5444 = vunpack.c.h.b16 %v4765
    %v5445 = vunpack.c.l.b16 %v4766
    %v5446 = vunpack.c.h.b16 %v4766
    %v5447 = vunpack.c.l.b16 %v4767
    %v5448 = vunpack.c.h.b16 %v4767
    %v5449 = vunpack.c.l.b16 %v4768
    %v5450 = vunpack.c.h.b16 %v4768
    %v5451 = vunpack.c.l.b16 %v4769
    %v5452 = vunpack.c.h.b16 %v4769
    %v5453 = vunpack.c.l.b16 %v4770
    %v5454 = vunpack.c.h.b16 %v4770
    %v5455 = vunpack.c.l.b16 %v4771
    %v5456 = vunpack.c.h.b16 %v4771
    %v5457 = vunpack.c.l.b16 %v4772
    %v5458 = vunpack.c.h.b16 %v4772
    %v5459 = vunpack.c.l.b16 %v4773
    %v5460 = vunpack.c.h.b16 %v4773
    %v5461 = vunpack.c.l.b16 %v4774
    %v5462 = vunpack.c.h.b16 %v4774
    %v5463 = vunpack.c.l.b16 %v4775
    %v5464 = vunpack.c.h.b16 %v4775
    %v5465 = vunpack.c.l.b16 %v4776
    %v5466 = vunpack.c.h.b16 %v4776
    %v5467 = vunpack.c.l.b16 %v4777
    %v5468 = vunpack.c.h.b16 %v4777
    %v5469 = vunpack.c.l.b16 %v4778
    %v5470 = vunpack.c.h.b16 %v4778
    %v5471 = vunpack.c.l.b16 %v4779
    %v5472 = vunpack.c.h.b16 %v4779
    %v5473 = vunpack.c.l.b16 %v4780
    %v5474 = vunpack.c.h.b16 %v4780
    %v5475 = vunpack.c.l.b16 %v4781
    %v5476 = vunpack.c.h.b16 %v4781
    %v5477 = vunpack.c.l.b16 %v4782
    %v5478 = vunpack.c.h.b16 %v4782
    %v5479 = vunpack.c.l.b16 %v4783
    %v5480 = vunpack.c.h.b16 %v4783
    %v5481 = vunpack.c.l.b16 %v4784
    %v5482 = vunpack.c.h.b16 %v4784
    %v5483 = vunpack.c.l.b16 %v4785
    %v5484 = vunpack.c.h.b16 %v4785
    %v5485 = vunpack.c.l.b16 %v4786
    %v5486 = vunpack.c.h.b16 %v4786
    %v5487 = vunpack.c.l.b16 %v4787
    %v5488 = vunpack.c.h.b16 %v4787
    %v5489 = vunpack.c.l.b16 %v4788
    %v5490 = vunpack.c.h.b16 %v4788
    %v5491 = vunpack.c.l.b16 %v4789
    %v5492 = vunpack.c.h.b16 %v4789
    %v5493 = vunpack.c.l.b16 %v4790
    %v5494 = vunpack.c.h.b16 %v4790
    %v5495 = vunpack.c.l.b16 %v4791
    %v5496 = vunpack.c.h.b16 %v4791
    %v5497 = vunpack.c.l.b16 %v4792
    %v5498 = vunpack.c.h.b16 %v4792
    %v5499 = vunpack.c.l.b16 %v4793
    %v5500 = vunpack.c.h.b16 %v4793
    %v5501 = vunpack.c.l.b16 %v4794
    %v5502 = vunpack.c.h.b16 %v4794
    %v5503 = vunpack.c.l.b16 %v4795
    %v5504 = vunpack.c.h.b16 %v4795
    %v5505 = vunpack.c.l.b16 %v4796
    %v5506 = vunpack.c.h.b16 %v4796
    %v5507 = vunpack.c.l.b16 %v4797
    %v5508 = vunpack.c.h.b16 %v4797
    %v5509 = vunpack.c.l.b16 %v4798
    %v5510 = vunpack.c.h.b16 %v4798
    %v5511 = vunpack.c.l.b16 %v4799
    %v5512 = vunpack.c.h.b16 %v4799
    %v5513 = vunpack.c.l.b16 %v4800
    %v5514 = vunpack.c.h.b16 %v4800
    %v5515 = vunpack.c.l.b16 %v4801
    %v5516 = vunpack.c.h.b16 %v4801
    %v5517 = vunpack.c.l.b16 %v4802
    %v5518 = vunpack.c.h.b16 %v4802
    %v5519 = vunpack.c.l.b16 %v4803
    %v5520 = vunpack.c.h.b16 %v4803
    %v5521 = vunpack.c.l.b16 %v4804
    %v5522 = vunpack.c.h.b16 %v4804
    %v5523 = vunpack.c.l.b16 %v4805
    %v5524 = vunpack.c.h.b16 %v4805
    %v5525 = vunpack.c.l.b16 %v4806
    %v5526 = vunpack.c.h.b16 %v4806
    %v5527 = vunpack.c.l.b16 %v4807
    %v5528 = vunpack.c.h.b16 %v4807
    %v5529 = vunpack.c.l.b16 %v4808
    %v5530 = vunpack.c.h.b16 %v4808
    %v5531 = vunpack.c.l.b16 %v4809
    %v5532 = vunpack.c.h.b16 %v4809
    %v5533 = vunpack.c.l.b16 %v4810
    %v5534 = vunpack.c.h.b16 %v4810
    %v5535 = vunpack.c.l.b16 %v4811
    %v5536 = vunpack.c.h.b16 %v4811
    %v5537 = vunpack.c.l.b16 %v4812
    %v5538 = vunpack.c.h.b16 %v4812
    %v5539 = vunpack.c.l.b16 %v4813
    %v5540 = vunpack.c.h.b16 %v4813
    %v5541 = vunpack.c.l.b16 %v4814
    %v5542 = vunpack.c.h.b16 %v4814
    %v5543 = vunpack.c.l.b16 %v4815
    %v5544 = vunpack.c.h.b16 %v4815
    %v5545 = vunpack.c.l.b16 %v4816
    %v5546 = vunpack.c.h.b16 %v4816
    %v5547 = vunpack.c.l.b16 %v4817
    %v5548 = vunpack.c.h.b16 %v4817
    %v5549 = vunpack.c.l.b16 %v4818
    %v5550 = vunpack.c.h.b16 %v4818
    %v5551 = vunpack.c.l.b16 %v4819
    %v5552 = vunpack.c.h.b16 %v4819
    %v5553 = vunpack.c.l.b16 %v4820
    %v5554 = vunpack.c.h.b16 %v4820
    %v5555 = vunpack.c.l.b16 %v4821
    %v5556 = vunpack.c.h.b16 %v4821
    %v5557 = vunpack.c.l.b16 %v4822
    %v5558 = vunpack.c.h.b16 %v4822
    %v5559 = vunpack.c.l.b16 %v4823
    %v5560 = vunpack.c.h.b16 %v4823
    %v5561 = vunpack.c.l.b16 %v4824
    %v5562 = vunpack.c.h.b16 %v4824
    %v5563 = vunpack.c.l.b16 %v4825
    %v5564 = vunpack.c.h.b16 %v4825
    %v5565 = vunpack.c.l.b16 %v4826
    %v5566 = vunpack.c.h.b16 %v4826
    %v5567 = vunpack.c.l.b16 %v4827
    %v5568 = vunpack.c.h.b16 %v4827
    %v5569 = vunpack.c.l.b16 %v4828
    %v5570 = vunpack.c.h.b16 %v4828
    %v5571 = vunpack.c.l.b16 %v4829
    %v5572 = vunpack.c.h.b16 %v4829
    %v5573 = vunpack.c.l.b16 %v4830
    %v5574 = vunpack.c.h.b16 %v4830
    %v5575 = vunpack.c.l.b16 %v4831
    %v5576 = vunpack.c.h.b16 %v4831
    %v5577 = vunpack.c.l.b16 %v4832
    %v5578 = vunpack.c.h.b16 %v4832
    %v5579 = vunpack.c.l.b16 %v4833
    %v5580 = vunpack.c.h.b16 %v4833
    %v5581 = vunpack.c.l.b16 %v4834
    %v5582 = vunpack.c.h.b16 %v4834
    %v5583 = vunpack.c.l.b16 %v4835
    %v5584 = vunpack.c.h.b16 %v4835
    %v5585 = vunpack.c.l.b16 %v4836
    %v5586 = vunpack.c.h.b16 %v4836
    %v5587 = vunpack.c.l.b16 %v4837
    %v5588 = vunpack.c.h.b16 %v4837
    %v5589 = vunpack.c.l.b16 %v4838
    %v5590 = vunpack.c.h.b16 %v4838
    %v5591 = vunpack.c.l.b16 %v4839
    %v5592 = vunpack.c.h.b16 %v4839
    %v5593 = vunpack.c.l.b16 %v4840
    %v5594 = vunpack.c.h.b16 %v4840
    %v5595 = vunpack.c.l.b16 %v4841
    %v5596 = vunpack.c.h.b16 %v4841
    %v5597 = vunpack.c.l.b16 %v4842
    %v5598 = vunpack.c.h.b16 %v4842
    %v5599 = vunpack.c.l.b16 %v4843
    %v5600 = vunpack.c.h.b16 %v4843
    %v5601 = vunpack.c.l.b16 %v4844
    %v5602 = vunpack.c.h.b16 %v4844
    %v5603 = vunpack.c.l.b16 %v4845
    %v5604 = vunpack.c.h.b16 %v4845
    %v5605 = vunpack.c.l.b16 %v4846
    %v5606 = vunpack.c.h.b16 %v4846
    %v5607 = vunpack.c.l.b16 %v4847
    %v5608 = vunpack.c.h.b16 %v4847
    %v5609 = vunpack.c.l.b16 %v4848
    %v5610 = vunpack.c.h.b16 %v4848
    %v5611 = vunpack.c.l.b16 %v4849
    %v5612 = vunpack.c.h.b16 %v4849
    %v5613 = vunpack.c.l.b16 %v4850
    %v5614 = vunpack.c.h.b16 %v4850
    %v5615 = vunpack.c.l.b16 %v4851
    %v5616 = vunpack.c.h.b16 %v4851
    %v5617 = vunpack.c.l.b16 %v4852
    %v5618 = vunpack.c.h.b16 %v4852
    %v5619 = vunpack.c.l.b16 %v4853
    %v5620 = vunpack.c.h.b16 %v4853
    %v5621 = vunpack.c.l.b16 %v4854
    %v5622 = vunpack.c.h.b16 %v4854
    %v5623 = vunpack.c.l.b16 %v4855
    %v5624 = vunpack.c.h.b16 %v4855
    %v5625 = vunpack.c.l.b16 %v4856
    %v5626 = vunpack.c.h.b16 %v4856
    %v5627 = vunpack.c.l.b16 %v4857
    %v5628 = vunpack.c.h.b16 %v4857
    %v5629 = vunpack.c.l.b16 %v4858
    %v5630 = vunpack.c.h.b16 %v4858
    %v5631 = vunpack.c.l.b16 %v4859
    %v5632 = vunpack.c.h.b16 %v4859
    %v5633 = vunpack.c.l.b16 %v4860
    %v5634 = vunpack.c.h.b16 %v4860
    %v5635 = vunpack.c.l.b16 %v4861
    %v5636 = vunpack.c.h.b16 %v4861
    %v5637 = vunpack.c.l.b16 %v4862
    %v5638 = vunpack.c.h.b16 %v4862
    %v5639 = vunpack.c.l.b16 %v4863
    %v5640 = vunpack.c.h.b16 %v4863
    %v5641 = vunpack.c.l.b16 %v4864
    %v5642 = vunpack.c.h.b16 %v4864
    %v5643 = vpack.c.b16 %v5135, %v5131
    %v5644 = vpack.c.b16 %v5136, %v5132
    %v5645 = vpack.c.b16 %v5137, %v5133
    %v5646 = vpack.c.b16 %v5138, %v5134
    %v5647 = vpack.c.b16 %v5143, %v5139
    %v5648 = vpack.c.b16 %v5144, %v5140
    %v5649 = vpack.c.b16 %v5145, %v5141
    %v5650 = vpack.c.b16 %v5146, %v5142
    %v5651 = vpack.c.b16 %v5151, %v5147
    %v5652 = vpack.c.b16 %v5152, %v5148
    %v5653 = vpack.c.b16 %v5153, %v5149
    %v5654 = vpack.c.b16 %v5154, %v5150
    %v5655 = vpack.c.b16 %v5159, %v5155
    %v5656 = vpack.c.b16 %v5160, %v5156
    %v5657 = vpack.c.b16 %v5161, %v5157
    %v5658 = vpack.c.b16 %v5162, %v5158
    %v5659 = vpack.c.b16 %v5167, %v5163
    %v5660 = vpack.c.b16 %v5168, %v5164
    %v5661 = vpack.c.b16 %v5169, %v5165
    %v5662 = vpack.c.b16 %v5170, %v5166
    %v5663 = vpack.c.b16 %v5175, %v5171
    %v5664 = vpack.c.b16 %v5176, %v5172
    %v5665 = vpack.c.b16 %v5177, %v5173
    %v5666 = vpack.c.b16 %v5178, %v5174
    %v5667 = vpack.c.b16 %v5183, %v5179
    %v5668 = vpack.c.b16 %v5184, %v5180
    %v5669 = vpack.c.b16 %v5185, %v5181
    %v5670 = vpack.c.b16 %v5186, %v5182
    %v5671 = vpack.c.b16 %v5191, %v5187
    %v5672 = vpack.c.b16 %v5192, %v5188
    %v5673 = vpack.c.b16 %v5193, %v5189
    %v5674 = vpack.c.b16 %v5194, %v5190
    %v5675 = vpack.c.b16 %v5199, %v5195
    %v5676 = vpack.c.b16 %v5200, %v5196
    %v5677 = vpack.c.b16 %v5201, %v5197
    %v5678 = vpack.c.b16 %v5202, %v5198
    %v5679 = vpack.c.b16 %v5207, %v5203
    %v5680 = vpack.c.b16 %v5208, %v5204
    %v5681 = vpack.c.b16 %v5209, %v5205
    %v5682 = vpack.c.b16 %v5210, %v5206
    %v5683 = vpack.c.b16 %v5215, %v5211
    %v5684 = vpack.c.b16 %v5216, %v5212
    %v5685 = vpack.c.b16 %v5217, %v5213
    %v5686 = vpack.c.b16 %v5218, %v5214
    %v5687 = vpack.c.b16 %v5223, %v5219
    %v5688 = vpack.c.b16 %v5224, %v5220
    %v5689 = vpack.c.b16 %v5225, %v5221
    %v5690 = vpack.c.b16 %v5226, %v5222
    %v5691 = vpack.c.b16 %v5231, %v5227
    %v5692 = vpack.c.b16 %v5232, %v5228
    %v5693 = vpack.c.b16 %v5233, %v5229
    %v5694 = vpack.c.b16 %v5234, %v5230
    %v5695 = vpack.c.b16 %v5239, %v5235
    %v5696 = vpack.c.b16 %v5240, %v5236
    %v5697 = vpack.c.b16 %v5241, %v5237
    %v5698 = vpack.c.b16 %v5242, %v5238
    %v5699 = vpack.c.b16 %v5247, %v5243
    %v5700 = vpack.c.b16 %v5248, %v5244
    %v5701 = vpack.c.b16 %v5249, %v5245
    %v5702 = vpack.c.b16 %v5250, %v5246
    %v5703 = vpack.c.b16 %v5255, %v5251
    %v5704 = vpack.c.b16 %v5256, %v5252
    %v5705 = vpack.c.b16 %v5257, %v5253
    %v5706 = vpack.c.b16 %v5258, %v5254
    %v5707 = vpack.c.b16 %v5263, %v5259
    %v5708 = vpack.c.b16 %v5264, %v5260
    %v5709 = vpack.c.b16 %v5265, %v5261
    %v5710 = vpack.c.b16 %v5266, %v5262
    %v5711 = vpack.c.b16 %v5271, %v5267
    %v5712 = vpack.c.b16 %v5272, %v5268
    %v5713 = vpack.c.b16 %v5273, %v5269
    %v5714 = vpack.c.b16 %v5274, %v5270
    %v5715 = vpack.c.b16 %v5279, %v5275
    %v5716 = vpack.c.b16 %v5280, %v5276
    %v5717 = vpack.c.b16 %v5281, %v5277
    %v5718 = vpack.c.b16 %v5282, %v5278
    %v5719 = vpack.c.b16 %v5287, %v5283
    %v5720 = vpack.c.b16 %v5288, %v5284
    %v5721 = vpack.c.b16 %v5289, %v5285
    %v5722 = vpack.c.b16 %v5290, %v5286
    %v5723 = vpack.c.b16 %v5295, %v5291
    %v5724 = vpack.c.b16 %v5296, %v5292
    %v5725 = vpack.c.b16 %v5297, %v5293
    %v5726 = vpack.c.b16 %v5298, %v5294
    %v5727 = vpack.c.b16 %v5303, %v5299
    %v5728 = vpack.c.b16 %v5304, %v5300
    %v5729 = vpack.c.b16 %v5305, %v5301
    %v5730 = vpack.c.b16 %v5306, %v5302
    %v5731 = vpack.c.b16 %v5311, %v5307
    %v5732 = vpack.c.b16 %v5312, %v5308
    %v5733 = vpack.c.b16 %v5313, %v5309
    %v5734 = vpack.c.b16 %v5314, %v5310
    %v5735 = vpack.c.b16 %v5319, %v5315
    %v5736 = vpack.c.b16 %v5320, %v5316
    %v5737 = vpack.c.b16 %v5321, %v5317
    %v5738 = vpack.c.b16 %v5322, %v5318
    %v5739 = vpack.c.b16 %v5327, %v5323
    %v5740 = vpack.c.b16 %v5328, %v5324
    %v5741 = vpack.c.b16 %v5329, %v5325
    %v5742 = vpack.c.b16 %v5330, %v5326
    %v5743 = vpack.c.b16 %v5335, %v5331
    %v5744 = vpack.c.b16 %v5336, %v5332
    %v5745 = vpack.c.b16 %v5337, %v5333
    %v5746 = vpack.c.b16 %v5338, %v5334
    %v5747 = vpack.c.b16 %v5343, %v5339
    %v5748 = vpack.c.b16 %v5344, %v5340
    %v5749 = vpack.c.b16 %v5345, %v5341
    %v5750 = vpack.c.b16 %v5346, %v5342
    %v5751 = vpack.c.b16 %v5351, %v5347
    %v5752 = vpack.c.b16 %v5352, %v5348
    %v5753 = vpack.c.b16 %v5353, %v5349
    %v5754 = vpack.c.b16 %v5354, %v5350
    %v5755 = vpack.c.b16 %v5359, %v5355
    %v5756 = vpack.c.b16 %v5360, %v5356
    %v5757 = vpack.c.b16 %v5361, %v5357
    %v5758 = vpack.c.b16 %v5362, %v5358
    %v5759 = vpack.c.b16 %v5367, %v5363
    %v5760 = vpack.c.b16 %v5368, %v5364
    %v5761 = vpack.c.b16 %v5369, %v5365
    %v5762 = vpack.c.b16 %v5370, %v5366
    %v5763 = vpack.c.b16 %v5375, %v5371
    %v5764 = vpack.c.b16 %v5376, %v5372
    %v5765 = vpack.c.b16 %v5377, %v5373
    %v5766 = vpack.c.b16 %v5378, %v5374
    %v5767 = vpack.c.b16 %v5383, %v5379
    %v5768 = vpack.c.b16 %v5384, %v5380
    %v5769 = vpack.c.b16 %v5385, %v5381
    %v5770 = vpack.c.b16 %v5386, %v5382
    %v5771 = vpack.c.b16 %v5391, %v5387
    %v5772 = vpack.c.b16 %v5392, %v5388
    %v5773 = vpack.c.b16 %v5393, %v5389
    %v5774 = vpack.c.b16 %v5394, %v5390
    %v5775 = vpack.c.b16 %v5399, %v5395
    %v5776 = vpack.c.b16 %v5400, %v5396
    %v5777 = vpack.c.b16 %v5401, %v5397
    %v5778 = vpack.c.b16 %v5402, %v5398
    %v5779 = vpack.c.b16 %v5407, %v5403
    %v5780 = vpack.c.b16 %v5408, %v5404
    %v5781 = vpack.c.b16 %v5409, %v5405
    %v5782 = vpack.c.b16 %v5410, %v5406
    %v5783 = vpack.c.b16 %v5415, %v5411
    %v5784 = vpack.c.b16 %v5416, %v5412
    %v5785 = vpack.c.b16 %v5417, %v5413
    %v5786 = vpack.c.b16 %v5418, %v5414
    %v5787 = vpack.c.b16 %v5423, %v5419
    %v5788 = vpack.c.b16 %v5424, %v5420
    %v5789 = vpack.c.b16 %v5425, %v5421
    %v5790 = vpack.c.b16 %v5426, %v5422
    %v5791 = vpack.c.b16 %v5431, %v5427
    %v5792 = vpack.c.b16 %v5432, %v5428
    %v5793 = vpack.c.b16 %v5433, %v5429
    %v5794 = vpack.c.b16 %v5434, %v5430
    %v5795 = vpack.c.b16 %v5439, %v5435
    %v5796 = vpack.c.b16 %v5440, %v5436
    %v5797 = vpack.c.b16 %v5441, %v5437
    %v5798 = vpack.c.b16 %v5442, %v5438
    %v5799 = vpack.c.b16 %v5447, %v5443
    %v5800 = vpack.c.b16 %v5448, %v5444
    %v5801 = vpack.c.b16 %v5449, %v5445
    %v5802 = vpack.c.b16 %v5450, %v5446
    %v5803 = vpack.c.b16 %v5455, %v5451
    %v5804 = vpack.c.b16 %v5456, %v5452
    %v5805 = vpack.c.b16 %v5457, %v5453
    %v5806 = vpack.c.b16 %v5458, %v5454
    %v5807 = vpack.c.b16 %v5463, %v5459
    %v5808 = vpack.c.b16 %v5464, %v5460
    %v5809 = vpack.c.b16 %v5465, %v5461
    %v5810 = vpack.c.b16 %v5466, %v5462
    %v5811 = vpack.c.b16 %v5471, %v5467
    %v5812 = vpack.c.b16 %v5472, %v5468
    %v5813 = vpack.c.b16 %v5473, %v5469
    %v5814 = vpack.c.b16 %v5474, %v5470
    %v5815 = vpack.c.b16 %v5479, %v5475
    %v5816 = vpack.c.b16 %v5480, %v5476
    %v5817 = vpack.c.b16 %v5481, %v5477
    %v5818 = vpack.c.b16 %v5482, %v5478
    %v5819 = vpack.c.b16 %v5487, %v5483
    %v5820 = vpack.c.b16 %v5488, %v5484
    %v5821 = vpack.c.b16 %v5489, %v5485
    %v5822 = vpack.c.b16 %v5490, %v5486
    %v5823 = vpack.c.b16 %v5495, %v5491
    %v5824 = vpack.c.b16 %v5496, %v5492
    %v5825 = vpack.c.b16 %v5497, %v5493
    %v5826 = vpack.c.b16 %v5498, %v5494
    %v5827 = vpack.c.b16 %v5503, %v5499
    %v5828 = vpack.c.b16 %v5504, %v5500
    %v5829 = vpack.c.b16 %v5505, %v5501
    %v5830 = vpack.c.b16 %v5506, %v5502
    %v5831 = vpack.c.b16 %v5511, %v5507
    %v5832 = vpack.c.b16 %v5512, %v5508
    %v5833 = vpack.c.b16 %v5513, %v5509
    %v5834 = vpack.c.b16 %v5514, %v5510
    %v5835 = vpack.c.b16 %v5519, %v5515
    %v5836 = vpack.c.b16 %v5520, %v5516
    %v5837 = vpack.c.b16 %v5521, %v5517
    %v5838 = vpack.c.b16 %v5522, %v5518
    %v5839 = vpack.c.b16 %v5527, %v5523
    %v5840 = vpack.c.b16 %v5528, %v5524
    %v5841 = vpack.c.b16 %v5529, %v5525
    %v5842 = vpack.c.b16 %v5530, %v5526
    %v5843 = vpack.c.b16 %v5535, %v5531
    %v5844 = vpack.c.b16 %v5536, %v5532
    %v5845 = vpack.c.b16 %v5537, %v5533
    %v5846 = vpack.c.b16 %v5538, %v5534
    %v5847 = vpack.c.b16 %v5543, %v5539
    %v5848 = vpack.c.b16 %v5544, %v5540
    %v5849 = vpack.c.b16 %v5545, %v5541
    %v5850 = vpack.c.b16 %v5546, %v5542
    %v5851 = vpack.c.b16 %v5551, %v5547
    %v5852 = vpack.c.b16 %v5552, %v5548
    %v5853 = vpack.c.b16 %v5553, %v5549
    %v5854 = vpack.c.b16 %v5554, %v5550
    %v5855 = vpack.c.b16 %v5559, %v5555
    %v5856 = vpack.c.b16 %v5560, %v5556
    %v5857 = vpack.c.b16 %v5561, %v5557
    %v5858 = vpack.c.b16 %v5562, %v5558
    %v5859 = vpack.c.b16 %v5567, %v5563
    %v5860 = vpack.c.b16 %v5568, %v5564
    %v5861 = vpack.c.b16 %v5569, %v5565
    %v5862 = vpack.c.b16 %v5570, %v5566
    %v5863 = vpack.c.b16 %v5575, %v5571
    %v5864 = vpack.c.b16 %v5576, %v5572
    %v5865 = vpack.c.b16 %v5577, %v5573
    %v5866 = vpack.c.b16 %v5578, %v5574
    %v5867 = vpack.c.b16 %v5583, %v5579
    %v5868 = vpack.c.b16 %v5584, %v5580
    %v5869 = vpack.c.b16 %v5585, %v5581
    %v5870 = vpack.c.b16 %v5586, %v5582
    %v5871 = vpack.c.b16 %v5591, %v5587
    %v5872 = vpack.c.b16 %v5592, %v5588
    %v5873 = vpack.c.b16 %v5593, %v5589
    %v5874 = vpack.c.b16 %v5594, %v5590
    %v5875 = vpack.c.b16 %v5599, %v5595
    %v5876 = vpack.c.b16 %v5600, %v5596
    %v5877 = vpack.c.b16 %v5601, %v5597
    %v5878 = vpack.c.b16 %v5602, %v5598
    %v5879 = vpack.c.b16 %v5607, %v5603
    %v5880 = vpack.c.b16 %v5608, %v5604
    %v5881 = vpack.c.b16 %v5609, %v5605
    %v5882 = vpack.c.b16 %v5610, %v5606
    %v5883 = vpack.c.b16 %v5615, %v5611
    %v5884 = vpack.c.b16 %v5616, %v5612
    %v5885 = vpack.c.b16 %v5617, %v5613
    %v5886 = vpack.c.b16 %v5618, %v5614
    %v5887 = vpack.c.b16 %v5623, %v5619
    %v5888 = vpack.c.b16 %v5624, %v5620
    %v5889 = vpack.c.b16 %v5625, %v5621
    %v5890 = vpack.c.b16 %v5626, %v5622
    %v5891 = vpack.c.b16 %v5631, %v5627
    %v5892 = vpack.c.b16 %v5632, %v5628
    %v5893 = vpack.c.b16 %v5633, %v5629
    %v5894 = vpack.c.b16 %v5634, %v5630
    %v5895 = vpack.c.b16 %v5639, %v5635
    %v5896 = vpack.c.b16 %v5640, %v5636
    %v5897 = vpack.c.b16 %v5641, %v5637
    %v5898 = vpack.c.b16 %v5642, %v5638
    %6155 = vmatpush.bf16.msra.mxu0 %v5671
    %6156 = vmatpush.bf16.msra.mxu0 %v5667
    %6157 = vmatpush.bf16.msra.mxu0 %v5663
    %6158 = vmatpush.bf16.msra.mxu0 %v5659
    %6159 = vmatpush.bf16.msra.mxu0 %v5655
    %6160 = vmatpush.bf16.msra.mxu0 %v5651
    %6161 = vmatpush.bf16.msra.mxu0 %v5647
    %6162 = vmatpush.bf16.msra.mxu0 %v5643
    %6163 = vmatmul.bf16.gmra.mxu0 %v4601
    %v6164 = vpop.f32.mrf.mxu0
    %v6165 = vadd.f32 %v4867, %v6164
    %v6166 = vpop.f32.mrf.mxu0
    %6167 = vdwg.mxu0
    %6168 = vmatpush.bf16.msra.mxu0 %v5703
    %6169 = vmatpush.bf16.msra.mxu0 %v5699
    %6170 = vmatpush.bf16.msra.mxu0 %v5695
    %6171 = vmatpush.bf16.msra.mxu0 %v5691
    %6172 = vmatpush.bf16.msra.mxu0 %v5687
    %6173 = vmatpush.bf16.msra.mxu0 %v5683
    %6174 = vmatpush.bf16.msra.mxu0 %v5679
    %6175 = vmatpush.bf16.msra.mxu0 %v5675
    %6176 = vmatmul.bf16.gmra.mxu0 %v4602
    %v6177 = vpop.f32.mrf.mxu0
    %v6178 = vadd.f32 %v6165, %v6177
    %v6179 = vpop.f32.mrf.mxu0
    %6180 = vdwg.mxu0
    %6181 = vmatpush.bf16.msra.mxu0 %v5735
    %6182 = vmatpush.bf16.msra.mxu0 %v5731
    %6183 = vmatpush.bf16.msra.mxu0 %v5727
    %6184 = vmatpush.bf16.msra.mxu0 %v5723
    %6185 = vmatpush.bf16.msra.mxu0 %v5719
    %6186 = vmatpush.bf16.msra.mxu0 %v5715
    %6187 = vmatpush.bf16.msra.mxu0 %v5711
    %6188 = vmatpush.bf16.msra.mxu0 %v5707
    %6189 = vmatmul.bf16.gmra.mxu0 %v4603
    %v6190 = vpop.f32.mrf.mxu0
    %v6191 = vadd.f32 %v6178, %v6190
    %v6192 = vpop.f32.mrf.mxu0
    %6193 = vdwg.mxu0
    %6194 = vmatpush.bf16.msra.mxu0 %v5767
    %6195 = vmatpush.bf16.msra.mxu0 %v5763
    %6196 = vmatpush.bf16.msra.mxu0 %v5759
    %6197 = vmatpush.bf16.msra.mxu0 %v5755
    %6198 = vmatpush.bf16.msra.mxu0 %v5751
    %6199 = vmatpush.bf16.msra.mxu0 %v5747
    %6200 = vmatpush.bf16.msra.mxu0 %v5743
    %6201 = vmatpush.bf16.msra.mxu0 %v5739
    %6202 = vmatmul.bf16.gmra.mxu0 %v4604
    %v6203 = vpop.f32.mrf.mxu0
    %v6204 = vadd.f32 %v6191, %v6203
    %v6205 = vpop.f32.mrf.mxu0
    %6206 = vdwg.mxu0
    %6207 = vmatpush.bf16.msra.mxu0 %v5799
    %6208 = vmatpush.bf16.msra.mxu0 %v5795
    %6209 = vmatpush.bf16.msra.mxu0 %v5791
    %6210 = vmatpush.bf16.msra.mxu0 %v5787
    %6211 = vmatpush.bf16.msra.mxu0 %v5783
    %6212 = vmatpush.bf16.msra.mxu0 %v5779
    %6213 = vmatpush.bf16.msra.mxu0 %v5775
    %6214 = vmatpush.bf16.msra.mxu0 %v5771
    %6215 = vmatmul.bf16.gmra.mxu0 %v4605
    %v6216 = vpop.f32.mrf.mxu0
    %v6217 = vadd.f32 %v6204, %v6216
    %v6218 = vpop.f32.mrf.mxu0
    %6219 = vdwg.mxu0
    %6220 = vmatpush.bf16.msra.mxu0 %v5831
    %6221 = vmatpush.bf16.msra.mxu0 %v5827
    %6222 = vmatpush.bf16.msra.mxu0 %v5823
    %6223 = vmatpush.bf16.msra.mxu0 %v5819
    %6224 = vmatpush.bf16.msra.mxu0 %v5815
    %6225 = vmatpush.bf16.msra.mxu0 %v5811
    %6226 = vmatpush.bf16.msra.mxu0 %v5807
    %6227 = vmatpush.bf16.msra.mxu0 %v5803
    %6228 = vmatmul.bf16.gmra.mxu0 %v4606
    %v6229 = vpop.f32.mrf.mxu0
    %v6230 = vadd.f32 %v6217, %v6229
    %v6231 = vpop.f32.mrf.mxu0
    %6232 = vdwg.mxu0
    %6233 = vmatpush.bf16.msra.mxu0 %v5863
    %6234 = vmatpush.bf16.msra.mxu0 %v5859
    %6235 = vmatpush.bf16.msra.mxu0 %v5855
    %6236 = vmatpush.bf16.msra.mxu0 %v5851
    %6237 = vmatpush.bf16.msra.mxu0 %v5847
    %6238 = vmatpush.bf16.msra.mxu0 %v5843
    %6239 = vmatpush.bf16.msra.mxu0 %v5839
    %6240 = vmatpush.bf16.msra.mxu0 %v5835
    %6241 = vmatmul.bf16.gmra.mxu0 %v4607
    %v6242 = vpop.f32.mrf.mxu0
    %v6243 = vadd.f32 %v6230, %v6242
    %v6244 = vpop.f32.mrf.mxu0
    %6245 = vdwg.mxu0
    %6246 = vmatpush.bf16.msra.mxu0 %v5895
    %6247 = vmatpush.bf16.msra.mxu0 %v5891
    %6248 = vmatpush.bf16.msra.mxu0 %v5887
    %6249 = vmatpush.bf16.msra.mxu0 %v5883
    %6250 = vmatpush.bf16.msra.mxu0 %v5879
    %6251 = vmatpush.bf16.msra.mxu0 %v5875
    %6252 = vmatpush.bf16.msra.mxu0 %v5871
    %6253 = vmatpush.bf16.msra.mxu0 %v5867
    %6254 = vmatmul.bf16.gmra.mxu0 %v4608
    %v6255 = vpop.f32.mrf.mxu0
    %v6256 = vadd.f32 %v6243, %v6255
    %v6257 = vpop.f32.mrf.mxu0
    %6258 = vdwg.mxu0
    %6259 = vmatpush.bf16.msra.mxu0 %v5672
    %6260 = vmatpush.bf16.msra.mxu0 %v5668
    %6261 = vmatpush.bf16.msra.mxu0 %v5664
    %6262 = vmatpush.bf16.msra.mxu0 %v5660
    %6263 = vmatpush.bf16.msra.mxu0 %v5656
    %6264 = vmatpush.bf16.msra.mxu0 %v5652
    %6265 = vmatpush.bf16.msra.mxu0 %v5648
    %6266 = vmatpush.bf16.msra.mxu0 %v5644
    %6267 = vmatmul.bf16.gmra.mxu0 %v4601
    %v6268 = vpop.f32.mrf.mxu0
    %v6269 = vadd.f32 %v4868, %v6268
    %v6270 = vpop.f32.mrf.mxu0
    %6271 = vdwg.mxu0
    %6272 = vmatpush.bf16.msra.mxu0 %v5704
    %6273 = vmatpush.bf16.msra.mxu0 %v5700
    %6274 = vmatpush.bf16.msra.mxu0 %v5696
    %6275 = vmatpush.bf16.msra.mxu0 %v5692
    %6276 = vmatpush.bf16.msra.mxu0 %v5688
    %6277 = vmatpush.bf16.msra.mxu0 %v5684
    %6278 = vmatpush.bf16.msra.mxu0 %v5680
    %6279 = vmatpush.bf16.msra.mxu0 %v5676
    %6280 = vmatmul.bf16.gmra.mxu0 %v4602
    %v6281 = vpop.f32.mrf.mxu0
    %v6282 = vadd.f32 %v6269, %v6281
    %v6283 = vpop.f32.mrf.mxu0
    %6284 = vdwg.mxu0
    %6285 = vmatpush.bf16.msra.mxu0 %v5736
    %6286 = vmatpush.bf16.msra.mxu0 %v5732
    %6287 = vmatpush.bf16.msra.mxu0 %v5728
    %6288 = vmatpush.bf16.msra.mxu0 %v5724
    %6289 = vmatpush.bf16.msra.mxu0 %v5720
    %6290 = vmatpush.bf16.msra.mxu0 %v5716
    %6291 = vmatpush.bf16.msra.mxu0 %v5712
    %6292 = vmatpush.bf16.msra.mxu0 %v5708
    %6293 = vmatmul.bf16.gmra.mxu0 %v4603
    %v6294 = vpop.f32.mrf.mxu0
    %v6295 = vadd.f32 %v6282, %v6294
    %v6296 = vpop.f32.mrf.mxu0
    %6297 = vdwg.mxu0
    %6298 = vmatpush.bf16.msra.mxu0 %v5768
    %6299 = vmatpush.bf16.msra.mxu0 %v5764
    %6300 = vmatpush.bf16.msra.mxu0 %v5760
    %6301 = vmatpush.bf16.msra.mxu0 %v5756
    %6302 = vmatpush.bf16.msra.mxu0 %v5752
    %6303 = vmatpush.bf16.msra.mxu0 %v5748
    %6304 = vmatpush.bf16.msra.mxu0 %v5744
    %6305 = vmatpush.bf16.msra.mxu0 %v5740
    %6306 = vmatmul.bf16.gmra.mxu0 %v4604
    %v6307 = vpop.f32.mrf.mxu0
    %v6308 = vadd.f32 %v6295, %v6307
    %v6309 = vpop.f32.mrf.mxu0
    %6310 = vdwg.mxu0
    %6311 = vmatpush.bf16.msra.mxu0 %v5800
    %6312 = vmatpush.bf16.msra.mxu0 %v5796
    %6313 = vmatpush.bf16.msra.mxu0 %v5792
    %6314 = vmatpush.bf16.msra.mxu0 %v5788
    %6315 = vmatpush.bf16.msra.mxu0 %v5784
    %6316 = vmatpush.bf16.msra.mxu0 %v5780
    %6317 = vmatpush.bf16.msra.mxu0 %v5776
    %6318 = vmatpush.bf16.msra.mxu0 %v5772
    %6319 = vmatmul.bf16.gmra.mxu0 %v4605
    %v6320 = vpop.f32.mrf.mxu0
    %v6321 = vadd.f32 %v6308, %v6320
    %v6322 = vpop.f32.mrf.mxu0
    %6323 = vdwg.mxu0
    %6324 = vmatpush.bf16.msra.mxu0 %v5832
    %6325 = vmatpush.bf16.msra.mxu0 %v5828
    %6326 = vmatpush.bf16.msra.mxu0 %v5824
    %6327 = vmatpush.bf16.msra.mxu0 %v5820
    %6328 = vmatpush.bf16.msra.mxu0 %v5816
    %6329 = vmatpush.bf16.msra.mxu0 %v5812
    %6330 = vmatpush.bf16.msra.mxu0 %v5808
    %6331 = vmatpush.bf16.msra.mxu0 %v5804
    %6332 = vmatmul.bf16.gmra.mxu0 %v4606
    %v6333 = vpop.f32.mrf.mxu0
    %v6334 = vadd.f32 %v6321, %v6333
    %v6335 = vpop.f32.mrf.mxu0
    %6336 = vdwg.mxu0
    %6337 = vmatpush.bf16.msra.mxu0 %v5864
    %6338 = vmatpush.bf16.msra.mxu0 %v5860
    %6339 = vmatpush.bf16.msra.mxu0 %v5856
    %6340 = vmatpush.bf16.msra.mxu0 %v5852
    %6341 = vmatpush.bf16.msra.mxu0 %v5848
    %6342 = vmatpush.bf16.msra.mxu0 %v5844
    %6343 = vmatpush.bf16.msra.mxu0 %v5840
    %6344 = vmatpush.bf16.msra.mxu0 %v5836
    %6345 = vmatmul.bf16.gmra.mxu0 %v4607
    %v6346 = vpop.f32.mrf.mxu0
    %v6347 = vadd.f32 %v6334, %v6346
    %v6348 = vpop.f32.mrf.mxu0
    %6349 = vdwg.mxu0
    %6350 = vmatpush.bf16.msra.mxu0 %v5896
    %6351 = vmatpush.bf16.msra.mxu0 %v5892
    %6352 = vmatpush.bf16.msra.mxu0 %v5888
    %6353 = vmatpush.bf16.msra.mxu0 %v5884
    %6354 = vmatpush.bf16.msra.mxu0 %v5880
    %6355 = vmatpush.bf16.msra.mxu0 %v5876
    %6356 = vmatpush.bf16.msra.mxu0 %v5872
    %6357 = vmatpush.bf16.msra.mxu0 %v5868
    %6358 = vmatmul.bf16.gmra.mxu0 %v4608
    %v6359 = vpop.f32.mrf.mxu0
    %v6360 = vadd.f32 %v6347, %v6359
    %v6361 = vpop.f32.mrf.mxu0
    %6362 = vdwg.mxu0
    %6363 = vmatpush.bf16.msra.mxu0 %v5673
    %6364 = vmatpush.bf16.msra.mxu0 %v5669
    %6365 = vmatpush.bf16.msra.mxu0 %v5665
    %6366 = vmatpush.bf16.msra.mxu0 %v5661
    %6367 = vmatpush.bf16.msra.mxu0 %v5657
    %6368 = vmatpush.bf16.msra.mxu0 %v5653
    %6369 = vmatpush.bf16.msra.mxu0 %v5649
    %6370 = vmatpush.bf16.msra.mxu0 %v5645
    %6371 = vmatmul.bf16.gmra.mxu0 %v4601
    %v6372 = vpop.f32.mrf.mxu0
    %v6373 = vadd.f32 %v4869, %v6372
    %v6374 = vpop.f32.mrf.mxu0
    %6375 = vdwg.mxu0
    %6376 = vmatpush.bf16.msra.mxu0 %v5705
    %6377 = vmatpush.bf16.msra.mxu0 %v5701
    %6378 = vmatpush.bf16.msra.mxu0 %v5697
    %6379 = vmatpush.bf16.msra.mxu0 %v5693
    %6380 = vmatpush.bf16.msra.mxu0 %v5689
    %6381 = vmatpush.bf16.msra.mxu0 %v5685
    %6382 = vmatpush.bf16.msra.mxu0 %v5681
    %6383 = vmatpush.bf16.msra.mxu0 %v5677
    %6384 = vmatmul.bf16.gmra.mxu0 %v4602
    %v6385 = vpop.f32.mrf.mxu0
    %v6386 = vadd.f32 %v6373, %v6385
    %v6387 = vpop.f32.mrf.mxu0
    %6388 = vdwg.mxu0
    %6389 = vmatpush.bf16.msra.mxu0 %v5737
    %6390 = vmatpush.bf16.msra.mxu0 %v5733
    %6391 = vmatpush.bf16.msra.mxu0 %v5729
    %6392 = vmatpush.bf16.msra.mxu0 %v5725
    %6393 = vmatpush.bf16.msra.mxu0 %v5721
    %6394 = vmatpush.bf16.msra.mxu0 %v5717
    %6395 = vmatpush.bf16.msra.mxu0 %v5713
    %6396 = vmatpush.bf16.msra.mxu0 %v5709
    %6397 = vmatmul.bf16.gmra.mxu0 %v4603
    %v6398 = vpop.f32.mrf.mxu0
    %v6399 = vadd.f32 %v6386, %v6398
    %v6400 = vpop.f32.mrf.mxu0
    %6401 = vdwg.mxu0
    %6402 = vmatpush.bf16.msra.mxu0 %v5769
    %6403 = vmatpush.bf16.msra.mxu0 %v5765
    %6404 = vmatpush.bf16.msra.mxu0 %v5761
    %6405 = vmatpush.bf16.msra.mxu0 %v5757
    %6406 = vmatpush.bf16.msra.mxu0 %v5753
    %6407 = vmatpush.bf16.msra.mxu0 %v5749
    %6408 = vmatpush.bf16.msra.mxu0 %v5745
    %6409 = vmatpush.bf16.msra.mxu0 %v5741
    %6410 = vmatmul.bf16.gmra.mxu0 %v4604
    %v6411 = vpop.f32.mrf.mxu0
    %v6412 = vadd.f32 %v6399, %v6411
    %v6413 = vpop.f32.mrf.mxu0
    %6414 = vdwg.mxu0
    %6415 = vmatpush.bf16.msra.mxu0 %v5801
    %6416 = vmatpush.bf16.msra.mxu0 %v5797
    %6417 = vmatpush.bf16.msra.mxu0 %v5793
    %6418 = vmatpush.bf16.msra.mxu0 %v5789
    %6419 = vmatpush.bf16.msra.mxu0 %v5785
    %6420 = vmatpush.bf16.msra.mxu0 %v5781
    %6421 = vmatpush.bf16.msra.mxu0 %v5777
    %6422 = vmatpush.bf16.msra.mxu0 %v5773
    %6423 = vmatmul.bf16.gmra.mxu0 %v4605
    %v6424 = vpop.f32.mrf.mxu0
    %v6425 = vadd.f32 %v6412, %v6424
    %v6426 = vpop.f32.mrf.mxu0
    %6427 = vdwg.mxu0
    %6428 = vmatpush.bf16.msra.mxu0 %v5833
    %6429 = vmatpush.bf16.msra.mxu0 %v5829
    %6430 = vmatpush.bf16.msra.mxu0 %v5825
    %6431 = vmatpush.bf16.msra.mxu0 %v5821
    %6432 = vmatpush.bf16.msra.mxu0 %v5817
    %6433 = vmatpush.bf16.msra.mxu0 %v5813
    %6434 = vmatpush.bf16.msra.mxu0 %v5809
    %6435 = vmatpush.bf16.msra.mxu0 %v5805
    %6436 = vmatmul.bf16.gmra.mxu0 %v4606
    %v6437 = vpop.f32.mrf.mxu0
    %v6438 = vadd.f32 %v6425, %v6437
    %v6439 = vpop.f32.mrf.mxu0
    %6440 = vdwg.mxu0
    %6441 = vmatpush.bf16.msra.mxu0 %v5865
    %6442 = vmatpush.bf16.msra.mxu0 %v5861
    %6443 = vmatpush.bf16.msra.mxu0 %v5857
    %6444 = vmatpush.bf16.msra.mxu0 %v5853
    %6445 = vmatpush.bf16.msra.mxu0 %v5849
    %6446 = vmatpush.bf16.msra.mxu0 %v5845
    %6447 = vmatpush.bf16.msra.mxu0 %v5841
    %6448 = vmatpush.bf16.msra.mxu0 %v5837
    %6449 = vmatmul.bf16.gmra.mxu0 %v4607
    %v6450 = vpop.f32.mrf.mxu0
    %v6451 = vadd.f32 %v6438, %v6450
    %v6452 = vpop.f32.mrf.mxu0
    %6453 = vdwg.mxu0
    %6454 = vmatpush.bf16.msra.mxu0 %v5897
    %6455 = vmatpush.bf16.msra.mxu0 %v5893
    %6456 = vmatpush.bf16.msra.mxu0 %v5889
    %6457 = vmatpush.bf16.msra.mxu0 %v5885
    %6458 = vmatpush.bf16.msra.mxu0 %v5881
    %6459 = vmatpush.bf16.msra.mxu0 %v5877
    %6460 = vmatpush.bf16.msra.mxu0 %v5873
    %6461 = vmatpush.bf16.msra.mxu0 %v5869
    %6462 = vmatmul.bf16.gmra.mxu0 %v4608
    %v6463 = vpop.f32.mrf.mxu0
    %v6464 = vadd.f32 %v6451, %v6463
    %v6465 = vpop.f32.mrf.mxu0
    %6466 = vdwg.mxu0
    %6467 = vmatpush.bf16.msra.mxu0 %v5674
    %6468 = vmatpush.bf16.msra.mxu0 %v5670
    %6469 = vmatpush.bf16.msra.mxu0 %v5666
    %6470 = vmatpush.bf16.msra.mxu0 %v5662
    %6471 = vmatpush.bf16.msra.mxu0 %v5658
    %6472 = vmatpush.bf16.msra.mxu0 %v5654
    %6473 = vmatpush.bf16.msra.mxu0 %v5650
    %6474 = vmatpush.bf16.msra.mxu0 %v5646
    %6475 = vmatmul.bf16.gmra.mxu0 %v4601
    %v6476 = vpop.f32.mrf.mxu0
    %v6477 = vadd.f32 %v4870, %v6476
    %v6478 = vpop.f32.mrf.mxu0
    %6479 = vdwg.mxu0
    %6480 = vmatpush.bf16.msra.mxu0 %v5706
    %6481 = vmatpush.bf16.msra.mxu0 %v5702
    %6482 = vmatpush.bf16.msra.mxu0 %v5698
    %6483 = vmatpush.bf16.msra.mxu0 %v5694
    %6484 = vmatpush.bf16.msra.mxu0 %v5690
    %6485 = vmatpush.bf16.msra.mxu0 %v5686
    %6486 = vmatpush.bf16.msra.mxu0 %v5682
    %6487 = vmatpush.bf16.msra.mxu0 %v5678
    %6488 = vmatmul.bf16.gmra.mxu0 %v4602
    %v6489 = vpop.f32.mrf.mxu0
    %v6490 = vadd.f32 %v6477, %v6489
    %v6491 = vpop.f32.mrf.mxu0
    %6492 = vdwg.mxu0
    %6493 = vmatpush.bf16.msra.mxu0 %v5738
    %6494 = vmatpush.bf16.msra.mxu0 %v5734
    %6495 = vmatpush.bf16.msra.mxu0 %v5730
    %6496 = vmatpush.bf16.msra.mxu0 %v5726
    %6497 = vmatpush.bf16.msra.mxu0 %v5722
    %6498 = vmatpush.bf16.msra.mxu0 %v5718
    %6499 = vmatpush.bf16.msra.mxu0 %v5714
    %6500 = vmatpush.bf16.msra.mxu0 %v5710
    %6501 = vmatmul.bf16.gmra.mxu0 %v4603
    %v6502 = vpop.f32.mrf.mxu0
    %v6503 = vadd.f32 %v6490, %v6502
    %v6504 = vpop.f32.mrf.mxu0
    %6505 = vdwg.mxu0
    %6506 = vmatpush.bf16.msra.mxu0 %v5770
    %6507 = vmatpush.bf16.msra.mxu0 %v5766
    %6508 = vmatpush.bf16.msra.mxu0 %v5762
    %6509 = vmatpush.bf16.msra.mxu0 %v5758
    %6510 = vmatpush.bf16.msra.mxu0 %v5754
    %6511 = vmatpush.bf16.msra.mxu0 %v5750
    %6512 = vmatpush.bf16.msra.mxu0 %v5746
    %6513 = vmatpush.bf16.msra.mxu0 %v5742
    %6514 = vmatmul.bf16.gmra.mxu0 %v4604
    %v6515 = vpop.f32.mrf.mxu0
    %v6516 = vadd.f32 %v6503, %v6515
    %v6517 = vpop.f32.mrf.mxu0
    %6518 = vdwg.mxu0
    %6519 = vmatpush.bf16.msra.mxu0 %v5802
    %6520 = vmatpush.bf16.msra.mxu0 %v5798
    %6521 = vmatpush.bf16.msra.mxu0 %v5794
    %6522 = vmatpush.bf16.msra.mxu0 %v5790
    %6523 = vmatpush.bf16.msra.mxu0 %v5786
    %6524 = vmatpush.bf16.msra.mxu0 %v5782
    %6525 = vmatpush.bf16.msra.mxu0 %v5778
    %6526 = vmatpush.bf16.msra.mxu0 %v5774
    %6527 = vmatmul.bf16.gmra.mxu0 %v4605
    %v6528 = vpop.f32.mrf.mxu0
    %v6529 = vadd.f32 %v6516, %v6528
    %v6530 = vpop.f32.mrf.mxu0
    %6531 = vdwg.mxu0
    %6532 = vmatpush.bf16.msra.mxu0 %v5834
    %6533 = vmatpush.bf16.msra.mxu0 %v5830
    %6534 = vmatpush.bf16.msra.mxu0 %v5826
    %6535 = vmatpush.bf16.msra.mxu0 %v5822
    %6536 = vmatpush.bf16.msra.mxu0 %v5818
    %6537 = vmatpush.bf16.msra.mxu0 %v5814
    %6538 = vmatpush.bf16.msra.mxu0 %v5810
    %6539 = vmatpush.bf16.msra.mxu0 %v5806
    %6540 = vmatmul.bf16.gmra.mxu0 %v4606
    %v6541 = vpop.f32.mrf.mxu0
    %v6542 = vadd.f32 %v6529, %v6541
    %v6543 = vpop.f32.mrf.mxu0
    %6544 = vdwg.mxu0
    %6545 = vmatpush.bf16.msra.mxu0 %v5866
    %6546 = vmatpush.bf16.msra.mxu0 %v5862
    %6547 = vmatpush.bf16.msra.mxu0 %v5858
    %6548 = vmatpush.bf16.msra.mxu0 %v5854
    %6549 = vmatpush.bf16.msra.mxu0 %v5850
    %6550 = vmatpush.bf16.msra.mxu0 %v5846
    %6551 = vmatpush.bf16.msra.mxu0 %v5842
    %6552 = vmatpush.bf16.msra.mxu0 %v5838
    %6553 = vmatmul.bf16.gmra.mxu0 %v4607
    %v6554 = vpop.f32.mrf.mxu0
    %v6555 = vadd.f32 %v6542, %v6554
    %v6556 = vpop.f32.mrf.mxu0
    %6557 = vdwg.mxu0
    %6558 = vmatpush.bf16.msra.mxu0 %v5898
    %6559 = vmatpush.bf16.msra.mxu0 %v5894
    %6560 = vmatpush.bf16.msra.mxu0 %v5890
    %6561 = vmatpush.bf16.msra.mxu0 %v5886
    %6562 = vmatpush.bf16.msra.mxu0 %v5882
    %6563 = vmatpush.bf16.msra.mxu0 %v5878
    %6564 = vmatpush.bf16.msra.mxu0 %v5874
    %6565 = vmatpush.bf16.msra.mxu0 %v5870
    %6566 = vmatmul.bf16.gmra.mxu0 %v4608
    %v6567 = vpop.f32.mrf.mxu0
    %v6568 = vadd.f32 %v6555, %v6567
    %v6569 = vpop.f32.mrf.mxu0
    %6570 = vdwg.mxu0
    %v6571 = vmax.f32 %v6256, 0.0
    %v6572 = vmax.f32 %v6360, 0.0
    %v6573 = vmax.f32 %v6464, 0.0
    %v6574 = vmax.f32 %v6568, 0.0
    %v6575 = vpack.c.bf16 %v6571, %v6571
    %v6576 = vpack.c.bf16 %v6572, %v6572
    %v6577 = vpack.c.bf16 %v6573, %v6573
    %v6578 = vpack.c.bf16 %v6574, %v6574
    %v6579 = vld [vmem:[#allocation10] sm:$0xf]
    %v6580 = vld [vmem:[#allocation10 + $0x4] sm:$0xf]
    %v6581 = vld [vmem:[#allocation10 + $0x8] sm:$0xf]
    %v6582 = vld [vmem:[#allocation10 + $0xc] sm:$0xf]
    %v6583 = vld [vmem:[#allocation10 + $0x10] sm:$0xf]
    %v6584 = vld [vmem:[#allocation10 + $0x14] sm:$0xf]
    %v6585 = vld [vmem:[#allocation10 + $0x18] sm:$0xf]
    %v6586 = vld [vmem:[#allocation10 + $0x1c] sm:$0xf]
    %v6587 = vld [vmem:[#allocation10 + $0x20] sm:$0xf]
    %v6588 = vld [vmem:[#allocation10 + $0x24] sm:$0xf]
    %v6589 = vld [vmem:[#allocation10 + $0x28] sm:$0xf]
    %v6590 = vld [vmem:[#allocation10 + $0x2c] sm:$0xf]
    %v6591 = vld [vmem:[#allocation10 + $0x30] sm:$0xf]
    %v6592 = vld [vmem:[#allocation10 + $0x34] sm:$0xf]
    %v6593 = vld [vmem:[#allocation10 + $0x38] sm:$0xf]
    %v6594 = vld [vmem:[#allocation10 + $0x3c] sm:$0xf]
    %v6595 = vld [vmem:[#allocation10 + $0x40] sm:$0xf]
    %v6596 = vld [vmem:[#allocation10 + $0x44] sm:$0xf]
    %v6597 = vld [vmem:[#allocation10 + $0x48] sm:$0xf]
    %v6598 = vld [vmem:[#allocation10 + $0x4c] sm:$0xf]
    %v6599 = vld [vmem:[#allocation10 + $0x50] sm:$0xf]
    %v6600 = vld [vmem:[#allocation10 + $0x54] sm:$0xf]
    %v6601 = vld [vmem:[#allocation10 + $0x58] sm:$0xf]
    %v6602 = vld [vmem:[#allocation10 + $0x5c] sm:$0xf]
    %v6603 = vld [vmem:[#allocation10 + $0x60] sm:$0xf]
    %v6604 = vld [vmem:[#allocation10 + $0x64] sm:$0xf]
    %v6605 = vld [vmem:[#allocation10 + $0x68] sm:$0xf]
    %v6606 = vld [vmem:[#allocation10 + $0x6c] sm:$0xf]
    %v6607 = vld [vmem:[#allocation10 + $0x70] sm:$0xf]
    %v6608 = vld [vmem:[#allocation10 + $0x74] sm:$0xf]
    %v6609 = vld [vmem:[#allocation10 + $0x78] sm:$0xf]
    %v6610 = vld [vmem:[#allocation10 + $0x7c] sm:$0xf]
    %v6611 = vld [vmem:[#allocation10 + $0x80] sm:$0xf]
    %v6612 = vld [vmem:[#allocation10 + $0x84] sm:$0xf]
    %v6613 = vld [vmem:[#allocation10 + $0x88] sm:$0xf]
    %v6614 = vld [vmem:[#allocation10 + $0x8c] sm:$0xf]
    %v6615 = vld [vmem:[#allocation10 + $0x90] sm:$0xf]
    %v6616 = vld [vmem:[#allocation10 + $0x94] sm:$0xf]
    %v6617 = vld [vmem:[#allocation10 + $0x98] sm:$0xf]
    %v6618 = vld [vmem:[#allocation10 + $0x9c] sm:$0xf]
    %v6619 = vld [vmem:[#allocation10 + $0xa0] sm:$0xf]
    %v6620 = vld [vmem:[#allocation10 + $0xa4] sm:$0xf]
    %v6621 = vld [vmem:[#allocation10 + $0xa8] sm:$0xf]
    %v6622 = vld [vmem:[#allocation10 + $0xac] sm:$0xf]
    %v6623 = vld [vmem:[#allocation10 + $0xb0] sm:$0xf]
    %v6624 = vld [vmem:[#allocation10 + $0xb4] sm:$0xf]
    %v6625 = vld [vmem:[#allocation10 + $0xb8] sm:$0xf]
    %v6626 = vld [vmem:[#allocation10 + $0xbc] sm:$0xf]
    %v6627 = vld [vmem:[#allocation10 + $0xc0] sm:$0xf]
    %v6628 = vld [vmem:[#allocation10 + $0xc4] sm:$0xf]
    %v6629 = vld [vmem:[#allocation10 + $0xc8] sm:$0xf]
    %v6630 = vld [vmem:[#allocation10 + $0xcc] sm:$0xf]
    %v6631 = vld [vmem:[#allocation10 + $0xd0] sm:$0xf]
    %v6632 = vld [vmem:[#allocation10 + $0xd4] sm:$0xf]
    %v6633 = vld [vmem:[#allocation10 + $0xd8] sm:$0xf]
    %v6634 = vld [vmem:[#allocation10 + $0xdc] sm:$0xf]
    %v6635 = vld [vmem:[#allocation10 + $0xe0] sm:$0xf]
    %v6636 = vld [vmem:[#allocation10 + $0xe4] sm:$0xf]
    %v6637 = vld [vmem:[#allocation10 + $0xe8] sm:$0xf]
    %v6638 = vld [vmem:[#allocation10 + $0xec] sm:$0xf]
    %v6639 = vld [vmem:[#allocation10 + $0xf0] sm:$0xf]
    %v6640 = vld [vmem:[#allocation10 + $0xf4] sm:$0xf]
    %v6641 = vld [vmem:[#allocation10 + $0xf8] sm:$0xf]
    %v6642 = vld [vmem:[#allocation10 + $0xfc] sm:$0xf]
    %v6643 = vld [vmem:[%s10] sm:$0x1]
    %v6645 = vperm.slane %v6643, 0
    %v6711 = vunpack.c.l.b16 %v6579
    %v6712 = vunpack.c.l.b16 %v6580
    %v6713 = vunpack.c.l.b16 %v6581
    %v6714 = vunpack.c.l.b16 %v6582
    %v6715 = vunpack.c.l.b16 %v6583
    %v6716 = vunpack.c.l.b16 %v6584
    %v6717 = vunpack.c.l.b16 %v6585
    %v6718 = vunpack.c.l.b16 %v6586
    %v6719 = vunpack.c.l.b16 %v6587
    %v6720 = vunpack.c.l.b16 %v6588
    %v6721 = vunpack.c.l.b16 %v6589
    %v6722 = vunpack.c.l.b16 %v6590
    %v6723 = vunpack.c.l.b16 %v6591
    %v6724 = vunpack.c.l.b16 %v6592
    %v6725 = vunpack.c.l.b16 %v6593
    %v6726 = vunpack.c.l.b16 %v6594
    %v6727 = vunpack.c.l.b16 %v6595
    %v6728 = vunpack.c.l.b16 %v6596
    %v6729 = vunpack.c.l.b16 %v6597
    %v6730 = vunpack.c.l.b16 %v6598
    %v6731 = vunpack.c.l.b16 %v6599
    %v6732 = vunpack.c.l.b16 %v6600
    %v6733 = vunpack.c.l.b16 %v6601
    %v6734 = vunpack.c.l.b16 %v6602
    %v6735 = vunpack.c.l.b16 %v6603
    %v6736 = vunpack.c.l.b16 %v6604
    %v6737 = vunpack.c.l.b16 %v6605
    %v6738 = vunpack.c.l.b16 %v6606
    %v6739 = vunpack.c.l.b16 %v6607
    %v6740 = vunpack.c.l.b16 %v6608
    %v6741 = vunpack.c.l.b16 %v6609
    %v6742 = vunpack.c.l.b16 %v6610
    %v6743 = vunpack.c.l.b16 %v6611
    %v6744 = vunpack.c.l.b16 %v6612
    %v6745 = vunpack.c.l.b16 %v6613
    %v6746 = vunpack.c.l.b16 %v6614
    %v6747 = vunpack.c.l.b16 %v6615
    %v6748 = vunpack.c.l.b16 %v6616
    %v6749 = vunpack.c.l.b16 %v6617
    %v6750 = vunpack.c.l.b16 %v6618
    %v6751 = vunpack.c.l.b16 %v6619
    %v6752 = vunpack.c.l.b16 %v6620
    %v6753 = vunpack.c.l.b16 %v6621
    %v6754 = vunpack.c.l.b16 %v6622
    %v6755 = vunpack.c.l.b16 %v6623
    %v6756 = vunpack.c.l.b16 %v6624
    %v6757 = vunpack.c.l.b16 %v6625
    %v6758 = vunpack.c.l.b16 %v6626
    %v6759 = vunpack.c.l.b16 %v6627
    %v6760 = vunpack.c.l.b16 %v6628
    %v6761 = vunpack.c.l.b16 %v6629
    %v6762 = vunpack.c.l.b16 %v6630
    %v6763 = vunpack.c.l.b16 %v6631
    %v6764 = vunpack.c.l.b16 %v6632
    %v6765 = vunpack.c.l.b16 %v6633
    %v6766 = vunpack.c.l.b16 %v6634
    %v6767 = vunpack.c.l.b16 %v6635
    %v6768 = vunpack.c.l.b16 %v6636
    %v6769 = vunpack.c.l.b16 %v6637
    %v6770 = vunpack.c.l.b16 %v6638
    %v6771 = vunpack.c.l.b16 %v6639
    %v6772 = vunpack.c.l.b16 %v6640
    %v6773 = vunpack.c.l.b16 %v6641
    %v6774 = vunpack.c.l.b16 %v6642
    %v6775 = vpack.c.b16 %v6712, %v6711
    %v6776 = vpack.c.b16 %v6714, %v6713
    %v6777 = vpack.c.b16 %v6716, %v6715
    %v6778 = vpack.c.b16 %v6718, %v6717
    %v6779 = vpack.c.b16 %v6720, %v6719
    %v6780 = vpack.c.b16 %v6722, %v6721
    %v6781 = vpack.c.b16 %v6724, %v6723
    %v6782 = vpack.c.b16 %v6726, %v6725
    %v6783 = vpack.c.b16 %v6728, %v6727
    %v6784 = vpack.c.b16 %v6730, %v6729
    %v6785 = vpack.c.b16 %v6732, %v6731
    %v6786 = vpack.c.b16 %v6734, %v6733
    %v6787 = vpack.c.b16 %v6736, %v6735
    %v6788 = vpack.c.b16 %v6738, %v6737
    %v6789 = vpack.c.b16 %v6740, %v6739
    %v6790 = vpack.c.b16 %v6742, %v6741
    %v6791 = vpack.c.b16 %v6744, %v6743
    %v6792 = vpack.c.b16 %v6746, %v6745
    %v6793 = vpack.c.b16 %v6748, %v6747
    %v6794 = vpack.c.b16 %v6750, %v6749
    %v6795 = vpack.c.b16 %v6752, %v6751
    %v6796 = vpack.c.b16 %v6754, %v6753
    %v6797 = vpack.c.b16 %v6756, %v6755
    %v6798 = vpack.c.b16 %v6758, %v6757
    %v6799 = vpack.c.b16 %v6760, %v6759
    %v6800 = vpack.c.b16 %v6762, %v6761
    %v6801 = vpack.c.b16 %v6764, %v6763
    %v6802 = vpack.c.b16 %v6766, %v6765
    %v6803 = vpack.c.b16 %v6768, %v6767
    %v6804 = vpack.c.b16 %v6770, %v6769
    %v6805 = vpack.c.b16 %v6772, %v6771
    %v6806 = vpack.c.b16 %v6774, %v6773
    %6839 = vmatpush.bf16.msra.mxu0 %v6782
    %6840 = vmatpush.bf16.msra.mxu0 %v6781
    %6841 = vmatpush.bf16.msra.mxu0 %v6780
    %6842 = vmatpush.bf16.msra.mxu0 %v6779
    %6843 = vmatpush.bf16.msra.mxu0 %v6778
    %6844 = vmatpush.bf16.msra.mxu0 %v6777
    %6845 = vmatpush.bf16.msra.mxu0 %v6776
    %6846 = vmatpush.bf16.msra.mxu0 %v6775
    %6847 = vmatmul.bf16.gmra.mxu0 %v6575
    %v6848 = vpop.f32.mrf.mxu0
    %v6849 = vadd.f32 %v6645, %v6848
    %v6850 = vpop.f32.mrf.mxu0
    %6851 = vdwg.mxu0
    %6852 = vmatpush.bf16.msra.mxu0 %v6790
    %6853 = vmatpush.bf16.msra.mxu0 %v6789
    %6854 = vmatpush.bf16.msra.mxu0 %v6788
    %6855 = vmatpush.bf16.msra.mxu0 %v6787
    %6856 = vmatpush.bf16.msra.mxu0 %v6786
    %6857 = vmatpush.bf16.msra.mxu0 %v6785
    %6858 = vmatpush.bf16.msra.mxu0 %v6784
    %6859 = vmatpush.bf16.msra.mxu0 %v6783
    %6860 = vmatmul.bf16.gmra.mxu0 %v6576
    %v6861 = vpop.f32.mrf.mxu0
    %v6862 = vadd.f32 %v6849, %v6861
    %v6863 = vpop.f32.mrf.mxu0
    %6864 = vdwg.mxu0
    %6865 = vmatpush.bf16.msra.mxu0 %v6798
    %6866 = vmatpush.bf16.msra.mxu0 %v6797
    %6867 = vmatpush.bf16.msra.mxu0 %v6796
    %6868 = vmatpush.bf16.msra.mxu0 %v6795
    %6869 = vmatpush.bf16.msra.mxu0 %v6794
    %6870 = vmatpush.bf16.msra.mxu0 %v6793
    %6871 = vmatpush.bf16.msra.mxu0 %v6792
    %6872 = vmatpush.bf16.msra.mxu0 %v6791
    %6873 = vmatmul.bf16.gmra.mxu0 %v6577
    %v6874 = vpop.f32.mrf.mxu0
    %v6875 = vadd.f32 %v6862, %v6874
    %v6876 = vpop.f32.mrf.mxu0
    %6877 = vdwg.mxu0
    %6878 = vmatpush.bf16.msra.mxu0 %v6806
    %6879 = vmatpush.bf16.msra.mxu0 %v6805
    %6880 = vmatpush.bf16.msra.mxu0 %v6804
    %6881 = vmatpush.bf16.msra.mxu0 %v6803
    %6882 = vmatpush.bf16.msra.mxu0 %v6802
    %6883 = vmatpush.bf16.msra.mxu0 %v6801
    %6884 = vmatpush.bf16.msra.mxu0 %v6800
    %6885 = vmatpush.bf16.msra.mxu0 %v6799
    %6886 = vmatmul.bf16.gmra.mxu0 %v6578
    %v6887 = vpop.f32.mrf.mxu0
    %v6888 = vadd.f32 %v6875, %v6887
    %v6889 = vpop.f32.mrf.mxu0
    %6890 = vdwg.mxu0
    %6891 = vst [vmem:[%s11] sm:$0xff] %v6888
    // Predicated region
    $region70: #{_forward.1} parent=1 // pred_check
      _
    $region71: #{_forward.1} parent=1 // pred_check_branch
      %6893 = sbr.rel (0) target = $region73
    $region72: #{_forward.1} parent=1 // pred_region
      _
    $region73: #{_forward.1} parent=1 // pred_fallthru
      _
    // Predicated region
    $region74: #{_forward.1} parent=1 // pred_check
      _
    $region75: #{_forward.1} parent=1 // pred_check_branch
      %6895 = sbr.rel (0) target = $region77
    $region76: #{_forward.1} parent=1 // pred_region
      _
    $region77: #{_forward.1} parent=1 // pred_fallthru
      _
    %6896 = vsyncpa [#allocation3], 1
    %6897 = vsyncpa [#allocation5], 1
    %6898 = vsyncpa [#allocation8], 1
    %6899 = vsyncpa [#allocation11], 1

// kernel: _forward.1
$region0: #{_forward.1}
  #allocation0 [shape = 'u32[]', space=smem, size = 0x4, offset = 0x4, fixed_abs, tag = 'smem constant byte address 0x4 - core index']
  #allocation1 [shape = 'u32[72,128]{1,0:T(1,128)}', space=vmem, size = 0x9000, scoped, tag = 'internal scratch']
  %s0 = inlined_call_operand.vmem [shape: bf16[8,128], index: 0, kind: input, shape index: {}]
  %s1 = inlined_call_operand.hbm [shape: bf16[128,1024], index: 1, kind: input, shape index: {}]
  %s2 = inlined_call_operand.vmem [shape: f32[1,1024], index: 2, kind: input, shape index: {}]
  %s3 = inlined_call_operand.hbm [shape: bf16[1024,512], index: 3, kind: input, shape index: {}]
  %s4 = inlined_call_operand.vmem [shape: f32[1,512], index: 4, kind: input, shape index: {}]
  %s5 = inlined_call_operand.hbm [shape: bf16[512,1024], index: 5, kind: input, shape index: {}]
  %s6 = inlined_call_operand.hbm [shape: f32[1,1024], index: 6, kind: input, shape index: {}]
  %s7 = inlined_call_operand.hbm [shape: bf16[1024,512], index: 7, kind: input, shape index: {}]
  %s8 = inlined_call_operand.vmem [shape: f32[1,512], index: 8, kind: input, shape index: {}]
  %s9 = inlined_call_operand.hbm [shape: bf16[512,128], index: 9, kind: input, shape index: {}]
  %s10 = inlined_call_operand.vmem [shape: f32[1,128], index: 10, kind: input, shape index: {}]
  %s11 = inlined_call_operand.vmem [shape: f32[8,128], index: 11, kind: output, shape index: {}]
  %s12 = sld [smem:[#allocation0]]
  $region78: #{_forward.1} parent=0
    _
  %s14 = ssub.s32 1, %s12
  %s15 = scalar_select 0, %s14, %s12
  $region1: #{_forward.1} parent=0
    #allocation2 [shape = 'u8[262144]{0}', space=vmem, size = 0x40000, scoped, tag = 'input window, operand 1, single buffered']
    #allocation3 [shape = 's32[1]{0}', space=sflag, size = 0x4, scoped, tag = 'scoped memory for _forward.1']
    #allocation4 [shape = 'u8[1048576]{0}', space=vmem, size = 0x100000, scoped, tag = 'input window, operand 3, single buffered']
    #allocation5 [shape = 's32[1]{0}', space=sflag, size = 0x4, scoped, tag = 'scoped memory for _forward.1']
    #allocation6 [shape = 'u8[1048576]{0}', space=vmem, size = 0x100000, scoped, tag = 'input window, operand 5, single buffered']
    #allocation7 [shape = 'u8[4096]{0}', space=vmem, size = 0x1000, scoped, tag = 'input window, operand 6, single buffered']
    #allocation8 [shape = 's32[1]{0}', space=sflag, size = 0x4, scoped, tag = 'scoped memory for _forward.1']
    #allocation9 [shape = 'u8[1048576]{0}', space=vmem, size = 0x100000, scoped, tag = 'input window, operand 7, single buffered']
    #allocation10 [shape = 'u8[131072]{0}', space=vmem, size = 0x20000, scoped, tag = 'input window, operand 9, single buffered']
    #allocation11 [shape = 's32[1]{0}', space=sflag, size = 0x4, scoped, tag = 'scoped memory for _forward.1']
    %16 = vsyncpa [#allocation3], 0
    %17 = vsyncpa [#allocation5], 0
    %18 = vsyncpa [#allocation8], 0
    %19 = vsyncpa [#allocation11], 0
    // Predicated region
    $region2: #{_forward.1} parent=1 // pred_check
      _
    $region3: #{_forward.1} parent=1 // pred_check_branch
      %21 = sbr.rel (0) target = $region5
    $region4: #{_forward.1} parent=1 // pred_region
      _
    $region5: #{_forward.1} parent=1 // pred_fallthru
      _
    // Predicated region
    $region6: #{_forward.1} parent=1 // pred_check
      _
    $region7: #{_forward.1} parent=1 // pred_check_branch
      %23 = sbr.rel (0) target = $region9
    $region8: #{_forward.1} parent=1 // pred_region
      %25 = vsyncadd [#allocation3], 0
      %s26 = sshll.u32 %s1, 4
      %s27 = int_to_ptr.hbm [resolvable:$true] %s26
      %s28 = sshll.u32 [#allocation2], 4
      %s29 = int_to_ptr.vmem [resolvable:$true] %s28
      %34 = dma.hbm_to_vmem [thread:$0]  %s27, 8192, %s29, [#allocation3], 512, 512, 32
    $region9: #{_forward.1} parent=1 // pred_fallthru
      _
    // Predicated region
    $region10: #{_forward.1} parent=1 // pred_check
      _
    $region11: #{_forward.1} parent=1 // pred_check_branch
      %36 = sbr.rel (0) target = $region13
    $region12: #{_forward.1} parent=1 // pred_region
      _
    $region13: #{_forward.1} parent=1 // pred_fallthru
      _
    // Predicated region
    $region14: #{_forward.1} parent=1 // pred_check
      _
    $region15: #{_forward.1} parent=1 // pred_check_branch
      %38 = sbr.rel (0) target = $region17
    $region16: #{_forward.1} parent=1 // pred_region
      %40 = vsyncadd [#allocation5], 0
      %s41 = sshll.u32 %s3, 4
      %s42 = int_to_ptr.hbm [resolvable:$true] %s41
      %s43 = sshll.u32 [#allocation4], 4
      %s44 = int_to_ptr.vmem [resolvable:$true] %s43
      %49 = dma.hbm_to_vmem [thread:$0]  %s42, 32768, %s44, [#allocation5], 256, 256, 16
    $region17: #{_forward.1} parent=1 // pred_fallthru
      _
    // Predicated region
    $region18: #{_forward.1} parent=1 // pred_check
      _
    $region19: #{_forward.1} parent=1 // pred_check_branch
      %51 = sbr.rel (0) target = $region21
    $region20: #{_forward.1} parent=1 // pred_region
      _
    $region21: #{_forward.1} parent=1 // pred_fallthru
      _
    // Predicated region
    $region22: #{_forward.1} parent=1 // pred_check
      _
    $region23: #{_forward.1} parent=1 // pred_check_branch
      %53 = sbr.rel (0) target = $region25
    $region24: #{_forward.1} parent=1 // pred_region
      %55 = vsyncadd [#allocation5], 0
      %s56 = sshll.u32 %s5, 4
      %s57 = int_to_ptr.hbm [resolvable:$true] %s56
      %s58 = sshll.u32 [#allocation6], 4
      %s59 = int_to_ptr.vmem [resolvable:$true] %s58
      %64 = dma.hbm_to_vmem [thread:$0]  %s57, 32768, %s59, [#allocation5], 512, 512, 32
    $region25: #{_forward.1} parent=1 // pred_fallthru
      _
    // Predicated region
    $region26: #{_forward.1} parent=1 // pred_check
      _
    $region27: #{_forward.1} parent=1 // pred_check_branch
      %66 = sbr.rel (0) target = $region29
    $region28: #{_forward.1} parent=1 // pred_region
      %68 = vsyncadd [#allocation8], 0
      %s70 = sshll.u32 %s6, 4
      %s71 = int_to_ptr.hbm [resolvable:$true] %s70
      %s72 = sshll.u32 [#allocation7], 4
      %s73 = int_to_ptr.vmem [resolvable:$true] %s72
      %75 = dma.hbm_to_vmem [thread:$0]  %s71, 128, %s73, [#allocation8]
    $region29: #{_forward.1} parent=1 // pred_fallthru
      _
    // Predicated region
    $region30: #{_forward.1} parent=1 // pred_check
      _
    $region31: #{_forward.1} parent=1 // pred_check_branch
      %77 = sbr.rel (0) target = $region33
    $region32: #{_forward.1} parent=1 // pred_region
      %79 = vsyncadd [#allocation8], 0
      %s80 = sshll.u32 %s7, 4
      %s81 = int_to_ptr.hbm [resolvable:$true] %s80
      %s82 = sshll.u32 [#allocation9], 4
      %s83 = int_to_ptr.vmem [resolvable:$true] %s82
      %88 = dma.hbm_to_vmem [thread:$0]  %s81, 32768, %s83, [#allocation8], 256, 256, 16
    $region33: #{_forward.1} parent=1 // pred_fallthru
      _
    // Predicated region
    $region34: #{_forward.1} parent=1 // pred_check
      _
    $region35: #{_forward.1} parent=1 // pred_check_branch
      %90 = sbr.rel (0) target = $region37
    $region36: #{_forward.1} parent=1 // pred_region
      _
    $region37: #{_forward.1} parent=1 // pred_fallthru
      _
    // Predicated region
    $region38: #{_forward.1} parent=1 // pred_check
      _
    $region39: #{_forward.1} parent=1 // pred_check_branch
      %92 = sbr.rel (0) target = $region41
    $region40: #{_forward.1} parent=1 // pred_region
      %94 = vsyncadd [#allocation11], 0
      %s95 = sshll.u32 %s9, 4
      %s96 = int_to_ptr.hbm [resolvable:$true] %s95
      %s97 = sshll.u32 [#allocation10], 4
      %s98 = int_to_ptr.vmem [resolvable:$true] %s97
      %103 = dma.hbm_to_vmem [thread:$0]  %s96, 4096, %s98, [#allocation11], 64, 64, 4
    $region41: #{_forward.1} parent=1 // pred_fallthru
      _
    // Predicated region
    $region42: #{_forward.1} parent=1 // pred_check
      _
    $region43: #{_forward.1} parent=1 // pred_check_branch
      %105 = sbr.rel (0) target = $region45
    $region44: #{_forward.1} parent=1 // pred_region
      _
    $region45: #{_forward.1} parent=1 // pred_fallthru
      _
    // Predicated region
    $region46: #{_forward.1} parent=1 // pred_check
      _
    $region47: #{_forward.1} parent=1 // pred_check_branch
      %107 = sbr.rel (0) target = $region49
    $region48: #{_forward.1} parent=1 // pred_region
      %109 = dma.done [#allocation3], 8192
    $region49: #{_forward.1} parent=1 // pred_fallthru
      _
    // Predicated region
    $region50: #{_forward.1} parent=1 // pred_check
      _
    $region51: #{_forward.1} parent=1 // pred_check_branch
      %111 = sbr.rel (0) target = $region53
    $region52: #{_forward.1} parent=1 // pred_region
      %113 = dma.done [#allocation5], 32768
    $region53: #{_forward.1} parent=1 // pred_fallthru
      _
    // Predicated region
    $region54: #{_forward.1} parent=1 // pred_check
      _
    $region55: #{_forward.1} parent=1 // pred_check_branch
      %115 = sbr.rel (0) target = $region57
    $region56: #{_forward.1} parent=1 // pred_region
      %117 = dma.done [#allocation5], 32768
    $region57: #{_forward.1} parent=1 // pred_fallthru
      _
    // Predicated region
    $region58: #{_forward.1} parent=1 // pred_check
      _
    $region59: #{_forward.1} parent=1 // pred_check_branch
      %119 = sbr.rel (0) target = $region61
    $region60: #{_forward.1} parent=1 // pred_region
      %121 = dma.done [#allocation8], 128
    $region61: #{_forward.1} parent=1 // pred_fallthru
      _
    // Predicated region
    $region62: #{_forward.1} parent=1 // pred_check
      _
    $region63: #{_forward.1} parent=1 // pred_check_branch
      %123 = sbr.rel (0) target = $region65
    $region64: #{_forward.1} parent=1 // pred_region
      %125 = dma.done [#allocation8], 32768
    $region65: #{_forward.1} parent=1 // pred_fallthru
      _
    // Predicated region
    $region66: #{_forward.1} parent=1 // pred_check
      _
    $region67: #{_forward.1} parent=1 // pred_check_branch
      %127 = sbr.rel (0) target = $region69
    $region68: #{_forward.1} parent=1 // pred_region
      %129 = dma.done [#allocation11], 4096
    $region69: #{_forward.1} parent=1 // pred_fallthru
      _
    %v130 = vld [vmem:[%s0] sm:$0xf]
    %v131 = vld [vmem:[#allocation2] sm:$0xff]
    %v132 = vld [vmem:[#allocation2 + $0x8] sm:$0xff]
    %v133 = vld [vmem:[#allocation2 + $0x10] sm:$0xff]
    %v134 = vld [vmem:[#allocation2 + $0x18] sm:$0xff]
    %v135 = vld [vmem:[#allocation2 + $0x20] sm:$0xff]
    %v136 = vld [vmem:[#allocation2 + $0x28] sm:$0xff]
    %v137 = vld [vmem:[#allocation2 + $0x30] sm:$0xff]
    %v138 = vld [vmem:[#allocation2 + $0x38] sm:$0xff]
    %v139 = vld [vmem:[#allocation2 + $0x40] sm:$0xff]
    %v140 = vld [vmem:[#allocation2 + $0x48] sm:$0xff]
    %v141 = vld [vmem:[#allocation2 + $0x50] sm:$0xff]
    %v142 = vld [vmem:[#allocation2 + $0x58] sm:$0xff]
    %v143 = vld [vmem:[#allocation2 + $0x60] sm:$0xff]
    %v144 = vld [vmem:[#allocation2 + $0x68] sm:$0xff]
    %v145 = vld [vmem:[#allocation2 + $0x70] sm:$0xff]
    %v146 = vld [vmem:[#allocation2 + $0x78] sm:$0xff]
    %v147 = vld [vmem:[#allocation2 + $0x80] sm:$0xff]
    %v148 = vld [vmem:[#allocation2 + $0x88] sm:$0xff]
    %v149 = vld [vmem:[#allocation2 + $0x90] sm:$0xff]
    %v150 = vld [vmem:[#allocation2 + $0x98] sm:$0xff]
    %v151 = vld [vmem:[#allocation2 + $0xa0] sm:$0xff]
    %v152 = vld [vmem:[#allocation2 + $0xa8] sm:$0xff]
    %v153 = vld [vmem:[#allocation2 + $0xb0] sm:$0xff]
    %v154 = vld [vmem:[#allocation2 + $0xb8] sm:$0xff]
    %v155 = vld [vmem:[#allocation2 + $0xc0] sm:$0xff]
    %v156 = vld [vmem:[#allocation2 + $0xc8] sm:$0xff]
    %v157 = vld [vmem:[#allocation2 + $0xd0] sm:$0xff]
    %v158 = vld [vmem:[#allocation2 + $0xd8] sm:$0xff]
    %v159 = vld [vmem:[#allocation2 + $0xe0] sm:$0xff]
    %v160 = vld [vmem:[#allocation2 + $0xe8] sm:$0xff]
    %v161 = vld [vmem:[#allocation2 + $0xf0] sm:$0xff]
    %v162 = vld [vmem:[#allocation2 + $0xf8] sm:$0xff]
    %v163 = vld [vmem:[#allocation2 + $0x100] sm:$0xff]
    %v164 = vld [vmem:[#allocation2 + $0x108] sm:$0xff]
    %v165 = vld [vmem:[#allocation2 + $0x110] sm:$0xff]
    %v166 = vld [vmem:[#allocation2 + $0x118] sm:$0xff]
    %v167 = vld [vmem:[#allocation2 + $0x120] sm:$0xff]
    %v168 = vld [vmem:[#allocation2 + $0x128] sm:$0xff]
    %v169 = vld [vmem:[#allocation2 + $0x130] sm:$0xff]
    %v170 = vld [vmem:[#allocation2 + $0x138] sm:$0xff]
    %v171 = vld [vmem:[#allocation2 + $0x140] sm:$0xff]
    %v172 = vld [vmem:[#allocation2 + $0x148] sm:$0xff]
    %v173 = vld [vmem:[#allocation2 + $0x150] sm:$0xff]
    %v174 = vld [vmem:[#allocation2 + $0x158] sm:$0xff]
    %v175 = vld [vmem:[#allocation2 + $0x160] sm:$0xff]
    %v176 = vld [vmem:[#allocation2 + $0x168] sm:$0xff]
    %v177 = vld [vmem:[#allocation2 + $0x170] sm:$0xff]
    %v178 = vld [vmem:[#allocation2 + $0x178] sm:$0xff]
    %v179 = vld [vmem:[#allocation2 + $0x180] sm:$0xff]
    %v180 = vld [vmem:[#allocation2 + $0x188] sm:$0xff]
    %v181 = vld [vmem:[#allocation2 + $0x190] sm:$0xff]
    %v182 = vld [vmem:[#allocation2 + $0x198] sm:$0xff]
    %v183 = vld [vmem:[#allocation2 + $0x1a0] sm:$0xff]
    %v184 = vld [vmem:[#allocation2 + $0x1a8] sm:$0xff]
    %v185 = vld [vmem:[#allocation2 + $0x1b0] sm:$0xff]
    %v186 = vld [vmem:[#allocation2 + $0x1b8] sm:$0xff]
    %v187 = vld [vmem:[#allocation2 + $0x1c0] sm:$0xff]
    %v188 = vld [vmem:[#allocation2 + $0x1c8] sm:$0xff]
    %v189 = vld [vmem:[#allocation2 + $0x1d0] sm:$0xff]
    %v190 = vld [vmem:[#allocation2 + $0x1d8] sm:$0xff]
    %v191 = vld [vmem:[#allocation2 + $0x1e0] sm:$0xff]
    %v192 = vld [vmem:[#allocation2 + $0x1e8] sm:$0xff]
    %v193 = vld [vmem:[#allocation2 + $0x1f0] sm:$0xff]
    %v194 = vld [vmem:[#allocation2 + $0x1f8] sm:$0xff]
    %v195 = vld [vmem:[%s2] sm:$0xff]
    %v197 = vperm.slane %v195, 0
    %v198 = vperm.slane %v195, 1
    %v199 = vperm.slane %v195, 2
    %v200 = vperm.slane %v195, 3
    %v201 = vperm.slane %v195, 4
    %v202 = vperm.slane %v195, 5
    %v203 = vperm.slane %v195, 6
    %v204 = vperm.slane %v195, 7
    %v277 = vunpack.c.l.b16 %v131
    %v278 = vunpack.c.h.b16 %v131
    %v279 = vunpack.c.l.b16 %v132
    %v280 = vunpack.c.h.b16 %v132
    %v281 = vunpack.c.l.b16 %v133
    %v282 = vunpack.c.h.b16 %v133
    %v283 = vunpack.c.l.b16 %v134
    %v284 = vunpack.c.h.b16 %v134
    %v285 = vunpack.c.l.b16 %v135
    %v286 = vunpack.c.h.b16 %v135
    %v287 = vunpack.c.l.b16 %v136
    %v288 = vunpack.c.h.b16 %v136
    %v289 = vunpack.c.l.b16 %v137
    %v290 = vunpack.c.h.b16 %v137
    %v291 = vunpack.c.l.b16 %v138
    %v292 = vunpack.c.h.b16 %v138
    %v293 = vunpack.c.l.b16 %v139
    %v294 = vunpack.c.h.b16 %v139
    %v295 = vunpack.c.l.b16 %v140
    %v296 = vunpack.c.h.b16 %v140
    %v297 = vunpack.c.l.b16 %v141
    %v298 = vunpack.c.h.b16 %v141
    %v299 = vunpack.c.l.b16 %v142
    %v300 = vunpack.c.h.b16 %v142
    %v301 = vunpack.c.l.b16 %v143
    %v302 = vunpack.c.h.b16 %v143
    %v303 = vunpack.c.l.b16 %v144
    %v304 = vunpack.c.h.b16 %v144
    %v305 = vunpack.c.l.b16 %v145
    %v306 = vunpack.c.h.b16 %v145
    %v307 = vunpack.c.l.b16 %v146
    %v308 = vunpack.c.h.b16 %v146
    %v309 = vunpack.c.l.b16 %v147
    %v310 = vunpack.c.h.b16 %v147
    %v311 = vunpack.c.l.b16 %v148
    %v312 = vunpack.c.h.b16 %v148
    %v313 = vunpack.c.l.b16 %v149
    %v314 = vunpack.c.h.b16 %v149
    %v315 = vunpack.c.l.b16 %v150
    %v316 = vunpack.c.h.b16 %v150
    %v317 = vunpack.c.l.b16 %v151
    %v318 = vunpack.c.h.b16 %v151
    %v319 = vunpack.c.l.b16 %v152
    %v320 = vunpack.c.h.b16 %v152
    %v321 = vunpack.c.l.b16 %v153
    %v322 = vunpack.c.h.b16 %v153
    %v323 = vunpack.c.l.b16 %v154
    %v324 = vunpack.c.h.b16 %v154
    %v325 = vunpack.c.l.b16 %v155
    %v326 = vunpack.c.h.b16 %v155
    %v327 = vunpack.c.l.b16 %v156
    %v328 = vunpack.c.h.b16 %v156
    %v329 = vunpack.c.l.b16 %v157
    %v330 = vunpack.c.h.b16 %v157
    %v331 = vunpack.c.l.b16 %v158
    %v332 = vunpack.c.h.b16 %v158
    %v333 = vunpack.c.l.b16 %v159
    %v334 = vunpack.c.h.b16 %v159
    %v335 = vunpack.c.l.b16 %v160
    %v336 = vunpack.c.h.b16 %v160
    %v337 = vunpack.c.l.b16 %v161
    %v338 = vunpack.c.h.b16 %v161
    %v339 = vunpack.c.l.b16 %v162
    %v340 = vunpack.c.h.b16 %v162
    %v341 = vunpack.c.l.b16 %v163
    %v342 = vunpack.c.h.b16 %v163
    %v343 = vunpack.c.l.b16 %v164
    %v344 = vunpack.c.h.b16 %v164
    %v345 = vunpack.c.l.b16 %v165
    %v346 = vunpack.c.h.b16 %v165
    %v347 = vunpack.c.l.b16 %v166
    %v348 = vunpack.c.h.b16 %v166
    %v349 = vunpack.c.l.b16 %v167
    %v350 = vunpack.c.h.b16 %v167
    %v351 = vunpack.c.l.b16 %v168
    %v352 = vunpack.c.h.b16 %v168
    %v353 = vunpack.c.l.b16 %v169
    %v354 = vunpack.c.h.b16 %v169
    %v355 = vunpack.c.l.b16 %v170
    %v356 = vunpack.c.h.b16 %v170
    %v357 = vunpack.c.l.b16 %v171
    %v358 = vunpack.c.h.b16 %v171
    %v359 = vunpack.c.l.b16 %v172
    %v360 = vunpack.c.h.b16 %v172
    %v361 = vunpack.c.l.b16 %v173
    %v362 = vunpack.c.h.b16 %v173
    %v363 = vunpack.c.l.b16 %v174
    %v364 = vunpack.c.h.b16 %v174
    %v365 = vunpack.c.l.b16 %v175
    %v366 = vunpack.c.h.b16 %v175
    %v367 = vunpack.c.l.b16 %v176
    %v368 = vunpack.c.h.b16 %v176
    %v369 = vunpack.c.l.b16 %v177
    %v370 = vunpack.c.h.b16 %v177
    %v371 = vunpack.c.l.b16 %v178
    %v372 = vunpack.c.h.b16 %v178
    %v373 = vunpack.c.l.b16 %v179
    %v374 = vunpack.c.h.b16 %v179
    %v375 = vunpack.c.l.b16 %v180
    %v376 = vunpack.c.h.b16 %v180
    %v377 = vunpack.c.l.b16 %v181
    %v378 = vunpack.c.h.b16 %v181
    %v379 = vunpack.c.l.b16 %v182
    %v380 = vunpack.c.h.b16 %v182
    %v381 = vunpack.c.l.b16 %v183
    %v382 = vunpack.c.h.b16 %v183
    %v383 = vunpack.c.l.b16 %v184
    %v384 = vunpack.c.h.b16 %v184
    %v385 = vunpack.c.l.b16 %v185
    %v386 = vunpack.c.h.b16 %v185
    %v387 = vunpack.c.l.b16 %v186
    %v388 = vunpack.c.h.b16 %v186
    %v389 = vunpack.c.l.b16 %v187
    %v390 = vunpack.c.h.b16 %v187
    %v391 = vunpack.c.l.b16 %v188
    %v392 = vunpack.c.h.b16 %v188
    %v393 = vunpack.c.l.b16 %v189
    %v394 = vunpack.c.h.b16 %v189
    %v395 = vunpack.c.l.b16 %v190
    %v396 = vunpack.c.h.b16 %v190
    %v397 = vunpack.c.l.b16 %v191
    %v398 = vunpack.c.h.b16 %v191
    %v399 = vunpack.c.l.b16 %v192
    %v400 = vunpack.c.h.b16 %v192
    %v401 = vunpack.c.l.b16 %v193
    %v402 = vunpack.c.h.b16 %v193
    %v403 = vunpack.c.l.b16 %v194
    %v404 = vunpack.c.h.b16 %v194
    %v405 = vpack.c.b16 %v285, %v277
    %v406 = vpack.c.b16 %v286, %v278
    %v407 = vpack.c.b16 %v287, %v279
    %v408 = vpack.c.b16 %v288, %v280
    %v409 = vpack.c.b16 %v289, %v281
    %v410 = vpack.c.b16 %v290, %v282
    %v411 = vpack.c.b16 %v291, %v283
    %v412 = vpack.c.b16 %v292, %v284
    %v413 = vpack.c.b16 %v301, %v293
    %v414 = vpack.c.b16 %v302, %v294
    %v415 = vpack.c.b16 %v303, %v295
    %v416 = vpack.c.b16 %v304, %v296
    %v417 = vpack.c.b16 %v305, %v297
    %v418 = vpack.c.b16 %v306, %v298
    %v419 = vpack.c.b16 %v307, %v299
    %v420 = vpack.c.b16 %v308, %v300
    %v421 = vpack.c.b16 %v317, %v309
    %v422 = vpack.c.b16 %v318, %v310
    %v423 = vpack.c.b16 %v319, %v311
    %v424 = vpack.c.b16 %v320, %v312
    %v425 = vpack.c.b16 %v321, %v313
    %v426 = vpack.c.b16 %v322, %v314
    %v427 = vpack.c.b16 %v323, %v315
    %v428 = vpack.c.b16 %v324, %v316
    %v429 = vpack.c.b16 %v333, %v325
    %v430 = vpack.c.b16 %v334, %v326
    %v431 = vpack.c.b16 %v335, %v327
    %v432 = vpack.c.b16 %v336, %v328
    %v433 = vpack.c.b16 %v337, %v329
    %v434 = vpack.c.b16 %v338, %v330
    %v435 = vpack.c.b16 %v339, %v331
    %v436 = vpack.c.b16 %v340, %v332
    %v437 = vpack.c.b16 %v349, %v341
    %v438 = vpack.c.b16 %v350, %v342
    %v439 = vpack.c.b16 %v351, %v343
    %v440 = vpack.c.b16 %v352, %v344
    %v441 = vpack.c.b16 %v353, %v345
    %v442 = vpack.c.b16 %v354, %v346
    %v443 = vpack.c.b16 %v355, %v347
    %v444 = vpack.c.b16 %v356, %v348
    %v445 = vpack.c.b16 %v365, %v357
    %v446 = vpack.c.b16 %v366, %v358
    %v447 = vpack.c.b16 %v367, %v359
    %v448 = vpack.c.b16 %v368, %v360
    %v449 = vpack.c.b16 %v369, %v361
    %v450 = vpack.c.b16 %v370, %v362
    %v451 = vpack.c.b16 %v371, %v363
    %v452 = vpack.c.b16 %v372, %v364
    %v453 = vpack.c.b16 %v381, %v373
    %v454 = vpack.c.b16 %v382, %v374
    %v455 = vpack.c.b16 %v383, %v375
    %v456 = vpack.c.b16 %v384, %v376
    %v457 = vpack.c.b16 %v385, %v377
    %v458 = vpack.c.b16 %v386, %v378
    %v459 = vpack.c.b16 %v387, %v379
    %v460 = vpack.c.b16 %v388, %v380
    %v461 = vpack.c.b16 %v397, %v389
    %v462 = vpack.c.b16 %v398, %v390
    %v463 = vpack.c.b16 %v399, %v391
    %v464 = vpack.c.b16 %v400, %v392
    %v465 = vpack.c.b16 %v401, %v393
    %v466 = vpack.c.b16 %v402, %v394
    %v467 = vpack.c.b16 %v403, %v395
    %v468 = vpack.c.b16 %v404, %v396
    %533 = vmatpush.bf16.msra.mxu0 %v461
    %534 = vmatpush.bf16.msra.mxu0 %v453
    %535 = vmatpush.bf16.msra.mxu0 %v445
    %536 = vmatpush.bf16.msra.mxu0 %v437
    %537 = vmatpush.bf16.msra.mxu0 %v429
    %538 = vmatpush.bf16.msra.mxu0 %v421
    %539 = vmatpush.bf16.msra.mxu0 %v413
    %540 = vmatpush.bf16.msra.mxu0 %v405
    %541 = vmatmul.bf16.gmra.mxu0 %v130
    %v542 = vpop.f32.mrf.mxu0
    %v543 = vadd.f32 %v197, %v542
    %v544 = vpop.f32.mrf.mxu0
    %545 = vdwg.mxu0
    %546 = vmatpush.bf16.msra.mxu0 %v462
    %547 = vmatpush.bf16.msra.mxu0 %v454
    %548 = vmatpush.bf16.msra.mxu0 %v446
    %549 = vmatpush.bf16.msra.mxu0 %v438
    %550 = vmatpush.bf16.msra.mxu0 %v430
    %551 = vmatpush.bf16.msra.mxu0 %v422
    %552 = vmatpush.bf16.msra.mxu0 %v414
    %553 = vmatpush.bf16.msra.mxu0 %v406
    %554 = vmatmul.bf16.gmra.mxu0 %v130
    %v555 = vpop.f32.mrf.mxu0
    %v556 = vadd.f32 %v198, %v555
    %v557 = vpop.f32.mrf.mxu0
    %558 = vdwg.mxu0
    %559 = vmatpush.bf16.msra.mxu0 %v463
    %560 = vmatpush.bf16.msra.mxu0 %v455
    %561 = vmatpush.bf16.msra.mxu0 %v447
    %562 = vmatpush.bf16.msra.mxu0 %v439
    %563 = vmatpush.bf16.msra.mxu0 %v431
    %564 = vmatpush.bf16.msra.mxu0 %v423
    %565 = vmatpush.bf16.msra.mxu0 %v415
    %566 = vmatpush.bf16.msra.mxu0 %v407
    %567 = vmatmul.bf16.gmra.mxu0 %v130
    %v568 = vpop.f32.mrf.mxu0
    %v569 = vadd.f32 %v199, %v568
    %v570 = vpop.f32.mrf.mxu0
    %571 = vdwg.mxu0
    %572 = vmatpush.bf16.msra.mxu0 %v464
    %573 = vmatpush.bf16.msra.mxu0 %v456
    %574 = vmatpush.bf16.msra.mxu0 %v448
    %575 = vmatpush.bf16.msra.mxu0 %v440
    %576 = vmatpush.bf16.msra.mxu0 %v432
    %577 = vmatpush.bf16.msra.mxu0 %v424
    %578 = vmatpush.bf16.msra.mxu0 %v416
    %579 = vmatpush.bf16.msra.mxu0 %v408
    %580 = vmatmul.bf16.gmra.mxu0 %v130
    %v581 = vpop.f32.mrf.mxu0
    %v582 = vadd.f32 %v200, %v581
    %v583 = vpop.f32.mrf.mxu0
    %584 = vdwg.mxu0
    %585 = vmatpush.bf16.msra.mxu0 %v465
    %586 = vmatpush.bf16.msra.mxu0 %v457
    %587 = vmatpush.bf16.msra.mxu0 %v449
    %588 = vmatpush.bf16.msra.mxu0 %v441
    %589 = vmatpush.bf16.msra.mxu0 %v433
    %590 = vmatpush.bf16.msra.mxu0 %v425
    %591 = vmatpush.bf16.msra.mxu0 %v417
    %592 = vmatpush.bf16.msra.mxu0 %v409
    %593 = vmatmul.bf16.gmra.mxu0 %v130
    %v594 = vpop.f32.mrf.mxu0
    %v595 = vadd.f32 %v201, %v594
    %v596 = vpop.f32.mrf.mxu0
    %597 = vdwg.mxu0
    %598 = vmatpush.bf16.msra.mxu0 %v466
    %599 = vmatpush.bf16.msra.mxu0 %v458
    %600 = vmatpush.bf16.msra.mxu0 %v450
    %601 = vmatpush.bf16.msra.mxu0 %v442
    %602 = vmatpush.bf16.msra.mxu0 %v434
    %603 = vmatpush.bf16.msra.mxu0 %v426
    %604 = vmatpush.bf16.msra.mxu0 %v418
    %605 = vmatpush.bf16.msra.mxu0 %v410
    %606 = vmatmul.bf16.gmra.mxu0 %v130
    %v607 = vpop.f32.mrf.mxu0
    %v608 = vadd.f32 %v202, %v607
    %v609 = vpop.f32.mrf.mxu0
    %610 = vdwg.mxu0
    %611 = vmatpush.bf16.msra.mxu0 %v467
    %612 = vmatpush.bf16.msra.mxu0 %v459
    %613 = vmatpush.bf16.msra.mxu0 %v451
    %614 = vmatpush.bf16.msra.mxu0 %v443
    %615 = vmatpush.bf16.msra.mxu0 %v435
    %616 = vmatpush.bf16.msra.mxu0 %v427
    %617 = vmatpush.bf16.msra.mxu0 %v419
    %618 = vmatpush.bf16.msra.mxu0 %v411
    %619 = vmatmul.bf16.gmra.mxu0 %v130
    %v620 = vpop.f32.mrf.mxu0
    %v621 = vadd.f32 %v203, %v620
    %v622 = vpop.f32.mrf.mxu0
    %623 = vdwg.mxu0
    %624 = vmatpush.bf16.msra.mxu0 %v468
    %625 = vmatpush.bf16.msra.mxu0 %v460
    %626 = vmatpush.bf16.msra.mxu0 %v452
    %627 = vmatpush.bf16.msra.mxu0 %v444
    %628 = vmatpush.bf16.msra.mxu0 %v436
    %629 = vmatpush.bf16.msra.mxu0 %v428
    %630 = vmatpush.bf16.msra.mxu0 %v420
    %631 = vmatpush.bf16.msra.mxu0 %v412
    %632 = vmatmul.bf16.gmra.mxu0 %v130
    %v633 = vpop.f32.mrf.mxu0
    %v634 = vadd.f32 %v204, %v633
    %v635 = vpop.f32.mrf.mxu0
    %636 = vdwg.mxu0
    %v637 = vmax.f32 %v543, 0.0
    %v638 = vmax.f32 %v556, 0.0
    %v639 = vmax.f32 %v569, 0.0
    %v640 = vmax.f32 %v582, 0.0
    %v641 = vmax.f32 %v595, 0.0
    %v642 = vmax.f32 %v608, 0.0
    %v643 = vmax.f32 %v621, 0.0
    %v644 = vmax.f32 %v634, 0.0
    %v645 = vpack.c.bf16 %v637, %v637
    %v646 = vpack.c.bf16 %v638, %v638
    %v647 = vpack.c.bf16 %v639, %v639
    %v648 = vpack.c.bf16 %v640, %v640
    %v649 = vpack.c.bf16 %v641, %v641
    %v650 = vpack.c.bf16 %v642, %v642
    %v651 = vpack.c.bf16 %v643, %v643
    %v652 = vpack.c.bf16 %v644, %v644
    %v653 = vld [vmem:[#allocation4] sm:$0xff]
    %v654 = vld [vmem:[#allocation4 + $0x8] sm:$0xff]
    %v655 = vld [vmem:[#allocation4 + $0x10] sm:$0xff]
    %v656 = vld [vmem:[#allocation4 + $0x18] sm:$0xff]
    %v657 = vld [vmem:[#allocation4 + $0x20] sm:$0xff]
    %v658 = vld [vmem:[#allocation4 + $0x28] sm:$0xff]
    %v659 = vld [vmem:[#allocation4 + $0x30] sm:$0xff]
    %v660 = vld [vmem:[#allocation4 + $0x38] sm:$0xff]
    %v661 = vld [vmem:[#allocation4 + $0x40] sm:$0xff]
    %v662 = vld [vmem:[#allocation4 + $0x48] sm:$0xff]
    %v663 = vld [vmem:[#allocation4 + $0x50] sm:$0xff]
    %v664 = vld [vmem:[#allocation4 + $0x58] sm:$0xff]
    %v665 = vld [vmem:[#allocation4 + $0x60] sm:$0xff]
    %v666 = vld [vmem:[#allocation4 + $0x68] sm:$0xff]
    %v667 = vld [vmem:[#allocation4 + $0x70] sm:$0xff]
    %v668 = vld [vmem:[#allocation4 + $0x78] sm:$0xff]
    %v669 = vld [vmem:[#allocation4 + $0x80] sm:$0xff]
    %v670 = vld [vmem:[#allocation4 + $0x88] sm:$0xff]
    %v671 = vld [vmem:[#allocation4 + $0x90] sm:$0xff]
    %v672 = vld [vmem:[#allocation4 + $0x98] sm:$0xff]
    %v673 = vld [vmem:[#allocation4 + $0xa0] sm:$0xff]
    %v674 = vld [vmem:[#allocation4 + $0xa8] sm:$0xff]
    %v675 = vld [vmem:[#allocation4 + $0xb0] sm:$0xff]
    %v676 = vld [vmem:[#allocation4 + $0xb8] sm:$0xff]
    %v677 = vld [vmem:[#allocation4 + $0xc0] sm:$0xff]
    %v678 = vld [vmem:[#allocation4 + $0xc8] sm:$0xff]
    %v679 = vld [vmem:[#allocation4 + $0xd0] sm:$0xff]
    %v680 = vld [vmem:[#allocation4 + $0xd8] sm:$0xff]
    %v681 = vld [vmem:[#allocation4 + $0xe0] sm:$0xff]
    %v682 = vld [vmem:[#allocation4 + $0xe8] sm:$0xff]
    %v683 = vld [vmem:[#allocation4 + $0xf0] sm:$0xff]
    %v684 = vld [vmem:[#allocation4 + $0xf8] sm:$0xff]
    %v685 = vld [vmem:[#allocation4 + $0x100] sm:$0xff]
    %v686 = vld [vmem:[#allocation4 + $0x108] sm:$0xff]
    %v687 = vld [vmem:[#allocation4 + $0x110] sm:$0xff]
    %v688 = vld [vmem:[#allocation4 + $0x118] sm:$0xff]
    %v689 = vld [vmem:[#allocation4 + $0x120] sm:$0xff]
    %v690 = vld [vmem:[#allocation4 + $0x128] sm:$0xff]
    %v691 = vld [vmem:[#allocation4 + $0x130] sm:$0xff]
    %v692 = vld [vmem:[#allocation4 + $0x138] sm:$0xff]
    %v693 = vld [vmem:[#allocation4 + $0x140] sm:$0xff]
    %v694 = vld [vmem:[#allocation4 + $0x148] sm:$0xff]
    %v695 = vld [vmem:[#allocation4 + $0x150] sm:$0xff]
    %v696 = vld [vmem:[#allocation4 + $0x158] sm:$0xff]
    %v697 = vld [vmem:[#allocation4 + $0x160] sm:$0xff]
    %v698 = vld [vmem:[#allocation4 + $0x168] sm:$0xff]
    %v699 = vld [vmem:[#allocation4 + $0x170] sm:$0xff]
    %v700 = vld [vmem:[#allocation4 + $0x178] sm:$0xff]
    %v701 = vld [vmem:[#allocation4 + $0x180] sm:$0xff]
    %v702 = vld [vmem:[#allocation4 + $0x188] sm:$0xff]
    %v703 = vld [vmem:[#allocation4 + $0x190] sm:$0xff]
    %v704 = vld [vmem:[#allocation4 + $0x198] sm:$0xff]
    %v705 = vld [vmem:[#allocation4 + $0x1a0] sm:$0xff]
    %v706 = vld [vmem:[#allocation4 + $0x1a8] sm:$0xff]
    %v707 = vld [vmem:[#allocation4 + $0x1b0] sm:$0xff]
    %v708 = vld [vmem:[#allocation4 + $0x1b8] sm:$0xff]
    %v709 = vld [vmem:[#allocation4 + $0x1c0] sm:$0xff]
    %v710 = vld [vmem:[#allocation4 + $0x1c8] sm:$0xff]
    %v711 = vld [vmem:[#allocation4 + $0x1d0] sm:$0xff]
    %v712 = vld [vmem:[#allocation4 + $0x1d8] sm:$0xff]
    %v713 = vld [vmem:[#allocation4 + $0x1e0] sm:$0xff]
    %v714 = vld [vmem:[#allocation4 + $0x1e8] sm:$0xff]
    %v715 = vld [vmem:[#allocation4 + $0x1f0] sm:$0xff]
    %v716 = vld [vmem:[#allocation4 + $0x1f8] sm:$0xff]
    %v717 = vld [vmem:[#allocation4 + $0x200] sm:$0xff]
    %v718 = vld [vmem:[#allocation4 + $0x208] sm:$0xff]
    %v719 = vld [vmem:[#allocation4 + $0x210] sm:$0xff]
    %v720 = vld [vmem:[#allocation4 + $0x218] sm:$0xff]
    %v721 = vld [vmem:[#allocation4 + $0x220] sm:$0xff]
    %v722 = vld [vmem:[#allocation4 + $0x228] sm:$0xff]
    %v723 = vld [vmem:[#allocation4 + $0x230] sm:$0xff]
    %v724 = vld [vmem:[#allocation4 + $0x238] sm:$0xff]
    %v725 = vld [vmem:[#allocation4 + $0x240] sm:$0xff]
    %v726 = vld [vmem:[#allocation4 + $0x248] sm:$0xff]
    %v727 = vld [vmem:[#allocation4 + $0x250] sm:$0xff]
    %v728 = vld [vmem:[#allocation4 + $0x258] sm:$0xff]
    %v729 = vld [vmem:[#allocation4 + $0x260] sm:$0xff]
    %v730 = vld [vmem:[#allocation4 + $0x268] sm:$0xff]
    %v731 = vld [vmem:[#allocation4 + $0x270] sm:$0xff]
    %v732 = vld [vmem:[#allocation4 + $0x278] sm:$0xff]
    %v733 = vld [vmem:[#allocation4 + $0x280] sm:$0xff]
    %v734 = vld [vmem:[#allocation4 + $0x288] sm:$0xff]
    %v735 = vld [vmem:[#allocation4 + $0x290] sm:$0xff]
    %v736 = vld [vmem:[#allocation4 + $0x298] sm:$0xff]
    %v737 = vld [vmem:[#allocation4 + $0x2a0] sm:$0xff]
    %v738 = vld [vmem:[#allocation4 + $0x2a8] sm:$0xff]
    %v739 = vld [vmem:[#allocation4 + $0x2b0] sm:$0xff]
    %v740 = vld [vmem:[#allocation4 + $0x2b8] sm:$0xff]
    %v741 = vld [vmem:[#allocation4 + $0x2c0] sm:$0xff]
    %v742 = vld [vmem:[#allocation4 + $0x2c8] sm:$0xff]
    %v743 = vld [vmem:[#allocation4 + $0x2d0] sm:$0xff]
    %v744 = vld [vmem:[#allocation4 + $0x2d8] sm:$0xff]
    %v745 = vld [vmem:[#allocation4 + $0x2e0] sm:$0xff]
    %v746 = vld [vmem:[#allocation4 + $0x2e8] sm:$0xff]
    %v747 = vld [vmem:[#allocation4 + $0x2f0] sm:$0xff]
    %v748 = vld [vmem:[#allocation4 + $0x2f8] sm:$0xff]
    %v749 = vld [vmem:[#allocation4 + $0x300] sm:$0xff]
    %v750 = vld [vmem:[#allocation4 + $0x308] sm:$0xff]
    %v751 = vld [vmem:[#allocation4 + $0x310] sm:$0xff]
    %v752 = vld [vmem:[#allocation4 + $0x318] sm:$0xff]
    %v753 = vld [vmem:[#allocation4 + $0x320] sm:$0xff]
    %v754 = vld [vmem:[#allocation4 + $0x328] sm:$0xff]
    %v755 = vld [vmem:[#allocation4 + $0x330] sm:$0xff]
    %v756 = vld [vmem:[#allocation4 + $0x338] sm:$0xff]
    %v757 = vld [vmem:[#allocation4 + $0x340] sm:$0xff]
    %v758 = vld [vmem:[#allocation4 + $0x348] sm:$0xff]
    %v759 = vld [vmem:[#allocation4 + $0x350] sm:$0xff]
    %v760 = vld [vmem:[#allocation4 + $0x358] sm:$0xff]
    %v761 = vld [vmem:[#allocation4 + $0x360] sm:$0xff]
    %v762 = vld [vmem:[#allocation4 + $0x368] sm:$0xff]
    %v763 = vld [vmem:[#allocation4 + $0x370] sm:$0xff]
    %v764 = vld [vmem:[#allocation4 + $0x378] sm:$0xff]
    %v765 = vld [vmem:[#allocation4 + $0x380] sm:$0xff]
    %v766 = vld [vmem:[#allocation4 + $0x388] sm:$0xff]
    %v767 = vld [vmem:[#allocation4 + $0x390] sm:$0xff]
    %v768 = vld [vmem:[#allocation4 + $0x398] sm:$0xff]
    %v769 = vld [vmem:[#allocation4 + $0x3a0] sm:$0xff]
    %v770 = vld [vmem:[#allocation4 + $0x3a8] sm:$0xff]
    %v771 = vld [vmem:[#allocation4 + $0x3b0] sm:$0xff]
    %v772 = vld [vmem:[#allocation4 + $0x3b8] sm:$0xff]
    %v773 = vld [vmem:[#allocation4 + $0x3c0] sm:$0xff]
    %v774 = vld [vmem:[#allocation4 + $0x3c8] sm:$0xff]
    %v775 = vld [vmem:[#allocation4 + $0x3d0] sm:$0xff]
    %v776 = vld [vmem:[#allocation4 + $0x3d8] sm:$0xff]
    %v777 = vld [vmem:[#allocation4 + $0x3e0] sm:$0xff]
    %v778 = vld [vmem:[#allocation4 + $0x3e8] sm:$0xff]
    %v779 = vld [vmem:[#allocation4 + $0x3f0] sm:$0xff]
    %v780 = vld [vmem:[#allocation4 + $0x3f8] sm:$0xff]
    %v781 = vld [vmem:[#allocation4 + $0x400] sm:$0xff]
    %v782 = vld [vmem:[#allocation4 + $0x408] sm:$0xff]
    %v783 = vld [vmem:[#allocation4 + $0x410] sm:$0xff]
    %v784 = vld [vmem:[#allocation4 + $0x418] sm:$0xff]
    %v785 = vld [vmem:[#allocation4 + $0x420] sm:$0xff]
    %v786 = vld [vmem:[#allocation4 + $0x428] sm:$0xff]
    %v787 = vld [vmem:[#allocation4 + $0x430] sm:$0xff]
    %v788 = vld [vmem:[#allocation4 + $0x438] sm:$0xff]
    %v789 = vld [vmem:[#allocation4 + $0x440] sm:$0xff]
    %v790 = vld [vmem:[#allocation4 + $0x448] sm:$0xff]
    %v791 = vld [vmem:[#allocation4 + $0x450] sm:$0xff]
    %v792 = vld [vmem:[#allocation4 + $0x458] sm:$0xff]
    %v793 = vld [vmem:[#allocation4 + $0x460] sm:$0xff]
    %v794 = vld [vmem:[#allocation4 + $0x468] sm:$0xff]
    %v795 = vld [vmem:[#allocation4 + $0x470] sm:$0xff]
    %v796 = vld [vmem:[#allocation4 + $0x478] sm:$0xff]
    %v797 = vld [vmem:[#allocation4 + $0x480] sm:$0xff]
    %v798 = vld [vmem:[#allocation4 + $0x488] sm:$0xff]
    %v799 = vld [vmem:[#allocation4 + $0x490] sm:$0xff]
    %v800 = vld [vmem:[#allocation4 + $0x498] sm:$0xff]
    %v801 = vld [vmem:[#allocation4 + $0x4a0] sm:$0xff]
    %v802 = vld [vmem:[#allocation4 + $0x4a8] sm:$0xff]
    %v803 = vld [vmem:[#allocation4 + $0x4b0] sm:$0xff]
    %v804 = vld [vmem:[#allocation4 + $0x4b8] sm:$0xff]
    %v805 = vld [vmem:[#allocation4 + $0x4c0] sm:$0xff]
    %v806 = vld [vmem:[#allocation4 + $0x4c8] sm:$0xff]
    %v807 = vld [vmem:[#allocation4 + $0x4d0] sm:$0xff]
    %v808 = vld [vmem:[#allocation4 + $0x4d8] sm:$0xff]
    %v809 = vld [vmem:[#allocation4 + $0x4e0] sm:$0xff]
    %v810 = vld [vmem:[#allocation4 + $0x4e8] sm:$0xff]
    %v811 = vld [vmem:[#allocation4 + $0x4f0] sm:$0xff]
    %v812 = vld [vmem:[#allocation4 + $0x4f8] sm:$0xff]
    %v813 = vld [vmem:[#allocation4 + $0x500] sm:$0xff]
    %v814 = vld [vmem:[#allocation4 + $0x508] sm:$0xff]
    %v815 = vld [vmem:[#allocation4 + $0x510] sm:$0xff]
    %v816 = vld [vmem:[#allocation4 + $0x518] sm:$0xff]
    %v817 = vld [vmem:[#allocation4 + $0x520] sm:$0xff]
    %v818 = vld [vmem:[#allocation4 + $0x528] sm:$0xff]
    %v819 = vld [vmem:[#allocation4 + $0x530] sm:$0xff]
    %v820 = vld [vmem:[#allocation4 + $0x538] sm:$0xff]
    %v821 = vld [vmem:[#allocation4 + $0x540] sm:$0xff]
    %v822 = vld [vmem:[#allocation4 + $0x548] sm:$0xff]
    %v823 = vld [vmem:[#allocation4 + $0x550] sm:$0xff]
    %v824 = vld [vmem:[#allocation4 + $0x558] sm:$0xff]
    %v825 = vld [vmem:[#allocation4 + $0x560] sm:$0xff]
    %v826 = vld [vmem:[#allocation4 + $0x568] sm:$0xff]
    %v827 = vld [vmem:[#allocation4 + $0x570] sm:$0xff]
    %v828 = vld [vmem:[#allocation4 + $0x578] sm:$0xff]
    %v829 = vld [vmem:[#allocation4 + $0x580] sm:$0xff]
    %v830 = vld [vmem:[#allocation4 + $0x588] sm:$0xff]
    %v831 = vld [vmem:[#allocation4 + $0x590] sm:$0xff]
    %v832 = vld [vmem:[#allocation4 + $0x598] sm:$0xff]
    %v833 = vld [vmem:[#allocation4 + $0x5a0] sm:$0xff]
    %v834 = vld [vmem:[#allocation4 + $0x5a8] sm:$0xff]
    %v835 = vld [vmem:[#allocation4 + $0x5b0] sm:$0xff]
    %v836 = vld [vmem:[#allocation4 + $0x5b8] sm:$0xff]
    %v837 = vld [vmem:[#allocation4 + $0x5c0] sm:$0xff]
    %v838 = vld [vmem:[#allocation4 + $0x5c8] sm:$0xff]
    %v839 = vld [vmem:[#allocation4 + $0x5d0] sm:$0xff]
    %v840 = vld [vmem:[#allocation4 + $0x5d8] sm:$0xff]
    %v841 = vld [vmem:[#allocation4 + $0x5e0] sm:$0xff]
    %v842 = vld [vmem:[#allocation4 + $0x5e8] sm:$0xff]
    %v843 = vld [vmem:[#allocation4 + $0x5f0] sm:$0xff]
    %v844 = vld [vmem:[#allocation4 + $0x5f8] sm:$0xff]
    %v845 = vld [vmem:[#allocation4 + $0x600] sm:$0xff]
    %v846 = vld [vmem:[#allocation4 + $0x608] sm:$0xff]
    %v847 = vld [vmem:[#allocation4 + $0x610] sm:$0xff]
    %v848 = vld [vmem:[#allocation4 + $0x618] sm:$0xff]
    %v849 = vld [vmem:[#allocation4 + $0x620] sm:$0xff]
    %v850 = vld [vmem:[#allocation4 + $0x628] sm:$0xff]
    %v851 = vld [vmem:[#allocation4 + $0x630] sm:$0xff]
    %v852 = vld [vmem:[#allocation4 + $0x638] sm:$0xff]
    %v853 = vld [vmem:[#allocation4 + $0x640] sm:$0xff]
    %v854 = vld [vmem:[#allocation4 + $0x648] sm:$0xff]
    %v855 = vld [vmem:[#allocation4 + $0x650] sm:$0xff]
    %v856 = vld [vmem:[#allocation4 + $0x658] sm:$0xff]
    %v857 = vld [vmem:[#allocation4 + $0x660] sm:$0xff]
    %v858 = vld [vmem:[#allocation4 + $0x668] sm:$0xff]
    %v859 = vld [vmem:[#allocation4 + $0x670] sm:$0xff]
    %v860 = vld [vmem:[#allocation4 + $0x678] sm:$0xff]
    %v861 = vld [vmem:[#allocation4 + $0x680] sm:$0xff]
    %v862 = vld [vmem:[#allocation4 + $0x688] sm:$0xff]
    %v863 = vld [vmem:[#allocation4 + $0x690] sm:$0xff]
    %v864 = vld [vmem:[#allocation4 + $0x698] sm:$0xff]
    %v865 = vld [vmem:[#allocation4 + $0x6a0] sm:$0xff]
    %v866 = vld [vmem:[#allocation4 + $0x6a8] sm:$0xff]
    %v867 = vld [vmem:[#allocation4 + $0x6b0] sm:$0xff]
    %v868 = vld [vmem:[#allocation4 + $0x6b8] sm:$0xff]
    %v869 = vld [vmem:[#allocation4 + $0x6c0] sm:$0xff]
    %v870 = vld [vmem:[#allocation4 + $0x6c8] sm:$0xff]
    %v871 = vld [vmem:[#allocation4 + $0x6d0] sm:$0xff]
    %v872 = vld [vmem:[#allocation4 + $0x6d8] sm:$0xff]
    %v873 = vld [vmem:[#allocation4 + $0x6e0] sm:$0xff]
    %v874 = vld [vmem:[#allocation4 + $0x6e8] sm:$0xff]
    %v875 = vld [vmem:[#allocation4 + $0x6f0] sm:$0xff]
    %v876 = vld [vmem:[#allocation4 + $0x6f8] sm:$0xff]
    %v877 = vld [vmem:[#allocation4 + $0x700] sm:$0xff]
    %v878 = vld [vmem:[#allocation4 + $0x708] sm:$0xff]
    %v879 = vld [vmem:[#allocation4 + $0x710] sm:$0xff]
    %v880 = vld [vmem:[#allocation4 + $0x718] sm:$0xff]
    %v881 = vld [vmem:[#allocation4 + $0x720] sm:$0xff]
    %v882 = vld [vmem:[#allocation4 + $0x728] sm:$0xff]
    %v883 = vld [vmem:[#allocation4 + $0x730] sm:$0xff]
    %v884 = vld [vmem:[#allocation4 + $0x738] sm:$0xff]
    %v885 = vld [vmem:[#allocation4 + $0x740] sm:$0xff]
    %v886 = vld [vmem:[#allocation4 + $0x748] sm:$0xff]
    %v887 = vld [vmem:[#allocation4 + $0x750] sm:$0xff]
    %v888 = vld [vmem:[#allocation4 + $0x758] sm:$0xff]
    %v889 = vld [vmem:[#allocation4 + $0x760] sm:$0xff]
    %v890 = vld [vmem:[#allocation4 + $0x768] sm:$0xff]
    %v891 = vld [vmem:[#allocation4 + $0x770] sm:$0xff]
    %v892 = vld [vmem:[#allocation4 + $0x778] sm:$0xff]
    %v893 = vld [vmem:[#allocation4 + $0x780] sm:$0xff]
    %v894 = vld [vmem:[#allocation4 + $0x788] sm:$0xff]
    %v895 = vld [vmem:[#allocation4 + $0x790] sm:$0xff]
    %v896 = vld [vmem:[#allocation4 + $0x798] sm:$0xff]
    %v897 = vld [vmem:[#allocation4 + $0x7a0] sm:$0xff]
    %v898 = vld [vmem:[#allocation4 + $0x7a8] sm:$0xff]
    %v899 = vld [vmem:[#allocation4 + $0x7b0] sm:$0xff]
    %v900 = vld [vmem:[#allocation4 + $0x7b8] sm:$0xff]
    %v901 = vld [vmem:[#allocation4 + $0x7c0] sm:$0xff]
    %v902 = vld [vmem:[#allocation4 + $0x7c8] sm:$0xff]
    %v903 = vld [vmem:[#allocation4 + $0x7d0] sm:$0xff]
    %v904 = vld [vmem:[#allocation4 + $0x7d8] sm:$0xff]
    %v905 = vld [vmem:[#allocation4 + $0x7e0] sm:$0xff]
    %v906 = vld [vmem:[#allocation4 + $0x7e8] sm:$0xff]
    %v907 = vld [vmem:[#allocation4 + $0x7f0] sm:$0xff]
    %v908 = vld [vmem:[#allocation4 + $0x7f8] sm:$0xff]
    %v909 = vld [vmem:[%s4] sm:$0xf]
    %v911 = vperm.slane %v909, 0
    %v912 = vperm.slane %v909, 1
    %v913 = vperm.slane %v909, 2
    %v914 = vperm.slane %v909, 3
    %v1175 = vunpack.c.l.b16 %v653
    %v1176 = vunpack.c.h.b16 %v653
    %v1177 = vunpack.c.l.b16 %v654
    %v1178 = vunpack.c.h.b16 %v654
    %v1179 = vunpack.c.l.b16 %v655
    %v1180 = vunpack.c.h.b16 %v655
    %v1181 = vunpack.c.l.b16 %v656
    %v1182 = vunpack.c.h.b16 %v656
    %v1183 = vunpack.c.l.b16 %v657
    %v1184 = vunpack.c.h.b16 %v657
    %v1185 = vunpack.c.l.b16 %v658
    %v1186 = vunpack.c.h.b16 %v658
    %v1187 = vunpack.c.l.b16 %v659
    %v1188 = vunpack.c.h.b16 %v659
    %v1189 = vunpack.c.l.b16 %v660
    %v1190 = vunpack.c.h.b16 %v660
    %v1191 = vunpack.c.l.b16 %v661
    %v1192 = vunpack.c.h.b16 %v661
    %v1193 = vunpack.c.l.b16 %v662
    %v1194 = vunpack.c.h.b16 %v662
    %v1195 = vunpack.c.l.b16 %v663
    %v1196 = vunpack.c.h.b16 %v663
    %v1197 = vunpack.c.l.b16 %v664
    %v1198 = vunpack.c.h.b16 %v664
    %v1199 = vunpack.c.l.b16 %v665
    %v1200 = vunpack.c.h.b16 %v665
    %v1201 = vunpack.c.l.b16 %v666
    %v1202 = vunpack.c.h.b16 %v666
    %v1203 = vunpack.c.l.b16 %v667
    %v1204 = vunpack.c.h.b16 %v667
    %v1205 = vunpack.c.l.b16 %v668
    %v1206 = vunpack.c.h.b16 %v668
    %v1207 = vunpack.c.l.b16 %v669
    %v1208 = vunpack.c.h.b16 %v669
    %v1209 = vunpack.c.l.b16 %v670
    %v1210 = vunpack.c.h.b16 %v670
    %v1211 = vunpack.c.l.b16 %v671
    %v1212 = vunpack.c.h.b16 %v671
    %v1213 = vunpack.c.l.b16 %v672
    %v1214 = vunpack.c.h.b16 %v672
    %v1215 = vunpack.c.l.b16 %v673
    %v1216 = vunpack.c.h.b16 %v673
    %v1217 = vunpack.c.l.b16 %v674
    %v1218 = vunpack.c.h.b16 %v674
    %v1219 = vunpack.c.l.b16 %v675
    %v1220 = vunpack.c.h.b16 %v675
    %v1221 = vunpack.c.l.b16 %v676
    %v1222 = vunpack.c.h.b16 %v676
    %v1223 = vunpack.c.l.b16 %v677
    %v1224 = vunpack.c.h.b16 %v677
    %v1225 = vunpack.c.l.b16 %v678
    %v1226 = vunpack.c.h.b16 %v678
    %v1227 = vunpack.c.l.b16 %v679
    %v1228 = vunpack.c.h.b16 %v679
    %v1229 = vunpack.c.l.b16 %v680
    %v1230 = vunpack.c.h.b16 %v680
    %v1231 = vunpack.c.l.b16 %v681
    %v1232 = vunpack.c.h.b16 %v681
    %v1233 = vunpack.c.l.b16 %v682
    %v1234 = vunpack.c.h.b16 %v682
    %v1235 = vunpack.c.l.b16 %v683
    %v1236 = vunpack.c.h.b16 %v683
    %v1237 = vunpack.c.l.b16 %v684
    %v1238 = vunpack.c.h.b16 %v684
    %v1239 = vunpack.c.l.b16 %v685
    %v1240 = vunpack.c.h.b16 %v685
    %v1241 = vunpack.c.l.b16 %v686
    %v1242 = vunpack.c.h.b16 %v686
    %v1243 = vunpack.c.l.b16 %v687
    %v1244 = vunpack.c.h.b16 %v687
    %v1245 = vunpack.c.l.b16 %v688
    %v1246 = vunpack.c.h.b16 %v688
    %v1247 = vunpack.c.l.b16 %v689
    %v1248 = vunpack.c.h.b16 %v689
    %v1249 = vunpack.c.l.b16 %v690
    %v1250 = vunpack.c.h.b16 %v690
    %v1251 = vunpack.c.l.b16 %v691
    %v1252 = vunpack.c.h.b16 %v691
    %v1253 = vunpack.c.l.b16 %v692
    %v1254 = vunpack.c.h.b16 %v692
    %v1255 = vunpack.c.l.b16 %v693
    %v1256 = vunpack.c.h.b16 %v693
    %v1257 = vunpack.c.l.b16 %v694
    %v1258 = vunpack.c.h.b16 %v694
    %v1259 = vunpack.c.l.b16 %v695
    %v1260 = vunpack.c.h.b16 %v695
    %v1261 = vunpack.c.l.b16 %v696
    %v1262 = vunpack.c.h.b16 %v696
    %v1263 = vunpack.c.l.b16 %v697
    %v1264 = vunpack.c.h.b16 %v697
    %v1265 = vunpack.c.l.b16 %v698
    %v1266 = vunpack.c.h.b16 %v698
    %v1267 = vunpack.c.l.b16 %v699
    %v1268 = vunpack.c.h.b16 %v699
    %v1269 = vunpack.c.l.b16 %v700
    %v1270 = vunpack.c.h.b16 %v700
    %v1271 = vunpack.c.l.b16 %v701
    %v1272 = vunpack.c.h.b16 %v701
    %v1273 = vunpack.c.l.b16 %v702
    %v1274 = vunpack.c.h.b16 %v702
    %v1275 = vunpack.c.l.b16 %v703
    %v1276 = vunpack.c.h.b16 %v703
    %v1277 = vunpack.c.l.b16 %v704
    %v1278 = vunpack.c.h.b16 %v704
    %v1279 = vunpack.c.l.b16 %v705
    %v1280 = vunpack.c.h.b16 %v705
    %v1281 = vunpack.c.l.b16 %v706
    %v1282 = vunpack.c.h.b16 %v706
    %v1283 = vunpack.c.l.b16 %v707
    %v1284 = vunpack.c.h.b16 %v707
    %v1285 = vunpack.c.l.b16 %v708
    %v1286 = vunpack.c.h.b16 %v708
    %v1287 = vunpack.c.l.b16 %v709
    %v1288 = vunpack.c.h.b16 %v709
    %v1289 = vunpack.c.l.b16 %v710
    %v1290 = vunpack.c.h.b16 %v710
    %v1291 = vunpack.c.l.b16 %v711
    %v1292 = vunpack.c.h.b16 %v711
    %v1293 = vunpack.c.l.b16 %v712
    %v1294 = vunpack.c.h.b16 %v712
    %v1295 = vunpack.c.l.b16 %v713
    %v1296 = vunpack.c.h.b16 %v713
    %v1297 = vunpack.c.l.b16 %v714
    %v1298 = vunpack.c.h.b16 %v714
    %v1299 = vunpack.c.l.b16 %v715
    %v1300 = vunpack.c.h.b16 %v715
    %v1301 = vunpack.c.l.b16 %v716
    %v1302 = vunpack.c.h.b16 %v716
    %v1303 = vunpack.c.l.b16 %v717
    %v1304 = vunpack.c.h.b16 %v717
    %v1305 = vunpack.c.l.b16 %v718
    %v1306 = vunpack.c.h.b16 %v718
    %v1307 = vunpack.c.l.b16 %v719
    %v1308 = vunpack.c.h.b16 %v719
    %v1309 = vunpack.c.l.b16 %v720
    %v1310 = vunpack.c.h.b16 %v720
    %v1311 = vunpack.c.l.b16 %v721
    %v1312 = vunpack.c.h.b16 %v721
    %v1313 = vunpack.c.l.b16 %v722
    %v1314 = vunpack.c.h.b16 %v722
    %v1315 = vunpack.c.l.b16 %v723
    %v1316 = vunpack.c.h.b16 %v723
    %v1317 = vunpack.c.l.b16 %v724
    %v1318 = vunpack.c.h.b16 %v724
    %v1319 = vunpack.c.l.b16 %v725
    %v1320 = vunpack.c.h.b16 %v725
    %v1321 = vunpack.c.l.b16 %v726
    %v1322 = vunpack.c.h.b16 %v726
    %v1323 = vunpack.c.l.b16 %v727
    %v1324 = vunpack.c.h.b16 %v727
    %v1325 = vunpack.c.l.b16 %v728
    %v1326 = vunpack.c.h.b16 %v728
    %v1327 = vunpack.c.l.b16 %v729
    %v1328 = vunpack.c.h.b16 %v729
    %v1329 = vunpack.c.l.b16 %v730
    %v1330 = vunpack.c.h.b16 %v730
    %v1331 = vunpack.c.l.b16 %v731
    %v1332 = vunpack.c.h.b16 %v731
    %v1333 = vunpack.c.l.b16 %v732
    %v1334 = vunpack.c.h.b16 %v732
    %v1335 = vunpack.c.l.b16 %v733
    %v1336 = vunpack.c.h.b16 %v733
    %v1337 = vunpack.c.l.b16 %v734
    %v1338 = vunpack.c.h.b16 %v734
    %v1339 = vunpack.c.l.b16 %v735
    %v1340 = vunpack.c.h.b16 %v735
    %v1341 = vunpack.c.l.b16 %v736
    %v1342 = vunpack.c.h.b16 %v736
    %v1343 = vunpack.c.l.b16 %v737
    %v1344 = vunpack.c.h.b16 %v737
    %v1345 = vunpack.c.l.b16 %v738
    %v1346 = vunpack.c.h.b16 %v738
    %v1347 = vunpack.c.l.b16 %v739
    %v1348 = vunpack.c.h.b16 %v739
    %v1349 = vunpack.c.l.b16 %v740
    %v1350 = vunpack.c.h.b16 %v740
    %v1351 = vunpack.c.l.b16 %v741
    %v1352 = vunpack.c.h.b16 %v741
    %v1353 = vunpack.c.l.b16 %v742
    %v1354 = vunpack.c.h.b16 %v742
    %v1355 = vunpack.c.l.b16 %v743
    %v1356 = vunpack.c.h.b16 %v743
    %v1357 = vunpack.c.l.b16 %v744
    %v1358 = vunpack.c.h.b16 %v744
    %v1359 = vunpack.c.l.b16 %v745
    %v1360 = vunpack.c.h.b16 %v745
    %v1361 = vunpack.c.l.b16 %v746
    %v1362 = vunpack.c.h.b16 %v746
    %v1363 = vunpack.c.l.b16 %v747
    %v1364 = vunpack.c.h.b16 %v747
    %v1365 = vunpack.c.l.b16 %v748
    %v1366 = vunpack.c.h.b16 %v748
    %v1367 = vunpack.c.l.b16 %v749
    %v1368 = vunpack.c.h.b16 %v749
    %v1369 = vunpack.c.l.b16 %v750
    %v1370 = vunpack.c.h.b16 %v750
    %v1371 = vunpack.c.l.b16 %v751
    %v1372 = vunpack.c.h.b16 %v751
    %v1373 = vunpack.c.l.b16 %v752
    %v1374 = vunpack.c.h.b16 %v752
    %v1375 = vunpack.c.l.b16 %v753
    %v1376 = vunpack.c.h.b16 %v753
    %v1377 = vunpack.c.l.b16 %v754
    %v1378 = vunpack.c.h.b16 %v754
    %v1379 = vunpack.c.l.b16 %v755
    %v1380 = vunpack.c.h.b16 %v755
    %v1381 = vunpack.c.l.b16 %v756
    %v1382 = vunpack.c.h.b16 %v756
    %v1383 = vunpack.c.l.b16 %v757
    %v1384 = vunpack.c.h.b16 %v757
    %v1385 = vunpack.c.l.b16 %v758
    %v1386 = vunpack.c.h.b16 %v758
    %v1387 = vunpack.c.l.b16 %v759
    %v1388 = vunpack.c.h.b16 %v759
    %v1389 = vunpack.c.l.b16 %v760
    %v1390 = vunpack.c.h.b16 %v760
    %v1391 = vunpack.c.l.b16 %v761
    %v1392 = vunpack.c.h.b16 %v761
    %v1393 = vunpack.c.l.b16 %v762
    %v1394 = vunpack.c.h.b16 %v762
    %v1395 = vunpack.c.l.b16 %v763
    %v1396 = vunpack.c.h.b16 %v763
    %v1397 = vunpack.c.l.b16 %v764
    %v1398 = vunpack.c.h.b16 %v764
    %v1399 = vunpack.c.l.b16 %v765
    %v1400 = vunpack.c.h.b16 %v765
    %v1401 = vunpack.c.l.b16 %v766
    %v1402 = vunpack.c.h.b16 %v766
    %v1403 = vunpack.c.l.b16 %v767
    %v1404 = vunpack.c.h.b16 %v767
    %v1405 = vunpack.c.l.b16 %v768
    %v1406 = vunpack.c.h.b16 %v768
    %v1407 = vunpack.c.l.b16 %v769
    %v1408 = vunpack.c.h.b16 %v769
    %v1409 = vunpack.c.l.b16 %v770
    %v1410 = vunpack.c.h.b16 %v770
    %v1411 = vunpack.c.l.b16 %v771
    %v1412 = vunpack.c.h.b16 %v771
    %v1413 = vunpack.c.l.b16 %v772
    %v1414 = vunpack.c.h.b16 %v772
    %v1415 = vunpack.c.l.b16 %v773
    %v1416 = vunpack.c.h.b16 %v773
    %v1417 = vunpack.c.l.b16 %v774
    %v1418 = vunpack.c.h.b16 %v774
    %v1419 = vunpack.c.l.b16 %v775
    %v1420 = vunpack.c.h.b16 %v775
    %v1421 = vunpack.c.l.b16 %v776
    %v1422 = vunpack.c.h.b16 %v776
    %v1423 = vunpack.c.l.b16 %v777
    %v1424 = vunpack.c.h.b16 %v777
    %v1425 = vunpack.c.l.b16 %v778
    %v1426 = vunpack.c.h.b16 %v778
    %v1427 = vunpack.c.l.b16 %v779
    %v1428 = vunpack.c.h.b16 %v779
    %v1429 = vunpack.c.l.b16 %v780
    %v1430 = vunpack.c.h.b16 %v780
    %v1431 = vunpack.c.l.b16 %v781
    %v1432 = vunpack.c.h.b16 %v781
    %v1433 = vunpack.c.l.b16 %v782
    %v1434 = vunpack.c.h.b16 %v782
    %v1435 = vunpack.c.l.b16 %v783
    %v1436 = vunpack.c.h.b16 %v783
    %v1437 = vunpack.c.l.b16 %v784
    %v1438 = vunpack.c.h.b16 %v784
    %v1439 = vunpack.c.l.b16 %v785
    %v1440 = vunpack.c.h.b16 %v785
    %v1441 = vunpack.c.l.b16 %v786
    %v1442 = vunpack.c.h.b16 %v786
    %v1443 = vunpack.c.l.b16 %v787
    %v1444 = vunpack.c.h.b16 %v787
    %v1445 = vunpack.c.l.b16 %v788
    %v1446 = vunpack.c.h.b16 %v788
    %v1447 = vunpack.c.l.b16 %v789
    %v1448 = vunpack.c.h.b16 %v789
    %v1449 = vunpack.c.l.b16 %v790
    %v1450 = vunpack.c.h.b16 %v790
    %v1451 = vunpack.c.l.b16 %v791
    %v1452 = vunpack.c.h.b16 %v791
    %v1453 = vunpack.c.l.b16 %v792
    %v1454 = vunpack.c.h.b16 %v792
    %v1455 = vunpack.c.l.b16 %v793
    %v1456 = vunpack.c.h.b16 %v793
    %v1457 = vunpack.c.l.b16 %v794
    %v1458 = vunpack.c.h.b16 %v794
    %v1459 = vunpack.c.l.b16 %v795
    %v1460 = vunpack.c.h.b16 %v795
    %v1461 = vunpack.c.l.b16 %v796
    %v1462 = vunpack.c.h.b16 %v796
    %v1463 = vunpack.c.l.b16 %v797
    %v1464 = vunpack.c.h.b16 %v797
    %v1465 = vunpack.c.l.b16 %v798
    %v1466 = vunpack.c.h.b16 %v798
    %v1467 = vunpack.c.l.b16 %v799
    %v1468 = vunpack.c.h.b16 %v799
    %v1469 = vunpack.c.l.b16 %v800
    %v1470 = vunpack.c.h.b16 %v800
    %v1471 = vunpack.c.l.b16 %v801
    %v1472 = vunpack.c.h.b16 %v801
    %v1473 = vunpack.c.l.b16 %v802
    %v1474 = vunpack.c.h.b16 %v802
    %v1475 = vunpack.c.l.b16 %v803
    %v1476 = vunpack.c.h.b16 %v803
    %v1477 = vunpack.c.l.b16 %v804
    %v1478 = vunpack.c.h.b16 %v804
    %v1479 = vunpack.c.l.b16 %v805
    %v1480 = vunpack.c.h.b16 %v805
    %v1481 = vunpack.c.l.b16 %v806
    %v1482 = vunpack.c.h.b16 %v806
    %v1483 = vunpack.c.l.b16 %v807
    %v1484 = vunpack.c.h.b16 %v807
    %v1485 = vunpack.c.l.b16 %v808
    %v1486 = vunpack.c.h.b16 %v808
    %v1487 = vunpack.c.l.b16 %v809
    %v1488 = vunpack.c.h.b16 %v809
    %v1489 = vunpack.c.l.b16 %v810
    %v1490 = vunpack.c.h.b16 %v810
    %v1491 = vunpack.c.l.b16 %v811
    %v1492 = vunpack.c.h.b16 %v811
    %v1493 = vunpack.c.l.b16 %v812
    %v1494 = vunpack.c.h.b16 %v812
    %v1495 = vunpack.c.l.b16 %v813
    %v1496 = vunpack.c.h.b16 %v813
    %v1497 = vunpack.c.l.b16 %v814
    %v1498 = vunpack.c.h.b16 %v814
    %v1499 = vunpack.c.l.b16 %v815
    %v1500 = vunpack.c.h.b16 %v815
    %v1501 = vunpack.c.l.b16 %v816
    %v1502 = vunpack.c.h.b16 %v816
    %v1503 = vunpack.c.l.b16 %v817
    %v1504 = vunpack.c.h.b16 %v817
    %v1505 = vunpack.c.l.b16 %v818
    %v1506 = vunpack.c.h.b16 %v818
    %v1507 = vunpack.c.l.b16 %v819
    %v1508 = vunpack.c.h.b16 %v819
    %v1509 = vunpack.c.l.b16 %v820
    %v1510 = vunpack.c.h.b16 %v820
    %v1511 = vunpack.c.l.b16 %v821
    %v1512 = vunpack.c.h.b16 %v821
    %v1513 = vunpack.c.l.b16 %v822
    %v1514 = vunpack.c.h.b16 %v822
    %v1515 = vunpack.c.l.b16 %v823
    %v1516 = vunpack.c.h.b16 %v823
    %v1517 = vunpack.c.l.b16 %v824
    %v1518 = vunpack.c.h.b16 %v824
    %v1519 = vunpack.c.l.b16 %v825
    %v1520 = vunpack.c.h.b16 %v825
    %v1521 = vunpack.c.l.b16 %v826
    %v1522 = vunpack.c.h.b16 %v826
    %v1523 = vunpack.c.l.b16 %v827
    %v1524 = vunpack.c.h.b16 %v827
    %v1525 = vunpack.c.l.b16 %v828
    %v1526 = vunpack.c.h.b16 %v828
    %v1527 = vunpack.c.l.b16 %v829
    %v1528 = vunpack.c.h.b16 %v829
    %v1529 = vunpack.c.l.b16 %v830
    %v1530 = vunpack.c.h.b16 %v830
    %v1531 = vunpack.c.l.b16 %v831
    %v1532 = vunpack.c.h.b16 %v831
    %v1533 = vunpack.c.l.b16 %v832
    %v1534 = vunpack.c.h.b16 %v832
    %v1535 = vunpack.c.l.b16 %v833
    %v1536 = vunpack.c.h.b16 %v833
    %v1537 = vunpack.c.l.b16 %v834
    %v1538 = vunpack.c.h.b16 %v834
    %v1539 = vunpack.c.l.b16 %v835
    %v1540 = vunpack.c.h.b16 %v835
    %v1541 = vunpack.c.l.b16 %v836
    %v1542 = vunpack.c.h.b16 %v836
    %v1543 = vunpack.c.l.b16 %v837
    %v1544 = vunpack.c.h.b16 %v837
    %v1545 = vunpack.c.l.b16 %v838
    %v1546 = vunpack.c.h.b16 %v838
    %v1547 = vunpack.c.l.b16 %v839
    %v1548 = vunpack.c.h.b16 %v839
    %v1549 = vunpack.c.l.b16 %v840
    %v1550 = vunpack.c.h.b16 %v840
    %v1551 = vunpack.c.l.b16 %v841
    %v1552 = vunpack.c.h.b16 %v841
    %v1553 = vunpack.c.l.b16 %v842
    %v1554 = vunpack.c.h.b16 %v842
    %v1555 = vunpack.c.l.b16 %v843
    %v1556 = vunpack.c.h.b16 %v843
    %v1557 = vunpack.c.l.b16 %v844
    %v1558 = vunpack.c.h.b16 %v844
    %v1559 = vunpack.c.l.b16 %v845
    %v1560 = vunpack.c.h.b16 %v845
    %v1561 = vunpack.c.l.b16 %v846
    %v1562 = vunpack.c.h.b16 %v846
    %v1563 = vunpack.c.l.b16 %v847
    %v1564 = vunpack.c.h.b16 %v847
    %v1565 = vunpack.c.l.b16 %v848
    %v1566 = vunpack.c.h.b16 %v848
    %v1567 = vunpack.c.l.b16 %v849
    %v1568 = vunpack.c.h.b16 %v849
    %v1569 = vunpack.c.l.b16 %v850
    %v1570 = vunpack.c.h.b16 %v850
    %v1571 = vunpack.c.l.b16 %v851
    %v1572 = vunpack.c.h.b16 %v851
    %v1573 = vunpack.c.l.b16 %v852
    %v1574 = vunpack.c.h.b16 %v852
    %v1575 = vunpack.c.l.b16 %v853
    %v1576 = vunpack.c.h.b16 %v853
    %v1577 = vunpack.c.l.b16 %v854
    %v1578 = vunpack.c.h.b16 %v854
    %v1579 = vunpack.c.l.b16 %v855
    %v1580 = vunpack.c.h.b16 %v855
    %v1581 = vunpack.c.l.b16 %v856
    %v1582 = vunpack.c.h.b16 %v856
    %v1583 = vunpack.c.l.b16 %v857
    %v1584 = vunpack.c.h.b16 %v857
    %v1585 = vunpack.c.l.b16 %v858
    %v1586 = vunpack.c.h.b16 %v858
    %v1587 = vunpack.c.l.b16 %v859
    %v1588 = vunpack.c.h.b16 %v859
    %v1589 = vunpack.c.l.b16 %v860
    %v1590 = vunpack.c.h.b16 %v860
    %v1591 = vunpack.c.l.b16 %v861
    %v1592 = vunpack.c.h.b16 %v861
    %v1593 = vunpack.c.l.b16 %v862
    %v1594 = vunpack.c.h.b16 %v862
    %v1595 = vunpack.c.l.b16 %v863
    %v1596 = vunpack.c.h.b16 %v863
    %v1597 = vunpack.c.l.b16 %v864
    %v1598 = vunpack.c.h.b16 %v864
    %v1599 = vunpack.c.l.b16 %v865
    %v1600 = vunpack.c.h.b16 %v865
    %v1601 = vunpack.c.l.b16 %v866
    %v1602 = vunpack.c.h.b16 %v866
    %v1603 = vunpack.c.l.b16 %v867
    %v1604 = vunpack.c.h.b16 %v867
    %v1605 = vunpack.c.l.b16 %v868
    %v1606 = vunpack.c.h.b16 %v868
    %v1607 = vunpack.c.l.b16 %v869
    %v1608 = vunpack.c.h.b16 %v869
    %v1609 = vunpack.c.l.b16 %v870
    %v1610 = vunpack.c.h.b16 %v870
    %v1611 = vunpack.c.l.b16 %v871
    %v1612 = vunpack.c.h.b16 %v871
    %v1613 = vunpack.c.l.b16 %v872
    %v1614 = vunpack.c.h.b16 %v872
    %v1615 = vunpack.c.l.b16 %v873
    %v1616 = vunpack.c.h.b16 %v873
    %v1617 = vunpack.c.l.b16 %v874
    %v1618 = vunpack.c.h.b16 %v874
    %v1619 = vunpack.c.l.b16 %v875
    %v1620 = vunpack.c.h.b16 %v875
    %v1621 = vunpack.c.l.b16 %v876
    %v1622 = vunpack.c.h.b16 %v876
    %v1623 = vunpack.c.l.b16 %v877
    %v1624 = vunpack.c.h.b16 %v877
    %v1625 = vunpack.c.l.b16 %v878
    %v1626 = vunpack.c.h.b16 %v878
    %v1627 = vunpack.c.l.b16 %v879
    %v1628 = vunpack.c.h.b16 %v879
    %v1629 = vunpack.c.l.b16 %v880
    %v1630 = vunpack.c.h.b16 %v880
    %v1631 = vunpack.c.l.b16 %v881
    %v1632 = vunpack.c.h.b16 %v881
    %v1633 = vunpack.c.l.b16 %v882
    %v1634 = vunpack.c.h.b16 %v882
    %v1635 = vunpack.c.l.b16 %v883
    %v1636 = vunpack.c.h.b16 %v883
    %v1637 = vunpack.c.l.b16 %v884
    %v1638 = vunpack.c.h.b16 %v884
    %v1639 = vunpack.c.l.b16 %v885
    %v1640 = vunpack.c.h.b16 %v885
    %v1641 = vunpack.c.l.b16 %v886
    %v1642 = vunpack.c.h.b16 %v886
    %v1643 = vunpack.c.l.b16 %v887
    %v1644 = vunpack.c.h.b16 %v887
    %v1645 = vunpack.c.l.b16 %v888
    %v1646 = vunpack.c.h.b16 %v888
    %v1647 = vunpack.c.l.b16 %v889
    %v1648 = vunpack.c.h.b16 %v889
    %v1649 = vunpack.c.l.b16 %v890
    %v1650 = vunpack.c.h.b16 %v890
    %v1651 = vunpack.c.l.b16 %v891
    %v1652 = vunpack.c.h.b16 %v891
    %v1653 = vunpack.c.l.b16 %v892
    %v1654 = vunpack.c.h.b16 %v892
    %v1655 = vunpack.c.l.b16 %v893
    %v1656 = vunpack.c.h.b16 %v893
    %v1657 = vunpack.c.l.b16 %v894
    %v1658 = vunpack.c.h.b16 %v894
    %v1659 = vunpack.c.l.b16 %v895
    %v1660 = vunpack.c.h.b16 %v895
    %v1661 = vunpack.c.l.b16 %v896
    %v1662 = vunpack.c.h.b16 %v896
    %v1663 = vunpack.c.l.b16 %v897
    %v1664 = vunpack.c.h.b16 %v897
    %v1665 = vunpack.c.l.b16 %v898
    %v1666 = vunpack.c.h.b16 %v898
    %v1667 = vunpack.c.l.b16 %v899
    %v1668 = vunpack.c.h.b16 %v899
    %v1669 = vunpack.c.l.b16 %v900
    %v1670 = vunpack.c.h.b16 %v900
    %v1671 = vunpack.c.l.b16 %v901
    %v1672 = vunpack.c.h.b16 %v901
    %v1673 = vunpack.c.l.b16 %v902
    %v1674 = vunpack.c.h.b16 %v902
    %v1675 = vunpack.c.l.b16 %v903
    %v1676 = vunpack.c.h.b16 %v903
    %v1677 = vunpack.c.l.b16 %v904
    %v1678 = vunpack.c.h.b16 %v904
    %v1679 = vunpack.c.l.b16 %v905
    %v1680 = vunpack.c.h.b16 %v905
    %v1681 = vunpack.c.l.b16 %v906
    %v1682 = vunpack.c.h.b16 %v906
    %v1683 = vunpack.c.l.b16 %v907
    %v1684 = vunpack.c.h.b16 %v907
    %v1685 = vunpack.c.l.b16 %v908
    %v1686 = vunpack.c.h.b16 %v908
    %v1687 = vpack.c.b16 %v1179, %v1175
    %v1688 = vpack.c.b16 %v1180, %v1176
    %v1689 = vpack.c.b16 %v1181, %v1177
    %v1690 = vpack.c.b16 %v1182, %v1178
    %v1691 = vpack.c.b16 %v1187, %v1183
    %v1692 = vpack.c.b16 %v1188, %v1184
    %v1693 = vpack.c.b16 %v1189, %v1185
    %v1694 = vpack.c.b16 %v1190, %v1186
    %v1695 = vpack.c.b16 %v1195, %v1191
    %v1696 = vpack.c.b16 %v1196, %v1192
    %v1697 = vpack.c.b16 %v1197, %v1193
    %v1698 = vpack.c.b16 %v1198, %v1194
    %v1699 = vpack.c.b16 %v1203, %v1199
    %v1700 = vpack.c.b16 %v1204, %v1200
    %v1701 = vpack.c.b16 %v1205, %v1201
    %v1702 = vpack.c.b16 %v1206, %v1202
    %v1703 = vpack.c.b16 %v1211, %v1207
    %v1704 = vpack.c.b16 %v1212, %v1208
    %v1705 = vpack.c.b16 %v1213, %v1209
    %v1706 = vpack.c.b16 %v1214, %v1210
    %v1707 = vpack.c.b16 %v1219, %v1215
    %v1708 = vpack.c.b16 %v1220, %v1216
    %v1709 = vpack.c.b16 %v1221, %v1217
    %v1710 = vpack.c.b16 %v1222, %v1218
    %v1711 = vpack.c.b16 %v1227, %v1223
    %v1712 = vpack.c.b16 %v1228, %v1224
    %v1713 = vpack.c.b16 %v1229, %v1225
    %v1714 = vpack.c.b16 %v1230, %v1226
    %v1715 = vpack.c.b16 %v1235, %v1231
    %v1716 = vpack.c.b16 %v1236, %v1232
    %v1717 = vpack.c.b16 %v1237, %v1233
    %v1718 = vpack.c.b16 %v1238, %v1234
    %v1719 = vpack.c.b16 %v1243, %v1239
    %v1720 = vpack.c.b16 %v1244, %v1240
    %v1721 = vpack.c.b16 %v1245, %v1241
    %v1722 = vpack.c.b16 %v1246, %v1242
    %v1723 = vpack.c.b16 %v1251, %v1247
    %v1724 = vpack.c.b16 %v1252, %v1248
    %v1725 = vpack.c.b16 %v1253, %v1249
    %v1726 = vpack.c.b16 %v1254, %v1250
    %v1727 = vpack.c.b16 %v1259, %v1255
    %v1728 = vpack.c.b16 %v1260, %v1256
    %v1729 = vpack.c.b16 %v1261, %v1257
    %v1730 = vpack.c.b16 %v1262, %v1258
    %v1731 = vpack.c.b16 %v1267, %v1263
    %v1732 = vpack.c.b16 %v1268, %v1264
    %v1733 = vpack.c.b16 %v1269, %v1265
    %v1734 = vpack.c.b16 %v1270, %v1266
    %v1735 = vpack.c.b16 %v1275, %v1271
    %v1736 = vpack.c.b16 %v1276, %v1272
    %v1737 = vpack.c.b16 %v1277, %v1273
    %v1738 = vpack.c.b16 %v1278, %v1274
    %v1739 = vpack.c.b16 %v1283, %v1279
    %v1740 = vpack.c.b16 %v1284, %v1280
    %v1741 = vpack.c.b16 %v1285, %v1281
    %v1742 = vpack.c.b16 %v1286, %v1282
    %v1743 = vpack.c.b16 %v1291, %v1287
    %v1744 = vpack.c.b16 %v1292, %v1288
    %v1745 = vpack.c.b16 %v1293, %v1289
    %v1746 = vpack.c.b16 %v1294, %v1290
    %v1747 = vpack.c.b16 %v1299, %v1295
    %v1748 = vpack.c.b16 %v1300, %v1296
    %v1749 = vpack.c.b16 %v1301, %v1297
    %v1750 = vpack.c.b16 %v1302, %v1298
    %v1751 = vpack.c.b16 %v1307, %v1303
    %v1752 = vpack.c.b16 %v1308, %v1304
    %v1753 = vpack.c.b16 %v1309, %v1305
    %v1754 = vpack.c.b16 %v1310, %v1306
    %v1755 = vpack.c.b16 %v1315, %v1311
    %v1756 = vpack.c.b16 %v1316, %v1312
    %v1757 = vpack.c.b16 %v1317, %v1313
    %v1758 = vpack.c.b16 %v1318, %v1314
    %v1759 = vpack.c.b16 %v1323, %v1319
    %v1760 = vpack.c.b16 %v1324, %v1320
    %v1761 = vpack.c.b16 %v1325, %v1321
    %v1762 = vpack.c.b16 %v1326, %v1322
    %v1763 = vpack.c.b16 %v1331, %v1327
    %v1764 = vpack.c.b16 %v1332, %v1328
    %v1765 = vpack.c.b16 %v1333, %v1329
    %v1766 = vpack.c.b16 %v1334, %v1330
    %v1767 = vpack.c.b16 %v1339, %v1335
    %v1768 = vpack.c.b16 %v1340, %v1336
    %v1769 = vpack.c.b16 %v1341, %v1337
    %v1770 = vpack.c.b16 %v1342, %v1338
    %v1771 = vpack.c.b16 %v1347, %v1343
    %v1772 = vpack.c.b16 %v1348, %v1344
    %v1773 = vpack.c.b16 %v1349, %v1345
    %v1774 = vpack.c.b16 %v1350, %v1346
    %v1775 = vpack.c.b16 %v1355, %v1351
    %v1776 = vpack.c.b16 %v1356, %v1352
    %v1777 = vpack.c.b16 %v1357, %v1353
    %v1778 = vpack.c.b16 %v1358, %v1354
    %v1779 = vpack.c.b16 %v1363, %v1359
    %v1780 = vpack.c.b16 %v1364, %v1360
    %v1781 = vpack.c.b16 %v1365, %v1361
    %v1782 = vpack.c.b16 %v1366, %v1362
    %v1783 = vpack.c.b16 %v1371, %v1367
    %v1784 = vpack.c.b16 %v1372, %v1368
    %v1785 = vpack.c.b16 %v1373, %v1369
    %v1786 = vpack.c.b16 %v1374, %v1370
    %v1787 = vpack.c.b16 %v1379, %v1375
    %v1788 = vpack.c.b16 %v1380, %v1376
    %v1789 = vpack.c.b16 %v1381, %v1377
    %v1790 = vpack.c.b16 %v1382, %v1378
    %v1791 = vpack.c.b16 %v1387, %v1383
    %v1792 = vpack.c.b16 %v1388, %v1384
    %v1793 = vpack.c.b16 %v1389, %v1385
    %v1794 = vpack.c.b16 %v1390, %v1386
    %v1795 = vpack.c.b16 %v1395, %v1391
    %v1796 = vpack.c.b16 %v1396, %v1392
    %v1797 = vpack.c.b16 %v1397, %v1393
    %v1798 = vpack.c.b16 %v1398, %v1394
    %v1799 = vpack.c.b16 %v1403, %v1399
    %v1800 = vpack.c.b16 %v1404, %v1400
    %v1801 = vpack.c.b16 %v1405, %v1401
    %v1802 = vpack.c.b16 %v1406, %v1402
    %v1803 = vpack.c.b16 %v1411, %v1407
    %v1804 = vpack.c.b16 %v1412, %v1408
    %v1805 = vpack.c.b16 %v1413, %v1409
    %v1806 = vpack.c.b16 %v1414, %v1410
    %v1807 = vpack.c.b16 %v1419, %v1415
    %v1808 = vpack.c.b16 %v1420, %v1416
    %v1809 = vpack.c.b16 %v1421, %v1417
    %v1810 = vpack.c.b16 %v1422, %v1418
    %v1811 = vpack.c.b16 %v1427, %v1423
    %v1812 = vpack.c.b16 %v1428, %v1424
    %v1813 = vpack.c.b16 %v1429, %v1425
    %v1814 = vpack.c.b16 %v1430, %v1426
    %v1815 = vpack.c.b16 %v1435, %v1431
    %v1816 = vpack.c.b16 %v1436, %v1432
    %v1817 = vpack.c.b16 %v1437, %v1433
    %v1818 = vpack.c.b16 %v1438, %v1434
    %v1819 = vpack.c.b16 %v1443, %v1439
    %v1820 = vpack.c.b16 %v1444, %v1440
    %v1821 = vpack.c.b16 %v1445, %v1441
    %v1822 = vpack.c.b16 %v1446, %v1442
    %v1823 = vpack.c.b16 %v1451, %v1447
    %v1824 = vpack.c.b16 %v1452, %v1448
    %v1825 = vpack.c.b16 %v1453, %v1449
    %v1826 = vpack.c.b16 %v1454, %v1450
    %v1827 = vpack.c.b16 %v1459, %v1455
    %v1828 = vpack.c.b16 %v1460, %v1456
    %v1829 = vpack.c.b16 %v1461, %v1457
    %v1830 = vpack.c.b16 %v1462, %v1458
    %v1831 = vpack.c.b16 %v1467, %v1463
    %v1832 = vpack.c.b16 %v1468, %v1464
    %v1833 = vpack.c.b16 %v1469, %v1465
    %v1834 = vpack.c.b16 %v1470, %v1466
    %v1835 = vpack.c.b16 %v1475, %v1471
    %v1836 = vpack.c.b16 %v1476, %v1472
    %v1837 = vpack.c.b16 %v1477, %v1473
    %v1838 = vpack.c.b16 %v1478, %v1474
    %v1839 = vpack.c.b16 %v1483, %v1479
    %v1840 = vpack.c.b16 %v1484, %v1480
    %v1841 = vpack.c.b16 %v1485, %v1481
    %v1842 = vpack.c.b16 %v1486, %v1482
    %v1843 = vpack.c.b16 %v1491, %v1487
    %v1844 = vpack.c.b16 %v1492, %v1488
    %v1845 = vpack.c.b16 %v1493, %v1489
    %v1846 = vpack.c.b16 %v1494, %v1490
    %v1847 = vpack.c.b16 %v1499, %v1495
    %v1848 = vpack.c.b16 %v1500, %v1496
    %v1849 = vpack.c.b16 %v1501, %v1497
    %v1850 = vpack.c.b16 %v1502, %v1498
    %v1851 = vpack.c.b16 %v1507, %v1503
    %v1852 = vpack.c.b16 %v1508, %v1504
    %v1853 = vpack.c.b16 %v1509, %v1505
    %v1854 = vpack.c.b16 %v1510, %v1506
    %v1855 = vpack.c.b16 %v1515, %v1511
    %v1856 = vpack.c.b16 %v1516, %v1512
    %v1857 = vpack.c.b16 %v1517, %v1513
    %v1858 = vpack.c.b16 %v1518, %v1514
    %v1859 = vpack.c.b16 %v1523, %v1519
    %v1860 = vpack.c.b16 %v1524, %v1520
    %v1861 = vpack.c.b16 %v1525, %v1521
    %v1862 = vpack.c.b16 %v1526, %v1522
    %v1863 = vpack.c.b16 %v1531, %v1527
    %v1864 = vpack.c.b16 %v1532, %v1528
    %v1865 = vpack.c.b16 %v1533, %v1529
    %v1866 = vpack.c.b16 %v1534, %v1530
    %v1867 = vpack.c.b16 %v1539, %v1535
    %v1868 = vpack.c.b16 %v1540, %v1536
    %v1869 = vpack.c.b16 %v1541, %v1537
    %v1870 = vpack.c.b16 %v1542, %v1538
    %v1871 = vpack.c.b16 %v1547, %v1543
    %v1872 = vpack.c.b16 %v1548, %v1544
    %v1873 = vpack.c.b16 %v1549, %v1545
    %v1874 = vpack.c.b16 %v1550, %v1546
    %v1875 = vpack.c.b16 %v1555, %v1551
    %v1876 = vpack.c.b16 %v1556, %v1552
    %v1877 = vpack.c.b16 %v1557, %v1553
    %v1878 = vpack.c.b16 %v1558, %v1554
    %v1879 = vpack.c.b16 %v1563, %v1559
    %v1880 = vpack.c.b16 %v1564, %v1560
    %v1881 = vpack.c.b16 %v1565, %v1561
    %v1882 = vpack.c.b16 %v1566, %v1562
    %v1883 = vpack.c.b16 %v1571, %v1567
    %v1884 = vpack.c.b16 %v1572, %v1568
    %v1885 = vpack.c.b16 %v1573, %v1569
    %v1886 = vpack.c.b16 %v1574, %v1570
    %v1887 = vpack.c.b16 %v1579, %v1575
    %v1888 = vpack.c.b16 %v1580, %v1576
    %v1889 = vpack.c.b16 %v1581, %v1577
    %v1890 = vpack.c.b16 %v1582, %v1578
    %v1891 = vpack.c.b16 %v1587, %v1583
    %v1892 = vpack.c.b16 %v1588, %v1584
    %v1893 = vpack.c.b16 %v1589, %v1585
    %v1894 = vpack.c.b16 %v1590, %v1586
    %v1895 = vpack.c.b16 %v1595, %v1591
    %v1896 = vpack.c.b16 %v1596, %v1592
    %v1897 = vpack.c.b16 %v1597, %v1593
    %v1898 = vpack.c.b16 %v1598, %v1594
    %v1899 = vpack.c.b16 %v1603, %v1599
    %v1900 = vpack.c.b16 %v1604, %v1600
    %v1901 = vpack.c.b16 %v1605, %v1601
    %v1902 = vpack.c.b16 %v1606, %v1602
    %v1903 = vpack.c.b16 %v1611, %v1607
    %v1904 = vpack.c.b16 %v1612, %v1608
    %v1905 = vpack.c.b16 %v1613, %v1609
    %v1906 = vpack.c.b16 %v1614, %v1610
    %v1907 = vpack.c.b16 %v1619, %v1615
    %v1908 = vpack.c.b16 %v1620, %v1616
    %v1909 = vpack.c.b16 %v1621, %v1617
    %v1910 = vpack.c.b16 %v1622, %v1618
    %v1911 = vpack.c.b16 %v1627, %v1623
    %v1912 = vpack.c.b16 %v1628, %v1624
    %v1913 = vpack.c.b16 %v1629, %v1625
    %v1914 = vpack.c.b16 %v1630, %v1626
    %v1915 = vpack.c.b16 %v1635, %v1631
    %v1916 = vpack.c.b16 %v1636, %v1632
    %v1917 = vpack.c.b16 %v1637, %v1633
    %v1918 = vpack.c.b16 %v1638, %v1634
    %v1919 = vpack.c.b16 %v1643, %v1639
    %v1920 = vpack.c.b16 %v1644, %v1640
    %v1921 = vpack.c.b16 %v1645, %v1641
    %v1922 = vpack.c.b16 %v1646, %v1642
    %v1923 = vpack.c.b16 %v1651, %v1647
    %v1924 = vpack.c.b16 %v1652, %v1648
    %v1925 = vpack.c.b16 %v1653, %v1649
    %v1926 = vpack.c.b16 %v1654, %v1650
    %v1927 = vpack.c.b16 %v1659, %v1655
    %v1928 = vpack.c.b16 %v1660, %v1656
    %v1929 = vpack.c.b16 %v1661, %v1657
    %v1930 = vpack.c.b16 %v1662, %v1658
    %v1931 = vpack.c.b16 %v1667, %v1663
    %v1932 = vpack.c.b16 %v1668, %v1664
    %v1933 = vpack.c.b16 %v1669, %v1665
    %v1934 = vpack.c.b16 %v1670, %v1666
    %v1935 = vpack.c.b16 %v1675, %v1671
    %v1936 = vpack.c.b16 %v1676, %v1672
    %v1937 = vpack.c.b16 %v1677, %v1673
    %v1938 = vpack.c.b16 %v1678, %v1674
    %v1939 = vpack.c.b16 %v1683, %v1679
    %v1940 = vpack.c.b16 %v1684, %v1680
    %v1941 = vpack.c.b16 %v1685, %v1681
    %v1942 = vpack.c.b16 %v1686, %v1682
    %2199 = vmatpush.bf16.msra.mxu0 %v1715
    %2200 = vmatpush.bf16.msra.mxu0 %v1711
    %2201 = vmatpush.bf16.msra.mxu0 %v1707
    %2202 = vmatpush.bf16.msra.mxu0 %v1703
    %2203 = vmatpush.bf16.msra.mxu0 %v1699
    %2204 = vmatpush.bf16.msra.mxu0 %v1695
    %2205 = vmatpush.bf16.msra.mxu0 %v1691
    %2206 = vmatpush.bf16.msra.mxu0 %v1687
    %2207 = vmatmul.bf16.gmra.mxu0 %v645
    %v2208 = vpop.f32.mrf.mxu0
    %v2209 = vadd.f32 %v911, %v2208
    %v2210 = vpop.f32.mrf.mxu0
    %2211 = vdwg.mxu0
    %2212 = vmatpush.bf16.msra.mxu0 %v1747
    %2213 = vmatpush.bf16.msra.mxu0 %v1743
    %2214 = vmatpush.bf16.msra.mxu0 %v1739
    %2215 = vmatpush.bf16.msra.mxu0 %v1735
    %2216 = vmatpush.bf16.msra.mxu0 %v1731
    %2217 = vmatpush.bf16.msra.mxu0 %v1727
    %2218 = vmatpush.bf16.msra.mxu0 %v1723
    %2219 = vmatpush.bf16.msra.mxu0 %v1719
    %2220 = vmatmul.bf16.gmra.mxu0 %v646
    %v2221 = vpop.f32.mrf.mxu0
    %v2222 = vadd.f32 %v2209, %v2221
    %v2223 = vpop.f32.mrf.mxu0
    %2224 = vdwg.mxu0
    %2225 = vmatpush.bf16.msra.mxu0 %v1779
    %2226 = vmatpush.bf16.msra.mxu0 %v1775
    %2227 = vmatpush.bf16.msra.mxu0 %v1771
    %2228 = vmatpush.bf16.msra.mxu0 %v1767
    %2229 = vmatpush.bf16.msra.mxu0 %v1763
    %2230 = vmatpush.bf16.msra.mxu0 %v1759
    %2231 = vmatpush.bf16.msra.mxu0 %v1755
    %2232 = vmatpush.bf16.msra.mxu0 %v1751
    %2233 = vmatmul.bf16.gmra.mxu0 %v647
    %v2234 = vpop.f32.mrf.mxu0
    %v2235 = vadd.f32 %v2222, %v2234
    %v2236 = vpop.f32.mrf.mxu0
    %2237 = vdwg.mxu0
    %2238 = vmatpush.bf16.msra.mxu0 %v1811
    %2239 = vmatpush.bf16.msra.mxu0 %v1807
    %2240 = vmatpush.bf16.msra.mxu0 %v1803
    %2241 = vmatpush.bf16.msra.mxu0 %v1799
    %2242 = vmatpush.bf16.msra.mxu0 %v1795
    %2243 = vmatpush.bf16.msra.mxu0 %v1791
    %2244 = vmatpush.bf16.msra.mxu0 %v1787
    %2245 = vmatpush.bf16.msra.mxu0 %v1783
    %2246 = vmatmul.bf16.gmra.mxu0 %v648
    %v2247 = vpop.f32.mrf.mxu0
    %v2248 = vadd.f32 %v2235, %v2247
    %v2249 = vpop.f32.mrf.mxu0
    %2250 = vdwg.mxu0
    %2251 = vmatpush.bf16.msra.mxu0 %v1843
    %2252 = vmatpush.bf16.msra.mxu0 %v1839
    %2253 = vmatpush.bf16.msra.mxu0 %v1835
    %2254 = vmatpush.bf16.msra.mxu0 %v1831
    %2255 = vmatpush.bf16.msra.mxu0 %v1827
    %2256 = vmatpush.bf16.msra.mxu0 %v1823
    %2257 = vmatpush.bf16.msra.mxu0 %v1819
    %2258 = vmatpush.bf16.msra.mxu0 %v1815
    %2259 = vmatmul.bf16.gmra.mxu0 %v649
    %v2260 = vpop.f32.mrf.mxu0
    %v2261 = vadd.f32 %v2248, %v2260
    %v2262 = vpop.f32.mrf.mxu0
    %2263 = vdwg.mxu0
    %2264 = vmatpush.bf16.msra.mxu0 %v1875
    %2265 = vmatpush.bf16.msra.mxu0 %v1871
    %2266 = vmatpush.bf16.msra.mxu0 %v1867
    %2267 = vmatpush.bf16.msra.mxu0 %v1863
    %2268 = vmatpush.bf16.msra.mxu0 %v1859
    %2269 = vmatpush.bf16.msra.mxu0 %v1855
    %2270 = vmatpush.bf16.msra.mxu0 %v1851
    %2271 = vmatpush.bf16.msra.mxu0 %v1847
    %2272 = vmatmul.bf16.gmra.mxu0 %v650
    %v2273 = vpop.f32.mrf.mxu0
    %v2274 = vadd.f32 %v2261, %v2273
    %v2275 = vpop.f32.mrf.mxu0
    %2276 = vdwg.mxu0
    %2277 = vmatpush.bf16.msra.mxu0 %v1907
    %2278 = vmatpush.bf16.msra.mxu0 %v1903
    %2279 = vmatpush.bf16.msra.mxu0 %v1899
    %2280 = vmatpush.bf16.msra.mxu0 %v1895
    %2281 = vmatpush.bf16.msra.mxu0 %v1891
    %2282 = vmatpush.bf16.msra.mxu0 %v1887
    %2283 = vmatpush.bf16.msra.mxu0 %v1883
    %2284 = vmatpush.bf16.msra.mxu0 %v1879
    %2285 = vmatmul.bf16.gmra.mxu0 %v651
    %v2286 = vpop.f32.mrf.mxu0
    %v2287 = vadd.f32 %v2274, %v2286
    %v2288 = vpop.f32.mrf.mxu0
    %2289 = vdwg.mxu0
    %2290 = vmatpush.bf16.msra.mxu0 %v1939
    %2291 = vmatpush.bf16.msra.mxu0 %v1935
    %2292 = vmatpush.bf16.msra.mxu0 %v1931
    %2293 = vmatpush.bf16.msra.mxu0 %v1927
    %2294 = vmatpush.bf16.msra.mxu0 %v1923
    %2295 = vmatpush.bf16.msra.mxu0 %v1919
    %2296 = vmatpush.bf16.msra.mxu0 %v1915
    %2297 = vmatpush.bf16.msra.mxu0 %v1911
    %2298 = vmatmul.bf16.gmra.mxu0 %v652
    %v2299 = vpop.f32.mrf.mxu0
    %v2300 = vadd.f32 %v2287, %v2299
    %v2301 = vpop.f32.mrf.mxu0
    %2302 = vdwg.mxu0
    %2303 = vmatpush.bf16.msra.mxu0 %v1716
    %2304 = vmatpush.bf16.msra.mxu0 %v1712
    %2305 = vmatpush.bf16.msra.mxu0 %v1708
    %2306 = vmatpush.bf16.msra.mxu0 %v1704
    %2307 = vmatpush.bf16.msra.mxu0 %v1700
    %2308 = vmatpush.bf16.msra.mxu0 %v1696
    %2309 = vmatpush.bf16.msra.mxu0 %v1692
    %2310 = vmatpush.bf16.msra.mxu0 %v1688
    %2311 = vmatmul.bf16.gmra.mxu0 %v645
    %v2312 = vpop.f32.mrf.mxu0
    %v2313 = vadd.f32 %v912, %v2312
    %v2314 = vpop.f32.mrf.mxu0
    %2315 = vdwg.mxu0
    %2316 = vmatpush.bf16.msra.mxu0 %v1748
    %2317 = vmatpush.bf16.msra.mxu0 %v1744
    %2318 = vmatpush.bf16.msra.mxu0 %v1740
    %2319 = vmatpush.bf16.msra.mxu0 %v1736
    %2320 = vmatpush.bf16.msra.mxu0 %v1732
    %2321 = vmatpush.bf16.msra.mxu0 %v1728
    %2322 = vmatpush.bf16.msra.mxu0 %v1724
    %2323 = vmatpush.bf16.msra.mxu0 %v1720
    %2324 = vmatmul.bf16.gmra.mxu0 %v646
    %v2325 = vpop.f32.mrf.mxu0
    %v2326 = vadd.f32 %v2313, %v2325
    %v2327 = vpop.f32.mrf.mxu0
    %2328 = vdwg.mxu0
    %2329 = vmatpush.bf16.msra.mxu0 %v1780
    %2330 = vmatpush.bf16.msra.mxu0 %v1776
    %2331 = vmatpush.bf16.msra.mxu0 %v1772
    %2332 = vmatpush.bf16.msra.mxu0 %v1768
    %2333 = vmatpush.bf16.msra.mxu0 %v1764
    %2334 = vmatpush.bf16.msra.mxu0 %v1760
    %2335 = vmatpush.bf16.msra.mxu0 %v1756
    %2336 = vmatpush.bf16.msra.mxu0 %v1752
    %2337 = vmatmul.bf16.gmra.mxu0 %v647
    %v2338 = vpop.f32.mrf.mxu0
    %v2339 = vadd.f32 %v2326, %v2338
    %v2340 = vpop.f32.mrf.mxu0
    %2341 = vdwg.mxu0
    %2342 = vmatpush.bf16.msra.mxu0 %v1812
    %2343 = vmatpush.bf16.msra.mxu0 %v1808
    %2344 = vmatpush.bf16.msra.mxu0 %v1804
    %2345 = vmatpush.bf16.msra.mxu0 %v1800
    %2346 = vmatpush.bf16.msra.mxu0 %v1796
    %2347 = vmatpush.bf16.msra.mxu0 %v1792
    %2348 = vmatpush.bf16.msra.mxu0 %v1788
    %2349 = vmatpush.bf16.msra.mxu0 %v1784
    %2350 = vmatmul.bf16.gmra.mxu0 %v648
    %v2351 = vpop.f32.mrf.mxu0
    %v2352 = vadd.f32 %v2339, %v2351
    %v2353 = vpop.f32.mrf.mxu0
    %2354 = vdwg.mxu0
    %2355 = vmatpush.bf16.msra.mxu0 %v1844
    %2356 = vmatpush.bf16.msra.mxu0 %v1840
    %2357 = vmatpush.bf16.msra.mxu0 %v1836
    %2358 = vmatpush.bf16.msra.mxu0 %v1832
    %2359 = vmatpush.bf16.msra.mxu0 %v1828
    %2360 = vmatpush.bf16.msra.mxu0 %v1824
    %2361 = vmatpush.bf16.msra.mxu0 %v1820
    %2362 = vmatpush.bf16.msra.mxu0 %v1816
    %2363 = vmatmul.bf16.gmra.mxu0 %v649
    %v2364 = vpop.f32.mrf.mxu0
    %v2365 = vadd.f32 %v2352, %v2364
    %v2366 = vpop.f32.mrf.mxu0
    %2367 = vdwg.mxu0
    %2368 = vmatpush.bf16.msra.mxu0 %v1876
    %2369 = vmatpush.bf16.msra.mxu0 %v1872
    %2370 = vmatpush.bf16.msra.mxu0 %v1868
    %2371 = vmatpush.bf16.msra.mxu0 %v1864
    %2372 = vmatpush.bf16.msra.mxu0 %v1860
    %2373 = vmatpush.bf16.msra.mxu0 %v1856
    %2374 = vmatpush.bf16.msra.mxu0 %v1852
    %2375 = vmatpush.bf16.msra.mxu0 %v1848
    %2376 = vmatmul.bf16.gmra.mxu0 %v650
    %v2377 = vpop.f32.mrf.mxu0
    %v2378 = vadd.f32 %v2365, %v2377
    %v2379 = vpop.f32.mrf.mxu0
    %2380 = vdwg.mxu0
    %2381 = vmatpush.bf16.msra.mxu0 %v1908
    %2382 = vmatpush.bf16.msra.mxu0 %v1904
    %2383 = vmatpush.bf16.msra.mxu0 %v1900
    %2384 = vmatpush.bf16.msra.mxu0 %v1896
    %2385 = vmatpush.bf16.msra.mxu0 %v1892
    %2386 = vmatpush.bf16.msra.mxu0 %v1888
    %2387 = vmatpush.bf16.msra.mxu0 %v1884
    %2388 = vmatpush.bf16.msra.mxu0 %v1880
    %2389 = vmatmul.bf16.gmra.mxu0 %v651
    %v2390 = vpop.f32.mrf.mxu0
    %v2391 = vadd.f32 %v2378, %v2390
    %v2392 = vpop.f32.mrf.mxu0
    %2393 = vdwg.mxu0
    %2394 = vmatpush.bf16.msra.mxu0 %v1940
    %2395 = vmatpush.bf16.msra.mxu0 %v1936
    %2396 = vmatpush.bf16.msra.mxu0 %v1932
    %2397 = vmatpush.bf16.msra.mxu0 %v1928
    %2398 = vmatpush.bf16.msra.mxu0 %v1924
    %2399 = vmatpush.bf16.msra.mxu0 %v1920
    %2400 = vmatpush.bf16.msra.mxu0 %v1916
    %2401 = vmatpush.bf16.msra.mxu0 %v1912
    %2402 = vmatmul.bf16.gmra.mxu0 %v652
    %v2403 = vpop.f32.mrf.mxu0
    %v2404 = vadd.f32 %v2391, %v2403
    %v2405 = vpop.f32.mrf.mxu0
    %2406 = vdwg.mxu0
    %2407 = vmatpush.bf16.msra.mxu0 %v1717
    %2408 = vmatpush.bf16.msra.mxu0 %v1713
    %2409 = vmatpush.bf16.msra.mxu0 %v1709
    %2410 = vmatpush.bf16.msra.mxu0 %v1705
    %2411 = vmatpush.bf16.msra.mxu0 %v1701
    %2412 = vmatpush.bf16.msra.mxu0 %v1697
    %2413 = vmatpush.bf16.msra.mxu0 %v1693
    %2414 = vmatpush.bf16.msra.mxu0 %v1689
    %2415 = vmatmul.bf16.gmra.mxu0 %v645
    %v2416 = vpop.f32.mrf.mxu0
    %v2417 = vadd.f32 %v913, %v2416
    %v2418 = vpop.f32.mrf.mxu0
    %2419 = vdwg.mxu0
    %2420 = vmatpush.bf16.msra.mxu0 %v1749
    %2421 = vmatpush.bf16.msra.mxu0 %v1745
    %2422 = vmatpush.bf16.msra.mxu0 %v1741
    %2423 = vmatpush.bf16.msra.mxu0 %v1737
    %2424 = vmatpush.bf16.msra.mxu0 %v1733
    %2425 = vmatpush.bf16.msra.mxu0 %v1729
    %2426 = vmatpush.bf16.msra.mxu0 %v1725
    %2427 = vmatpush.bf16.msra.mxu0 %v1721
    %2428 = vmatmul.bf16.gmra.mxu0 %v646
    %v2429 = vpop.f32.mrf.mxu0
    %v2430 = vadd.f32 %v2417, %v2429
    %v2431 = vpop.f32.mrf.mxu0
    %2432 = vdwg.mxu0
    %2433 = vmatpush.bf16.msra.mxu0 %v1781
    %2434 = vmatpush.bf16.msra.mxu0 %v1777
    %2435 = vmatpush.bf16.msra.mxu0 %v1773
    %2436 = vmatpush.bf16.msra.mxu0 %v1769
    %2437 = vmatpush.bf16.msra.mxu0 %v1765
    %2438 = vmatpush.bf16.msra.mxu0 %v1761
    %2439 = vmatpush.bf16.msra.mxu0 %v1757
    %2440 = vmatpush.bf16.msra.mxu0 %v1753
    %2441 = vmatmul.bf16.gmra.mxu0 %v647
    %v2442 = vpop.f32.mrf.mxu0
    %v2443 = vadd.f32 %v2430, %v2442
    %v2444 = vpop.f32.mrf.mxu0
    %2445 = vdwg.mxu0
    %2446 = vmatpush.bf16.msra.mxu0 %v1813
    %2447 = vmatpush.bf16.msra.mxu0 %v1809
    %2448 = vmatpush.bf16.msra.mxu0 %v1805
    %2449 = vmatpush.bf16.msra.mxu0 %v1801
    %2450 = vmatpush.bf16.msra.mxu0 %v1797
    %2451 = vmatpush.bf16.msra.mxu0 %v1793
    %2452 = vmatpush.bf16.msra.mxu0 %v1789
    %2453 = vmatpush.bf16.msra.mxu0 %v1785
    %2454 = vmatmul.bf16.gmra.mxu0 %v648
    %v2455 = vpop.f32.mrf.mxu0
    %v2456 = vadd.f32 %v2443, %v2455
    %v2457 = vpop.f32.mrf.mxu0
    %2458 = vdwg.mxu0
    %2459 = vmatpush.bf16.msra.mxu0 %v1845
    %2460 = vmatpush.bf16.msra.mxu0 %v1841
    %2461 = vmatpush.bf16.msra.mxu0 %v1837
    %2462 = vmatpush.bf16.msra.mxu0 %v1833
    %2463 = vmatpush.bf16.msra.mxu0 %v1829
    %2464 = vmatpush.bf16.msra.mxu0 %v1825
    %2465 = vmatpush.bf16.msra.mxu0 %v1821
    %2466 = vmatpush.bf16.msra.mxu0 %v1817
    %2467 = vmatmul.bf16.gmra.mxu0 %v649
    %v2468 = vpop.f32.mrf.mxu0
    %v2469 = vadd.f32 %v2456, %v2468
    %v2470 = vpop.f32.mrf.mxu0
    %2471 = vdwg.mxu0
    %2472 = vmatpush.bf16.msra.mxu0 %v1877
    %2473 = vmatpush.bf16.msra.mxu0 %v1873
    %2474 = vmatpush.bf16.msra.mxu0 %v1869
    %2475 = vmatpush.bf16.msra.mxu0 %v1865
    %2476 = vmatpush.bf16.msra.mxu0 %v1861
    %2477 = vmatpush.bf16.msra.mxu0 %v1857
    %2478 = vmatpush.bf16.msra.mxu0 %v1853
    %2479 = vmatpush.bf16.msra.mxu0 %v1849
    %2480 = vmatmul.bf16.gmra.mxu0 %v650
    %v2481 = vpop.f32.mrf.mxu0
    %v2482 = vadd.f32 %v2469, %v2481
    %v2483 = vpop.f32.mrf.mxu0
    %2484 = vdwg.mxu0
    %2485 = vmatpush.bf16.msra.mxu0 %v1909
    %2486 = vmatpush.bf16.msra.mxu0 %v1905
    %2487 = vmatpush.bf16.msra.mxu0 %v1901
    %2488 = vmatpush.bf16.msra.mxu0 %v1897
    %2489 = vmatpush.bf16.msra.mxu0 %v1893
    %2490 = vmatpush.bf16.msra.mxu0 %v1889
    %2491 = vmatpush.bf16.msra.mxu0 %v1885
    %2492 = vmatpush.bf16.msra.mxu0 %v1881
    %2493 = vmatmul.bf16.gmra.mxu0 %v651
    %v2494 = vpop.f32.mrf.mxu0
    %v2495 = vadd.f32 %v2482, %v2494
    %v2496 = vpop.f32.mrf.mxu0
    %2497 = vdwg.mxu0
    %2498 = vmatpush.bf16.msra.mxu0 %v1941
    %2499 = vmatpush.bf16.msra.mxu0 %v1937
    %2500 = vmatpush.bf16.msra.mxu0 %v1933
    %2501 = vmatpush.bf16.msra.mxu0 %v1929
    %2502 = vmatpush.bf16.msra.mxu0 %v1925
    %2503 = vmatpush.bf16.msra.mxu0 %v1921
    %2504 = vmatpush.bf16.msra.mxu0 %v1917
    %2505 = vmatpush.bf16.msra.mxu0 %v1913
    %2506 = vmatmul.bf16.gmra.mxu0 %v652
    %v2507 = vpop.f32.mrf.mxu0
    %v2508 = vadd.f32 %v2495, %v2507
    %v2509 = vpop.f32.mrf.mxu0
    %2510 = vdwg.mxu0
    %2511 = vmatpush.bf16.msra.mxu0 %v1718
    %2512 = vmatpush.bf16.msra.mxu0 %v1714
    %2513 = vmatpush.bf16.msra.mxu0 %v1710
    %2514 = vmatpush.bf16.msra.mxu0 %v1706
    %2515 = vmatpush.bf16.msra.mxu0 %v1702
    %2516 = vmatpush.bf16.msra.mxu0 %v1698
    %2517 = vmatpush.bf16.msra.mxu0 %v1694
    %2518 = vmatpush.bf16.msra.mxu0 %v1690
    %2519 = vmatmul.bf16.gmra.mxu0 %v645
    %v2520 = vpop.f32.mrf.mxu0
    %v2521 = vadd.f32 %v914, %v2520
    %v2522 = vpop.f32.mrf.mxu0
    %2523 = vdwg.mxu0
    %2524 = vmatpush.bf16.msra.mxu0 %v1750
    %2525 = vmatpush.bf16.msra.mxu0 %v1746
    %2526 = vmatpush.bf16.msra.mxu0 %v1742
    %2527 = vmatpush.bf16.msra.mxu0 %v1738
    %2528 = vmatpush.bf16.msra.mxu0 %v1734
    %2529 = vmatpush.bf16.msra.mxu0 %v1730
    %2530 = vmatpush.bf16.msra.mxu0 %v1726
    %2531 = vmatpush.bf16.msra.mxu0 %v1722
    %2532 = vmatmul.bf16.gmra.mxu0 %v646
    %v2533 = vpop.f32.mrf.mxu0
    %v2534 = vadd.f32 %v2521, %v2533
    %v2535 = vpop.f32.mrf.mxu0
    %2536 = vdwg.mxu0
    %2537 = vmatpush.bf16.msra.mxu0 %v1782
    %2538 = vmatpush.bf16.msra.mxu0 %v1778
    %2539 = vmatpush.bf16.msra.mxu0 %v1774
    %2540 = vmatpush.bf16.msra.mxu0 %v1770
    %2541 = vmatpush.bf16.msra.mxu0 %v1766
    %2542 = vmatpush.bf16.msra.mxu0 %v1762
    %2543 = vmatpush.bf16.msra.mxu0 %v1758
    %2544 = vmatpush.bf16.msra.mxu0 %v1754
    %2545 = vmatmul.bf16.gmra.mxu0 %v647
    %v2546 = vpop.f32.mrf.mxu0
    %v2547 = vadd.f32 %v2534, %v2546
    %v2548 = vpop.f32.mrf.mxu0
    %2549 = vdwg.mxu0
    %2550 = vmatpush.bf16.msra.mxu0 %v1814
    %2551 = vmatpush.bf16.msra.mxu0 %v1810
    %2552 = vmatpush.bf16.msra.mxu0 %v1806
    %2553 = vmatpush.bf16.msra.mxu0 %v1802
    %2554 = vmatpush.bf16.msra.mxu0 %v1798
    %2555 = vmatpush.bf16.msra.mxu0 %v1794
    %2556 = vmatpush.bf16.msra.mxu0 %v1790
    %2557 = vmatpush.bf16.msra.mxu0 %v1786
    %2558 = vmatmul.bf16.gmra.mxu0 %v648
    %v2559 = vpop.f32.mrf.mxu0
    %v2560 = vadd.f32 %v2547, %v2559
    %v2561 = vpop.f32.mrf.mxu0
    %2562 = vdwg.mxu0
    %2563 = vmatpush.bf16.msra.mxu0 %v1846
    %2564 = vmatpush.bf16.msra.mxu0 %v1842
    %2565 = vmatpush.bf16.msra.mxu0 %v1838
    %2566 = vmatpush.bf16.msra.mxu0 %v1834
    %2567 = vmatpush.bf16.msra.mxu0 %v1830
    %2568 = vmatpush.bf16.msra.mxu0 %v1826
    %2569 = vmatpush.bf16.msra.mxu0 %v1822
    %2570 = vmatpush.bf16.msra.mxu0 %v1818
    %2571 = vmatmul.bf16.gmra.mxu0 %v649
    %v2572 = vpop.f32.mrf.mxu0
    %v2573 = vadd.f32 %v2560, %v2572
    %v2574 = vpop.f32.mrf.mxu0
    %2575 = vdwg.mxu0
    %2576 = vmatpush.bf16.msra.mxu0 %v1878
    %2577 = vmatpush.bf16.msra.mxu0 %v1874
    %2578 = vmatpush.bf16.msra.mxu0 %v1870
    %2579 = vmatpush.bf16.msra.mxu0 %v1866
    %2580 = vmatpush.bf16.msra.mxu0 %v1862
    %2581 = vmatpush.bf16.msra.mxu0 %v1858
    %2582 = vmatpush.bf16.msra.mxu0 %v1854
    %2583 = vmatpush.bf16.msra.mxu0 %v1850
    %2584 = vmatmul.bf16.gmra.mxu0 %v650
    %v2585 = vpop.f32.mrf.mxu0
    %v2586 = vadd.f32 %v2573, %v2585
    %v2587 = vpop.f32.mrf.mxu0
    %2588 = vdwg.mxu0
    %2589 = vmatpush.bf16.msra.mxu0 %v1910
    %2590 = vmatpush.bf16.msra.mxu0 %v1906
    %2591 = vmatpush.bf16.msra.mxu0 %v1902
    %2592 = vmatpush.bf16.msra.mxu0 %v1898
    %2593 = vmatpush.bf16.msra.mxu0 %v1894
    %2594 = vmatpush.bf16.msra.mxu0 %v1890
    %2595 = vmatpush.bf16.msra.mxu0 %v1886
    %2596 = vmatpush.bf16.msra.mxu0 %v1882
    %2597 = vmatmul.bf16.gmra.mxu0 %v651
    %v2598 = vpop.f32.mrf.mxu0
    %v2599 = vadd.f32 %v2586, %v2598
    %v2600 = vpop.f32.mrf.mxu0
    %2601 = vdwg.mxu0
    %2602 = vmatpush.bf16.msra.mxu0 %v1942
    %2603 = vmatpush.bf16.msra.mxu0 %v1938
    %2604 = vmatpush.bf16.msra.mxu0 %v1934
    %2605 = vmatpush.bf16.msra.mxu0 %v1930
    %2606 = vmatpush.bf16.msra.mxu0 %v1926
    %2607 = vmatpush.bf16.msra.mxu0 %v1922
    %2608 = vmatpush.bf16.msra.mxu0 %v1918
    %2609 = vmatpush.bf16.msra.mxu0 %v1914
    %2610 = vmatmul.bf16.gmra.mxu0 %v652
    %v2611 = vpop.f32.mrf.mxu0
    %v2612 = vadd.f32 %v2599, %v2611
    %v2613 = vpop.f32.mrf.mxu0
    %2614 = vdwg.mxu0
    %v2615 = vmax.f32 %v2300, 0.0
    %v2616 = vmax.f32 %v2404, 0.0
    %v2617 = vmax.f32 %v2508, 0.0
    %v2618 = vmax.f32 %v2612, 0.0
    %v2619 = vpack.c.bf16 %v2615, %v2615
    %v2620 = vpack.c.bf16 %v2616, %v2616
    %v2621 = vpack.c.bf16 %v2617, %v2617
    %v2622 = vpack.c.bf16 %v2618, %v2618
    %v2623 = vld [vmem:[#allocation6] sm:$0xff]
    %v2624 = vld [vmem:[#allocation6 + $0x8] sm:$0xff]
    %v2625 = vld [vmem:[#allocation6 + $0x10] sm:$0xff]
    %v2626 = vld [vmem:[#allocation6 + $0x18] sm:$0xff]
    %v2627 = vld [vmem:[#allocation6 + $0x20] sm:$0xff]
    %v2628 = vld [vmem:[#allocation6 + $0x28] sm:$0xff]
    %v2629 = vld [vmem:[#allocation6 + $0x30] sm:$0xff]
    %v2630 = vld [vmem:[#allocation6 + $0x38] sm:$0xff]
    %v2631 = vld [vmem:[#allocation6 + $0x40] sm:$0xff]
    %v2632 = vld [vmem:[#allocation6 + $0x48] sm:$0xff]
    %v2633 = vld [vmem:[#allocation6 + $0x50] sm:$0xff]
    %v2634 = vld [vmem:[#allocation6 + $0x58] sm:$0xff]
    %v2635 = vld [vmem:[#allocation6 + $0x60] sm:$0xff]
    %v2636 = vld [vmem:[#allocation6 + $0x68] sm:$0xff]
    %v2637 = vld [vmem:[#allocation6 + $0x70] sm:$0xff]
    %v2638 = vld [vmem:[#allocation6 + $0x78] sm:$0xff]
    %v2639 = vld [vmem:[#allocation6 + $0x80] sm:$0xff]
    %v2640 = vld [vmem:[#allocation6 + $0x88] sm:$0xff]
    %v2641 = vld [vmem:[#allocation6 + $0x90] sm:$0xff]
    %v2642 = vld [vmem:[#allocation6 + $0x98] sm:$0xff]
    %v2643 = vld [vmem:[#allocation6 + $0xa0] sm:$0xff]
    %v2644 = vld [vmem:[#allocation6 + $0xa8] sm:$0xff]
    %v2645 = vld [vmem:[#allocation6 + $0xb0] sm:$0xff]
    %v2646 = vld [vmem:[#allocation6 + $0xb8] sm:$0xff]
    %v2647 = vld [vmem:[#allocation6 + $0xc0] sm:$0xff]
    %v2648 = vld [vmem:[#allocation6 + $0xc8] sm:$0xff]
    %v2649 = vld [vmem:[#allocation6 + $0xd0] sm:$0xff]
    %v2650 = vld [vmem:[#allocation6 + $0xd8] sm:$0xff]
    %v2651 = vld [vmem:[#allocation6 + $0xe0] sm:$0xff]
    %v2652 = vld [vmem:[#allocation6 + $0xe8] sm:$0xff]
    %v2653 = vld [vmem:[#allocation6 + $0xf0] sm:$0xff]
    %v2654 = vld [vmem:[#allocation6 + $0xf8] sm:$0xff]
    %v2655 = vld [vmem:[#allocation6 + $0x100] sm:$0xff]
    %v2656 = vld [vmem:[#allocation6 + $0x108] sm:$0xff]
    %v2657 = vld [vmem:[#allocation6 + $0x110] sm:$0xff]
    %v2658 = vld [vmem:[#allocation6 + $0x118] sm:$0xff]
    %v2659 = vld [vmem:[#allocation6 + $0x120] sm:$0xff]
    %v2660 = vld [vmem:[#allocation6 + $0x128] sm:$0xff]
    %v2661 = vld [vmem:[#allocation6 + $0x130] sm:$0xff]
    %v2662 = vld [vmem:[#allocation6 + $0x138] sm:$0xff]
    %v2663 = vld [vmem:[#allocation6 + $0x140] sm:$0xff]
    %v2664 = vld [vmem:[#allocation6 + $0x148] sm:$0xff]
    %v2665 = vld [vmem:[#allocation6 + $0x150] sm:$0xff]
    %v2666 = vld [vmem:[#allocation6 + $0x158] sm:$0xff]
    %v2667 = vld [vmem:[#allocation6 + $0x160] sm:$0xff]
    %v2668 = vld [vmem:[#allocation6 + $0x168] sm:$0xff]
    %v2669 = vld [vmem:[#allocation6 + $0x170] sm:$0xff]
    %v2670 = vld [vmem:[#allocation6 + $0x178] sm:$0xff]
    %v2671 = vld [vmem:[#allocation6 + $0x180] sm:$0xff]
    %v2672 = vld [vmem:[#allocation6 + $0x188] sm:$0xff]
    %v2673 = vld [vmem:[#allocation6 + $0x190] sm:$0xff]
    %v2674 = vld [vmem:[#allocation6 + $0x198] sm:$0xff]
    %v2675 = vld [vmem:[#allocation6 + $0x1a0] sm:$0xff]
    %v2676 = vld [vmem:[#allocation6 + $0x1a8] sm:$0xff]
    %v2677 = vld [vmem:[#allocation6 + $0x1b0] sm:$0xff]
    %v2678 = vld [vmem:[#allocation6 + $0x1b8] sm:$0xff]
    %v2679 = vld [vmem:[#allocation6 + $0x1c0] sm:$0xff]
    %v2680 = vld [vmem:[#allocation6 + $0x1c8] sm:$0xff]
    %v2681 = vld [vmem:[#allocation6 + $0x1d0] sm:$0xff]
    %v2682 = vld [vmem:[#allocation6 + $0x1d8] sm:$0xff]
    %v2683 = vld [vmem:[#allocation6 + $0x1e0] sm:$0xff]
    %v2684 = vld [vmem:[#allocation6 + $0x1e8] sm:$0xff]
    %v2685 = vld [vmem:[#allocation6 + $0x1f0] sm:$0xff]
    %v2686 = vld [vmem:[#allocation6 + $0x1f8] sm:$0xff]
    %v2687 = vld [vmem:[#allocation6 + $0x200] sm:$0xff]
    %v2688 = vld [vmem:[#allocation6 + $0x208] sm:$0xff]
    %v2689 = vld [vmem:[#allocation6 + $0x210] sm:$0xff]
    %v2690 = vld [vmem:[#allocation6 + $0x218] sm:$0xff]
    %v2691 = vld [vmem:[#allocation6 + $0x220] sm:$0xff]
    %v2692 = vld [vmem:[#allocation6 + $0x228] sm:$0xff]
    %v2693 = vld [vmem:[#allocation6 + $0x230] sm:$0xff]
    %v2694 = vld [vmem:[#allocation6 + $0x238] sm:$0xff]
    %v2695 = vld [vmem:[#allocation6 + $0x240] sm:$0xff]
    %v2696 = vld [vmem:[#allocation6 + $0x248] sm:$0xff]
    %v2697 = vld [vmem:[#allocation6 + $0x250] sm:$0xff]
    %v2698 = vld [vmem:[#allocation6 + $0x258] sm:$0xff]
    %v2699 = vld [vmem:[#allocation6 + $0x260] sm:$0xff]
    %v2700 = vld [vmem:[#allocation6 + $0x268] sm:$0xff]
    %v2701 = vld [vmem:[#allocation6 + $0x270] sm:$0xff]
    %v2702 = vld [vmem:[#allocation6 + $0x278] sm:$0xff]
    %v2703 = vld [vmem:[#allocation6 + $0x280] sm:$0xff]
    %v2704 = vld [vmem:[#allocation6 + $0x288] sm:$0xff]
    %v2705 = vld [vmem:[#allocation6 + $0x290] sm:$0xff]
    %v2706 = vld [vmem:[#allocation6 + $0x298] sm:$0xff]
    %v2707 = vld [vmem:[#allocation6 + $0x2a0] sm:$0xff]
    %v2708 = vld [vmem:[#allocation6 + $0x2a8] sm:$0xff]
    %v2709 = vld [vmem:[#allocation6 + $0x2b0] sm:$0xff]
    %v2710 = vld [vmem:[#allocation6 + $0x2b8] sm:$0xff]
    %v2711 = vld [vmem:[#allocation6 + $0x2c0] sm:$0xff]
    %v2712 = vld [vmem:[#allocation6 + $0x2c8] sm:$0xff]
    %v2713 = vld [vmem:[#allocation6 + $0x2d0] sm:$0xff]
    %v2714 = vld [vmem:[#allocation6 + $0x2d8] sm:$0xff]
    %v2715 = vld [vmem:[#allocation6 + $0x2e0] sm:$0xff]
    %v2716 = vld [vmem:[#allocation6 + $0x2e8] sm:$0xff]
    %v2717 = vld [vmem:[#allocation6 + $0x2f0] sm:$0xff]
    %v2718 = vld [vmem:[#allocation6 + $0x2f8] sm:$0xff]
    %v2719 = vld [vmem:[#allocation6 + $0x300] sm:$0xff]
    %v2720 = vld [vmem:[#allocation6 + $0x308] sm:$0xff]
    %v2721 = vld [vmem:[#allocation6 + $0x310] sm:$0xff]
    %v2722 = vld [vmem:[#allocation6 + $0x318] sm:$0xff]
    %v2723 = vld [vmem:[#allocation6 + $0x320] sm:$0xff]
    %v2724 = vld [vmem:[#allocation6 + $0x328] sm:$0xff]
    %v2725 = vld [vmem:[#allocation6 + $0x330] sm:$0xff]
    %v2726 = vld [vmem:[#allocation6 + $0x338] sm:$0xff]
    %v2727 = vld [vmem:[#allocation6 + $0x340] sm:$0xff]
    %v2728 = vld [vmem:[#allocation6 + $0x348] sm:$0xff]
    %v2729 = vld [vmem:[#allocation6 + $0x350] sm:$0xff]
    %v2730 = vld [vmem:[#allocation6 + $0x358] sm:$0xff]
    %v2731 = vld [vmem:[#allocation6 + $0x360] sm:$0xff]
    %v2732 = vld [vmem:[#allocation6 + $0x368] sm:$0xff]
    %v2733 = vld [vmem:[#allocation6 + $0x370] sm:$0xff]
    %v2734 = vld [vmem:[#allocation6 + $0x378] sm:$0xff]
    %v2735 = vld [vmem:[#allocation6 + $0x380] sm:$0xff]
    %v2736 = vld [vmem:[#allocation6 + $0x388] sm:$0xff]
    %v2737 = vld [vmem:[#allocation6 + $0x390] sm:$0xff]
    %v2738 = vld [vmem:[#allocation6 + $0x398] sm:$0xff]
    %v2739 = vld [vmem:[#allocation6 + $0x3a0] sm:$0xff]
    %v2740 = vld [vmem:[#allocation6 + $0x3a8] sm:$0xff]
    %v2741 = vld [vmem:[#allocation6 + $0x3b0] sm:$0xff]
    %v2742 = vld [vmem:[#allocation6 + $0x3b8] sm:$0xff]
    %v2743 = vld [vmem:[#allocation6 + $0x3c0] sm:$0xff]
    %v2744 = vld [vmem:[#allocation6 + $0x3c8] sm:$0xff]
    %v2745 = vld [vmem:[#allocation6 + $0x3d0] sm:$0xff]
    %v2746 = vld [vmem:[#allocation6 + $0x3d8] sm:$0xff]
    %v2747 = vld [vmem:[#allocation6 + $0x3e0] sm:$0xff]
    %v2748 = vld [vmem:[#allocation6 + $0x3e8] sm:$0xff]
    %v2749 = vld [vmem:[#allocation6 + $0x3f0] sm:$0xff]
    %v2750 = vld [vmem:[#allocation6 + $0x3f8] sm:$0xff]
    %v2751 = vld [vmem:[#allocation6 + $0x400] sm:$0xff]
    %v2752 = vld [vmem:[#allocation6 + $0x408] sm:$0xff]
    %v2753 = vld [vmem:[#allocation6 + $0x410] sm:$0xff]
    %v2754 = vld [vmem:[#allocation6 + $0x418] sm:$0xff]
    %v2755 = vld [vmem:[#allocation6 + $0x420] sm:$0xff]
    %v2756 = vld [vmem:[#allocation6 + $0x428] sm:$0xff]
    %v2757 = vld [vmem:[#allocation6 + $0x430] sm:$0xff]
    %v2758 = vld [vmem:[#allocation6 + $0x438] sm:$0xff]
    %v2759 = vld [vmem:[#allocation6 + $0x440] sm:$0xff]
    %v2760 = vld [vmem:[#allocation6 + $0x448] sm:$0xff]
    %v2761 = vld [vmem:[#allocation6 + $0x450] sm:$0xff]
    %v2762 = vld [vmem:[#allocation6 + $0x458] sm:$0xff]
    %v2763 = vld [vmem:[#allocation6 + $0x460] sm:$0xff]
    %v2764 = vld [vmem:[#allocation6 + $0x468] sm:$0xff]
    %v2765 = vld [vmem:[#allocation6 + $0x470] sm:$0xff]
    %v2766 = vld [vmem:[#allocation6 + $0x478] sm:$0xff]
    %v2767 = vld [vmem:[#allocation6 + $0x480] sm:$0xff]
    %v2768 = vld [vmem:[#allocation6 + $0x488] sm:$0xff]
    %v2769 = vld [vmem:[#allocation6 + $0x490] sm:$0xff]
    %v2770 = vld [vmem:[#allocation6 + $0x498] sm:$0xff]
    %v2771 = vld [vmem:[#allocation6 + $0x4a0] sm:$0xff]
    %v2772 = vld [vmem:[#allocation6 + $0x4a8] sm:$0xff]
    %v2773 = vld [vmem:[#allocation6 + $0x4b0] sm:$0xff]
    %v2774 = vld [vmem:[#allocation6 + $0x4b8] sm:$0xff]
    %v2775 = vld [vmem:[#allocation6 + $0x4c0] sm:$0xff]
    %v2776 = vld [vmem:[#allocation6 + $0x4c8] sm:$0xff]
    %v2777 = vld [vmem:[#allocation6 + $0x4d0] sm:$0xff]
    %v2778 = vld [vmem:[#allocation6 + $0x4d8] sm:$0xff]
    %v2779 = vld [vmem:[#allocation6 + $0x4e0] sm:$0xff]
    %v2780 = vld [vmem:[#allocation6 + $0x4e8] sm:$0xff]
    %v2781 = vld [vmem:[#allocation6 + $0x4f0] sm:$0xff]
    %v2782 = vld [vmem:[#allocation6 + $0x4f8] sm:$0xff]
    %v2783 = vld [vmem:[#allocation6 + $0x500] sm:$0xff]
    %v2784 = vld [vmem:[#allocation6 + $0x508] sm:$0xff]
    %v2785 = vld [vmem:[#allocation6 + $0x510] sm:$0xff]
    %v2786 = vld [vmem:[#allocation6 + $0x518] sm:$0xff]
    %v2787 = vld [vmem:[#allocation6 + $0x520] sm:$0xff]
    %v2788 = vld [vmem:[#allocation6 + $0x528] sm:$0xff]
    %v2789 = vld [vmem:[#allocation6 + $0x530] sm:$0xff]
    %v2790 = vld [vmem:[#allocation6 + $0x538] sm:$0xff]
    %v2791 = vld [vmem:[#allocation6 + $0x540] sm:$0xff]
    %v2792 = vld [vmem:[#allocation6 + $0x548] sm:$0xff]
    %v2793 = vld [vmem:[#allocation6 + $0x550] sm:$0xff]
    %v2794 = vld [vmem:[#allocation6 + $0x558] sm:$0xff]
    %v2795 = vld [vmem:[#allocation6 + $0x560] sm:$0xff]
    %v2796 = vld [vmem:[#allocation6 + $0x568] sm:$0xff]
    %v2797 = vld [vmem:[#allocation6 + $0x570] sm:$0xff]
    %v2798 = vld [vmem:[#allocation6 + $0x578] sm:$0xff]
    %v2799 = vld [vmem:[#allocation6 + $0x580] sm:$0xff]
    %v2800 = vld [vmem:[#allocation6 + $0x588] sm:$0xff]
    %v2801 = vld [vmem:[#allocation6 + $0x590] sm:$0xff]
    %v2802 = vld [vmem:[#allocation6 + $0x598] sm:$0xff]
    %v2803 = vld [vmem:[#allocation6 + $0x5a0] sm:$0xff]
    %v2804 = vld [vmem:[#allocation6 + $0x5a8] sm:$0xff]
    %v2805 = vld [vmem:[#allocation6 + $0x5b0] sm:$0xff]
    %v2806 = vld [vmem:[#allocation6 + $0x5b8] sm:$0xff]
    %v2807 = vld [vmem:[#allocation6 + $0x5c0] sm:$0xff]
    %v2808 = vld [vmem:[#allocation6 + $0x5c8] sm:$0xff]
    %v2809 = vld [vmem:[#allocation6 + $0x5d0] sm:$0xff]
    %v2810 = vld [vmem:[#allocation6 + $0x5d8] sm:$0xff]
    %v2811 = vld [vmem:[#allocation6 + $0x5e0] sm:$0xff]
    %v2812 = vld [vmem:[#allocation6 + $0x5e8] sm:$0xff]
    %v2813 = vld [vmem:[#allocation6 + $0x5f0] sm:$0xff]
    %v2814 = vld [vmem:[#allocation6 + $0x5f8] sm:$0xff]
    %v2815 = vld [vmem:[#allocation6 + $0x600] sm:$0xff]
    %v2816 = vld [vmem:[#allocation6 + $0x608] sm:$0xff]
    %v2817 = vld [vmem:[#allocation6 + $0x610] sm:$0xff]
    %v2818 = vld [vmem:[#allocation6 + $0x618] sm:$0xff]
    %v2819 = vld [vmem:[#allocation6 + $0x620] sm:$0xff]
    %v2820 = vld [vmem:[#allocation6 + $0x628] sm:$0xff]
    %v2821 = vld [vmem:[#allocation6 + $0x630] sm:$0xff]
    %v2822 = vld [vmem:[#allocation6 + $0x638] sm:$0xff]
    %v2823 = vld [vmem:[#allocation6 + $0x640] sm:$0xff]
    %v2824 = vld [vmem:[#allocation6 + $0x648] sm:$0xff]
    %v2825 = vld [vmem:[#allocation6 + $0x650] sm:$0xff]
    %v2826 = vld [vmem:[#allocation6 + $0x658] sm:$0xff]
    %v2827 = vld [vmem:[#allocation6 + $0x660] sm:$0xff]
    %v2828 = vld [vmem:[#allocation6 + $0x668] sm:$0xff]
    %v2829 = vld [vmem:[#allocation6 + $0x670] sm:$0xff]
    %v2830 = vld [vmem:[#allocation6 + $0x678] sm:$0xff]
    %v2831 = vld [vmem:[#allocation6 + $0x680] sm:$0xff]
    %v2832 = vld [vmem:[#allocation6 + $0x688] sm:$0xff]
    %v2833 = vld [vmem:[#allocation6 + $0x690] sm:$0xff]
    %v2834 = vld [vmem:[#allocation6 + $0x698] sm:$0xff]
    %v2835 = vld [vmem:[#allocation6 + $0x6a0] sm:$0xff]
    %v2836 = vld [vmem:[#allocation6 + $0x6a8] sm:$0xff]
    %v2837 = vld [vmem:[#allocation6 + $0x6b0] sm:$0xff]
    %v2838 = vld [vmem:[#allocation6 + $0x6b8] sm:$0xff]
    %v2839 = vld [vmem:[#allocation6 + $0x6c0] sm:$0xff]
    %v2840 = vld [vmem:[#allocation6 + $0x6c8] sm:$0xff]
    %v2841 = vld [vmem:[#allocation6 + $0x6d0] sm:$0xff]
    %v2842 = vld [vmem:[#allocation6 + $0x6d8] sm:$0xff]
    %v2843 = vld [vmem:[#allocation6 + $0x6e0] sm:$0xff]
    %v2844 = vld [vmem:[#allocation6 + $0x6e8] sm:$0xff]
    %v2845 = vld [vmem:[#allocation6 + $0x6f0] sm:$0xff]
    %v2846 = vld [vmem:[#allocation6 + $0x6f8] sm:$0xff]
    %v2847 = vld [vmem:[#allocation6 + $0x700] sm:$0xff]
    %v2848 = vld [vmem:[#allocation6 + $0x708] sm:$0xff]
    %v2849 = vld [vmem:[#allocation6 + $0x710] sm:$0xff]
    %v2850 = vld [vmem:[#allocation6 + $0x718] sm:$0xff]
    %v2851 = vld [vmem:[#allocation6 + $0x720] sm:$0xff]
    %v2852 = vld [vmem:[#allocation6 + $0x728] sm:$0xff]
    %v2853 = vld [vmem:[#allocation6 + $0x730] sm:$0xff]
    %v2854 = vld [vmem:[#allocation6 + $0x738] sm:$0xff]
    %v2855 = vld [vmem:[#allocation6 + $0x740] sm:$0xff]
    %v2856 = vld [vmem:[#allocation6 + $0x748] sm:$0xff]
    %v2857 = vld [vmem:[#allocation6 + $0x750] sm:$0xff]
    %v2858 = vld [vmem:[#allocation6 + $0x758] sm:$0xff]
    %v2859 = vld [vmem:[#allocation6 + $0x760] sm:$0xff]
    %v2860 = vld [vmem:[#allocation6 + $0x768] sm:$0xff]
    %v2861 = vld [vmem:[#allocation6 + $0x770] sm:$0xff]
    %v2862 = vld [vmem:[#allocation6 + $0x778] sm:$0xff]
    %v2863 = vld [vmem:[#allocation6 + $0x780] sm:$0xff]
    %v2864 = vld [vmem:[#allocation6 + $0x788] sm:$0xff]
    %v2865 = vld [vmem:[#allocation6 + $0x790] sm:$0xff]
    %v2866 = vld [vmem:[#allocation6 + $0x798] sm:$0xff]
    %v2867 = vld [vmem:[#allocation6 + $0x7a0] sm:$0xff]
    %v2868 = vld [vmem:[#allocation6 + $0x7a8] sm:$0xff]
    %v2869 = vld [vmem:[#allocation6 + $0x7b0] sm:$0xff]
    %v2870 = vld [vmem:[#allocation6 + $0x7b8] sm:$0xff]
    %v2871 = vld [vmem:[#allocation6 + $0x7c0] sm:$0xff]
    %v2872 = vld [vmem:[#allocation6 + $0x7c8] sm:$0xff]
    %v2873 = vld [vmem:[#allocation6 + $0x7d0] sm:$0xff]
    %v2874 = vld [vmem:[#allocation6 + $0x7d8] sm:$0xff]
    %v2875 = vld [vmem:[#allocation6 + $0x7e0] sm:$0xff]
    %v2876 = vld [vmem:[#allocation6 + $0x7e8] sm:$0xff]
    %v2877 = vld [vmem:[#allocation6 + $0x7f0] sm:$0xff]
    %v2878 = vld [vmem:[#allocation6 + $0x7f8] sm:$0xff]
    %v2879 = vld [vmem:[#allocation7] sm:$0xff]
    %v2881 = vperm.slane %v2879, 0
    %v2882 = vperm.slane %v2879, 1
    %v2883 = vperm.slane %v2879, 2
    %v2884 = vperm.slane %v2879, 3
    %v2885 = vperm.slane %v2879, 4
    %v2886 = vperm.slane %v2879, 5
    %v2887 = vperm.slane %v2879, 6
    %v2888 = vperm.slane %v2879, 7
    %v3153 = vunpack.c.l.b16 %v2623
    %v3154 = vunpack.c.h.b16 %v2623
    %v3155 = vunpack.c.l.b16 %v2624
    %v3156 = vunpack.c.h.b16 %v2624
    %v3157 = vunpack.c.l.b16 %v2625
    %v3158 = vunpack.c.h.b16 %v2625
    %v3159 = vunpack.c.l.b16 %v2626
    %v3160 = vunpack.c.h.b16 %v2626
    %v3161 = vunpack.c.l.b16 %v2627
    %v3162 = vunpack.c.h.b16 %v2627
    %v3163 = vunpack.c.l.b16 %v2628
    %v3164 = vunpack.c.h.b16 %v2628
    %v3165 = vunpack.c.l.b16 %v2629
    %v3166 = vunpack.c.h.b16 %v2629
    %v3167 = vunpack.c.l.b16 %v2630
    %v3168 = vunpack.c.h.b16 %v2630
    %v3169 = vunpack.c.l.b16 %v2631
    %v3170 = vunpack.c.h.b16 %v2631
    %v3171 = vunpack.c.l.b16 %v2632
    %v3172 = vunpack.c.h.b16 %v2632
    %v3173 = vunpack.c.l.b16 %v2633
    %v3174 = vunpack.c.h.b16 %v2633
    %v3175 = vunpack.c.l.b16 %v2634
    %v3176 = vunpack.c.h.b16 %v2634
    %v3177 = vunpack.c.l.b16 %v2635
    %v3178 = vunpack.c.h.b16 %v2635
    %v3179 = vunpack.c.l.b16 %v2636
    %v3180 = vunpack.c.h.b16 %v2636
    %v3181 = vunpack.c.l.b16 %v2637
    %v3182 = vunpack.c.h.b16 %v2637
    %v3183 = vunpack.c.l.b16 %v2638
    %v3184 = vunpack.c.h.b16 %v2638
    %v3185 = vunpack.c.l.b16 %v2639
    %v3186 = vunpack.c.h.b16 %v2639
    %v3187 = vunpack.c.l.b16 %v2640
    %v3188 = vunpack.c.h.b16 %v2640
    %v3189 = vunpack.c.l.b16 %v2641
    %v3190 = vunpack.c.h.b16 %v2641
    %v3191 = vunpack.c.l.b16 %v2642
    %v3192 = vunpack.c.h.b16 %v2642
    %v3193 = vunpack.c.l.b16 %v2643
    %v3194 = vunpack.c.h.b16 %v2643
    %v3195 = vunpack.c.l.b16 %v2644
    %v3196 = vunpack.c.h.b16 %v2644
    %v3197 = vunpack.c.l.b16 %v2645
    %v3198 = vunpack.c.h.b16 %v2645
    %v3199 = vunpack.c.l.b16 %v2646
    %v3200 = vunpack.c.h.b16 %v2646
    %v3201 = vunpack.c.l.b16 %v2647
    %v3202 = vunpack.c.h.b16 %v2647
    %v3203 = vunpack.c.l.b16 %v2648
    %v3204 = vunpack.c.h.b16 %v2648
    %v3205 = vunpack.c.l.b16 %v2649
    %v3206 = vunpack.c.h.b16 %v2649
    %v3207 = vunpack.c.l.b16 %v2650
    %v3208 = vunpack.c.h.b16 %v2650
    %v3209 = vunpack.c.l.b16 %v2651
    %v3210 = vunpack.c.h.b16 %v2651
    %v3211 = vunpack.c.l.b16 %v2652
    %v3212 = vunpack.c.h.b16 %v2652
    %v3213 = vunpack.c.l.b16 %v2653
    %v3214 = vunpack.c.h.b16 %v2653
    %v3215 = vunpack.c.l.b16 %v2654
    %v3216 = vunpack.c.h.b16 %v2654
    %v3217 = vunpack.c.l.b16 %v2655
    %v3218 = vunpack.c.h.b16 %v2655
    %v3219 = vunpack.c.l.b16 %v2656
    %v3220 = vunpack.c.h.b16 %v2656
    %v3221 = vunpack.c.l.b16 %v2657
    %v3222 = vunpack.c.h.b16 %v2657
    %v3223 = vunpack.c.l.b16 %v2658
    %v3224 = vunpack.c.h.b16 %v2658
    %v3225 = vunpack.c.l.b16 %v2659
    %v3226 = vunpack.c.h.b16 %v2659
    %v3227 = vunpack.c.l.b16 %v2660
    %v3228 = vunpack.c.h.b16 %v2660
    %v3229 = vunpack.c.l.b16 %v2661
    %v3230 = vunpack.c.h.b16 %v2661
    %v3231 = vunpack.c.l.b16 %v2662
    %v3232 = vunpack.c.h.b16 %v2662
    %v3233 = vunpack.c.l.b16 %v2663
    %v3234 = vunpack.c.h.b16 %v2663
    %v3235 = vunpack.c.l.b16 %v2664
    %v3236 = vunpack.c.h.b16 %v2664
    %v3237 = vunpack.c.l.b16 %v2665
    %v3238 = vunpack.c.h.b16 %v2665
    %v3239 = vunpack.c.l.b16 %v2666
    %v3240 = vunpack.c.h.b16 %v2666
    %v3241 = vunpack.c.l.b16 %v2667
    %v3242 = vunpack.c.h.b16 %v2667
    %v3243 = vunpack.c.l.b16 %v2668
    %v3244 = vunpack.c.h.b16 %v2668
    %v3245 = vunpack.c.l.b16 %v2669
    %v3246 = vunpack.c.h.b16 %v2669
    %v3247 = vunpack.c.l.b16 %v2670
    %v3248 = vunpack.c.h.b16 %v2670
    %v3249 = vunpack.c.l.b16 %v2671
    %v3250 = vunpack.c.h.b16 %v2671
    %v3251 = vunpack.c.l.b16 %v2672
    %v3252 = vunpack.c.h.b16 %v2672
    %v3253 = vunpack.c.l.b16 %v2673
    %v3254 = vunpack.c.h.b16 %v2673
    %v3255 = vunpack.c.l.b16 %v2674
    %v3256 = vunpack.c.h.b16 %v2674
    %v3257 = vunpack.c.l.b16 %v2675
    %v3258 = vunpack.c.h.b16 %v2675
    %v3259 = vunpack.c.l.b16 %v2676
    %v3260 = vunpack.c.h.b16 %v2676
    %v3261 = vunpack.c.l.b16 %v2677
    %v3262 = vunpack.c.h.b16 %v2677
    %v3263 = vunpack.c.l.b16 %v2678
    %v3264 = vunpack.c.h.b16 %v2678
    %v3265 = vunpack.c.l.b16 %v2679
    %v3266 = vunpack.c.h.b16 %v2679
    %v3267 = vunpack.c.l.b16 %v2680
    %v3268 = vunpack.c.h.b16 %v2680
    %v3269 = vunpack.c.l.b16 %v2681
    %v3270 = vunpack.c.h.b16 %v2681
    %v3271 = vunpack.c.l.b16 %v2682
    %v3272 = vunpack.c.h.b16 %v2682
    %v3273 = vunpack.c.l.b16 %v2683
    %v3274 = vunpack.c.h.b16 %v2683
    %v3275 = vunpack.c.l.b16 %v2684
    %v3276 = vunpack.c.h.b16 %v2684
    %v3277 = vunpack.c.l.b16 %v2685
    %v3278 = vunpack.c.h.b16 %v2685
    %v3279 = vunpack.c.l.b16 %v2686
    %v3280 = vunpack.c.h.b16 %v2686
    %v3281 = vunpack.c.l.b16 %v2687
    %v3282 = vunpack.c.h.b16 %v2687
    %v3283 = vunpack.c.l.b16 %v2688
    %v3284 = vunpack.c.h.b16 %v2688
    %v3285 = vunpack.c.l.b16 %v2689
    %v3286 = vunpack.c.h.b16 %v2689
    %v3287 = vunpack.c.l.b16 %v2690
    %v3288 = vunpack.c.h.b16 %v2690
    %v3289 = vunpack.c.l.b16 %v2691
    %v3290 = vunpack.c.h.b16 %v2691
    %v3291 = vunpack.c.l.b16 %v2692
    %v3292 = vunpack.c.h.b16 %v2692
    %v3293 = vunpack.c.l.b16 %v2693
    %v3294 = vunpack.c.h.b16 %v2693
    %v3295 = vunpack.c.l.b16 %v2694
    %v3296 = vunpack.c.h.b16 %v2694
    %v3297 = vunpack.c.l.b16 %v2695
    %v3298 = vunpack.c.h.b16 %v2695
    %v3299 = vunpack.c.l.b16 %v2696
    %v3300 = vunpack.c.h.b16 %v2696
    %v3301 = vunpack.c.l.b16 %v2697
    %v3302 = vunpack.c.h.b16 %v2697
    %v3303 = vunpack.c.l.b16 %v2698
    %v3304 = vunpack.c.h.b16 %v2698
    %v3305 = vunpack.c.l.b16 %v2699
    %v3306 = vunpack.c.h.b16 %v2699
    %v3307 = vunpack.c.l.b16 %v2700
    %v3308 = vunpack.c.h.b16 %v2700
    %v3309 = vunpack.c.l.b16 %v2701
    %v3310 = vunpack.c.h.b16 %v2701
    %v3311 = vunpack.c.l.b16 %v2702
    %v3312 = vunpack.c.h.b16 %v2702
    %v3313 = vunpack.c.l.b16 %v2703
    %v3314 = vunpack.c.h.b16 %v2703
    %v3315 = vunpack.c.l.b16 %v2704
    %v3316 = vunpack.c.h.b16 %v2704
    %v3317 = vunpack.c.l.b16 %v2705
    %v3318 = vunpack.c.h.b16 %v2705
    %v3319 = vunpack.c.l.b16 %v2706
    %v3320 = vunpack.c.h.b16 %v2706
    %v3321 = vunpack.c.l.b16 %v2707
    %v3322 = vunpack.c.h.b16 %v2707
    %v3323 = vunpack.c.l.b16 %v2708
    %v3324 = vunpack.c.h.b16 %v2708
    %v3325 = vunpack.c.l.b16 %v2709
    %v3326 = vunpack.c.h.b16 %v2709
    %v3327 = vunpack.c.l.b16 %v2710
    %v3328 = vunpack.c.h.b16 %v2710
    %v3329 = vunpack.c.l.b16 %v2711
    %v3330 = vunpack.c.h.b16 %v2711
    %v3331 = vunpack.c.l.b16 %v2712
    %v3332 = vunpack.c.h.b16 %v2712
    %v3333 = vunpack.c.l.b16 %v2713
    %v3334 = vunpack.c.h.b16 %v2713
    %v3335 = vunpack.c.l.b16 %v2714
    %v3336 = vunpack.c.h.b16 %v2714
    %v3337 = vunpack.c.l.b16 %v2715
    %v3338 = vunpack.c.h.b16 %v2715
    %v3339 = vunpack.c.l.b16 %v2716
    %v3340 = vunpack.c.h.b16 %v2716
    %v3341 = vunpack.c.l.b16 %v2717
    %v3342 = vunpack.c.h.b16 %v2717
    %v3343 = vunpack.c.l.b16 %v2718
    %v3344 = vunpack.c.h.b16 %v2718
    %v3345 = vunpack.c.l.b16 %v2719
    %v3346 = vunpack.c.h.b16 %v2719
    %v3347 = vunpack.c.l.b16 %v2720
    %v3348 = vunpack.c.h.b16 %v2720
    %v3349 = vunpack.c.l.b16 %v2721
    %v3350 = vunpack.c.h.b16 %v2721
    %v3351 = vunpack.c.l.b16 %v2722
    %v3352 = vunpack.c.h.b16 %v2722
    %v3353 = vunpack.c.l.b16 %v2723
    %v3354 = vunpack.c.h.b16 %v2723
    %v3355 = vunpack.c.l.b16 %v2724
    %v3356 = vunpack.c.h.b16 %v2724
    %v3357 = vunpack.c.l.b16 %v2725
    %v3358 = vunpack.c.h.b16 %v2725
    %v3359 = vunpack.c.l.b16 %v2726
    %v3360 = vunpack.c.h.b16 %v2726
    %v3361 = vunpack.c.l.b16 %v2727
    %v3362 = vunpack.c.h.b16 %v2727
    %v3363 = vunpack.c.l.b16 %v2728
    %v3364 = vunpack.c.h.b16 %v2728
    %v3365 = vunpack.c.l.b16 %v2729
    %v3366 = vunpack.c.h.b16 %v2729
    %v3367 = vunpack.c.l.b16 %v2730
    %v3368 = vunpack.c.h.b16 %v2730
    %v3369 = vunpack.c.l.b16 %v2731
    %v3370 = vunpack.c.h.b16 %v2731
    %v3371 = vunpack.c.l.b16 %v2732
    %v3372 = vunpack.c.h.b16 %v2732
    %v3373 = vunpack.c.l.b16 %v2733
    %v3374 = vunpack.c.h.b16 %v2733
    %v3375 = vunpack.c.l.b16 %v2734
    %v3376 = vunpack.c.h.b16 %v2734
    %v3377 = vunpack.c.l.b16 %v2735
    %v3378 = vunpack.c.h.b16 %v2735
    %v3379 = vunpack.c.l.b16 %v2736
    %v3380 = vunpack.c.h.b16 %v2736
    %v3381 = vunpack.c.l.b16 %v2737
    %v3382 = vunpack.c.h.b16 %v2737
    %v3383 = vunpack.c.l.b16 %v2738
    %v3384 = vunpack.c.h.b16 %v2738
    %v3385 = vunpack.c.l.b16 %v2739
    %v3386 = vunpack.c.h.b16 %v2739
    %v3387 = vunpack.c.l.b16 %v2740
    %v3388 = vunpack.c.h.b16 %v2740
    %v3389 = vunpack.c.l.b16 %v2741
    %v3390 = vunpack.c.h.b16 %v2741
    %v3391 = vunpack.c.l.b16 %v2742
    %v3392 = vunpack.c.h.b16 %v2742
    %v3393 = vunpack.c.l.b16 %v2743
    %v3394 = vunpack.c.h.b16 %v2743
    %v3395 = vunpack.c.l.b16 %v2744
    %v3396 = vunpack.c.h.b16 %v2744
    %v3397 = vunpack.c.l.b16 %v2745
    %v3398 = vunpack.c.h.b16 %v2745
    %v3399 = vunpack.c.l.b16 %v2746
    %v3400 = vunpack.c.h.b16 %v2746
    %v3401 = vunpack.c.l.b16 %v2747
    %v3402 = vunpack.c.h.b16 %v2747
    %v3403 = vunpack.c.l.b16 %v2748
    %v3404 = vunpack.c.h.b16 %v2748
    %v3405 = vunpack.c.l.b16 %v2749
    %v3406 = vunpack.c.h.b16 %v2749
    %v3407 = vunpack.c.l.b16 %v2750
    %v3408 = vunpack.c.h.b16 %v2750
    %v3409 = vunpack.c.l.b16 %v2751
    %v3410 = vunpack.c.h.b16 %v2751
    %v3411 = vunpack.c.l.b16 %v2752
    %v3412 = vunpack.c.h.b16 %v2752
    %v3413 = vunpack.c.l.b16 %v2753
    %v3414 = vunpack.c.h.b16 %v2753
    %v3415 = vunpack.c.l.b16 %v2754
    %v3416 = vunpack.c.h.b16 %v2754
    %v3417 = vunpack.c.l.b16 %v2755
    %v3418 = vunpack.c.h.b16 %v2755
    %v3419 = vunpack.c.l.b16 %v2756
    %v3420 = vunpack.c.h.b16 %v2756
    %v3421 = vunpack.c.l.b16 %v2757
    %v3422 = vunpack.c.h.b16 %v2757
    %v3423 = vunpack.c.l.b16 %v2758
    %v3424 = vunpack.c.h.b16 %v2758
    %v3425 = vunpack.c.l.b16 %v2759
    %v3426 = vunpack.c.h.b16 %v2759
    %v3427 = vunpack.c.l.b16 %v2760
    %v3428 = vunpack.c.h.b16 %v2760
    %v3429 = vunpack.c.l.b16 %v2761
    %v3430 = vunpack.c.h.b16 %v2761
    %v3431 = vunpack.c.l.b16 %v2762
    %v3432 = vunpack.c.h.b16 %v2762
    %v3433 = vunpack.c.l.b16 %v2763
    %v3434 = vunpack.c.h.b16 %v2763
    %v3435 = vunpack.c.l.b16 %v2764
    %v3436 = vunpack.c.h.b16 %v2764
    %v3437 = vunpack.c.l.b16 %v2765
    %v3438 = vunpack.c.h.b16 %v2765
    %v3439 = vunpack.c.l.b16 %v2766
    %v3440 = vunpack.c.h.b16 %v2766
    %v3441 = vunpack.c.l.b16 %v2767
    %v3442 = vunpack.c.h.b16 %v2767
    %v3443 = vunpack.c.l.b16 %v2768
    %v3444 = vunpack.c.h.b16 %v2768
    %v3445 = vunpack.c.l.b16 %v2769
    %v3446 = vunpack.c.h.b16 %v2769
    %v3447 = vunpack.c.l.b16 %v2770
    %v3448 = vunpack.c.h.b16 %v2770
    %v3449 = vunpack.c.l.b16 %v2771
    %v3450 = vunpack.c.h.b16 %v2771
    %v3451 = vunpack.c.l.b16 %v2772
    %v3452 = vunpack.c.h.b16 %v2772
    %v3453 = vunpack.c.l.b16 %v2773
    %v3454 = vunpack.c.h.b16 %v2773
    %v3455 = vunpack.c.l.b16 %v2774
    %v3456 = vunpack.c.h.b16 %v2774
    %v3457 = vunpack.c.l.b16 %v2775
    %v3458 = vunpack.c.h.b16 %v2775
    %v3459 = vunpack.c.l.b16 %v2776
    %v3460 = vunpack.c.h.b16 %v2776
    %v3461 = vunpack.c.l.b16 %v2777
    %v3462 = vunpack.c.h.b16 %v2777
    %v3463 = vunpack.c.l.b16 %v2778
    %v3464 = vunpack.c.h.b16 %v2778
    %v3465 = vunpack.c.l.b16 %v2779
    %v3466 = vunpack.c.h.b16 %v2779
    %v3467 = vunpack.c.l.b16 %v2780
    %v3468 = vunpack.c.h.b16 %v2780
    %v3469 = vunpack.c.l.b16 %v2781
    %v3470 = vunpack.c.h.b16 %v2781
    %v3471 = vunpack.c.l.b16 %v2782
    %v3472 = vunpack.c.h.b16 %v2782
    %v3473 = vunpack.c.l.b16 %v2783
    %v3474 = vunpack.c.h.b16 %v2783
    %v3475 = vunpack.c.l.b16 %v2784
    %v3476 = vunpack.c.h.b16 %v2784
    %v3477 = vunpack.c.l.b16 %v2785
    %v3478 = vunpack.c.h.b16 %v2785
    %v3479 = vunpack.c.l.b16 %v2786
    %v3480 = vunpack.c.h.b16 %v2786
    %v3481 = vunpack.c.l.b16 %v2787
    %v3482 = vunpack.c.h.b16 %v2787
    %v3483 = vunpack.c.l.b16 %v2788
    %v3484 = vunpack.c.h.b16 %v2788
    %v3485 = vunpack.c.l.b16 %v2789
    %v3486 = vunpack.c.h.b16 %v2789
    %v3487 = vunpack.c.l.b16 %v2790
    %v3488 = vunpack.c.h.b16 %v2790
    %v3489 = vunpack.c.l.b16 %v2791
    %v3490 = vunpack.c.h.b16 %v2791
    %v3491 = vunpack.c.l.b16 %v2792
    %v3492 = vunpack.c.h.b16 %v2792
    %v3493 = vunpack.c.l.b16 %v2793
    %v3494 = vunpack.c.h.b16 %v2793
    %v3495 = vunpack.c.l.b16 %v2794
    %v3496 = vunpack.c.h.b16 %v2794
    %v3497 = vunpack.c.l.b16 %v2795
    %v3498 = vunpack.c.h.b16 %v2795
    %v3499 = vunpack.c.l.b16 %v2796
    %v3500 = vunpack.c.h.b16 %v2796
    %v3501 = vunpack.c.l.b16 %v2797
    %v3502 = vunpack.c.h.b16 %v2797
    %v3503 = vunpack.c.l.b16 %v2798
    %v3504 = vunpack.c.h.b16 %v2798
    %v3505 = vunpack.c.l.b16 %v2799
    %v3506 = vunpack.c.h.b16 %v2799
    %v3507 = vunpack.c.l.b16 %v2800
    %v3508 = vunpack.c.h.b16 %v2800
    %v3509 = vunpack.c.l.b16 %v2801
    %v3510 = vunpack.c.h.b16 %v2801
    %v3511 = vunpack.c.l.b16 %v2802
    %v3512 = vunpack.c.h.b16 %v2802
    %v3513 = vunpack.c.l.b16 %v2803
    %v3514 = vunpack.c.h.b16 %v2803
    %v3515 = vunpack.c.l.b16 %v2804
    %v3516 = vunpack.c.h.b16 %v2804
    %v3517 = vunpack.c.l.b16 %v2805
    %v3518 = vunpack.c.h.b16 %v2805
    %v3519 = vunpack.c.l.b16 %v2806
    %v3520 = vunpack.c.h.b16 %v2806
    %v3521 = vunpack.c.l.b16 %v2807
    %v3522 = vunpack.c.h.b16 %v2807
    %v3523 = vunpack.c.l.b16 %v2808
    %v3524 = vunpack.c.h.b16 %v2808
    %v3525 = vunpack.c.l.b16 %v2809
    %v3526 = vunpack.c.h.b16 %v2809
    %v3527 = vunpack.c.l.b16 %v2810
    %v3528 = vunpack.c.h.b16 %v2810
    %v3529 = vunpack.c.l.b16 %v2811
    %v3530 = vunpack.c.h.b16 %v2811
    %v3531 = vunpack.c.l.b16 %v2812
    %v3532 = vunpack.c.h.b16 %v2812
    %v3533 = vunpack.c.l.b16 %v2813
    %v3534 = vunpack.c.h.b16 %v2813
    %v3535 = vunpack.c.l.b16 %v2814
    %v3536 = vunpack.c.h.b16 %v2814
    %v3537 = vunpack.c.l.b16 %v2815
    %v3538 = vunpack.c.h.b16 %v2815
    %v3539 = vunpack.c.l.b16 %v2816
    %v3540 = vunpack.c.h.b16 %v2816
    %v3541 = vunpack.c.l.b16 %v2817
    %v3542 = vunpack.c.h.b16 %v2817
    %v3543 = vunpack.c.l.b16 %v2818
    %v3544 = vunpack.c.h.b16 %v2818
    %v3545 = vunpack.c.l.b16 %v2819
    %v3546 = vunpack.c.h.b16 %v2819
    %v3547 = vunpack.c.l.b16 %v2820
    %v3548 = vunpack.c.h.b16 %v2820
    %v3549 = vunpack.c.l.b16 %v2821
    %v3550 = vunpack.c.h.b16 %v2821
    %v3551 = vunpack.c.l.b16 %v2822
    %v3552 = vunpack.c.h.b16 %v2822
    %v3553 = vunpack.c.l.b16 %v2823
    %v3554 = vunpack.c.h.b16 %v2823
    %v3555 = vunpack.c.l.b16 %v2824
    %v3556 = vunpack.c.h.b16 %v2824
    %v3557 = vunpack.c.l.b16 %v2825
    %v3558 = vunpack.c.h.b16 %v2825
    %v3559 = vunpack.c.l.b16 %v2826
    %v3560 = vunpack.c.h.b16 %v2826
    %v3561 = vunpack.c.l.b16 %v2827
    %v3562 = vunpack.c.h.b16 %v2827
    %v3563 = vunpack.c.l.b16 %v2828
    %v3564 = vunpack.c.h.b16 %v2828
    %v3565 = vunpack.c.l.b16 %v2829
    %v3566 = vunpack.c.h.b16 %v2829
    %v3567 = vunpack.c.l.b16 %v2830
    %v3568 = vunpack.c.h.b16 %v2830
    %v3569 = vunpack.c.l.b16 %v2831
    %v3570 = vunpack.c.h.b16 %v2831
    %v3571 = vunpack.c.l.b16 %v2832
    %v3572 = vunpack.c.h.b16 %v2832
    %v3573 = vunpack.c.l.b16 %v2833
    %v3574 = vunpack.c.h.b16 %v2833
    %v3575 = vunpack.c.l.b16 %v2834
    %v3576 = vunpack.c.h.b16 %v2834
    %v3577 = vunpack.c.l.b16 %v2835
    %v3578 = vunpack.c.h.b16 %v2835
    %v3579 = vunpack.c.l.b16 %v2836
    %v3580 = vunpack.c.h.b16 %v2836
    %v3581 = vunpack.c.l.b16 %v2837
    %v3582 = vunpack.c.h.b16 %v2837
    %v3583 = vunpack.c.l.b16 %v2838
    %v3584 = vunpack.c.h.b16 %v2838
    %v3585 = vunpack.c.l.b16 %v2839
    %v3586 = vunpack.c.h.b16 %v2839
    %v3587 = vunpack.c.l.b16 %v2840
    %v3588 = vunpack.c.h.b16 %v2840
    %v3589 = vunpack.c.l.b16 %v2841
    %v3590 = vunpack.c.h.b16 %v2841
    %v3591 = vunpack.c.l.b16 %v2842
    %v3592 = vunpack.c.h.b16 %v2842
    %v3593 = vunpack.c.l.b16 %v2843
    %v3594 = vunpack.c.h.b16 %v2843
    %v3595 = vunpack.c.l.b16 %v2844
    %v3596 = vunpack.c.h.b16 %v2844
    %v3597 = vunpack.c.l.b16 %v2845
    %v3598 = vunpack.c.h.b16 %v2845
    %v3599 = vunpack.c.l.b16 %v2846
    %v3600 = vunpack.c.h.b16 %v2846
    %v3601 = vunpack.c.l.b16 %v2847
    %v3602 = vunpack.c.h.b16 %v2847
    %v3603 = vunpack.c.l.b16 %v2848
    %v3604 = vunpack.c.h.b16 %v2848
    %v3605 = vunpack.c.l.b16 %v2849
    %v3606 = vunpack.c.h.b16 %v2849
    %v3607 = vunpack.c.l.b16 %v2850
    %v3608 = vunpack.c.h.b16 %v2850
    %v3609 = vunpack.c.l.b16 %v2851
    %v3610 = vunpack.c.h.b16 %v2851
    %v3611 = vunpack.c.l.b16 %v2852
    %v3612 = vunpack.c.h.b16 %v2852
    %v3613 = vunpack.c.l.b16 %v2853
    %v3614 = vunpack.c.h.b16 %v2853
    %v3615 = vunpack.c.l.b16 %v2854
    %v3616 = vunpack.c.h.b16 %v2854
    %v3617 = vunpack.c.l.b16 %v2855
    %v3618 = vunpack.c.h.b16 %v2855
    %v3619 = vunpack.c.l.b16 %v2856
    %v3620 = vunpack.c.h.b16 %v2856
    %v3621 = vunpack.c.l.b16 %v2857
    %v3622 = vunpack.c.h.b16 %v2857
    %v3623 = vunpack.c.l.b16 %v2858
    %v3624 = vunpack.c.h.b16 %v2858
    %v3625 = vunpack.c.l.b16 %v2859
    %v3626 = vunpack.c.h.b16 %v2859
    %v3627 = vunpack.c.l.b16 %v2860
    %v3628 = vunpack.c.h.b16 %v2860
    %v3629 = vunpack.c.l.b16 %v2861
    %v3630 = vunpack.c.h.b16 %v2861
    %v3631 = vunpack.c.l.b16 %v2862
    %v3632 = vunpack.c.h.b16 %v2862
    %v3633 = vunpack.c.l.b16 %v2863
    %v3634 = vunpack.c.h.b16 %v2863
    %v3635 = vunpack.c.l.b16 %v2864
    %v3636 = vunpack.c.h.b16 %v2864
    %v3637 = vunpack.c.l.b16 %v2865
    %v3638 = vunpack.c.h.b16 %v2865
    %v3639 = vunpack.c.l.b16 %v2866
    %v3640 = vunpack.c.h.b16 %v2866
    %v3641 = vunpack.c.l.b16 %v2867
    %v3642 = vunpack.c.h.b16 %v2867
    %v3643 = vunpack.c.l.b16 %v2868
    %v3644 = vunpack.c.h.b16 %v2868
    %v3645 = vunpack.c.l.b16 %v2869
    %v3646 = vunpack.c.h.b16 %v2869
    %v3647 = vunpack.c.l.b16 %v2870
    %v3648 = vunpack.c.h.b16 %v2870
    %v3649 = vunpack.c.l.b16 %v2871
    %v3650 = vunpack.c.h.b16 %v2871
    %v3651 = vunpack.c.l.b16 %v2872
    %v3652 = vunpack.c.h.b16 %v2872
    %v3653 = vunpack.c.l.b16 %v2873
    %v3654 = vunpack.c.h.b16 %v2873
    %v3655 = vunpack.c.l.b16 %v2874
    %v3656 = vunpack.c.h.b16 %v2874
    %v3657 = vunpack.c.l.b16 %v2875
    %v3658 = vunpack.c.h.b16 %v2875
    %v3659 = vunpack.c.l.b16 %v2876
    %v3660 = vunpack.c.h.b16 %v2876
    %v3661 = vunpack.c.l.b16 %v2877
    %v3662 = vunpack.c.h.b16 %v2877
    %v3663 = vunpack.c.l.b16 %v2878
    %v3664 = vunpack.c.h.b16 %v2878
    %v3665 = vpack.c.b16 %v3161, %v3153
    %v3666 = vpack.c.b16 %v3162, %v3154
    %v3667 = vpack.c.b16 %v3163, %v3155
    %v3668 = vpack.c.b16 %v3164, %v3156
    %v3669 = vpack.c.b16 %v3165, %v3157
    %v3670 = vpack.c.b16 %v3166, %v3158
    %v3671 = vpack.c.b16 %v3167, %v3159
    %v3672 = vpack.c.b16 %v3168, %v3160
    %v3673 = vpack.c.b16 %v3177, %v3169
    %v3674 = vpack.c.b16 %v3178, %v3170
    %v3675 = vpack.c.b16 %v3179, %v3171
    %v3676 = vpack.c.b16 %v3180, %v3172
    %v3677 = vpack.c.b16 %v3181, %v3173
    %v3678 = vpack.c.b16 %v3182, %v3174
    %v3679 = vpack.c.b16 %v3183, %v3175
    %v3680 = vpack.c.b16 %v3184, %v3176
    %v3681 = vpack.c.b16 %v3193, %v3185
    %v3682 = vpack.c.b16 %v3194, %v3186
    %v3683 = vpack.c.b16 %v3195, %v3187
    %v3684 = vpack.c.b16 %v3196, %v3188
    %v3685 = vpack.c.b16 %v3197, %v3189
    %v3686 = vpack.c.b16 %v3198, %v3190
    %v3687 = vpack.c.b16 %v3199, %v3191
    %v3688 = vpack.c.b16 %v3200, %v3192
    %v3689 = vpack.c.b16 %v3209, %v3201
    %v3690 = vpack.c.b16 %v3210, %v3202
    %v3691 = vpack.c.b16 %v3211, %v3203
    %v3692 = vpack.c.b16 %v3212, %v3204
    %v3693 = vpack.c.b16 %v3213, %v3205
    %v3694 = vpack.c.b16 %v3214, %v3206
    %v3695 = vpack.c.b16 %v3215, %v3207
    %v3696 = vpack.c.b16 %v3216, %v3208
    %v3697 = vpack.c.b16 %v3225, %v3217
    %v3698 = vpack.c.b16 %v3226, %v3218
    %v3699 = vpack.c.b16 %v3227, %v3219
    %v3700 = vpack.c.b16 %v3228, %v3220
    %v3701 = vpack.c.b16 %v3229, %v3221
    %v3702 = vpack.c.b16 %v3230, %v3222
    %v3703 = vpack.c.b16 %v3231, %v3223
    %v3704 = vpack.c.b16 %v3232, %v3224
    %v3705 = vpack.c.b16 %v3241, %v3233
    %v3706 = vpack.c.b16 %v3242, %v3234
    %v3707 = vpack.c.b16 %v3243, %v3235
    %v3708 = vpack.c.b16 %v3244, %v3236
    %v3709 = vpack.c.b16 %v3245, %v3237
    %v3710 = vpack.c.b16 %v3246, %v3238
    %v3711 = vpack.c.b16 %v3247, %v3239
    %v3712 = vpack.c.b16 %v3248, %v3240
    %v3713 = vpack.c.b16 %v3257, %v3249
    %v3714 = vpack.c.b16 %v3258, %v3250
    %v3715 = vpack.c.b16 %v3259, %v3251
    %v3716 = vpack.c.b16 %v3260, %v3252
    %v3717 = vpack.c.b16 %v3261, %v3253
    %v3718 = vpack.c.b16 %v3262, %v3254
    %v3719 = vpack.c.b16 %v3263, %v3255
    %v3720 = vpack.c.b16 %v3264, %v3256
    %v3721 = vpack.c.b16 %v3273, %v3265
    %v3722 = vpack.c.b16 %v3274, %v3266
    %v3723 = vpack.c.b16 %v3275, %v3267
    %v3724 = vpack.c.b16 %v3276, %v3268
    %v3725 = vpack.c.b16 %v3277, %v3269
    %v3726 = vpack.c.b16 %v3278, %v3270
    %v3727 = vpack.c.b16 %v3279, %v3271
    %v3728 = vpack.c.b16 %v3280, %v3272
    %v3729 = vpack.c.b16 %v3289, %v3281
    %v3730 = vpack.c.b16 %v3290, %v3282
    %v3731 = vpack.c.b16 %v3291, %v3283
    %v3732 = vpack.c.b16 %v3292, %v3284
    %v3733 = vpack.c.b16 %v3293, %v3285
    %v3734 = vpack.c.b16 %v3294, %v3286
    %v3735 = vpack.c.b16 %v3295, %v3287
    %v3736 = vpack.c.b16 %v3296, %v3288
    %v3737 = vpack.c.b16 %v3305, %v3297
    %v3738 = vpack.c.b16 %v3306, %v3298
    %v3739 = vpack.c.b16 %v3307, %v3299
    %v3740 = vpack.c.b16 %v3308, %v3300
    %v3741 = vpack.c.b16 %v3309, %v3301
    %v3742 = vpack.c.b16 %v3310, %v3302
    %v3743 = vpack.c.b16 %v3311, %v3303
    %v3744 = vpack.c.b16 %v3312, %v3304
    %v3745 = vpack.c.b16 %v3321, %v3313
    %v3746 = vpack.c.b16 %v3322, %v3314
    %v3747 = vpack.c.b16 %v3323, %v3315
    %v3748 = vpack.c.b16 %v3324, %v3316
    %v3749 = vpack.c.b16 %v3325, %v3317
    %v3750 = vpack.c.b16 %v3326, %v3318
    %v3751 = vpack.c.b16 %v3327, %v3319
    %v3752 = vpack.c.b16 %v3328, %v3320
    %v3753 = vpack.c.b16 %v3337, %v3329
    %v3754 = vpack.c.b16 %v3338, %v3330
    %v3755 = vpack.c.b16 %v3339, %v3331
    %v3756 = vpack.c.b16 %v3340, %v3332
    %v3757 = vpack.c.b16 %v3341, %v3333
    %v3758 = vpack.c.b16 %v3342, %v3334
    %v3759 = vpack.c.b16 %v3343, %v3335
    %v3760 = vpack.c.b16 %v3344, %v3336
    %v3761 = vpack.c.b16 %v3353, %v3345
    %v3762 = vpack.c.b16 %v3354, %v3346
    %v3763 = vpack.c.b16 %v3355, %v3347
    %v3764 = vpack.c.b16 %v3356, %v3348
    %v3765 = vpack.c.b16 %v3357, %v3349
    %v3766 = vpack.c.b16 %v3358, %v3350
    %v3767 = vpack.c.b16 %v3359, %v3351
    %v3768 = vpack.c.b16 %v3360, %v3352
    %v3769 = vpack.c.b16 %v3369, %v3361
    %v3770 = vpack.c.b16 %v3370, %v3362
    %v3771 = vpack.c.b16 %v3371, %v3363
    %v3772 = vpack.c.b16 %v3372, %v3364
    %v3773 = vpack.c.b16 %v3373, %v3365
    %v3774 = vpack.c.b16 %v3374, %v3366
    %v3775 = vpack.c.b16 %v3375, %v3367
    %v3776 = vpack.c.b16 %v3376, %v3368
    %v3777 = vpack.c.b16 %v3385, %v3377
    %v3778 = vpack.c.b16 %v3386, %v3378
    %v3779 = vpack.c.b16 %v3387, %v3379
    %v3780 = vpack.c.b16 %v3388, %v3380
    %v3781 = vpack.c.b16 %v3389, %v3381
    %v3782 = vpack.c.b16 %v3390, %v3382
    %v3783 = vpack.c.b16 %v3391, %v3383
    %v3784 = vpack.c.b16 %v3392, %v3384
    %v3785 = vpack.c.b16 %v3401, %v3393
    %v3786 = vpack.c.b16 %v3402, %v3394
    %v3787 = vpack.c.b16 %v3403, %v3395
    %v3788 = vpack.c.b16 %v3404, %v3396
    %v3789 = vpack.c.b16 %v3405, %v3397
    %v3790 = vpack.c.b16 %v3406, %v3398
    %v3791 = vpack.c.b16 %v3407, %v3399
    %v3792 = vpack.c.b16 %v3408, %v3400
    %v3793 = vpack.c.b16 %v3417, %v3409
    %v3794 = vpack.c.b16 %v3418, %v3410
    %v3795 = vpack.c.b16 %v3419, %v3411
    %v3796 = vpack.c.b16 %v3420, %v3412
    %v3797 = vpack.c.b16 %v3421, %v3413
    %v3798 = vpack.c.b16 %v3422, %v3414
    %v3799 = vpack.c.b16 %v3423, %v3415
    %v3800 = vpack.c.b16 %v3424, %v3416
    %v3801 = vpack.c.b16 %v3433, %v3425
    %v3802 = vpack.c.b16 %v3434, %v3426
    %v3803 = vpack.c.b16 %v3435, %v3427
    %v3804 = vpack.c.b16 %v3436, %v3428
    %v3805 = vpack.c.b16 %v3437, %v3429
    %v3806 = vpack.c.b16 %v3438, %v3430
    %v3807 = vpack.c.b16 %v3439, %v3431
    %v3808 = vpack.c.b16 %v3440, %v3432
    %v3809 = vpack.c.b16 %v3449, %v3441
    %v3810 = vpack.c.b16 %v3450, %v3442
    %v3811 = vpack.c.b16 %v3451, %v3443
    %v3812 = vpack.c.b16 %v3452, %v3444
    %v3813 = vpack.c.b16 %v3453, %v3445
    %v3814 = vpack.c.b16 %v3454, %v3446
    %v3815 = vpack.c.b16 %v3455, %v3447
    %v3816 = vpack.c.b16 %v3456, %v3448
    %v3817 = vpack.c.b16 %v3465, %v3457
    %v3818 = vpack.c.b16 %v3466, %v3458
    %v3819 = vpack.c.b16 %v3467, %v3459
    %v3820 = vpack.c.b16 %v3468, %v3460
    %v3821 = vpack.c.b16 %v3469, %v3461
    %v3822 = vpack.c.b16 %v3470, %v3462
    %v3823 = vpack.c.b16 %v3471, %v3463
    %v3824 = vpack.c.b16 %v3472, %v3464
    %v3825 = vpack.c.b16 %v3481, %v3473
    %v3826 = vpack.c.b16 %v3482, %v3474
    %v3827 = vpack.c.b16 %v3483, %v3475
    %v3828 = vpack.c.b16 %v3484, %v3476
    %v3829 = vpack.c.b16 %v3485, %v3477
    %v3830 = vpack.c.b16 %v3486, %v3478
    %v3831 = vpack.c.b16 %v3487, %v3479
    %v3832 = vpack.c.b16 %v3488, %v3480
    %v3833 = vpack.c.b16 %v3497, %v3489
    %v3834 = vpack.c.b16 %v3498, %v3490
    %v3835 = vpack.c.b16 %v3499, %v3491
    %v3836 = vpack.c.b16 %v3500, %v3492
    %v3837 = vpack.c.b16 %v3501, %v3493
    %v3838 = vpack.c.b16 %v3502, %v3494
    %v3839 = vpack.c.b16 %v3503, %v3495
    %v3840 = vpack.c.b16 %v3504, %v3496
    %v3841 = vpack.c.b16 %v3513, %v3505
    %v3842 = vpack.c.b16 %v3514, %v3506
    %v3843 = vpack.c.b16 %v3515, %v3507
    %v3844 = vpack.c.b16 %v3516, %v3508
    %v3845 = vpack.c.b16 %v3517, %v3509
    %v3846 = vpack.c.b16 %v3518, %v3510
    %v3847 = vpack.c.b16 %v3519, %v3511
    %v3848 = vpack.c.b16 %v3520, %v3512
    %v3849 = vpack.c.b16 %v3529, %v3521
    %v3850 = vpack.c.b16 %v3530, %v3522
    %v3851 = vpack.c.b16 %v3531, %v3523
    %v3852 = vpack.c.b16 %v3532, %v3524
    %v3853 = vpack.c.b16 %v3533, %v3525
    %v3854 = vpack.c.b16 %v3534, %v3526
    %v3855 = vpack.c.b16 %v3535, %v3527
    %v3856 = vpack.c.b16 %v3536, %v3528
    %v3857 = vpack.c.b16 %v3545, %v3537
    %v3858 = vpack.c.b16 %v3546, %v3538
    %v3859 = vpack.c.b16 %v3547, %v3539
    %v3860 = vpack.c.b16 %v3548, %v3540
    %v3861 = vpack.c.b16 %v3549, %v3541
    %v3862 = vpack.c.b16 %v3550, %v3542
    %v3863 = vpack.c.b16 %v3551, %v3543
    %v3864 = vpack.c.b16 %v3552, %v3544
    %v3865 = vpack.c.b16 %v3561, %v3553
    %v3866 = vpack.c.b16 %v3562, %v3554
    %v3867 = vpack.c.b16 %v3563, %v3555
    %v3868 = vpack.c.b16 %v3564, %v3556
    %v3869 = vpack.c.b16 %v3565, %v3557
    %v3870 = vpack.c.b16 %v3566, %v3558
    %v3871 = vpack.c.b16 %v3567, %v3559
    %v3872 = vpack.c.b16 %v3568, %v3560
    %v3873 = vpack.c.b16 %v3577, %v3569
    %v3874 = vpack.c.b16 %v3578, %v3570
    %v3875 = vpack.c.b16 %v3579, %v3571
    %v3876 = vpack.c.b16 %v3580, %v3572
    %v3877 = vpack.c.b16 %v3581, %v3573
    %v3878 = vpack.c.b16 %v3582, %v3574
    %v3879 = vpack.c.b16 %v3583, %v3575
    %v3880 = vpack.c.b16 %v3584, %v3576
    %v3881 = vpack.c.b16 %v3593, %v3585
    %v3882 = vpack.c.b16 %v3594, %v3586
    %v3883 = vpack.c.b16 %v3595, %v3587
    %v3884 = vpack.c.b16 %v3596, %v3588
    %v3885 = vpack.c.b16 %v3597, %v3589
    %v3886 = vpack.c.b16 %v3598, %v3590
    %v3887 = vpack.c.b16 %v3599, %v3591
    %v3888 = vpack.c.b16 %v3600, %v3592
    %v3889 = vpack.c.b16 %v3609, %v3601
    %v3890 = vpack.c.b16 %v3610, %v3602
    %v3891 = vpack.c.b16 %v3611, %v3603
    %v3892 = vpack.c.b16 %v3612, %v3604
    %v3893 = vpack.c.b16 %v3613, %v3605
    %v3894 = vpack.c.b16 %v3614, %v3606
    %v3895 = vpack.c.b16 %v3615, %v3607
    %v3896 = vpack.c.b16 %v3616, %v3608
    %v3897 = vpack.c.b16 %v3625, %v3617
    %v3898 = vpack.c.b16 %v3626, %v3618
    %v3899 = vpack.c.b16 %v3627, %v3619
    %v3900 = vpack.c.b16 %v3628, %v3620
    %v3901 = vpack.c.b16 %v3629, %v3621
    %v3902 = vpack.c.b16 %v3630, %v3622
    %v3903 = vpack.c.b16 %v3631, %v3623
    %v3904 = vpack.c.b16 %v3632, %v3624
    %v3905 = vpack.c.b16 %v3641, %v3633
    %v3906 = vpack.c.b16 %v3642, %v3634
    %v3907 = vpack.c.b16 %v3643, %v3635
    %v3908 = vpack.c.b16 %v3644, %v3636
    %v3909 = vpack.c.b16 %v3645, %v3637
    %v3910 = vpack.c.b16 %v3646, %v3638
    %v3911 = vpack.c.b16 %v3647, %v3639
    %v3912 = vpack.c.b16 %v3648, %v3640
    %v3913 = vpack.c.b16 %v3657, %v3649
    %v3914 = vpack.c.b16 %v3658, %v3650
    %v3915 = vpack.c.b16 %v3659, %v3651
    %v3916 = vpack.c.b16 %v3660, %v3652
    %v3917 = vpack.c.b16 %v3661, %v3653
    %v3918 = vpack.c.b16 %v3662, %v3654
    %v3919 = vpack.c.b16 %v3663, %v3655
    %v3920 = vpack.c.b16 %v3664, %v3656
    %4177 = vmatpush.bf16.msra.mxu0 %v3721
    %4178 = vmatpush.bf16.msra.mxu0 %v3713
    %4179 = vmatpush.bf16.msra.mxu0 %v3705
    %4180 = vmatpush.bf16.msra.mxu0 %v3697
    %4181 = vmatpush.bf16.msra.mxu0 %v3689
    %4182 = vmatpush.bf16.msra.mxu0 %v3681
    %4183 = vmatpush.bf16.msra.mxu0 %v3673
    %4184 = vmatpush.bf16.msra.mxu0 %v3665
    %4185 = vmatmul.bf16.gmra.mxu0 %v2619
    %v4186 = vpop.f32.mrf.mxu0
    %v4187 = vadd.f32 %v2881, %v4186
    %v4188 = vpop.f32.mrf.mxu0
    %4189 = vdwg.mxu0
    %4190 = vmatpush.bf16.msra.mxu0 %v3785
    %4191 = vmatpush.bf16.msra.mxu0 %v3777
    %4192 = vmatpush.bf16.msra.mxu0 %v3769
    %4193 = vmatpush.bf16.msra.mxu0 %v3761
    %4194 = vmatpush.bf16.msra.mxu0 %v3753
    %4195 = vmatpush.bf16.msra.mxu0 %v3745
    %4196 = vmatpush.bf16.msra.mxu0 %v3737
    %4197 = vmatpush.bf16.msra.mxu0 %v3729
    %4198 = vmatmul.bf16.gmra.mxu0 %v2620
    %v4199 = vpop.f32.mrf.mxu0
    %v4200 = vadd.f32 %v4187, %v4199
    %v4201 = vpop.f32.mrf.mxu0
    %4202 = vdwg.mxu0
    %4203 = vmatpush.bf16.msra.mxu0 %v3849
    %4204 = vmatpush.bf16.msra.mxu0 %v3841
    %4205 = vmatpush.bf16.msra.mxu0 %v3833
    %4206 = vmatpush.bf16.msra.mxu0 %v3825
    %4207 = vmatpush.bf16.msra.mxu0 %v3817
    %4208 = vmatpush.bf16.msra.mxu0 %v3809
    %4209 = vmatpush.bf16.msra.mxu0 %v3801
    %4210 = vmatpush.bf16.msra.mxu0 %v3793
    %4211 = vmatmul.bf16.gmra.mxu0 %v2621
    %v4212 = vpop.f32.mrf.mxu0
    %v4213 = vadd.f32 %v4200, %v4212
    %v4214 = vpop.f32.mrf.mxu0
    %4215 = vdwg.mxu0
    %4216 = vmatpush.bf16.msra.mxu0 %v3913
    %4217 = vmatpush.bf16.msra.mxu0 %v3905
    %4218 = vmatpush.bf16.msra.mxu0 %v3897
    %4219 = vmatpush.bf16.msra.mxu0 %v3889
    %4220 = vmatpush.bf16.msra.mxu0 %v3881
    %4221 = vmatpush.bf16.msra.mxu0 %v3873
    %4222 = vmatpush.bf16.msra.mxu0 %v3865
    %4223 = vmatpush.bf16.msra.mxu0 %v3857
    %4224 = vmatmul.bf16.gmra.mxu0 %v2622
    %v4225 = vpop.f32.mrf.mxu0
    %v4226 = vadd.f32 %v4213, %v4225
    %v4227 = vpop.f32.mrf.mxu0
    %4228 = vdwg.mxu0
    %4229 = vmatpush.bf16.msra.mxu0 %v3722
    %4230 = vmatpush.bf16.msra.mxu0 %v3714
    %4231 = vmatpush.bf16.msra.mxu0 %v3706
    %4232 = vmatpush.bf16.msra.mxu0 %v3698
    %4233 = vmatpush.bf16.msra.mxu0 %v3690
    %4234 = vmatpush.bf16.msra.mxu0 %v3682
    %4235 = vmatpush.bf16.msra.mxu0 %v3674
    %4236 = vmatpush.bf16.msra.mxu0 %v3666
    %4237 = vmatmul.bf16.gmra.mxu0 %v2619
    %v4238 = vpop.f32.mrf.mxu0
    %v4239 = vadd.f32 %v2882, %v4238
    %v4240 = vpop.f32.mrf.mxu0
    %4241 = vdwg.mxu0
    %4242 = vmatpush.bf16.msra.mxu0 %v3786
    %4243 = vmatpush.bf16.msra.mxu0 %v3778
    %4244 = vmatpush.bf16.msra.mxu0 %v3770
    %4245 = vmatpush.bf16.msra.mxu0 %v3762
    %4246 = vmatpush.bf16.msra.mxu0 %v3754
    %4247 = vmatpush.bf16.msra.mxu0 %v3746
    %4248 = vmatpush.bf16.msra.mxu0 %v3738
    %4249 = vmatpush.bf16.msra.mxu0 %v3730
    %4250 = vmatmul.bf16.gmra.mxu0 %v2620
    %v4251 = vpop.f32.mrf.mxu0
    %v4252 = vadd.f32 %v4239, %v4251
    %v4253 = vpop.f32.mrf.mxu0
    %4254 = vdwg.mxu0
    %4255 = vmatpush.bf16.msra.mxu0 %v3850
    %4256 = vmatpush.bf16.msra.mxu0 %v3842
    %4257 = vmatpush.bf16.msra.mxu0 %v3834
    %4258 = vmatpush.bf16.msra.mxu0 %v3826
    %4259 = vmatpush.bf16.msra.mxu0 %v3818
    %4260 = vmatpush.bf16.msra.mxu0 %v3810
    %4261 = vmatpush.bf16.msra.mxu0 %v3802
    %4262 = vmatpush.bf16.msra.mxu0 %v3794
    %4263 = vmatmul.bf16.gmra.mxu0 %v2621
    %v4264 = vpop.f32.mrf.mxu0
    %v4265 = vadd.f32 %v4252, %v4264
    %v4266 = vpop.f32.mrf.mxu0
    %4267 = vdwg.mxu0
    %4268 = vmatpush.bf16.msra.mxu0 %v3914
    %4269 = vmatpush.bf16.msra.mxu0 %v3906
    %4270 = vmatpush.bf16.msra.mxu0 %v3898
    %4271 = vmatpush.bf16.msra.mxu0 %v3890
    %4272 = vmatpush.bf16.msra.mxu0 %v3882
    %4273 = vmatpush.bf16.msra.mxu0 %v3874
    %4274 = vmatpush.bf16.msra.mxu0 %v3866
    %4275 = vmatpush.bf16.msra.mxu0 %v3858
    %4276 = vmatmul.bf16.gmra.mxu0 %v2622
    %v4277 = vpop.f32.mrf.mxu0
    %v4278 = vadd.f32 %v4265, %v4277
    %v4279 = vpop.f32.mrf.mxu0
    %4280 = vdwg.mxu0
    %4281 = vmatpush.bf16.msra.mxu0 %v3723
    %4282 = vmatpush.bf16.msra.mxu0 %v3715
    %4283 = vmatpush.bf16.msra.mxu0 %v3707
    %4284 = vmatpush.bf16.msra.mxu0 %v3699
    %4285 = vmatpush.bf16.msra.mxu0 %v3691
    %4286 = vmatpush.bf16.msra.mxu0 %v3683
    %4287 = vmatpush.bf16.msra.mxu0 %v3675
    %4288 = vmatpush.bf16.msra.mxu0 %v3667
    %4289 = vmatmul.bf16.gmra.mxu0 %v2619
    %v4290 = vpop.f32.mrf.mxu0
    %v4291 = vadd.f32 %v2883, %v4290
    %v4292 = vpop.f32.mrf.mxu0
    %4293 = vdwg.mxu0
    %4294 = vmatpush.bf16.msra.mxu0 %v3787
    %4295 = vmatpush.bf16.msra.mxu0 %v3779
    %4296 = vmatpush.bf16.msra.mxu0 %v3771
    %4297 = vmatpush.bf16.msra.mxu0 %v3763
    %4298 = vmatpush.bf16.msra.mxu0 %v3755
    %4299 = vmatpush.bf16.msra.mxu0 %v3747
    %4300 = vmatpush.bf16.msra.mxu0 %v3739
    %4301 = vmatpush.bf16.msra.mxu0 %v3731
    %4302 = vmatmul.bf16.gmra.mxu0 %v2620
    %v4303 = vpop.f32.mrf.mxu0
    %v4304 = vadd.f32 %v4291, %v4303
    %v4305 = vpop.f32.mrf.mxu0
    %4306 = vdwg.mxu0
    %4307 = vmatpush.bf16.msra.mxu0 %v3851
    %4308 = vmatpush.bf16.msra.mxu0 %v3843
    %4309 = vmatpush.bf16.msra.mxu0 %v3835
    %4310 = vmatpush.bf16.msra.mxu0 %v3827
    %4311 = vmatpush.bf16.msra.mxu0 %v3819
    %4312 = vmatpush.bf16.msra.mxu0 %v3811
    %4313 = vmatpush.bf16.msra.mxu0 %v3803
    %4314 = vmatpush.bf16.msra.mxu0 %v3795
    %4315 = vmatmul.bf16.gmra.mxu0 %v2621
    %v4316 = vpop.f32.mrf.mxu0
    %v4317 = vadd.f32 %v4304, %v4316
    %v4318 = vpop.f32.mrf.mxu0
    %4319 = vdwg.mxu0
    %4320 = vmatpush.bf16.msra.mxu0 %v3915
    %4321 = vmatpush.bf16.msra.mxu0 %v3907
    %4322 = vmatpush.bf16.msra.mxu0 %v3899
    %4323 = vmatpush.bf16.msra.mxu0 %v3891
    %4324 = vmatpush.bf16.msra.mxu0 %v3883
    %4325 = vmatpush.bf16.msra.mxu0 %v3875
    %4326 = vmatpush.bf16.msra.mxu0 %v3867
    %4327 = vmatpush.bf16.msra.mxu0 %v3859
    %4328 = vmatmul.bf16.gmra.mxu0 %v2622
    %v4329 = vpop.f32.mrf.mxu0
    %v4330 = vadd.f32 %v4317, %v4329
    %v4331 = vpop.f32.mrf.mxu0
    %4332 = vdwg.mxu0
    %4333 = vmatpush.bf16.msra.mxu0 %v3724
    %4334 = vmatpush.bf16.msra.mxu0 %v3716
    %4335 = vmatpush.bf16.msra.mxu0 %v3708
    %4336 = vmatpush.bf16.msra.mxu0 %v3700
    %4337 = vmatpush.bf16.msra.mxu0 %v3692
    %4338 = vmatpush.bf16.msra.mxu0 %v3684
    %4339 = vmatpush.bf16.msra.mxu0 %v3676
    %4340 = vmatpush.bf16.msra.mxu0 %v3668
    %4341 = vmatmul.bf16.gmra.mxu0 %v2619
    %v4342 = vpop.f32.mrf.mxu0
    %v4343 = vadd.f32 %v2884, %v4342
    %v4344 = vpop.f32.mrf.mxu0
    %4345 = vdwg.mxu0
    %4346 = vmatpush.bf16.msra.mxu0 %v3788
    %4347 = vmatpush.bf16.msra.mxu0 %v3780
    %4348 = vmatpush.bf16.msra.mxu0 %v3772
    %4349 = vmatpush.bf16.msra.mxu0 %v3764
    %4350 = vmatpush.bf16.msra.mxu0 %v3756
    %4351 = vmatpush.bf16.msra.mxu0 %v3748
    %4352 = vmatpush.bf16.msra.mxu0 %v3740
    %4353 = vmatpush.bf16.msra.mxu0 %v3732
    %4354 = vmatmul.bf16.gmra.mxu0 %v2620
    %v4355 = vpop.f32.mrf.mxu0
    %v4356 = vadd.f32 %v4343, %v4355
    %v4357 = vpop.f32.mrf.mxu0
    %4358 = vdwg.mxu0
    %4359 = vmatpush.bf16.msra.mxu0 %v3852
    %4360 = vmatpush.bf16.msra.mxu0 %v3844
    %4361 = vmatpush.bf16.msra.mxu0 %v3836
    %4362 = vmatpush.bf16.msra.mxu0 %v3828
    %4363 = vmatpush.bf16.msra.mxu0 %v3820
    %4364 = vmatpush.bf16.msra.mxu0 %v3812
    %4365 = vmatpush.bf16.msra.mxu0 %v3804
    %4366 = vmatpush.bf16.msra.mxu0 %v3796
    %4367 = vmatmul.bf16.gmra.mxu0 %v2621
    %v4368 = vpop.f32.mrf.mxu0
    %v4369 = vadd.f32 %v4356, %v4368
    %v4370 = vpop.f32.mrf.mxu0
    %4371 = vdwg.mxu0
    %4372 = vmatpush.bf16.msra.mxu0 %v3916
    %4373 = vmatpush.bf16.msra.mxu0 %v3908
    %4374 = vmatpush.bf16.msra.mxu0 %v3900
    %4375 = vmatpush.bf16.msra.mxu0 %v3892
    %4376 = vmatpush.bf16.msra.mxu0 %v3884
    %4377 = vmatpush.bf16.msra.mxu0 %v3876
    %4378 = vmatpush.bf16.msra.mxu0 %v3868
    %4379 = vmatpush.bf16.msra.mxu0 %v3860
    %4380 = vmatmul.bf16.gmra.mxu0 %v2622
    %v4381 = vpop.f32.mrf.mxu0
    %v4382 = vadd.f32 %v4369, %v4381
    %v4383 = vpop.f32.mrf.mxu0
    %4384 = vdwg.mxu0
    %4385 = vmatpush.bf16.msra.mxu0 %v3725
    %4386 = vmatpush.bf16.msra.mxu0 %v3717
    %4387 = vmatpush.bf16.msra.mxu0 %v3709
    %4388 = vmatpush.bf16.msra.mxu0 %v3701
    %4389 = vmatpush.bf16.msra.mxu0 %v3693
    %4390 = vmatpush.bf16.msra.mxu0 %v3685
    %4391 = vmatpush.bf16.msra.mxu0 %v3677
    %4392 = vmatpush.bf16.msra.mxu0 %v3669
    %4393 = vmatmul.bf16.gmra.mxu0 %v2619
    %v4394 = vpop.f32.mrf.mxu0
    %v4395 = vadd.f32 %v2885, %v4394
    %v4396 = vpop.f32.mrf.mxu0
    %4397 = vdwg.mxu0
    %4398 = vmatpush.bf16.msra.mxu0 %v3789
    %4399 = vmatpush.bf16.msra.mxu0 %v3781
    %4400 = vmatpush.bf16.msra.mxu0 %v3773
    %4401 = vmatpush.bf16.msra.mxu0 %v3765
    %4402 = vmatpush.bf16.msra.mxu0 %v3757
    %4403 = vmatpush.bf16.msra.mxu0 %v3749
    %4404 = vmatpush.bf16.msra.mxu0 %v3741
    %4405 = vmatpush.bf16.msra.mxu0 %v3733
    %4406 = vmatmul.bf16.gmra.mxu0 %v2620
    %v4407 = vpop.f32.mrf.mxu0
    %v4408 = vadd.f32 %v4395, %v4407
    %v4409 = vpop.f32.mrf.mxu0
    %4410 = vdwg.mxu0
    %4411 = vmatpush.bf16.msra.mxu0 %v3853
    %4412 = vmatpush.bf16.msra.mxu0 %v3845
    %4413 = vmatpush.bf16.msra.mxu0 %v3837
    %4414 = vmatpush.bf16.msra.mxu0 %v3829
    %4415 = vmatpush.bf16.msra.mxu0 %v3821
    %4416 = vmatpush.bf16.msra.mxu0 %v3813
    %4417 = vmatpush.bf16.msra.mxu0 %v3805
    %4418 = vmatpush.bf16.msra.mxu0 %v3797
    %4419 = vmatmul.bf16.gmra.mxu0 %v2621
    %v4420 = vpop.f32.mrf.mxu0
    %v4421 = vadd.f32 %v4408, %v4420
    %v4422 = vpop.f32.mrf.mxu0
    %4423 = vdwg.mxu0
    %4424 = vmatpush.bf16.msra.mxu0 %v3917
    %4425 = vmatpush.bf16.msra.mxu0 %v3909
    %4426 = vmatpush.bf16.msra.mxu0 %v3901
    %4427 = vmatpush.bf16.msra.mxu0 %v3893
    %4428 = vmatpush.bf16.msra.mxu0 %v3885
    %4429 = vmatpush.bf16.msra.mxu0 %v3877
    %4430 = vmatpush.bf16.msra.mxu0 %v3869
    %4431 = vmatpush.bf16.msra.mxu0 %v3861
    %4432 = vmatmul.bf16.gmra.mxu0 %v2622
    %v4433 = vpop.f32.mrf.mxu0
    %v4434 = vadd.f32 %v4421, %v4433
    %v4435 = vpop.f32.mrf.mxu0
    %4436 = vdwg.mxu0
    %4437 = vmatpush.bf16.msra.mxu0 %v3726
    %4438 = vmatpush.bf16.msra.mxu0 %v3718
    %4439 = vmatpush.bf16.msra.mxu0 %v3710
    %4440 = vmatpush.bf16.msra.mxu0 %v3702
    %4441 = vmatpush.bf16.msra.mxu0 %v3694
    %4442 = vmatpush.bf16.msra.mxu0 %v3686
    %4443 = vmatpush.bf16.msra.mxu0 %v3678
    %4444 = vmatpush.bf16.msra.mxu0 %v3670
    %4445 = vmatmul.bf16.gmra.mxu0 %v2619
    %v4446 = vpop.f32.mrf.mxu0
    %v4447 = vadd.f32 %v2886, %v4446
    %v4448 = vpop.f32.mrf.mxu0
    %4449 = vdwg.mxu0
    %4450 = vmatpush.bf16.msra.mxu0 %v3790
    %4451 = vmatpush.bf16.msra.mxu0 %v3782
    %4452 = vmatpush.bf16.msra.mxu0 %v3774
    %4453 = vmatpush.bf16.msra.mxu0 %v3766
    %4454 = vmatpush.bf16.msra.mxu0 %v3758
    %4455 = vmatpush.bf16.msra.mxu0 %v3750
    %4456 = vmatpush.bf16.msra.mxu0 %v3742
    %4457 = vmatpush.bf16.msra.mxu0 %v3734
    %4458 = vmatmul.bf16.gmra.mxu0 %v2620
    %v4459 = vpop.f32.mrf.mxu0
    %v4460 = vadd.f32 %v4447, %v4459
    %v4461 = vpop.f32.mrf.mxu0
    %4462 = vdwg.mxu0
    %4463 = vmatpush.bf16.msra.mxu0 %v3854
    %4464 = vmatpush.bf16.msra.mxu0 %v3846
    %4465 = vmatpush.bf16.msra.mxu0 %v3838
    %4466 = vmatpush.bf16.msra.mxu0 %v3830
    %4467 = vmatpush.bf16.msra.mxu0 %v3822
    %4468 = vmatpush.bf16.msra.mxu0 %v3814
    %4469 = vmatpush.bf16.msra.mxu0 %v3806
    %4470 = vmatpush.bf16.msra.mxu0 %v3798
    %4471 = vmatmul.bf16.gmra.mxu0 %v2621
    %v4472 = vpop.f32.mrf.mxu0
    %v4473 = vadd.f32 %v4460, %v4472
    %v4474 = vpop.f32.mrf.mxu0
    %4475 = vdwg.mxu0
    %4476 = vmatpush.bf16.msra.mxu0 %v3918
    %4477 = vmatpush.bf16.msra.mxu0 %v3910
    %4478 = vmatpush.bf16.msra.mxu0 %v3902
    %4479 = vmatpush.bf16.msra.mxu0 %v3894
    %4480 = vmatpush.bf16.msra.mxu0 %v3886
    %4481 = vmatpush.bf16.msra.mxu0 %v3878
    %4482 = vmatpush.bf16.msra.mxu0 %v3870
    %4483 = vmatpush.bf16.msra.mxu0 %v3862
    %4484 = vmatmul.bf16.gmra.mxu0 %v2622
    %v4485 = vpop.f32.mrf.mxu0
    %v4486 = vadd.f32 %v4473, %v4485
    %v4487 = vpop.f32.mrf.mxu0
    %4488 = vdwg.mxu0
    %4489 = vmatpush.bf16.msra.mxu0 %v3727
    %4490 = vmatpush.bf16.msra.mxu0 %v3719
    %4491 = vmatpush.bf16.msra.mxu0 %v3711
    %4492 = vmatpush.bf16.msra.mxu0 %v3703
    %4493 = vmatpush.bf16.msra.mxu0 %v3695
    %4494 = vmatpush.bf16.msra.mxu0 %v3687
    %4495 = vmatpush.bf16.msra.mxu0 %v3679
    %4496 = vmatpush.bf16.msra.mxu0 %v3671
    %4497 = vmatmul.bf16.gmra.mxu0 %v2619
    %v4498 = vpop.f32.mrf.mxu0
    %v4499 = vadd.f32 %v2887, %v4498
    %v4500 = vpop.f32.mrf.mxu0
    %4501 = vdwg.mxu0
    %4502 = vmatpush.bf16.msra.mxu0 %v3791
    %4503 = vmatpush.bf16.msra.mxu0 %v3783
    %4504 = vmatpush.bf16.msra.mxu0 %v3775
    %4505 = vmatpush.bf16.msra.mxu0 %v3767
    %4506 = vmatpush.bf16.msra.mxu0 %v3759
    %4507 = vmatpush.bf16.msra.mxu0 %v3751
    %4508 = vmatpush.bf16.msra.mxu0 %v3743
    %4509 = vmatpush.bf16.msra.mxu0 %v3735
    %4510 = vmatmul.bf16.gmra.mxu0 %v2620
    %v4511 = vpop.f32.mrf.mxu0
    %v4512 = vadd.f32 %v4499, %v4511
    %v4513 = vpop.f32.mrf.mxu0
    %4514 = vdwg.mxu0
    %4515 = vmatpush.bf16.msra.mxu0 %v3855
    %4516 = vmatpush.bf16.msra.mxu0 %v3847
    %4517 = vmatpush.bf16.msra.mxu0 %v3839
    %4518 = vmatpush.bf16.msra.mxu0 %v3831
    %4519 = vmatpush.bf16.msra.mxu0 %v3823
    %4520 = vmatpush.bf16.msra.mxu0 %v3815
    %4521 = vmatpush.bf16.msra.mxu0 %v3807
    %4522 = vmatpush.bf16.msra.mxu0 %v3799
    %4523 = vmatmul.bf16.gmra.mxu0 %v2621
    %v4524 = vpop.f32.mrf.mxu0
    %v4525 = vadd.f32 %v4512, %v4524
    %v4526 = vpop.f32.mrf.mxu0
    %4527 = vdwg.mxu0
    %4528 = vmatpush.bf16.msra.mxu0 %v3919
    %4529 = vmatpush.bf16.msra.mxu0 %v3911
    %4530 = vmatpush.bf16.msra.mxu0 %v3903
    %4531 = vmatpush.bf16.msra.mxu0 %v3895
    %4532 = vmatpush.bf16.msra.mxu0 %v3887
    %4533 = vmatpush.bf16.msra.mxu0 %v3879
    %4534 = vmatpush.bf16.msra.mxu0 %v3871
    %4535 = vmatpush.bf16.msra.mxu0 %v3863
    %4536 = vmatmul.bf16.gmra.mxu0 %v2622
    %v4537 = vpop.f32.mrf.mxu0
    %v4538 = vadd.f32 %v4525, %v4537
    %v4539 = vpop.f32.mrf.mxu0
    %4540 = vdwg.mxu0
    %4541 = vmatpush.bf16.msra.mxu0 %v3728
    %4542 = vmatpush.bf16.msra.mxu0 %v3720
    %4543 = vmatpush.bf16.msra.mxu0 %v3712
    %4544 = vmatpush.bf16.msra.mxu0 %v3704
    %4545 = vmatpush.bf16.msra.mxu0 %v3696
    %4546 = vmatpush.bf16.msra.mxu0 %v3688
    %4547 = vmatpush.bf16.msra.mxu0 %v3680
    %4548 = vmatpush.bf16.msra.mxu0 %v3672
    %4549 = vmatmul.bf16.gmra.mxu0 %v2619
    %v4550 = vpop.f32.mrf.mxu0
    %v4551 = vadd.f32 %v2888, %v4550
    %v4552 = vpop.f32.mrf.mxu0
    %4553 = vdwg.mxu0
    %4554 = vmatpush.bf16.msra.mxu0 %v3792
    %4555 = vmatpush.bf16.msra.mxu0 %v3784
    %4556 = vmatpush.bf16.msra.mxu0 %v3776
    %4557 = vmatpush.bf16.msra.mxu0 %v3768
    %4558 = vmatpush.bf16.msra.mxu0 %v3760
    %4559 = vmatpush.bf16.msra.mxu0 %v3752
    %4560 = vmatpush.bf16.msra.mxu0 %v3744
    %4561 = vmatpush.bf16.msra.mxu0 %v3736
    %4562 = vmatmul.bf16.gmra.mxu0 %v2620
    %v4563 = vpop.f32.mrf.mxu0
    %v4564 = vadd.f32 %v4551, %v4563
    %v4565 = vpop.f32.mrf.mxu0
    %4566 = vdwg.mxu0
    %4567 = vmatpush.bf16.msra.mxu0 %v3856
    %4568 = vmatpush.bf16.msra.mxu0 %v3848
    %4569 = vmatpush.bf16.msra.mxu0 %v3840
    %4570 = vmatpush.bf16.msra.mxu0 %v3832
    %4571 = vmatpush.bf16.msra.mxu0 %v3824
    %4572 = vmatpush.bf16.msra.mxu0 %v3816
    %4573 = vmatpush.bf16.msra.mxu0 %v3808
    %4574 = vmatpush.bf16.msra.mxu0 %v3800
    %4575 = vmatmul.bf16.gmra.mxu0 %v2621
    %v4576 = vpop.f32.mrf.mxu0
    %v4577 = vadd.f32 %v4564, %v4576
    %v4578 = vpop.f32.mrf.mxu0
    %4579 = vdwg.mxu0
    %4580 = vmatpush.bf16.msra.mxu0 %v3920
    %4581 = vmatpush.bf16.msra.mxu0 %v3912
    %4582 = vmatpush.bf16.msra.mxu0 %v3904
    %4583 = vmatpush.bf16.msra.mxu0 %v3896
    %4584 = vmatpush.bf16.msra.mxu0 %v3888
    %4585 = vmatpush.bf16.msra.mxu0 %v3880
    %4586 = vmatpush.bf16.msra.mxu0 %v3872
    %4587 = vmatpush.bf16.msra.mxu0 %v3864
    %4588 = vmatmul.bf16.gmra.mxu0 %v2622
    %v4589 = vpop.f32.mrf.mxu0
    %v4590 = vadd.f32 %v4577, %v4589
    %v4591 = vpop.f32.mrf.mxu0
    %4592 = vdwg.mxu0
    %v4593 = vmax.f32 %v4226, 0.0
    %v4594 = vmax.f32 %v4278, 0.0
    %v4595 = vmax.f32 %v4330, 0.0
    %v4596 = vmax.f32 %v4382, 0.0
    %v4597 = vmax.f32 %v4434, 0.0
    %v4598 = vmax.f32 %v4486, 0.0
    %v4599 = vmax.f32 %v4538, 0.0
    %v4600 = vmax.f32 %v4590, 0.0
    %v4601 = vpack.c.bf16 %v4593, %v4593
    %v4602 = vpack.c.bf16 %v4594, %v4594
    %v4603 = vpack.c.bf16 %v4595, %v4595
    %v4604 = vpack.c.bf16 %v4596, %v4596
    %v4605 = vpack.c.bf16 %v4597, %v4597
    %v4606 = vpack.c.bf16 %v4598, %v4598
    %v4607 = vpack.c.bf16 %v4599, %v4599
    %v4608 = vpack.c.bf16 %v4600, %v4600
    %v4609 = vld [vmem:[#allocation9] sm:$0xff]
    %v4610 = vld [vmem:[#allocation9 + $0x8] sm:$0xff]
    %v4611 = vld [vmem:[#allocation9 + $0x10] sm:$0xff]
    %v4612 = vld [vmem:[#allocation9 + $0x18] sm:$0xff]
    %v4613 = vld [vmem:[#allocation9 + $0x20] sm:$0xff]
    %v4614 = vld [vmem:[#allocation9 + $0x28] sm:$0xff]
    %v4615 = vld [vmem:[#allocation9 + $0x30] sm:$0xff]
    %v4616 = vld [vmem:[#allocation9 + $0x38] sm:$0xff]
    %v4617 = vld [vmem:[#allocation9 + $0x40] sm:$0xff]
    %v4618 = vld [vmem:[#allocation9 + $0x48] sm:$0xff]
    %v4619 = vld [vmem:[#allocation9 + $0x50] sm:$0xff]
    %v4620 = vld [vmem:[#allocation9 + $0x58] sm:$0xff]
    %v4621 = vld [vmem:[#allocation9 + $0x60] sm:$0xff]
    %v4622 = vld [vmem:[#allocation9 + $0x68] sm:$0xff]
    %v4623 = vld [vmem:[#allocation9 + $0x70] sm:$0xff]
    %v4624 = vld [vmem:[#allocation9 + $0x78] sm:$0xff]
    %v4625 = vld [vmem:[#allocation9 + $0x80] sm:$0xff]
    %v4626 = vld [vmem:[#allocation9 + $0x88] sm:$0xff]
    %v4627 = vld [vmem:[#allocation9 + $0x90] sm:$0xff]
    %v4628 = vld [vmem:[#allocation9 + $0x98] sm:$0xff]
    %v4629 = vld [vmem:[#allocation9 + $0xa0] sm:$0xff]
    %v4630 = vld [vmem:[#allocation9 + $0xa8] sm:$0xff]
    %v4631 = vld [vmem:[#allocation9 + $0xb0] sm:$0xff]
    %v4632 = vld [vmem:[#allocation9 + $0xb8] sm:$0xff]
    %v4633 = vld [vmem:[#allocation9 + $0xc0] sm:$0xff]
    %v4634 = vld [vmem:[#allocation9 + $0xc8] sm:$0xff]
    %v4635 = vld [vmem:[#allocation9 + $0xd0] sm:$0xff]
    %v4636 = vld [vmem:[#allocation9 + $0xd8] sm:$0xff]
    %v4637 = vld [vmem:[#allocation9 + $0xe0] sm:$0xff]
    %v4638 = vld [vmem:[#allocation9 + $0xe8] sm:$0xff]
    %v4639 = vld [vmem:[#allocation9 + $0xf0] sm:$0xff]
    %v4640 = vld [vmem:[#allocation9 + $0xf8] sm:$0xff]
    %v4641 = vld [vmem:[#allocation9 + $0x100] sm:$0xff]
    %v4642 = vld [vmem:[#allocation9 + $0x108] sm:$0xff]
    %v4643 = vld [vmem:[#allocation9 + $0x110] sm:$0xff]
    %v4644 = vld [vmem:[#allocation9 + $0x118] sm:$0xff]
    %v4645 = vld [vmem:[#allocation9 + $0x120] sm:$0xff]
    %v4646 = vld [vmem:[#allocation9 + $0x128] sm:$0xff]
    %v4647 = vld [vmem:[#allocation9 + $0x130] sm:$0xff]
    %v4648 = vld [vmem:[#allocation9 + $0x138] sm:$0xff]
    %v4649 = vld [vmem:[#allocation9 + $0x140] sm:$0xff]
    %v4650 = vld [vmem:[#allocation9 + $0x148] sm:$0xff]
    %v4651 = vld [vmem:[#allocation9 + $0x150] sm:$0xff]
    %v4652 = vld [vmem:[#allocation9 + $0x158] sm:$0xff]
    %v4653 = vld [vmem:[#allocation9 + $0x160] sm:$0xff]
    %v4654 = vld [vmem:[#allocation9 + $0x168] sm:$0xff]
    %v4655 = vld [vmem:[#allocation9 + $0x170] sm:$0xff]
    %v4656 = vld [vmem:[#allocation9 + $0x178] sm:$0xff]
    %v4657 = vld [vmem:[#allocation9 + $0x180] sm:$0xff]
    %v4658 = vld [vmem:[#allocation9 + $0x188] sm:$0xff]
    %v4659 = vld [vmem:[#allocation9 + $0x190] sm:$0xff]
    %v4660 = vld [vmem:[#allocation9 + $0x198] sm:$0xff]
    %v4661 = vld [vmem:[#allocation9 + $0x1a0] sm:$0xff]
    %v4662 = vld [vmem:[#allocation9 + $0x1a8] sm:$0xff]
    %v4663 = vld [vmem:[#allocation9 + $0x1b0] sm:$0xff]
    %v4664 = vld [vmem:[#allocation9 + $0x1b8] sm:$0xff]
    %v4665 = vld [vmem:[#allocation9 + $0x1c0] sm:$0xff]
    %v4666 = vld [vmem:[#allocation9 + $0x1c8] sm:$0xff]
    %v4667 = vld [vmem:[#allocation9 + $0x1d0] sm:$0xff]
    %v4668 = vld [vmem:[#allocation9 + $0x1d8] sm:$0xff]
    %v4669 = vld [vmem:[#allocation9 + $0x1e0] sm:$0xff]
    %v4670 = vld [vmem:[#allocation9 + $0x1e8] sm:$0xff]
    %v4671 = vld [vmem:[#allocation9 + $0x1f0] sm:$0xff]
    %v4672 = vld [vmem:[#allocation9 + $0x1f8] sm:$0xff]
    %v4673 = vld [vmem:[#allocation9 + $0x200] sm:$0xff]
    %v4674 = vld [vmem:[#allocation9 + $0x208] sm:$0xff]
    %v4675 = vld [vmem:[#allocation9 + $0x210] sm:$0xff]
    %v4676 = vld [vmem:[#allocation9 + $0x218] sm:$0xff]
    %v4677 = vld [vmem:[#allocation9 + $0x220] sm:$0xff]
    %v4678 = vld [vmem:[#allocation9 + $0x228] sm:$0xff]
    %v4679 = vld [vmem:[#allocation9 + $0x230] sm:$0xff]
    %v4680 = vld [vmem:[#allocation9 + $0x238] sm:$0xff]
    %v4681 = vld [vmem:[#allocation9 + $0x240] sm:$0xff]
    %v4682 = vld [vmem:[#allocation9 + $0x248] sm:$0xff]
    %v4683 = vld [vmem:[#allocation9 + $0x250] sm:$0xff]
    %v4684 = vld [vmem:[#allocation9 + $0x258] sm:$0xff]
    %v4685 = vld [vmem:[#allocation9 + $0x260] sm:$0xff]
    %v4686 = vld [vmem:[#allocation9 + $0x268] sm:$0xff]
    %v4687 = vld [vmem:[#allocation9 + $0x270] sm:$0xff]
    %v4688 = vld [vmem:[#allocation9 + $0x278] sm:$0xff]
    %v4689 = vld [vmem:[#allocation9 + $0x280] sm:$0xff]
    %v4690 = vld [vmem:[#allocation9 + $0x288] sm:$0xff]
    %v4691 = vld [vmem:[#allocation9 + $0x290] sm:$0xff]
    %v4692 = vld [vmem:[#allocation9 + $0x298] sm:$0xff]
    %v4693 = vld [vmem:[#allocation9 + $0x2a0] sm:$0xff]
    %v4694 = vld [vmem:[#allocation9 + $0x2a8] sm:$0xff]
    %v4695 = vld [vmem:[#allocation9 + $0x2b0] sm:$0xff]
    %v4696 = vld [vmem:[#allocation9 + $0x2b8] sm:$0xff]
    %v4697 = vld [vmem:[#allocation9 + $0x2c0] sm:$0xff]
    %v4698 = vld [vmem:[#allocation9 + $0x2c8] sm:$0xff]
    %v4699 = vld [vmem:[#allocation9 + $0x2d0] sm:$0xff]
    %v4700 = vld [vmem:[#allocation9 + $0x2d8] sm:$0xff]
    %v4701 = vld [vmem:[#allocation9 + $0x2e0] sm:$0xff]
    %v4702 = vld [vmem:[#allocation9 + $0x2e8] sm:$0xff]
    %v4703 = vld [vmem:[#allocation9 + $0x2f0] sm:$0xff]
    %v4704 = vld [vmem:[#allocation9 + $0x2f8] sm:$0xff]
    %v4705 = vld [vmem:[#allocation9 + $0x300] sm:$0xff]
    %v4706 = vld [vmem:[#allocation9 + $0x308] sm:$0xff]
    %v4707 = vld [vmem:[#allocation9 + $0x310] sm:$0xff]
    %v4708 = vld [vmem:[#allocation9 + $0x318] sm:$0xff]
    %v4709 = vld [vmem:[#allocation9 + $0x320] sm:$0xff]
    %v4710 = vld [vmem:[#allocation9 + $0x328] sm:$0xff]
    %v4711 = vld [vmem:[#allocation9 + $0x330] sm:$0xff]
    %v4712 = vld [vmem:[#allocation9 + $0x338] sm:$0xff]
    %v4713 = vld [vmem:[#allocation9 + $0x340] sm:$0xff]
    %v4714 = vld [vmem:[#allocation9 + $0x348] sm:$0xff]
    %v4715 = vld [vmem:[#allocation9 + $0x350] sm:$0xff]
    %v4716 = vld [vmem:[#allocation9 + $0x358] sm:$0xff]
    %v4717 = vld [vmem:[#allocation9 + $0x360] sm:$0xff]
    %v4718 = vld [vmem:[#allocation9 + $0x368] sm:$0xff]
    %v4719 = vld [vmem:[#allocation9 + $0x370] sm:$0xff]
    %v4720 = vld [vmem:[#allocation9 + $0x378] sm:$0xff]
    %v4721 = vld [vmem:[#allocation9 + $0x380] sm:$0xff]
    %v4722 = vld [vmem:[#allocation9 + $0x388] sm:$0xff]
    %v4723 = vld [vmem:[#allocation9 + $0x390] sm:$0xff]
    %v4724 = vld [vmem:[#allocation9 + $0x398] sm:$0xff]
    %v4725 = vld [vmem:[#allocation9 + $0x3a0] sm:$0xff]
    %v4726 = vld [vmem:[#allocation9 + $0x3a8] sm:$0xff]
    %v4727 = vld [vmem:[#allocation9 + $0x3b0] sm:$0xff]
    %v4728 = vld [vmem:[#allocation9 + $0x3b8] sm:$0xff]
    %v4729 = vld [vmem:[#allocation9 + $0x3c0] sm:$0xff]
    %v4730 = vld [vmem:[#allocation9 + $0x3c8] sm:$0xff]
    %v4731 = vld [vmem:[#allocation9 + $0x3d0] sm:$0xff]
    %v4732 = vld [vmem:[#allocation9 + $0x3d8] sm:$0xff]
    %v4733 = vld [vmem:[#allocation9 + $0x3e0] sm:$0xff]
    %v4734 = vld [vmem:[#allocation9 + $0x3e8] sm:$0xff]
    %v4735 = vld [vmem:[#allocation9 + $0x3f0] sm:$0xff]
    %v4736 = vld [vmem:[#allocation9 + $0x3f8] sm:$0xff]
    %v4737 = vld [vmem:[#allocation9 + $0x400] sm:$0xff]
    %v4738 = vld [vmem:[#allocation9 + $0x408] sm:$0xff]
    %v4739 = vld [vmem:[#allocation9 + $0x410] sm:$0xff]
    %v4740 = vld [vmem:[#allocation9 + $0x418] sm:$0xff]
    %v4741 = vld [vmem:[#allocation9 + $0x420] sm:$0xff]
    %v4742 = vld [vmem:[#allocation9 + $0x428] sm:$0xff]
    %v4743 = vld [vmem:[#allocation9 + $0x430] sm:$0xff]
    %v4744 = vld [vmem:[#allocation9 + $0x438] sm:$0xff]
    %v4745 = vld [vmem:[#allocation9 + $0x440] sm:$0xff]
    %v4746 = vld [vmem:[#allocation9 + $0x448] sm:$0xff]
    %v4747 = vld [vmem:[#allocation9 + $0x450] sm:$0xff]
    %v4748 = vld [vmem:[#allocation9 + $0x458] sm:$0xff]
    %v4749 = vld [vmem:[#allocation9 + $0x460] sm:$0xff]
    %v4750 = vld [vmem:[#allocation9 + $0x468] sm:$0xff]
    %v4751 = vld [vmem:[#allocation9 + $0x470] sm:$0xff]
    %v4752 = vld [vmem:[#allocation9 + $0x478] sm:$0xff]
    %v4753 = vld [vmem:[#allocation9 + $0x480] sm:$0xff]
    %v4754 = vld [vmem:[#allocation9 + $0x488] sm:$0xff]
    %v4755 = vld [vmem:[#allocation9 + $0x490] sm:$0xff]
    %v4756 = vld [vmem:[#allocation9 + $0x498] sm:$0xff]
    %v4757 = vld [vmem:[#allocation9 + $0x4a0] sm:$0xff]
    %v4758 = vld [vmem:[#allocation9 + $0x4a8] sm:$0xff]
    %v4759 = vld [vmem:[#allocation9 + $0x4b0] sm:$0xff]
    %v4760 = vld [vmem:[#allocation9 + $0x4b8] sm:$0xff]
    %v4761 = vld [vmem:[#allocation9 + $0x4c0] sm:$0xff]
    %v4762 = vld [vmem:[#allocation9 + $0x4c8] sm:$0xff]
    %v4763 = vld [vmem:[#allocation9 + $0x4d0] sm:$0xff]
    %v4764 = vld [vmem:[#allocation9 + $0x4d8] sm:$0xff]
    %v4765 = vld [vmem:[#allocation9 + $0x4e0] sm:$0xff]
    %v4766 = vld [vmem:[#allocation9 + $0x4e8] sm:$0xff]
    %v4767 = vld [vmem:[#allocation9 + $0x4f0] sm:$0xff]
    %v4768 = vld [vmem:[#allocation9 + $0x4f8] sm:$0xff]
    %v4769 = vld [vmem:[#allocation9 + $0x500] sm:$0xff]
    %v4770 = vld [vmem:[#allocation9 + $0x508] sm:$0xff]
    %v4771 = vld [vmem:[#allocation9 + $0x510] sm:$0xff]
    %v4772 = vld [vmem:[#allocation9 + $0x518] sm:$0xff]
    %v4773 = vld [vmem:[#allocation9 + $0x520] sm:$0xff]
    %v4774 = vld [vmem:[#allocation9 + $0x528] sm:$0xff]
    %v4775 = vld [vmem:[#allocation9 + $0x530] sm:$0xff]
    %v4776 = vld [vmem:[#allocation9 + $0x538] sm:$0xff]
    %v4777 = vld [vmem:[#allocation9 + $0x540] sm:$0xff]
    %v4778 = vld [vmem:[#allocation9 + $0x548] sm:$0xff]
    %v4779 = vld [vmem:[#allocation9 + $0x550] sm:$0xff]
    %v4780 = vld [vmem:[#allocation9 + $0x558] sm:$0xff]
    %v4781 = vld [vmem:[#allocation9 + $0x560] sm:$0xff]
    %v4782 = vld [vmem:[#allocation9 + $0x568] sm:$0xff]
    %v4783 = vld [vmem:[#allocation9 + $0x570] sm:$0xff]
    %v4784 = vld [vmem:[#allocation9 + $0x578] sm:$0xff]
    %v4785 = vld [vmem:[#allocation9 + $0x580] sm:$0xff]
    %v4786 = vld [vmem:[#allocation9 + $0x588] sm:$0xff]
    %v4787 = vld [vmem:[#allocation9 + $0x590] sm:$0xff]
    %v4788 = vld [vmem:[#allocation9 + $0x598] sm:$0xff]
    %v4789 = vld [vmem:[#allocation9 + $0x5a0] sm:$0xff]
    %v4790 = vld [vmem:[#allocation9 + $0x5a8] sm:$0xff]
    %v4791 = vld [vmem:[#allocation9 + $0x5b0] sm:$0xff]
    %v4792 = vld [vmem:[#allocation9 + $0x5b8] sm:$0xff]
    %v4793 = vld [vmem:[#allocation9 + $0x5c0] sm:$0xff]
    %v4794 = vld [vmem:[#allocation9 + $0x5c8] sm:$0xff]
    %v4795 = vld [vmem:[#allocation9 + $0x5d0] sm:$0xff]
    %v4796 = vld [vmem:[#allocation9 + $0x5d8] sm:$0xff]
    %v4797 = vld [vmem:[#allocation9 + $0x5e0] sm:$0xff]
    %v4798 = vld [vmem:[#allocation9 + $0x5e8] sm:$0xff]
    %v4799 = vld [vmem:[#allocation9 + $0x5f0] sm:$0xff]
    %v4800 = vld [vmem:[#allocation9 + $0x5f8] sm:$0xff]
    %v4801 = vld [vmem:[#allocation9 + $0x600] sm:$0xff]
    %v4802 = vld [vmem:[#allocation9 + $0x608] sm:$0xff]
    %v4803 = vld [vmem:[#allocation9 + $0x610] sm:$0xff]
    %v4804 = vld [vmem:[#allocation9 + $0x618] sm:$0xff]
    %v4805 = vld [vmem:[#allocation9 + $0x620] sm:$0xff]
    %v4806 = vld [vmem:[#allocation9 + $0x628] sm:$0xff]
    %v4807 = vld [vmem:[#allocation9 + $0x630] sm:$0xff]
    %v4808 = vld [vmem:[#allocation9 + $0x638] sm:$0xff]
    %v4809 = vld [vmem:[#allocation9 + $0x640] sm:$0xff]
    %v4810 = vld [vmem:[#allocation9 + $0x648] sm:$0xff]
    %v4811 = vld [vmem:[#allocation9 + $0x650] sm:$0xff]
    %v4812 = vld [vmem:[#allocation9 + $0x658] sm:$0xff]
    %v4813 = vld [vmem:[#allocation9 + $0x660] sm:$0xff]
    %v4814 = vld [vmem:[#allocation9 + $0x668] sm:$0xff]
    %v4815 = vld [vmem:[#allocation9 + $0x670] sm:$0xff]
    %v4816 = vld [vmem:[#allocation9 + $0x678] sm:$0xff]
    %v4817 = vld [vmem:[#allocation9 + $0x680] sm:$0xff]
    %v4818 = vld [vmem:[#allocation9 + $0x688] sm:$0xff]
    %v4819 = vld [vmem:[#allocation9 + $0x690] sm:$0xff]
    %v4820 = vld [vmem:[#allocation9 + $0x698] sm:$0xff]
    %v4821 = vld [vmem:[#allocation9 + $0x6a0] sm:$0xff]
    %v4822 = vld [vmem:[#allocation9 + $0x6a8] sm:$0xff]
    %v4823 = vld [vmem:[#allocation9 + $0x6b0] sm:$0xff]
    %v4824 = vld [vmem:[#allocation9 + $0x6b8] sm:$0xff]
    %v4825 = vld [vmem:[#allocation9 + $0x6c0] sm:$0xff]
    %v4826 = vld [vmem:[#allocation9 + $0x6c8] sm:$0xff]
    %v4827 = vld [vmem:[#allocation9 + $0x6d0] sm:$0xff]
    %v4828 = vld [vmem:[#allocation9 + $0x6d8] sm:$0xff]
    %v4829 = vld [vmem:[#allocation9 + $0x6e0] sm:$0xff]
    %v4830 = vld [vmem:[#allocation9 + $0x6e8] sm:$0xff]
    %v4831 = vld [vmem:[#allocation9 + $0x6f0] sm:$0xff]
    %v4832 = vld [vmem:[#allocation9 + $0x6f8] sm:$0xff]
    %v4833 = vld [vmem:[#allocation9 + $0x700] sm:$0xff]
    %v4834 = vld [vmem:[#allocation9 + $0x708] sm:$0xff]
    %v4835 = vld [vmem:[#allocation9 + $0x710] sm:$0xff]
    %v4836 = vld [vmem:[#allocation9 + $0x718] sm:$0xff]
    %v4837 = vld [vmem:[#allocation9 + $0x720] sm:$0xff]
    %v4838 = vld [vmem:[#allocation9 + $0x728] sm:$0xff]
    %v4839 = vld [vmem:[#allocation9 + $0x730] sm:$0xff]
    %v4840 = vld [vmem:[#allocation9 + $0x738] sm:$0xff]
    %v4841 = vld [vmem:[#allocation9 + $0x740] sm:$0xff]
    %v4842 = vld [vmem:[#allocation9 + $0x748] sm:$0xff]
    %v4843 = vld [vmem:[#allocation9 + $0x750] sm:$0xff]
    %v4844 = vld [vmem:[#allocation9 + $0x758] sm:$0xff]
    %v4845 = vld [vmem:[#allocation9 + $0x760] sm:$0xff]
    %v4846 = vld [vmem:[#allocation9 + $0x768] sm:$0xff]
    %v4847 = vld [vmem:[#allocation9 + $0x770] sm:$0xff]
    %v4848 = vld [vmem:[#allocation9 + $0x778] sm:$0xff]
    %v4849 = vld [vmem:[#allocation9 + $0x780] sm:$0xff]
    %v4850 = vld [vmem:[#allocation9 + $0x788] sm:$0xff]
    %v4851 = vld [vmem:[#allocation9 + $0x790] sm:$0xff]
    %v4852 = vld [vmem:[#allocation9 + $0x798] sm:$0xff]
    %v4853 = vld [vmem:[#allocation9 + $0x7a0] sm:$0xff]
    %v4854 = vld [vmem:[#allocation9 + $0x7a8] sm:$0xff]
    %v4855 = vld [vmem:[#allocation9 + $0x7b0] sm:$0xff]
    %v4856 = vld [vmem:[#allocation9 + $0x7b8] sm:$0xff]
    %v4857 = vld [vmem:[#allocation9 + $0x7c0] sm:$0xff]
    %v4858 = vld [vmem:[#allocation9 + $0x7c8] sm:$0xff]
    %v4859 = vld [vmem:[#allocation9 + $0x7d0] sm:$0xff]
    %v4860 = vld [vmem:[#allocation9 + $0x7d8] sm:$0xff]
    %v4861 = vld [vmem:[#allocation9 + $0x7e0] sm:$0xff]
    %v4862 = vld [vmem:[#allocation9 + $0x7e8] sm:$0xff]
    %v4863 = vld [vmem:[#allocation9 + $0x7f0] sm:$0xff]
    %v4864 = vld [vmem:[#allocation9 + $0x7f8] sm:$0xff]
    %v4865 = vld [vmem:[%s8] sm:$0xf]
    %v4867 = vperm.slane %v4865, 0
    %v4868 = vperm.slane %v4865, 1
    %v4869 = vperm.slane %v4865, 2
    %v4870 = vperm.slane %v4865, 3
    %v5131 = vunpack.c.l.b16 %v4609
    %v5132 = vunpack.c.h.b16 %v4609
    %v5133 = vunpack.c.l.b16 %v4610
    %v5134 = vunpack.c.h.b16 %v4610
    %v5135 = vunpack.c.l.b16 %v4611
    %v5136 = vunpack.c.h.b16 %v4611
    %v5137 = vunpack.c.l.b16 %v4612
    %v5138 = vunpack.c.h.b16 %v4612
    %v5139 = vunpack.c.l.b16 %v4613
    %v5140 = vunpack.c.h.b16 %v4613
    %v5141 = vunpack.c.l.b16 %v4614
    %v5142 = vunpack.c.h.b16 %v4614
    %v5143 = vunpack.c.l.b16 %v4615
    %v5144 = vunpack.c.h.b16 %v4615
    %v5145 = vunpack.c.l.b16 %v4616
    %v5146 = vunpack.c.h.b16 %v4616
    %v5147 = vunpack.c.l.b16 %v4617
    %v5148 = vunpack.c.h.b16 %v4617
    %v5149 = vunpack.c.l.b16 %v4618
    %v5150 = vunpack.c.h.b16 %v4618
    %v5151 = vunpack.c.l.b16 %v4619
    %v5152 = vunpack.c.h.b16 %v4619
    %v5153 = vunpack.c.l.b16 %v4620
    %v5154 = vunpack.c.h.b16 %v4620
    %v5155 = vunpack.c.l.b16 %v4621
    %v5156 = vunpack.c.h.b16 %v4621
    %v5157 = vunpack.c.l.b16 %v4622
    %v5158 = vunpack.c.h.b16 %v4622
    %v5159 = vunpack.c.l.b16 %v4623
    %v5160 = vunpack.c.h.b16 %v4623
    %v5161 = vunpack.c.l.b16 %v4624
    %v5162 = vunpack.c.h.b16 %v4624
    %v5163 = vunpack.c.l.b16 %v4625
    %v5164 = vunpack.c.h.b16 %v4625
    %v5165 = vunpack.c.l.b16 %v4626
    %v5166 = vunpack.c.h.b16 %v4626
    %v5167 = vunpack.c.l.b16 %v4627
    %v5168 = vunpack.c.h.b16 %v4627
    %v5169 = vunpack.c.l.b16 %v4628
    %v5170 = vunpack.c.h.b16 %v4628
    %v5171 = vunpack.c.l.b16 %v4629
    %v5172 = vunpack.c.h.b16 %v4629
    %v5173 = vunpack.c.l.b16 %v4630
    %v5174 = vunpack.c.h.b16 %v4630
    %v5175 = vunpack.c.l.b16 %v4631
    %v5176 = vunpack.c.h.b16 %v4631
    %v5177 = vunpack.c.l.b16 %v4632
    %v5178 = vunpack.c.h.b16 %v4632
    %v5179 = vunpack.c.l.b16 %v4633
    %v5180 = vunpack.c.h.b16 %v4633
    %v5181 = vunpack.c.l.b16 %v4634
    %v5182 = vunpack.c.h.b16 %v4634
    %v5183 = vunpack.c.l.b16 %v4635
    %v5184 = vunpack.c.h.b16 %v4635
    %v5185 = vunpack.c.l.b16 %v4636
    %v5186 = vunpack.c.h.b16 %v4636
    %v5187 = vunpack.c.l.b16 %v4637
    %v5188 = vunpack.c.h.b16 %v4637
    %v5189 = vunpack.c.l.b16 %v4638
    %v5190 = vunpack.c.h.b16 %v4638
    %v5191 = vunpack.c.l.b16 %v4639
    %v5192 = vunpack.c.h.b16 %v4639
    %v5193 = vunpack.c.l.b16 %v4640
    %v5194 = vunpack.c.h.b16 %v4640
    %v5195 = vunpack.c.l.b16 %v4641
    %v5196 = vunpack.c.h.b16 %v4641
    %v5197 = vunpack.c.l.b16 %v4642
    %v5198 = vunpack.c.h.b16 %v4642
    %v5199 = vunpack.c.l.b16 %v4643
    %v5200 = vunpack.c.h.b16 %v4643
    %v5201 = vunpack.c.l.b16 %v4644
    %v5202 = vunpack.c.h.b16 %v4644
    %v5203 = vunpack.c.l.b16 %v4645
    %v5204 = vunpack.c.h.b16 %v4645
    %v5205 = vunpack.c.l.b16 %v4646
    %v5206 = vunpack.c.h.b16 %v4646
    %v5207 = vunpack.c.l.b16 %v4647
    %v5208 = vunpack.c.h.b16 %v4647
    %v5209 = vunpack.c.l.b16 %v4648
    %v5210 = vunpack.c.h.b16 %v4648
    %v5211 = vunpack.c.l.b16 %v4649
    %v5212 = vunpack.c.h.b16 %v4649
    %v5213 = vunpack.c.l.b16 %v4650
    %v5214 = vunpack.c.h.b16 %v4650
    %v5215 = vunpack.c.l.b16 %v4651
    %v5216 = vunpack.c.h.b16 %v4651
    %v5217 = vunpack.c.l.b16 %v4652
    %v5218 = vunpack.c.h.b16 %v4652
    %v5219 = vunpack.c.l.b16 %v4653
    %v5220 = vunpack.c.h.b16 %v4653
    %v5221 = vunpack.c.l.b16 %v4654
    %v5222 = vunpack.c.h.b16 %v4654
    %v5223 = vunpack.c.l.b16 %v4655
    %v5224 = vunpack.c.h.b16 %v4655
    %v5225 = vunpack.c.l.b16 %v4656
    %v5226 = vunpack.c.h.b16 %v4656
    %v5227 = vunpack.c.l.b16 %v4657
    %v5228 = vunpack.c.h.b16 %v4657
    %v5229 = vunpack.c.l.b16 %v4658
    %v5230 = vunpack.c.h.b16 %v4658
    %v5231 = vunpack.c.l.b16 %v4659
    %v5232 = vunpack.c.h.b16 %v4659
    %v5233 = vunpack.c.l.b16 %v4660
    %v5234 = vunpack.c.h.b16 %v4660
    %v5235 = vunpack.c.l.b16 %v4661
    %v5236 = vunpack.c.h.b16 %v4661
    %v5237 = vunpack.c.l.b16 %v4662
    %v5238 = vunpack.c.h.b16 %v4662
    %v5239 = vunpack.c.l.b16 %v4663
    %v5240 = vunpack.c.h.b16 %v4663
    %v5241 = vunpack.c.l.b16 %v4664
    %v5242 = vunpack.c.h.b16 %v4664
    %v5243 = vunpack.c.l.b16 %v4665
    %v5244 = vunpack.c.h.b16 %v4665
    %v5245 = vunpack.c.l.b16 %v4666
    %v5246 = vunpack.c.h.b16 %v4666
    %v5247 = vunpack.c.l.b16 %v4667
    %v5248 = vunpack.c.h.b16 %v4667
    %v5249 = vunpack.c.l.b16 %v4668
    %v5250 = vunpack.c.h.b16 %v4668
    %v5251 = vunpack.c.l.b16 %v4669
    %v5252 = vunpack.c.h.b16 %v4669
    %v5253 = vunpack.c.l.b16 %v4670
    %v5254 = vunpack.c.h.b16 %v4670
    %v5255 = vunpack.c.l.b16 %v4671
    %v5256 = vunpack.c.h.b16 %v4671
    %v5257 = vunpack.c.l.b16 %v4672
    %v5258 = vunpack.c.h.b16 %v4672
    %v5259 = vunpack.c.l.b16 %v4673
    %v5260 = vunpack.c.h.b16 %v4673
    %v5261 = vunpack.c.l.b16 %v4674
    %v5262 = vunpack.c.h.b16 %v4674
    %v5263 = vunpack.c.l.b16 %v4675
    %v5264 = vunpack.c.h.b16 %v4675
    %v5265 = vunpack.c.l.b16 %v4676
    %v5266 = vunpack.c.h.b16 %v4676
    %v5267 = vunpack.c.l.b16 %v4677
    %v5268 = vunpack.c.h.b16 %v4677
    %v5269 = vunpack.c.l.b16 %v4678
    %v5270 = vunpack.c.h.b16 %v4678
    %v5271 = vunpack.c.l.b16 %v4679
    %v5272 = vunpack.c.h.b16 %v4679
    %v5273 = vunpack.c.l.b16 %v4680
    %v5274 = vunpack.c.h.b16 %v4680
    %v5275 = vunpack.c.l.b16 %v4681
    %v5276 = vunpack.c.h.b16 %v4681
    %v5277 = vunpack.c.l.b16 %v4682
    %v5278 = vunpack.c.h.b16 %v4682
    %v5279 = vunpack.c.l.b16 %v4683
    %v5280 = vunpack.c.h.b16 %v4683
    %v5281 = vunpack.c.l.b16 %v4684
    %v5282 = vunpack.c.h.b16 %v4684
    %v5283 = vunpack.c.l.b16 %v4685
    %v5284 = vunpack.c.h.b16 %v4685
    %v5285 = vunpack.c.l.b16 %v4686
    %v5286 = vunpack.c.h.b16 %v4686
    %v5287 = vunpack.c.l.b16 %v4687
    %v5288 = vunpack.c.h.b16 %v4687
    %v5289 = vunpack.c.l.b16 %v4688
    %v5290 = vunpack.c.h.b16 %v4688
    %v5291 = vunpack.c.l.b16 %v4689
    %v5292 = vunpack.c.h.b16 %v4689
    %v5293 = vunpack.c.l.b16 %v4690
    %v5294 = vunpack.c.h.b16 %v4690
    %v5295 = vunpack.c.l.b16 %v4691
    %v5296 = vunpack.c.h.b16 %v4691
    %v5297 = vunpack.c.l.b16 %v4692
    %v5298 = vunpack.c.h.b16 %v4692
    %v5299 = vunpack.c.l.b16 %v4693
    %v5300 = vunpack.c.h.b16 %v4693
    %v5301 = vunpack.c.l.b16 %v4694
    %v5302 = vunpack.c.h.b16 %v4694
    %v5303 = vunpack.c.l.b16 %v4695
    %v5304 = vunpack.c.h.b16 %v4695
    %v5305 = vunpack.c.l.b16 %v4696
    %v5306 = vunpack.c.h.b16 %v4696
    %v5307 = vunpack.c.l.b16 %v4697
    %v5308 = vunpack.c.h.b16 %v4697
    %v5309 = vunpack.c.l.b16 %v4698
    %v5310 = vunpack.c.h.b16 %v4698
    %v5311 = vunpack.c.l.b16 %v4699
    %v5312 = vunpack.c.h.b16 %v4699
    %v5313 = vunpack.c.l.b16 %v4700
    %v5314 = vunpack.c.h.b16 %v4700
    %v5315 = vunpack.c.l.b16 %v4701
    %v5316 = vunpack.c.h.b16 %v4701
    %v5317 = vunpack.c.l.b16 %v4702
    %v5318 = vunpack.c.h.b16 %v4702
    %v5319 = vunpack.c.l.b16 %v4703
    %v5320 = vunpack.c.h.b16 %v4703
    %v5321 = vunpack.c.l.b16 %v4704
    %v5322 = vunpack.c.h.b16 %v4704
    %v5323 = vunpack.c.l.b16 %v4705
    %v5324 = vunpack.c.h.b16 %v4705
    %v5325 = vunpack.c.l.b16 %v4706
    %v5326 = vunpack.c.h.b16 %v4706
    %v5327 = vunpack.c.l.b16 %v4707
    %v5328 = vunpack.c.h.b16 %v4707
    %v5329 = vunpack.c.l.b16 %v4708
    %v5330 = vunpack.c.h.b16 %v4708
    %v5331 = vunpack.c.l.b16 %v4709
    %v5332 = vunpack.c.h.b16 %v4709
    %v5333 = vunpack.c.l.b16 %v4710
    %v5334 = vunpack.c.h.b16 %v4710
    %v5335 = vunpack.c.l.b16 %v4711
    %v5336 = vunpack.c.h.b16 %v4711
    %v5337 = vunpack.c.l.b16 %v4712
    %v5338 = vunpack.c.h.b16 %v4712
    %v5339 = vunpack.c.l.b16 %v4713
    %v5340 = vunpack.c.h.b16 %v4713
    %v5341 = vunpack.c.l.b16 %v4714
    %v5342 = vunpack.c.h.b16 %v4714
    %v5343 = vunpack.c.l.b16 %v4715
    %v5344 = vunpack.c.h.b16 %v4715
    %v5345 = vunpack.c.l.b16 %v4716
    %v5346 = vunpack.c.h.b16 %v4716
    %v5347 = vunpack.c.l.b16 %v4717
    %v5348 = vunpack.c.h.b16 %v4717
    %v5349 = vunpack.c.l.b16 %v4718
    %v5350 = vunpack.c.h.b16 %v4718
    %v5351 = vunpack.c.l.b16 %v4719
    %v5352 = vunpack.c.h.b16 %v4719
    %v5353 = vunpack.c.l.b16 %v4720
    %v5354 = vunpack.c.h.b16 %v4720
    %v5355 = vunpack.c.l.b16 %v4721
    %v5356 = vunpack.c.h.b16 %v4721
    %v5357 = vunpack.c.l.b16 %v4722
    %v5358 = vunpack.c.h.b16 %v4722
    %v5359 = vunpack.c.l.b16 %v4723
    %v5360 = vunpack.c.h.b16 %v4723
    %v5361 = vunpack.c.l.b16 %v4724
    %v5362 = vunpack.c.h.b16 %v4724
    %v5363 = vunpack.c.l.b16 %v4725
    %v5364 = vunpack.c.h.b16 %v4725
    %v5365 = vunpack.c.l.b16 %v4726
    %v5366 = vunpack.c.h.b16 %v4726
    %v5367 = vunpack.c.l.b16 %v4727
    %v5368 = vunpack.c.h.b16 %v4727
    %v5369 = vunpack.c.l.b16 %v4728
    %v5370 = vunpack.c.h.b16 %v4728
    %v5371 = vunpack.c.l.b16 %v4729
    %v5372 = vunpack.c.h.b16 %v4729
    %v5373 = vunpack.c.l.b16 %v4730
    %v5374 = vunpack.c.h.b16 %v4730
    %v5375 = vunpack.c.l.b16 %v4731
    %v5376 = vunpack.c.h.b16 %v4731
    %v5377 = vunpack.c.l.b16 %v4732
    %v5378 = vunpack.c.h.b16 %v4732
    %v5379 = vunpack.c.l.b16 %v4733
    %v5380 = vunpack.c.h.b16 %v4733
    %v5381 = vunpack.c.l.b16 %v4734
    %v5382 = vunpack.c.h.b16 %v4734
    %v5383 = vunpack.c.l.b16 %v4735
    %v5384 = vunpack.c.h.b16 %v4735
    %v5385 = vunpack.c.l.b16 %v4736
    %v5386 = vunpack.c.h.b16 %v4736
    %v5387 = vunpack.c.l.b16 %v4737
    %v5388 = vunpack.c.h.b16 %v4737
    %v5389 = vunpack.c.l.b16 %v4738
    %v5390 = vunpack.c.h.b16 %v4738
    %v5391 = vunpack.c.l.b16 %v4739
    %v5392 = vunpack.c.h.b16 %v4739
    %v5393 = vunpack.c.l.b16 %v4740
    %v5394 = vunpack.c.h.b16 %v4740
    %v5395 = vunpack.c.l.b16 %v4741
    %v5396 = vunpack.c.h.b16 %v4741
    %v5397 = vunpack.c.l.b16 %v4742
    %v5398 = vunpack.c.h.b16 %v4742
    %v5399 = vunpack.c.l.b16 %v4743
    %v5400 = vunpack.c.h.b16 %v4743
    %v5401 = vunpack.c.l.b16 %v4744
    %v5402 = vunpack.c.h.b16 %v4744
    %v5403 = vunpack.c.l.b16 %v4745
    %v5404 = vunpack.c.h.b16 %v4745
    %v5405 = vunpack.c.l.b16 %v4746
    %v5406 = vunpack.c.h.b16 %v4746
    %v5407 = vunpack.c.l.b16 %v4747
    %v5408 = vunpack.c.h.b16 %v4747
    %v5409 = vunpack.c.l.b16 %v4748
    %v5410 = vunpack.c.h.b16 %v4748
    %v5411 = vunpack.c.l.b16 %v4749
    %v5412 = vunpack.c.h.b16 %v4749
    %v5413 = vunpack.c.l.b16 %v4750
    %v5414 = vunpack.c.h.b16 %v4750
    %v5415 = vunpack.c.l.b16 %v4751
    %v5416 = vunpack.c.h.b16 %v4751
    %v5417 = vunpack.c.l.b16 %v4752
    %v5418 = vunpack.c.h.b16 %v4752
    %v5419 = vunpack.c.l.b16 %v4753
    %v5420 = vunpack.c.h.b16 %v4753
    %v5421 = vunpack.c.l.b16 %v4754
    %v5422 = vunpack.c.h.b16 %v4754
    %v5423 = vunpack.c.l.b16 %v4755
    %v5424 = vunpack.c.h.b16 %v4755
    %v5425 = vunpack.c.l.b16 %v4756
    %v5426 = vunpack.c.h.b16 %v4756
    %v5427 = vunpack.c.l.b16 %v4757
    %v5428 = vunpack.c.h.b16 %v4757
    %v5429 = vunpack.c.l.b16 %v4758
    %v5430 = vunpack.c.h.b16 %v4758
    %v5431 = vunpack.c.l.b16 %v4759
    %v5432 = vunpack.c.h.b16 %v4759
    %v5433 = vunpack.c.l.b16 %v4760
    %v5434 = vunpack.c.h.b16 %v4760
    %v5435 = vunpack.c.l.b16 %v4761
    %v5436 = vunpack.c.h.b16 %v4761
    %v5437 = vunpack.c.l.b16 %v4762
    %v5438 = vunpack.c.h.b16 %v4762
    %v5439 = vunpack.c.l.b16 %v4763
    %v5440 = vunpack.c.h.b16 %v4763
    %v5441 = vunpack.c.l.b16 %v4764
    %v5442 = vunpack.c.h.b16 %v4764
    %v5443 = vunpack.c.l.b16 %v4765
    %v5444 = vunpack.c.h.b16 %v4765
    %v5445 = vunpack.c.l.b16 %v4766
    %v5446 = vunpack.c.h.b16 %v4766
    %v5447 = vunpack.c.l.b16 %v4767
    %v5448 = vunpack.c.h.b16 %v4767
    %v5449 = vunpack.c.l.b16 %v4768
    %v5450 = vunpack.c.h.b16 %v4768
    %v5451 = vunpack.c.l.b16 %v4769
    %v5452 = vunpack.c.h.b16 %v4769
    %v5453 = vunpack.c.l.b16 %v4770
    %v5454 = vunpack.c.h.b16 %v4770
    %v5455 = vunpack.c.l.b16 %v4771
    %v5456 = vunpack.c.h.b16 %v4771
    %v5457 = vunpack.c.l.b16 %v4772
    %v5458 = vunpack.c.h.b16 %v4772
    %v5459 = vunpack.c.l.b16 %v4773
    %v5460 = vunpack.c.h.b16 %v4773
    %v5461 = vunpack.c.l.b16 %v4774
    %v5462 = vunpack.c.h.b16 %v4774
    %v5463 = vunpack.c.l.b16 %v4775
    %v5464 = vunpack.c.h.b16 %v4775
    %v5465 = vunpack.c.l.b16 %v4776
    %v5466 = vunpack.c.h.b16 %v4776
    %v5467 = vunpack.c.l.b16 %v4777
    %v5468 = vunpack.c.h.b16 %v4777
    %v5469 = vunpack.c.l.b16 %v4778
    %v5470 = vunpack.c.h.b16 %v4778
    %v5471 = vunpack.c.l.b16 %v4779
    %v5472 = vunpack.c.h.b16 %v4779
    %v5473 = vunpack.c.l.b16 %v4780
    %v5474 = vunpack.c.h.b16 %v4780
    %v5475 = vunpack.c.l.b16 %v4781
    %v5476 = vunpack.c.h.b16 %v4781
    %v5477 = vunpack.c.l.b16 %v4782
    %v5478 = vunpack.c.h.b16 %v4782
    %v5479 = vunpack.c.l.b16 %v4783
    %v5480 = vunpack.c.h.b16 %v4783
    %v5481 = vunpack.c.l.b16 %v4784
    %v5482 = vunpack.c.h.b16 %v4784
    %v5483 = vunpack.c.l.b16 %v4785
    %v5484 = vunpack.c.h.b16 %v4785
    %v5485 = vunpack.c.l.b16 %v4786
    %v5486 = vunpack.c.h.b16 %v4786
    %v5487 = vunpack.c.l.b16 %v4787
    %v5488 = vunpack.c.h.b16 %v4787
    %v5489 = vunpack.c.l.b16 %v4788
    %v5490 = vunpack.c.h.b16 %v4788
    %v5491 = vunpack.c.l.b16 %v4789
    %v5492 = vunpack.c.h.b16 %v4789
    %v5493 = vunpack.c.l.b16 %v4790
    %v5494 = vunpack.c.h.b16 %v4790
    %v5495 = vunpack.c.l.b16 %v4791
    %v5496 = vunpack.c.h.b16 %v4791
    %v5497 = vunpack.c.l.b16 %v4792
    %v5498 = vunpack.c.h.b16 %v4792
    %v5499 = vunpack.c.l.b16 %v4793
    %v5500 = vunpack.c.h.b16 %v4793
    %v5501 = vunpack.c.l.b16 %v4794
    %v5502 = vunpack.c.h.b16 %v4794
    %v5503 = vunpack.c.l.b16 %v4795
    %v5504 = vunpack.c.h.b16 %v4795
    %v5505 = vunpack.c.l.b16 %v4796
    %v5506 = vunpack.c.h.b16 %v4796
    %v5507 = vunpack.c.l.b16 %v4797
    %v5508 = vunpack.c.h.b16 %v4797
    %v5509 = vunpack.c.l.b16 %v4798
    %v5510 = vunpack.c.h.b16 %v4798
    %v5511 = vunpack.c.l.b16 %v4799
    %v5512 = vunpack.c.h.b16 %v4799
    %v5513 = vunpack.c.l.b16 %v4800
    %v5514 = vunpack.c.h.b16 %v4800
    %v5515 = vunpack.c.l.b16 %v4801
    %v5516 = vunpack.c.h.b16 %v4801
    %v5517 = vunpack.c.l.b16 %v4802
    %v5518 = vunpack.c.h.b16 %v4802
    %v5519 = vunpack.c.l.b16 %v4803
    %v5520 = vunpack.c.h.b16 %v4803
    %v5521 = vunpack.c.l.b16 %v4804
    %v5522 = vunpack.c.h.b16 %v4804
    %v5523 = vunpack.c.l.b16 %v4805
    %v5524 = vunpack.c.h.b16 %v4805
    %v5525 = vunpack.c.l.b16 %v4806
    %v5526 = vunpack.c.h.b16 %v4806
    %v5527 = vunpack.c.l.b16 %v4807
    %v5528 = vunpack.c.h.b16 %v4807
    %v5529 = vunpack.c.l.b16 %v4808
    %v5530 = vunpack.c.h.b16 %v4808
    %v5531 = vunpack.c.l.b16 %v4809
    %v5532 = vunpack.c.h.b16 %v4809
    %v5533 = vunpack.c.l.b16 %v4810
    %v5534 = vunpack.c.h.b16 %v4810
    %v5535 = vunpack.c.l.b16 %v4811
    %v5536 = vunpack.c.h.b16 %v4811
    %v5537 = vunpack.c.l.b16 %v4812
    %v5538 = vunpack.c.h.b16 %v4812
    %v5539 = vunpack.c.l.b16 %v4813
    %v5540 = vunpack.c.h.b16 %v4813
    %v5541 = vunpack.c.l.b16 %v4814
    %v5542 = vunpack.c.h.b16 %v4814
    %v5543 = vunpack.c.l.b16 %v4815
    %v5544 = vunpack.c.h.b16 %v4815
    %v5545 = vunpack.c.l.b16 %v4816
    %v5546 = vunpack.c.h.b16 %v4816
    %v5547 = vunpack.c.l.b16 %v4817
    %v5548 = vunpack.c.h.b16 %v4817
    %v5549 = vunpack.c.l.b16 %v4818
    %v5550 = vunpack.c.h.b16 %v4818
    %v5551 = vunpack.c.l.b16 %v4819
    %v5552 = vunpack.c.h.b16 %v4819
    %v5553 = vunpack.c.l.b16 %v4820
    %v5554 = vunpack.c.h.b16 %v4820
    %v5555 = vunpack.c.l.b16 %v4821
    %v5556 = vunpack.c.h.b16 %v4821
    %v5557 = vunpack.c.l.b16 %v4822
    %v5558 = vunpack.c.h.b16 %v4822
    %v5559 = vunpack.c.l.b16 %v4823
    %v5560 = vunpack.c.h.b16 %v4823
    %v5561 = vunpack.c.l.b16 %v4824
    %v5562 = vunpack.c.h.b16 %v4824
    %v5563 = vunpack.c.l.b16 %v4825
    %v5564 = vunpack.c.h.b16 %v4825
    %v5565 = vunpack.c.l.b16 %v4826
    %v5566 = vunpack.c.h.b16 %v4826
    %v5567 = vunpack.c.l.b16 %v4827
    %v5568 = vunpack.c.h.b16 %v4827
    %v5569 = vunpack.c.l.b16 %v4828
    %v5570 = vunpack.c.h.b16 %v4828
    %v5571 = vunpack.c.l.b16 %v4829
    %v5572 = vunpack.c.h.b16 %v4829
    %v5573 = vunpack.c.l.b16 %v4830
    %v5574 = vunpack.c.h.b16 %v4830
    %v5575 = vunpack.c.l.b16 %v4831
    %v5576 = vunpack.c.h.b16 %v4831
    %v5577 = vunpack.c.l.b16 %v4832
    %v5578 = vunpack.c.h.b16 %v4832
    %v5579 = vunpack.c.l.b16 %v4833
    %v5580 = vunpack.c.h.b16 %v4833
    %v5581 = vunpack.c.l.b16 %v4834
    %v5582 = vunpack.c.h.b16 %v4834
    %v5583 = vunpack.c.l.b16 %v4835
    %v5584 = vunpack.c.h.b16 %v4835
    %v5585 = vunpack.c.l.b16 %v4836
    %v5586 = vunpack.c.h.b16 %v4836
    %v5587 = vunpack.c.l.b16 %v4837
    %v5588 = vunpack.c.h.b16 %v4837
    %v5589 = vunpack.c.l.b16 %v4838
    %v5590 = vunpack.c.h.b16 %v4838
    %v5591 = vunpack.c.l.b16 %v4839
    %v5592 = vunpack.c.h.b16 %v4839
    %v5593 = vunpack.c.l.b16 %v4840
    %v5594 = vunpack.c.h.b16 %v4840
    %v5595 = vunpack.c.l.b16 %v4841
    %v5596 = vunpack.c.h.b16 %v4841
    %v5597 = vunpack.c.l.b16 %v4842
    %v5598 = vunpack.c.h.b16 %v4842
    %v5599 = vunpack.c.l.b16 %v4843
    %v5600 = vunpack.c.h.b16 %v4843
    %v5601 = vunpack.c.l.b16 %v4844
    %v5602 = vunpack.c.h.b16 %v4844
    %v5603 = vunpack.c.l.b16 %v4845
    %v5604 = vunpack.c.h.b16 %v4845
    %v5605 = vunpack.c.l.b16 %v4846
    %v5606 = vunpack.c.h.b16 %v4846
    %v5607 = vunpack.c.l.b16 %v4847
    %v5608 = vunpack.c.h.b16 %v4847
    %v5609 = vunpack.c.l.b16 %v4848
    %v5610 = vunpack.c.h.b16 %v4848
    %v5611 = vunpack.c.l.b16 %v4849
    %v5612 = vunpack.c.h.b16 %v4849
    %v5613 = vunpack.c.l.b16 %v4850
    %v5614 = vunpack.c.h.b16 %v4850
    %v5615 = vunpack.c.l.b16 %v4851
    %v5616 = vunpack.c.h.b16 %v4851
    %v5617 = vunpack.c.l.b16 %v4852
    %v5618 = vunpack.c.h.b16 %v4852
    %v5619 = vunpack.c.l.b16 %v4853
    %v5620 = vunpack.c.h.b16 %v4853
    %v5621 = vunpack.c.l.b16 %v4854
    %v5622 = vunpack.c.h.b16 %v4854
    %v5623 = vunpack.c.l.b16 %v4855
    %v5624 = vunpack.c.h.b16 %v4855
    %v5625 = vunpack.c.l.b16 %v4856
    %v5626 = vunpack.c.h.b16 %v4856
    %v5627 = vunpack.c.l.b16 %v4857
    %v5628 = vunpack.c.h.b16 %v4857
    %v5629 = vunpack.c.l.b16 %v4858
    %v5630 = vunpack.c.h.b16 %v4858
    %v5631 = vunpack.c.l.b16 %v4859
    %v5632 = vunpack.c.h.b16 %v4859
    %v5633 = vunpack.c.l.b16 %v4860
    %v5634 = vunpack.c.h.b16 %v4860
    %v5635 = vunpack.c.l.b16 %v4861
    %v5636 = vunpack.c.h.b16 %v4861
    %v5637 = vunpack.c.l.b16 %v4862
    %v5638 = vunpack.c.h.b16 %v4862
    %v5639 = vunpack.c.l.b16 %v4863
    %v5640 = vunpack.c.h.b16 %v4863
    %v5641 = vunpack.c.l.b16 %v4864
    %v5642 = vunpack.c.h.b16 %v4864
    %v5643 = vpack.c.b16 %v5135, %v5131
    %v5644 = vpack.c.b16 %v5136, %v5132
    %v5645 = vpack.c.b16 %v5137, %v5133
    %v5646 = vpack.c.b16 %v5138, %v5134
    %v5647 = vpack.c.b16 %v5143, %v5139
    %v5648 = vpack.c.b16 %v5144, %v5140
    %v5649 = vpack.c.b16 %v5145, %v5141
    %v5650 = vpack.c.b16 %v5146, %v5142
    %v5651 = vpack.c.b16 %v5151, %v5147
    %v5652 = vpack.c.b16 %v5152, %v5148
    %v5653 = vpack.c.b16 %v5153, %v5149
    %v5654 = vpack.c.b16 %v5154, %v5150
    %v5655 = vpack.c.b16 %v5159, %v5155
    %v5656 = vpack.c.b16 %v5160, %v5156
    %v5657 = vpack.c.b16 %v5161, %v5157
    %v5658 = vpack.c.b16 %v5162, %v5158
    %v5659 = vpack.c.b16 %v5167, %v5163
    %v5660 = vpack.c.b16 %v5168, %v5164
    %v5661 = vpack.c.b16 %v5169, %v5165
    %v5662 = vpack.c.b16 %v5170, %v5166
    %v5663 = vpack.c.b16 %v5175, %v5171
    %v5664 = vpack.c.b16 %v5176, %v5172
    %v5665 = vpack.c.b16 %v5177, %v5173
    %v5666 = vpack.c.b16 %v5178, %v5174
    %v5667 = vpack.c.b16 %v5183, %v5179
    %v5668 = vpack.c.b16 %v5184, %v5180
    %v5669 = vpack.c.b16 %v5185, %v5181
    %v5670 = vpack.c.b16 %v5186, %v5182
    %v5671 = vpack.c.b16 %v5191, %v5187
    %v5672 = vpack.c.b16 %v5192, %v5188
    %v5673 = vpack.c.b16 %v5193, %v5189
    %v5674 = vpack.c.b16 %v5194, %v5190
    %v5675 = vpack.c.b16 %v5199, %v5195
    %v5676 = vpack.c.b16 %v5200, %v5196
    %v5677 = vpack.c.b16 %v5201, %v5197
    %v5678 = vpack.c.b16 %v5202, %v5198
    %v5679 = vpack.c.b16 %v5207, %v5203
    %v5680 = vpack.c.b16 %v5208, %v5204
    %v5681 = vpack.c.b16 %v5209, %v5205
    %v5682 = vpack.c.b16 %v5210, %v5206
    %v5683 = vpack.c.b16 %v5215, %v5211
    %v5684 = vpack.c.b16 %v5216, %v5212
    %v5685 = vpack.c.b16 %v5217, %v5213
    %v5686 = vpack.c.b16 %v5218, %v5214
    %v5687 = vpack.c.b16 %v5223, %v5219
    %v5688 = vpack.c.b16 %v5224, %v5220
    %v5689 = vpack.c.b16 %v5225, %v5221
    %v5690 = vpack.c.b16 %v5226, %v5222
    %v5691 = vpack.c.b16 %v5231, %v5227
    %v5692 = vpack.c.b16 %v5232, %v5228
    %v5693 = vpack.c.b16 %v5233, %v5229
    %v5694 = vpack.c.b16 %v5234, %v5230
    %v5695 = vpack.c.b16 %v5239, %v5235
    %v5696 = vpack.c.b16 %v5240, %v5236
    %v5697 = vpack.c.b16 %v5241, %v5237
    %v5698 = vpack.c.b16 %v5242, %v5238
    %v5699 = vpack.c.b16 %v5247, %v5243
    %v5700 = vpack.c.b16 %v5248, %v5244
    %v5701 = vpack.c.b16 %v5249, %v5245
    %v5702 = vpack.c.b16 %v5250, %v5246
    %v5703 = vpack.c.b16 %v5255, %v5251
    %v5704 = vpack.c.b16 %v5256, %v5252
    %v5705 = vpack.c.b16 %v5257, %v5253
    %v5706 = vpack.c.b16 %v5258, %v5254
    %v5707 = vpack.c.b16 %v5263, %v5259
    %v5708 = vpack.c.b16 %v5264, %v5260
    %v5709 = vpack.c.b16 %v5265, %v5261
    %v5710 = vpack.c.b16 %v5266, %v5262
    %v5711 = vpack.c.b16 %v5271, %v5267
    %v5712 = vpack.c.b16 %v5272, %v5268
    %v5713 = vpack.c.b16 %v5273, %v5269
    %v5714 = vpack.c.b16 %v5274, %v5270
    %v5715 = vpack.c.b16 %v5279, %v5275
    %v5716 = vpack.c.b16 %v5280, %v5276
    %v5717 = vpack.c.b16 %v5281, %v5277
    %v5718 = vpack.c.b16 %v5282, %v5278
    %v5719 = vpack.c.b16 %v5287, %v5283
    %v5720 = vpack.c.b16 %v5288, %v5284
    %v5721 = vpack.c.b16 %v5289, %v5285
    %v5722 = vpack.c.b16 %v5290, %v5286
    %v5723 = vpack.c.b16 %v5295, %v5291
    %v5724 = vpack.c.b16 %v5296, %v5292
    %v5725 = vpack.c.b16 %v5297, %v5293
    %v5726 = vpack.c.b16 %v5298, %v5294
    %v5727 = vpack.c.b16 %v5303, %v5299
    %v5728 = vpack.c.b16 %v5304, %v5300
    %v5729 = vpack.c.b16 %v5305, %v5301
    %v5730 = vpack.c.b16 %v5306, %v5302
    %v5731 = vpack.c.b16 %v5311, %v5307
    %v5732 = vpack.c.b16 %v5312, %v5308
    %v5733 = vpack.c.b16 %v5313, %v5309
    %v5734 = vpack.c.b16 %v5314, %v5310
    %v5735 = vpack.c.b16 %v5319, %v5315
    %v5736 = vpack.c.b16 %v5320, %v5316
    %v5737 = vpack.c.b16 %v5321, %v5317
    %v5738 = vpack.c.b16 %v5322, %v5318
    %v5739 = vpack.c.b16 %v5327, %v5323
    %v5740 = vpack.c.b16 %v5328, %v5324
    %v5741 = vpack.c.b16 %v5329, %v5325
    %v5742 = vpack.c.b16 %v5330, %v5326
    %v5743 = vpack.c.b16 %v5335, %v5331
    %v5744 = vpack.c.b16 %v5336, %v5332
    %v5745 = vpack.c.b16 %v5337, %v5333
    %v5746 = vpack.c.b16 %v5338, %v5334
    %v5747 = vpack.c.b16 %v5343, %v5339
    %v5748 = vpack.c.b16 %v5344, %v5340
    %v5749 = vpack.c.b16 %v5345, %v5341
    %v5750 = vpack.c.b16 %v5346, %v5342
    %v5751 = vpack.c.b16 %v5351, %v5347
    %v5752 = vpack.c.b16 %v5352, %v5348
    %v5753 = vpack.c.b16 %v5353, %v5349
    %v5754 = vpack.c.b16 %v5354, %v5350
    %v5755 = vpack.c.b16 %v5359, %v5355
    %v5756 = vpack.c.b16 %v5360, %v5356
    %v5757 = vpack.c.b16 %v5361, %v5357
    %v5758 = vpack.c.b16 %v5362, %v5358
    %v5759 = vpack.c.b16 %v5367, %v5363
    %v5760 = vpack.c.b16 %v5368, %v5364
    %v5761 = vpack.c.b16 %v5369, %v5365
    %v5762 = vpack.c.b16 %v5370, %v5366
    %v5763 = vpack.c.b16 %v5375, %v5371
    %v5764 = vpack.c.b16 %v5376, %v5372
    %v5765 = vpack.c.b16 %v5377, %v5373
    %v5766 = vpack.c.b16 %v5378, %v5374
    %v5767 = vpack.c.b16 %v5383, %v5379
    %v5768 = vpack.c.b16 %v5384, %v5380
    %v5769 = vpack.c.b16 %v5385, %v5381
    %v5770 = vpack.c.b16 %v5386, %v5382
    %v5771 = vpack.c.b16 %v5391, %v5387
    %v5772 = vpack.c.b16 %v5392, %v5388
    %v5773 = vpack.c.b16 %v5393, %v5389
    %v5774 = vpack.c.b16 %v5394, %v5390
    %v5775 = vpack.c.b16 %v5399, %v5395
    %v5776 = vpack.c.b16 %v5400, %v5396
    %v5777 = vpack.c.b16 %v5401, %v5397
    %v5778 = vpack.c.b16 %v5402, %v5398
    %v5779 = vpack.c.b16 %v5407, %v5403
    %v5780 = vpack.c.b16 %v5408, %v5404
    %v5781 = vpack.c.b16 %v5409, %v5405
    %v5782 = vpack.c.b16 %v5410, %v5406
    %v5783 = vpack.c.b16 %v5415, %v5411
    %v5784 = vpack.c.b16 %v5416, %v5412
    %v5785 = vpack.c.b16 %v5417, %v5413
    %v5786 = vpack.c.b16 %v5418, %v5414
    %v5787 = vpack.c.b16 %v5423, %v5419
    %v5788 = vpack.c.b16 %v5424, %v5420
    %v5789 = vpack.c.b16 %v5425, %v5421
    %v5790 = vpack.c.b16 %v5426, %v5422
    %v5791 = vpack.c.b16 %v5431, %v5427
    %v5792 = vpack.c.b16 %v5432, %v5428
    %v5793 = vpack.c.b16 %v5433, %v5429
    %v5794 = vpack.c.b16 %v5434, %v5430
    %v5795 = vpack.c.b16 %v5439, %v5435
    %v5796 = vpack.c.b16 %v5440, %v5436
    %v5797 = vpack.c.b16 %v5441, %v5437
    %v5798 = vpack.c.b16 %v5442, %v5438
    %v5799 = vpack.c.b16 %v5447, %v5443
    %v5800 = vpack.c.b16 %v5448, %v5444
    %v5801 = vpack.c.b16 %v5449, %v5445
    %v5802 = vpack.c.b16 %v5450, %v5446
    %v5803 = vpack.c.b16 %v5455, %v5451
    %v5804 = vpack.c.b16 %v5456, %v5452
    %v5805 = vpack.c.b16 %v5457, %v5453
    %v5806 = vpack.c.b16 %v5458, %v5454
    %v5807 = vpack.c.b16 %v5463, %v5459
    %v5808 = vpack.c.b16 %v5464, %v5460
    %v5809 = vpack.c.b16 %v5465, %v5461
    %v5810 = vpack.c.b16 %v5466, %v5462
    %v5811 = vpack.c.b16 %v5471, %v5467
    %v5812 = vpack.c.b16 %v5472, %v5468
    %v5813 = vpack.c.b16 %v5473, %v5469
    %v5814 = vpack.c.b16 %v5474, %v5470
    %v5815 = vpack.c.b16 %v5479, %v5475
    %v5816 = vpack.c.b16 %v5480, %v5476
    %v5817 = vpack.c.b16 %v5481, %v5477
    %v5818 = vpack.c.b16 %v5482, %v5478
    %v5819 = vpack.c.b16 %v5487, %v5483
    %v5820 = vpack.c.b16 %v5488, %v5484
    %v5821 = vpack.c.b16 %v5489, %v5485
    %v5822 = vpack.c.b16 %v5490, %v5486
    %v5823 = vpack.c.b16 %v5495, %v5491
    %v5824 = vpack.c.b16 %v5496, %v5492
    %v5825 = vpack.c.b16 %v5497, %v5493
    %v5826 = vpack.c.b16 %v5498, %v5494
    %v5827 = vpack.c.b16 %v5503, %v5499
    %v5828 = vpack.c.b16 %v5504, %v5500
    %v5829 = vpack.c.b16 %v5505, %v5501
    %v5830 = vpack.c.b16 %v5506, %v5502
    %v5831 = vpack.c.b16 %v5511, %v5507
    %v5832 = vpack.c.b16 %v5512, %v5508
    %v5833 = vpack.c.b16 %v5513, %v5509
    %v5834 = vpack.c.b16 %v5514, %v5510
    %v5835 = vpack.c.b16 %v5519, %v5515
    %v5836 = vpack.c.b16 %v5520, %v5516
    %v5837 = vpack.c.b16 %v5521, %v5517
    %v5838 = vpack.c.b16 %v5522, %v5518
    %v5839 = vpack.c.b16 %v5527, %v5523
    %v5840 = vpack.c.b16 %v5528, %v5524
    %v5841 = vpack.c.b16 %v5529, %v5525
    %v5842 = vpack.c.b16 %v5530, %v5526
    %v5843 = vpack.c.b16 %v5535, %v5531
    %v5844 = vpack.c.b16 %v5536, %v5532
    %v5845 = vpack.c.b16 %v5537, %v5533
    %v5846 = vpack.c.b16 %v5538, %v5534
    %v5847 = vpack.c.b16 %v5543, %v5539
    %v5848 = vpack.c.b16 %v5544, %v5540
    %v5849 = vpack.c.b16 %v5545, %v5541
    %v5850 = vpack.c.b16 %v5546, %v5542
    %v5851 = vpack.c.b16 %v5551, %v5547
    %v5852 = vpack.c.b16 %v5552, %v5548
    %v5853 = vpack.c.b16 %v5553, %v5549
    %v5854 = vpack.c.b16 %v5554, %v5550
    %v5855 = vpack.c.b16 %v5559, %v5555
    %v5856 = vpack.c.b16 %v5560, %v5556
    %v5857 = vpack.c.b16 %v5561, %v5557
    %v5858 = vpack.c.b16 %v5562, %v5558
    %v5859 = vpack.c.b16 %v5567, %v5563
    %v5860 = vpack.c.b16 %v5568, %v5564
    %v5861 = vpack.c.b16 %v5569, %v5565
    %v5862 = vpack.c.b16 %v5570, %v5566
    %v5863 = vpack.c.b16 %v5575, %v5571
    %v5864 = vpack.c.b16 %v5576, %v5572
    %v5865 = vpack.c.b16 %v5577, %v5573
    %v5866 = vpack.c.b16 %v5578, %v5574
    %v5867 = vpack.c.b16 %v5583, %v5579
    %v5868 = vpack.c.b16 %v5584, %v5580
    %v5869 = vpack.c.b16 %v5585, %v5581
    %v5870 = vpack.c.b16 %v5586, %v5582
    %v5871 = vpack.c.b16 %v5591, %v5587
    %v5872 = vpack.c.b16 %v5592, %v5588
    %v5873 = vpack.c.b16 %v5593, %v5589
    %v5874 = vpack.c.b16 %v5594, %v5590
    %v5875 = vpack.c.b16 %v5599, %v5595
    %v5876 = vpack.c.b16 %v5600, %v5596
    %v5877 = vpack.c.b16 %v5601, %v5597
    %v5878 = vpack.c.b16 %v5602, %v5598
    %v5879 = vpack.c.b16 %v5607, %v5603
    %v5880 = vpack.c.b16 %v5608, %v5604
    %v5881 = vpack.c.b16 %v5609, %v5605
    %v5882 = vpack.c.b16 %v5610, %v5606
    %v5883 = vpack.c.b16 %v5615, %v5611
    %v5884 = vpack.c.b16 %v5616, %v5612
    %v5885 = vpack.c.b16 %v5617, %v5613
    %v5886 = vpack.c.b16 %v5618, %v5614
    %v5887 = vpack.c.b16 %v5623, %v5619
    %v5888 = vpack.c.b16 %v5624, %v5620
    %v5889 = vpack.c.b16 %v5625, %v5621
    %v5890 = vpack.c.b16 %v5626, %v5622
    %v5891 = vpack.c.b16 %v5631, %v5627
    %v5892 = vpack.c.b16 %v5632, %v5628
    %v5893 = vpack.c.b16 %v5633, %v5629
    %v5894 = vpack.c.b16 %v5634, %v5630
    %v5895 = vpack.c.b16 %v5639, %v5635
    %v5896 = vpack.c.b16 %v5640, %v5636
    %v5897 = vpack.c.b16 %v5641, %v5637
    %v5898 = vpack.c.b16 %v5642, %v5638
    %6155 = vmatpush.bf16.msra.mxu0 %v5671
    %6156 = vmatpush.bf16.msra.mxu0 %v5667
    %6157 = vmatpush.bf16.msra.mxu0 %v5663
    %6158 = vmatpush.bf16.msra.mxu0 %v5659
    %6159 = vmatpush.bf16.msra.mxu0 %v5655
    %6160 = vmatpush.bf16.msra.mxu0 %v5651
    %6161 = vmatpush.bf16.msra.mxu0 %v5647
    %6162 = vmatpush.bf16.msra.mxu0 %v5643
    %6163 = vmatmul.bf16.gmra.mxu0 %v4601
    %v6164 = vpop.f32.mrf.mxu0
    %v6165 = vadd.f32 %v4867, %v6164
    %v6166 = vpop.f32.mrf.mxu0
    %6167 = vdwg.mxu0
    %6168 = vmatpush.bf16.msra.mxu0 %v5703
    %6169 = vmatpush.bf16.msra.mxu0 %v5699
    %6170 = vmatpush.bf16.msra.mxu0 %v5695
    %6171 = vmatpush.bf16.msra.mxu0 %v5691
    %6172 = vmatpush.bf16.msra.mxu0 %v5687
    %6173 = vmatpush.bf16.msra.mxu0 %v5683
    %6174 = vmatpush.bf16.msra.mxu0 %v5679
    %6175 = vmatpush.bf16.msra.mxu0 %v5675
    %6176 = vmatmul.bf16.gmra.mxu0 %v4602
    %v6177 = vpop.f32.mrf.mxu0
    %v6178 = vadd.f32 %v6165, %v6177
    %v6179 = vpop.f32.mrf.mxu0
    %6180 = vdwg.mxu0
    %6181 = vmatpush.bf16.msra.mxu0 %v5735
    %6182 = vmatpush.bf16.msra.mxu0 %v5731
    %6183 = vmatpush.bf16.msra.mxu0 %v5727
    %6184 = vmatpush.bf16.msra.mxu0 %v5723
    %6185 = vmatpush.bf16.msra.mxu0 %v5719
    %6186 = vmatpush.bf16.msra.mxu0 %v5715
    %6187 = vmatpush.bf16.msra.mxu0 %v5711
    %6188 = vmatpush.bf16.msra.mxu0 %v5707
    %6189 = vmatmul.bf16.gmra.mxu0 %v4603
    %v6190 = vpop.f32.mrf.mxu0
    %v6191 = vadd.f32 %v6178, %v6190
    %v6192 = vpop.f32.mrf.mxu0
    %6193 = vdwg.mxu0
    %6194 = vmatpush.bf16.msra.mxu0 %v5767
    %6195 = vmatpush.bf16.msra.mxu0 %v5763
    %6196 = vmatpush.bf16.msra.mxu0 %v5759
    %6197 = vmatpush.bf16.msra.mxu0 %v5755
    %6198 = vmatpush.bf16.msra.mxu0 %v5751
    %6199 = vmatpush.bf16.msra.mxu0 %v5747
    %6200 = vmatpush.bf16.msra.mxu0 %v5743
    %6201 = vmatpush.bf16.msra.mxu0 %v5739
    %6202 = vmatmul.bf16.gmra.mxu0 %v4604
    %v6203 = vpop.f32.mrf.mxu0
    %v6204 = vadd.f32 %v6191, %v6203
    %v6205 = vpop.f32.mrf.mxu0
    %6206 = vdwg.mxu0
    %6207 = vmatpush.bf16.msra.mxu0 %v5799
    %6208 = vmatpush.bf16.msra.mxu0 %v5795
    %6209 = vmatpush.bf16.msra.mxu0 %v5791
    %6210 = vmatpush.bf16.msra.mxu0 %v5787
    %6211 = vmatpush.bf16.msra.mxu0 %v5783
    %6212 = vmatpush.bf16.msra.mxu0 %v5779
    %6213 = vmatpush.bf16.msra.mxu0 %v5775
    %6214 = vmatpush.bf16.msra.mxu0 %v5771
    %6215 = vmatmul.bf16.gmra.mxu0 %v4605
    %v6216 = vpop.f32.mrf.mxu0
    %v6217 = vadd.f32 %v6204, %v6216
    %v6218 = vpop.f32.mrf.mxu0
    %6219 = vdwg.mxu0
    %6220 = vmatpush.bf16.msra.mxu0 %v5831
    %6221 = vmatpush.bf16.msra.mxu0 %v5827
    %6222 = vmatpush.bf16.msra.mxu0 %v5823
    %6223 = vmatpush.bf16.msra.mxu0 %v5819
    %6224 = vmatpush.bf16.msra.mxu0 %v5815
    %6225 = vmatpush.bf16.msra.mxu0 %v5811
    %6226 = vmatpush.bf16.msra.mxu0 %v5807
    %6227 = vmatpush.bf16.msra.mxu0 %v5803
    %6228 = vmatmul.bf16.gmra.mxu0 %v4606
    %v6229 = vpop.f32.mrf.mxu0
    %v6230 = vadd.f32 %v6217, %v6229
    %v6231 = vpop.f32.mrf.mxu0
    %6232 = vdwg.mxu0
    %6233 = vmatpush.bf16.msra.mxu0 %v5863
    %6234 = vmatpush.bf16.msra.mxu0 %v5859
    %6235 = vmatpush.bf16.msra.mxu0 %v5855
    %6236 = vmatpush.bf16.msra.mxu0 %v5851
    %6237 = vmatpush.bf16.msra.mxu0 %v5847
    %6238 = vmatpush.bf16.msra.mxu0 %v5843
    %6239 = vmatpush.bf16.msra.mxu0 %v5839
    %6240 = vmatpush.bf16.msra.mxu0 %v5835
    %6241 = vmatmul.bf16.gmra.mxu0 %v4607
    %v6242 = vpop.f32.mrf.mxu0
    %v6243 = vadd.f32 %v6230, %v6242
    %v6244 = vpop.f32.mrf.mxu0
    %6245 = vdwg.mxu0
    %6246 = vmatpush.bf16.msra.mxu0 %v5895
    %6247 = vmatpush.bf16.msra.mxu0 %v5891
    %6248 = vmatpush.bf16.msra.mxu0 %v5887
    %6249 = vmatpush.bf16.msra.mxu0 %v5883
    %6250 = vmatpush.bf16.msra.mxu0 %v5879
    %6251 = vmatpush.bf16.msra.mxu0 %v5875
    %6252 = vmatpush.bf16.msra.mxu0 %v5871
    %6253 = vmatpush.bf16.msra.mxu0 %v5867
    %6254 = vmatmul.bf16.gmra.mxu0 %v4608
    %v6255 = vpop.f32.mrf.mxu0
    %v6256 = vadd.f32 %v6243, %v6255
    %v6257 = vpop.f32.mrf.mxu0
    %6258 = vdwg.mxu0
    %6259 = vmatpush.bf16.msra.mxu0 %v5672
    %6260 = vmatpush.bf16.msra.mxu0 %v5668
    %6261 = vmatpush.bf16.msra.mxu0 %v5664
    %6262 = vmatpush.bf16.msra.mxu0 %v5660
    %6263 = vmatpush.bf16.msra.mxu0 %v5656
    %6264 = vmatpush.bf16.msra.mxu0 %v5652
    %6265 = vmatpush.bf16.msra.mxu0 %v5648
    %6266 = vmatpush.bf16.msra.mxu0 %v5644
    %6267 = vmatmul.bf16.gmra.mxu0 %v4601
    %v6268 = vpop.f32.mrf.mxu0
    %v6269 = vadd.f32 %v4868, %v6268
    %v6270 = vpop.f32.mrf.mxu0
    %6271 = vdwg.mxu0
    %6272 = vmatpush.bf16.msra.mxu0 %v5704
    %6273 = vmatpush.bf16.msra.mxu0 %v5700
    %6274 = vmatpush.bf16.msra.mxu0 %v5696
    %6275 = vmatpush.bf16.msra.mxu0 %v5692
    %6276 = vmatpush.bf16.msra.mxu0 %v5688
    %6277 = vmatpush.bf16.msra.mxu0 %v5684
    %6278 = vmatpush.bf16.msra.mxu0 %v5680
    %6279 = vmatpush.bf16.msra.mxu0 %v5676
    %6280 = vmatmul.bf16.gmra.mxu0 %v4602
    %v6281 = vpop.f32.mrf.mxu0
    %v6282 = vadd.f32 %v6269, %v6281
    %v6283 = vpop.f32.mrf.mxu0
    %6284 = vdwg.mxu0
    %6285 = vmatpush.bf16.msra.mxu0 %v5736
    %6286 = vmatpush.bf16.msra.mxu0 %v5732
    %6287 = vmatpush.bf16.msra.mxu0 %v5728
    %6288 = vmatpush.bf16.msra.mxu0 %v5724
    %6289 = vmatpush.bf16.msra.mxu0 %v5720
    %6290 = vmatpush.bf16.msra.mxu0 %v5716
    %6291 = vmatpush.bf16.msra.mxu0 %v5712
    %6292 = vmatpush.bf16.msra.mxu0 %v5708
    %6293 = vmatmul.bf16.gmra.mxu0 %v4603
    %v6294 = vpop.f32.mrf.mxu0
    %v6295 = vadd.f32 %v6282, %v6294
    %v6296 = vpop.f32.mrf.mxu0
    %6297 = vdwg.mxu0
    %6298 = vmatpush.bf16.msra.mxu0 %v5768
    %6299 = vmatpush.bf16.msra.mxu0 %v5764
    %6300 = vmatpush.bf16.msra.mxu0 %v5760
    %6301 = vmatpush.bf16.msra.mxu0 %v5756
    %6302 = vmatpush.bf16.msra.mxu0 %v5752
    %6303 = vmatpush.bf16.msra.mxu0 %v5748
    %6304 = vmatpush.bf16.msra.mxu0 %v5744
    %6305 = vmatpush.bf16.msra.mxu0 %v5740
    %6306 = vmatmul.bf16.gmra.mxu0 %v4604
    %v6307 = vpop.f32.mrf.mxu0
    %v6308 = vadd.f32 %v6295, %v6307
    %v6309 = vpop.f32.mrf.mxu0
    %6310 = vdwg.mxu0
    %6311 = vmatpush.bf16.msra.mxu0 %v5800
    %6312 = vmatpush.bf16.msra.mxu0 %v5796
    %6313 = vmatpush.bf16.msra.mxu0 %v5792
    %6314 = vmatpush.bf16.msra.mxu0 %v5788
    %6315 = vmatpush.bf16.msra.mxu0 %v5784
    %6316 = vmatpush.bf16.msra.mxu0 %v5780
    %6317 = vmatpush.bf16.msra.mxu0 %v5776
    %6318 = vmatpush.bf16.msra.mxu0 %v5772
    %6319 = vmatmul.bf16.gmra.mxu0 %v4605
    %v6320 = vpop.f32.mrf.mxu0
    %v6321 = vadd.f32 %v6308, %v6320
    %v6322 = vpop.f32.mrf.mxu0
    %6323 = vdwg.mxu0
    %6324 = vmatpush.bf16.msra.mxu0 %v5832
    %6325 = vmatpush.bf16.msra.mxu0 %v5828
    %6326 = vmatpush.bf16.msra.mxu0 %v5824
    %6327 = vmatpush.bf16.msra.mxu0 %v5820
    %6328 = vmatpush.bf16.msra.mxu0 %v5816
    %6329 = vmatpush.bf16.msra.mxu0 %v5812
    %6330 = vmatpush.bf16.msra.mxu0 %v5808
    %6331 = vmatpush.bf16.msra.mxu0 %v5804
    %6332 = vmatmul.bf16.gmra.mxu0 %v4606
    %v6333 = vpop.f32.mrf.mxu0
    %v6334 = vadd.f32 %v6321, %v6333
    %v6335 = vpop.f32.mrf.mxu0
    %6336 = vdwg.mxu0
    %6337 = vmatpush.bf16.msra.mxu0 %v5864
    %6338 = vmatpush.bf16.msra.mxu0 %v5860
    %6339 = vmatpush.bf16.msra.mxu0 %v5856
    %6340 = vmatpush.bf16.msra.mxu0 %v5852
    %6341 = vmatpush.bf16.msra.mxu0 %v5848
    %6342 = vmatpush.bf16.msra.mxu0 %v5844
    %6343 = vmatpush.bf16.msra.mxu0 %v5840
    %6344 = vmatpush.bf16.msra.mxu0 %v5836
    %6345 = vmatmul.bf16.gmra.mxu0 %v4607
    %v6346 = vpop.f32.mrf.mxu0
    %v6347 = vadd.f32 %v6334, %v6346
    %v6348 = vpop.f32.mrf.mxu0
    %6349 = vdwg.mxu0
    %6350 = vmatpush.bf16.msra.mxu0 %v5896
    %6351 = vmatpush.bf16.msra.mxu0 %v5892
    %6352 = vmatpush.bf16.msra.mxu0 %v5888
    %6353 = vmatpush.bf16.msra.mxu0 %v5884
    %6354 = vmatpush.bf16.msra.mxu0 %v5880
    %6355 = vmatpush.bf16.msra.mxu0 %v5876
    %6356 = vmatpush.bf16.msra.mxu0 %v5872
    %6357 = vmatpush.bf16.msra.mxu0 %v5868
    %6358 = vmatmul.bf16.gmra.mxu0 %v4608
    %v6359 = vpop.f32.mrf.mxu0
    %v6360 = vadd.f32 %v6347, %v6359
    %v6361 = vpop.f32.mrf.mxu0
    %6362 = vdwg.mxu0
    %6363 = vmatpush.bf16.msra.mxu0 %v5673
    %6364 = vmatpush.bf16.msra.mxu0 %v5669
    %6365 = vmatpush.bf16.msra.mxu0 %v5665
    %6366 = vmatpush.bf16.msra.mxu0 %v5661
    %6367 = vmatpush.bf16.msra.mxu0 %v5657
    %6368 = vmatpush.bf16.msra.mxu0 %v5653
    %6369 = vmatpush.bf16.msra.mxu0 %v5649
    %6370 = vmatpush.bf16.msra.mxu0 %v5645
    %6371 = vmatmul.bf16.gmra.mxu0 %v4601
    %v6372 = vpop.f32.mrf.mxu0
    %v6373 = vadd.f32 %v4869, %v6372
    %v6374 = vpop.f32.mrf.mxu0
    %6375 = vdwg.mxu0
    %6376 = vmatpush.bf16.msra.mxu0 %v5705
    %6377 = vmatpush.bf16.msra.mxu0 %v5701
    %6378 = vmatpush.bf16.msra.mxu0 %v5697
    %6379 = vmatpush.bf16.msra.mxu0 %v5693
    %6380 = vmatpush.bf16.msra.mxu0 %v5689
    %6381 = vmatpush.bf16.msra.mxu0 %v5685
    %6382 = vmatpush.bf16.msra.mxu0 %v5681
    %6383 = vmatpush.bf16.msra.mxu0 %v5677
    %6384 = vmatmul.bf16.gmra.mxu0 %v4602
    %v6385 = vpop.f32.mrf.mxu0
    %v6386 = vadd.f32 %v6373, %v6385
    %v6387 = vpop.f32.mrf.mxu0
    %6388 = vdwg.mxu0
    %6389 = vmatpush.bf16.msra.mxu0 %v5737
    %6390 = vmatpush.bf16.msra.mxu0 %v5733
    %6391 = vmatpush.bf16.msra.mxu0 %v5729
    %6392 = vmatpush.bf16.msra.mxu0 %v5725
    %6393 = vmatpush.bf16.msra.mxu0 %v5721
    %6394 = vmatpush.bf16.msra.mxu0 %v5717
    %6395 = vmatpush.bf16.msra.mxu0 %v5713
    %6396 = vmatpush.bf16.msra.mxu0 %v5709
    %6397 = vmatmul.bf16.gmra.mxu0 %v4603
    %v6398 = vpop.f32.mrf.mxu0
    %v6399 = vadd.f32 %v6386, %v6398
    %v6400 = vpop.f32.mrf.mxu0
    %6401 = vdwg.mxu0
    %6402 = vmatpush.bf16.msra.mxu0 %v5769
    %6403 = vmatpush.bf16.msra.mxu0 %v5765
    %6404 = vmatpush.bf16.msra.mxu0 %v5761
    %6405 = vmatpush.bf16.msra.mxu0 %v5757
    %6406 = vmatpush.bf16.msra.mxu0 %v5753
    %6407 = vmatpush.bf16.msra.mxu0 %v5749
    %6408 = vmatpush.bf16.msra.mxu0 %v5745
    %6409 = vmatpush.bf16.msra.mxu0 %v5741
    %6410 = vmatmul.bf16.gmra.mxu0 %v4604
    %v6411 = vpop.f32.mrf.mxu0
    %v6412 = vadd.f32 %v6399, %v6411
    %v6413 = vpop.f32.mrf.mxu0
    %6414 = vdwg.mxu0
    %6415 = vmatpush.bf16.msra.mxu0 %v5801
    %6416 = vmatpush.bf16.msra.mxu0 %v5797
    %6417 = vmatpush.bf16.msra.mxu0 %v5793
    %6418 = vmatpush.bf16.msra.mxu0 %v5789
    %6419 = vmatpush.bf16.msra.mxu0 %v5785
    %6420 = vmatpush.bf16.msra.mxu0 %v5781
    %6421 = vmatpush.bf16.msra.mxu0 %v5777
    %6422 = vmatpush.bf16.msra.mxu0 %v5773
    %6423 = vmatmul.bf16.gmra.mxu0 %v4605
    %v6424 = vpop.f32.mrf.mxu0
    %v6425 = vadd.f32 %v6412, %v6424
    %v6426 = vpop.f32.mrf.mxu0
    %6427 = vdwg.mxu0
    %6428 = vmatpush.bf16.msra.mxu0 %v5833
    %6429 = vmatpush.bf16.msra.mxu0 %v5829
    %6430 = vmatpush.bf16.msra.mxu0 %v5825
    %6431 = vmatpush.bf16.msra.mxu0 %v5821
    %6432 = vmatpush.bf16.msra.mxu0 %v5817
    %6433 = vmatpush.bf16.msra.mxu0 %v5813
    %6434 = vmatpush.bf16.msra.mxu0 %v5809
    %6435 = vmatpush.bf16.msra.mxu0 %v5805
    %6436 = vmatmul.bf16.gmra.mxu0 %v4606
    %v6437 = vpop.f32.mrf.mxu0
    %v6438 = vadd.f32 %v6425, %v6437
    %v6439 = vpop.f32.mrf.mxu0
    %6440 = vdwg.mxu0
    %6441 = vmatpush.bf16.msra.mxu0 %v5865
    %6442 = vmatpush.bf16.msra.mxu0 %v5861
    %6443 = vmatpush.bf16.msra.mxu0 %v5857
    %6444 = vmatpush.bf16.msra.mxu0 %v5853
    %6445 = vmatpush.bf16.msra.mxu0 %v5849
    %6446 = vmatpush.bf16.msra.mxu0 %v5845
    %6447 = vmatpush.bf16.msra.mxu0 %v5841
    %6448 = vmatpush.bf16.msra.mxu0 %v5837
    %6449 = vmatmul.bf16.gmra.mxu0 %v4607
    %v6450 = vpop.f32.mrf.mxu0
    %v6451 = vadd.f32 %v6438, %v6450
    %v6452 = vpop.f32.mrf.mxu0
    %6453 = vdwg.mxu0
    %6454 = vmatpush.bf16.msra.mxu0 %v5897
    %6455 = vmatpush.bf16.msra.mxu0 %v5893
    %6456 = vmatpush.bf16.msra.mxu0 %v5889
    %6457 = vmatpush.bf16.msra.mxu0 %v5885
    %6458 = vmatpush.bf16.msra.mxu0 %v5881
    %6459 = vmatpush.bf16.msra.mxu0 %v5877
    %6460 = vmatpush.bf16.msra.mxu0 %v5873
    %6461 = vmatpush.bf16.msra.mxu0 %v5869
    %6462 = vmatmul.bf16.gmra.mxu0 %v4608
    %v6463 = vpop.f32.mrf.mxu0
    %v6464 = vadd.f32 %v6451, %v6463
    %v6465 = vpop.f32.mrf.mxu0
    %6466 = vdwg.mxu0
    %6467 = vmatpush.bf16.msra.mxu0 %v5674
    %6468 = vmatpush.bf16.msra.mxu0 %v5670
    %6469 = vmatpush.bf16.msra.mxu0 %v5666
    %6470 = vmatpush.bf16.msra.mxu0 %v5662
    %6471 = vmatpush.bf16.msra.mxu0 %v5658
    %6472 = vmatpush.bf16.msra.mxu0 %v5654
    %6473 = vmatpush.bf16.msra.mxu0 %v5650
    %6474 = vmatpush.bf16.msra.mxu0 %v5646
    %6475 = vmatmul.bf16.gmra.mxu0 %v4601
    %v6476 = vpop.f32.mrf.mxu0
    %v6477 = vadd.f32 %v4870, %v6476
    %v6478 = vpop.f32.mrf.mxu0
    %6479 = vdwg.mxu0
    %6480 = vmatpush.bf16.msra.mxu0 %v5706
    %6481 = vmatpush.bf16.msra.mxu0 %v5702
    %6482 = vmatpush.bf16.msra.mxu0 %v5698
    %6483 = vmatpush.bf16.msra.mxu0 %v5694
    %6484 = vmatpush.bf16.msra.mxu0 %v5690
    %6485 = vmatpush.bf16.msra.mxu0 %v5686
    %6486 = vmatpush.bf16.msra.mxu0 %v5682
    %6487 = vmatpush.bf16.msra.mxu0 %v5678
    %6488 = vmatmul.bf16.gmra.mxu0 %v4602
    %v6489 = vpop.f32.mrf.mxu0
    %v6490 = vadd.f32 %v6477, %v6489
    %v6491 = vpop.f32.mrf.mxu0
    %6492 = vdwg.mxu0
    %6493 = vmatpush.bf16.msra.mxu0 %v5738
    %6494 = vmatpush.bf16.msra.mxu0 %v5734
    %6495 = vmatpush.bf16.msra.mxu0 %v5730
    %6496 = vmatpush.bf16.msra.mxu0 %v5726
    %6497 = vmatpush.bf16.msra.mxu0 %v5722
    %6498 = vmatpush.bf16.msra.mxu0 %v5718
    %6499 = vmatpush.bf16.msra.mxu0 %v5714
    %6500 = vmatpush.bf16.msra.mxu0 %v5710
    %6501 = vmatmul.bf16.gmra.mxu0 %v4603
    %v6502 = vpop.f32.mrf.mxu0
    %v6503 = vadd.f32 %v6490, %v6502
    %v6504 = vpop.f32.mrf.mxu0
    %6505 = vdwg.mxu0
    %6506 = vmatpush.bf16.msra.mxu0 %v5770
    %6507 = vmatpush.bf16.msra.mxu0 %v5766
    %6508 = vmatpush.bf16.msra.mxu0 %v5762
    %6509 = vmatpush.bf16.msra.mxu0 %v5758
    %6510 = vmatpush.bf16.msra.mxu0 %v5754
    %6511 = vmatpush.bf16.msra.mxu0 %v5750
    %6512 = vmatpush.bf16.msra.mxu0 %v5746
    %6513 = vmatpush.bf16.msra.mxu0 %v5742
    %6514 = vmatmul.bf16.gmra.mxu0 %v4604
    %v6515 = vpop.f32.mrf.mxu0
    %v6516 = vadd.f32 %v6503, %v6515
    %v6517 = vpop.f32.mrf.mxu0
    %6518 = vdwg.mxu0
    %6519 = vmatpush.bf16.msra.mxu0 %v5802
    %6520 = vmatpush.bf16.msra.mxu0 %v5798
    %6521 = vmatpush.bf16.msra.mxu0 %v5794
    %6522 = vmatpush.bf16.msra.mxu0 %v5790
    %6523 = vmatpush.bf16.msra.mxu0 %v5786
    %6524 = vmatpush.bf16.msra.mxu0 %v5782
    %6525 = vmatpush.bf16.msra.mxu0 %v5778
    %6526 = vmatpush.bf16.msra.mxu0 %v5774
    %6527 = vmatmul.bf16.gmra.mxu0 %v4605
    %v6528 = vpop.f32.mrf.mxu0
    %v6529 = vadd.f32 %v6516, %v6528
    %v6530 = vpop.f32.mrf.mxu0
    %6531 = vdwg.mxu0
    %6532 = vmatpush.bf16.msra.mxu0 %v5834
    %6533 = vmatpush.bf16.msra.mxu0 %v5830
    %6534 = vmatpush.bf16.msra.mxu0 %v5826
    %6535 = vmatpush.bf16.msra.mxu0 %v5822
    %6536 = vmatpush.bf16.msra.mxu0 %v5818
    %6537 = vmatpush.bf16.msra.mxu0 %v5814
    %6538 = vmatpush.bf16.msra.mxu0 %v5810
    %6539 = vmatpush.bf16.msra.mxu0 %v5806
    %6540 = vmatmul.bf16.gmra.mxu0 %v4606
    %v6541 = vpop.f32.mrf.mxu0
    %v6542 = vadd.f32 %v6529, %v6541
    %v6543 = vpop.f32.mrf.mxu0
    %6544 = vdwg.mxu0
    %6545 = vmatpush.bf16.msra.mxu0 %v5866
    %6546 = vmatpush.bf16.msra.mxu0 %v5862
    %6547 = vmatpush.bf16.msra.mxu0 %v5858
    %6548 = vmatpush.bf16.msra.mxu0 %v5854
    %6549 = vmatpush.bf16.msra.mxu0 %v5850
    %6550 = vmatpush.bf16.msra.mxu0 %v5846
    %6551 = vmatpush.bf16.msra.mxu0 %v5842
    %6552 = vmatpush.bf16.msra.mxu0 %v5838
    %6553 = vmatmul.bf16.gmra.mxu0 %v4607
    %v6554 = vpop.f32.mrf.mxu0
    %v6555 = vadd.f32 %v6542, %v6554
    %v6556 = vpop.f32.mrf.mxu0
    %6557 = vdwg.mxu0
    %6558 = vmatpush.bf16.msra.mxu0 %v5898
    %6559 = vmatpush.bf16.msra.mxu0 %v5894
    %6560 = vmatpush.bf16.msra.mxu0 %v5890
    %6561 = vmatpush.bf16.msra.mxu0 %v5886
    %6562 = vmatpush.bf16.msra.mxu0 %v5882
    %6563 = vmatpush.bf16.msra.mxu0 %v5878
    %6564 = vmatpush.bf16.msra.mxu0 %v5874
    %6565 = vmatpush.bf16.msra.mxu0 %v5870
    %6566 = vmatmul.bf16.gmra.mxu0 %v4608
    %v6567 = vpop.f32.mrf.mxu0
    %v6568 = vadd.f32 %v6555, %v6567
    %v6569 = vpop.f32.mrf.mxu0
    %6570 = vdwg.mxu0
    %v6571 = vmax.f32 %v6256, 0.0
    %v6572 = vmax.f32 %v6360, 0.0
    %v6573 = vmax.f32 %v6464, 0.0
    %v6574 = vmax.f32 %v6568, 0.0
    %v6575 = vpack.c.bf16 %v6571, %v6571
    %v6576 = vpack.c.bf16 %v6572, %v6572
    %v6577 = vpack.c.bf16 %v6573, %v6573
    %v6578 = vpack.c.bf16 %v6574, %v6574
    %v6579 = vld [vmem:[#allocation10] sm:$0xf]
    %v6580 = vld [vmem:[#allocation10 + $0x4] sm:$0xf]
    %v6581 = vld [vmem:[#allocation10 + $0x8] sm:$0xf]
    %v6582 = vld [vmem:[#allocation10 + $0xc] sm:$0xf]
    %v6583 = vld [vmem:[#allocation10 + $0x10] sm:$0xf]
    %v6584 = vld [vmem:[#allocation10 + $0x14] sm:$0xf]
    %v6585 = vld [vmem:[#allocation10 + $0x18] sm:$0xf]
    %v6586 = vld [vmem:[#allocation10 + $0x1c] sm:$0xf]
    %v6587 = vld [vmem:[#allocation10 + $0x20] sm:$0xf]
    %v6588 = vld [vmem:[#allocation10 + $0x24] sm:$0xf]
    %v6589 = vld [vmem:[#allocation10 + $0x28] sm:$0xf]
    %v6590 = vld [vmem:[#allocation10 + $0x2c] sm:$0xf]
    %v6591 = vld [vmem:[#allocation10 + $0x30] sm:$0xf]
    %v6592 = vld [vmem:[#allocation10 + $0x34] sm:$0xf]
    %v6593 = vld [vmem:[#allocation10 + $0x38] sm:$0xf]
    %v6594 = vld [vmem:[#allocation10 + $0x3c] sm:$0xf]
    %v6595 = vld [vmem:[#allocation10 + $0x40] sm:$0xf]
    %v6596 = vld [vmem:[#allocation10 + $0x44] sm:$0xf]
    %v6597 = vld [vmem:[#allocation10 + $0x48] sm:$0xf]
    %v6598 = vld [vmem:[#allocation10 + $0x4c] sm:$0xf]
    %v6599 = vld [vmem:[#allocation10 + $0x50] sm:$0xf]
    %v6600 = vld [vmem:[#allocation10 + $0x54] sm:$0xf]
    %v6601 = vld [vmem:[#allocation10 + $0x58] sm:$0xf]
    %v6602 = vld [vmem:[#allocation10 + $0x5c] sm:$0xf]
    %v6603 = vld [vmem:[#allocation10 + $0x60] sm:$0xf]
    %v6604 = vld [vmem:[#allocation10 + $0x64] sm:$0xf]
    %v6605 = vld [vmem:[#allocation10 + $0x68] sm:$0xf]
    %v6606 = vld [vmem:[#allocation10 + $0x6c] sm:$0xf]
    %v6607 = vld [vmem:[#allocation10 + $0x70] sm:$0xf]
    %v6608 = vld [vmem:[#allocation10 + $0x74] sm:$0xf]
    %v6609 = vld [vmem:[#allocation10 + $0x78] sm:$0xf]
    %v6610 = vld [vmem:[#allocation10 + $0x7c] sm:$0xf]
    %v6611 = vld [vmem:[#allocation10 + $0x80] sm:$0xf]
    %v6612 = vld [vmem:[#allocation10 + $0x84] sm:$0xf]
    %v6613 = vld [vmem:[#allocation10 + $0x88] sm:$0xf]
    %v6614 = vld [vmem:[#allocation10 + $0x8c] sm:$0xf]
    %v6615 = vld [vmem:[#allocation10 + $0x90] sm:$0xf]
    %v6616 = vld [vmem:[#allocation10 + $0x94] sm:$0xf]
    %v6617 = vld [vmem:[#allocation10 + $0x98] sm:$0xf]
    %v6618 = vld [vmem:[#allocation10 + $0x9c] sm:$0xf]
    %v6619 = vld [vmem:[#allocation10 + $0xa0] sm:$0xf]
    %v6620 = vld [vmem:[#allocation10 + $0xa4] sm:$0xf]
    %v6621 = vld [vmem:[#allocation10 + $0xa8] sm:$0xf]
    %v6622 = vld [vmem:[#allocation10 + $0xac] sm:$0xf]
    %v6623 = vld [vmem:[#allocation10 + $0xb0] sm:$0xf]
    %v6624 = vld [vmem:[#allocation10 + $0xb4] sm:$0xf]
    %v6625 = vld [vmem:[#allocation10 + $0xb8] sm:$0xf]
    %v6626 = vld [vmem:[#allocation10 + $0xbc] sm:$0xf]
    %v6627 = vld [vmem:[#allocation10 + $0xc0] sm:$0xf]
    %v6628 = vld [vmem:[#allocation10 + $0xc4] sm:$0xf]
    %v6629 = vld [vmem:[#allocation10 + $0xc8] sm:$0xf]
    %v6630 = vld [vmem:[#allocation10 + $0xcc] sm:$0xf]
    %v6631 = vld [vmem:[#allocation10 + $0xd0] sm:$0xf]
    %v6632 = vld [vmem:[#allocation10 + $0xd4] sm:$0xf]
    %v6633 = vld [vmem:[#allocation10 + $0xd8] sm:$0xf]
    %v6634 = vld [vmem:[#allocation10 + $0xdc] sm:$0xf]
    %v6635 = vld [vmem:[#allocation10 + $0xe0] sm:$0xf]
    %v6636 = vld [vmem:[#allocation10 + $0xe4] sm:$0xf]
    %v6637 = vld [vmem:[#allocation10 + $0xe8] sm:$0xf]
    %v6638 = vld [vmem:[#allocation10 + $0xec] sm:$0xf]
    %v6639 = vld [vmem:[#allocation10 + $0xf0] sm:$0xf]
    %v6640 = vld [vmem:[#allocation10 + $0xf4] sm:$0xf]
    %v6641 = vld [vmem:[#allocation10 + $0xf8] sm:$0xf]
    %v6642 = vld [vmem:[#allocation10 + $0xfc] sm:$0xf]
    %v6643 = vld [vmem:[%s10] sm:$0x1]
    %v6645 = vperm.slane %v6643, 0
    %v6711 = vunpack.c.l.b16 %v6579
    %v6712 = vunpack.c.l.b16 %v6580
    %v6713 = vunpack.c.l.b16 %v6581
    %v6714 = vunpack.c.l.b16 %v6582
    %v6715 = vunpack.c.l.b16 %v6583
    %v6716 = vunpack.c.l.b16 %v6584
    %v6717 = vunpack.c.l.b16 %v6585
    %v6718 = vunpack.c.l.b16 %v6586
    %v6719 = vunpack.c.l.b16 %v6587
    %v6720 = vunpack.c.l.b16 %v6588
    %v6721 = vunpack.c.l.b16 %v6589
    %v6722 = vunpack.c.l.b16 %v6590
    %v6723 = vunpack.c.l.b16 %v6591
    %v6724 = vunpack.c.l.b16 %v6592
    %v6725 = vunpack.c.l.b16 %v6593
    %v6726 = vunpack.c.l.b16 %v6594
    %v6727 = vunpack.c.l.b16 %v6595
    %v6728 = vunpack.c.l.b16 %v6596
    %v6729 = vunpack.c.l.b16 %v6597
    %v6730 = vunpack.c.l.b16 %v6598
    %v6731 = vunpack.c.l.b16 %v6599
    %v6732 = vunpack.c.l.b16 %v6600
    %v6733 = vunpack.c.l.b16 %v6601
    %v6734 = vunpack.c.l.b16 %v6602
    %v6735 = vunpack.c.l.b16 %v6603
    %v6736 = vunpack.c.l.b16 %v6604
    %v6737 = vunpack.c.l.b16 %v6605
    %v6738 = vunpack.c.l.b16 %v6606
    %v6739 = vunpack.c.l.b16 %v6607
    %v6740 = vunpack.c.l.b16 %v6608
    %v6741 = vunpack.c.l.b16 %v6609
    %v6742 = vunpack.c.l.b16 %v6610
    %v6743 = vunpack.c.l.b16 %v6611
    %v6744 = vunpack.c.l.b16 %v6612
    %v6745 = vunpack.c.l.b16 %v6613
    %v6746 = vunpack.c.l.b16 %v6614
    %v6747 = vunpack.c.l.b16 %v6615
    %v6748 = vunpack.c.l.b16 %v6616
    %v6749 = vunpack.c.l.b16 %v6617
    %v6750 = vunpack.c.l.b16 %v6618
    %v6751 = vunpack.c.l.b16 %v6619
    %v6752 = vunpack.c.l.b16 %v6620
    %v6753 = vunpack.c.l.b16 %v6621
    %v6754 = vunpack.c.l.b16 %v6622
    %v6755 = vunpack.c.l.b16 %v6623
    %v6756 = vunpack.c.l.b16 %v6624
    %v6757 = vunpack.c.l.b16 %v6625
    %v6758 = vunpack.c.l.b16 %v6626
    %v6759 = vunpack.c.l.b16 %v6627
    %v6760 = vunpack.c.l.b16 %v6628
    %v6761 = vunpack.c.l.b16 %v6629
    %v6762 = vunpack.c.l.b16 %v6630
    %v6763 = vunpack.c.l.b16 %v6631
    %v6764 = vunpack.c.l.b16 %v6632
    %v6765 = vunpack.c.l.b16 %v6633
    %v6766 = vunpack.c.l.b16 %v6634
    %v6767 = vunpack.c.l.b16 %v6635
    %v6768 = vunpack.c.l.b16 %v6636
    %v6769 = vunpack.c.l.b16 %v6637
    %v6770 = vunpack.c.l.b16 %v6638
    %v6771 = vunpack.c.l.b16 %v6639
    %v6772 = vunpack.c.l.b16 %v6640
    %v6773 = vunpack.c.l.b16 %v6641
    %v6774 = vunpack.c.l.b16 %v6642
    %v6775 = vpack.c.b16 %v6712, %v6711
    %v6776 = vpack.c.b16 %v6714, %v6713
    %v6777 = vpack.c.b16 %v6716, %v6715
    %v6778 = vpack.c.b16 %v6718, %v6717
    %v6779 = vpack.c.b16 %v6720, %v6719
    %v6780 = vpack.c.b16 %v6722, %v6721
    %v6781 = vpack.c.b16 %v6724, %v6723
    %v6782 = vpack.c.b16 %v6726, %v6725
    %v6783 = vpack.c.b16 %v6728, %v6727
    %v6784 = vpack.c.b16 %v6730, %v6729
    %v6785 = vpack.c.b16 %v6732, %v6731
    %v6786 = vpack.c.b16 %v6734, %v6733
    %v6787 = vpack.c.b16 %v6736, %v6735
    %v6788 = vpack.c.b16 %v6738, %v6737
    %v6789 = vpack.c.b16 %v6740, %v6739
    %v6790 = vpack.c.b16 %v6742, %v6741
    %v6791 = vpack.c.b16 %v6744, %v6743
    %v6792 = vpack.c.b16 %v6746, %v6745
    %v6793 = vpack.c.b16 %v6748, %v6747
    %v6794 = vpack.c.b16 %v6750, %v6749
    %v6795 = vpack.c.b16 %v6752, %v6751
    %v6796 = vpack.c.b16 %v6754, %v6753
    %v6797 = vpack.c.b16 %v6756, %v6755
    %v6798 = vpack.c.b16 %v6758, %v6757
    %v6799 = vpack.c.b16 %v6760, %v6759
    %v6800 = vpack.c.b16 %v6762, %v6761
    %v6801 = vpack.c.b16 %v6764, %v6763
    %v6802 = vpack.c.b16 %v6766, %v6765
    %v6803 = vpack.c.b16 %v6768, %v6767
    %v6804 = vpack.c.b16 %v6770, %v6769
    %v6805 = vpack.c.b16 %v6772, %v6771
    %v6806 = vpack.c.b16 %v6774, %v6773
    %6839 = vmatpush.bf16.msra.mxu0 %v6782
    %6840 = vmatpush.bf16.msra.mxu0 %v6781
    %6841 = vmatpush.bf16.msra.mxu0 %v6780
    %6842 = vmatpush.bf16.msra.mxu0 %v6779
    %6843 = vmatpush.bf16.msra.mxu0 %v6778
    %6844 = vmatpush.bf16.msra.mxu0 %v6777
    %6845 = vmatpush.bf16.msra.mxu0 %v6776
    %6846 = vmatpush.bf16.msra.mxu0 %v6775
    %6847 = vmatmul.bf16.gmra.mxu0 %v6575
    %v6848 = vpop.f32.mrf.mxu0
    %v6849 = vadd.f32 %v6645, %v6848
    %v6850 = vpop.f32.mrf.mxu0
    %6851 = vdwg.mxu0
    %6852 = vmatpush.bf16.msra.mxu0 %v6790
    %6853 = vmatpush.bf16.msra.mxu0 %v6789
    %6854 = vmatpush.bf16.msra.mxu0 %v6788
    %6855 = vmatpush.bf16.msra.mxu0 %v6787
    %6856 = vmatpush.bf16.msra.mxu0 %v6786
    %6857 = vmatpush.bf16.msra.mxu0 %v6785
    %6858 = vmatpush.bf16.msra.mxu0 %v6784
    %6859 = vmatpush.bf16.msra.mxu0 %v6783
    %6860 = vmatmul.bf16.gmra.mxu0 %v6576
    %v6861 = vpop.f32.mrf.mxu0
    %v6862 = vadd.f32 %v6849, %v6861
    %v6863 = vpop.f32.mrf.mxu0
    %6864 = vdwg.mxu0
    %6865 = vmatpush.bf16.msra.mxu0 %v6798
    %6866 = vmatpush.bf16.msra.mxu0 %v6797
    %6867 = vmatpush.bf16.msra.mxu0 %v6796
    %6868 = vmatpush.bf16.msra.mxu0 %v6795
    %6869 = vmatpush.bf16.msra.mxu0 %v6794
    %6870 = vmatpush.bf16.msra.mxu0 %v6793
    %6871 = vmatpush.bf16.msra.mxu0 %v6792
    %6872 = vmatpush.bf16.msra.mxu0 %v6791
    %6873 = vmatmul.bf16.gmra.mxu0 %v6577
    %v6874 = vpop.f32.mrf.mxu0
    %v6875 = vadd.f32 %v6862, %v6874
    %v6876 = vpop.f32.mrf.mxu0
    %6877 = vdwg.mxu0
    %6878 = vmatpush.bf16.msra.mxu0 %v6806
    %6879 = vmatpush.bf16.msra.mxu0 %v6805
    %6880 = vmatpush.bf16.msra.mxu0 %v6804
    %6881 = vmatpush.bf16.msra.mxu0 %v6803
    %6882 = vmatpush.bf16.msra.mxu0 %v6802
    %6883 = vmatpush.bf16.msra.mxu0 %v6801
    %6884 = vmatpush.bf16.msra.mxu0 %v6800
    %6885 = vmatpush.bf16.msra.mxu0 %v6799
    %6886 = vmatmul.bf16.gmra.mxu0 %v6578
    %v6887 = vpop.f32.mrf.mxu0
    %v6888 = vadd.f32 %v6875, %v6887
    %v6889 = vpop.f32.mrf.mxu0
    %6890 = vdwg.mxu0
    %6891 = vst [vmem:[%s11] sm:$0xff] %v6888
    // Predicated region
    $region70: #{_forward.1} parent=1 // pred_check
      _
    $region71: #{_forward.1} parent=1 // pred_check_branch
      %6893 = sbr.rel (0) target = $region73
    $region72: #{_forward.1} parent=1 // pred_region
      _
    $region73: #{_forward.1} parent=1 // pred_fallthru
      _
    // Predicated region
    $region74: #{_forward.1} parent=1 // pred_check
      _
    $region75: #{_forward.1} parent=1 // pred_check_branch
      %6895 = sbr.rel (0) target = $region77
    $region76: #{_forward.1} parent=1 // pred_region
      _
    $region77: #{_forward.1} parent=1 // pred_fallthru
      _
    %6896 = vsyncpa [#allocation3], 1
    %6897 = vsyncpa [#allocation5], 1
    %6898 = vsyncpa [#allocation8], 1
    %6899 = vsyncpa [#allocation11], 1

</llo_original>
